<compile_context>
chip_gen: v7x
topology: tpu7x:2x2x1
jax: 0.10.0
libtpu: 0.0.40
codegen_flags: <defaults>
</compile_context>

<pallas_src>
import functools

import jax
import jax.numpy as jnp
from jax import lax
from jax.experimental import pallas as pl
from jax.experimental.pallas import tpu as pltpu


# ----------------------------------------------------------------------------
# Fused Pallas kernel: one grid step == one batch element, full forward pass.
# ----------------------------------------------------------------------------

def _px_z_kernel(
    z_ref, mask_ref, rope_cs_ref, rope_r_ref,
    pre_w_ref, pre_b_ref, pre_ln_ref,
    dec_w_ref, dec_b_ref, dec_ln_ref,
    ff_w_ref, ff_b_ref,
    vis_w12_ref, vis_b12_ref, vis_ln12_ref, vis_w3_ref, vis_b3_ref, vis_ln3_ref,
    spc_w12_ref, spc_b12_ref, spc_ln12_ref, spc_w3_ref, spc_b3_ref, spc_ln3_ref,
    vis_out_ref, spc_out_ref,
    *, nlayers, nheads, eps,
):
    f32 = jnp.float32

    def linear(x, w, b, act=None):
        y = jnp.dot(x, w, preferred_element_type=f32) + b
        if act == "silu":
            y = y * jax.nn.sigmoid(y)
        return y

    def ln_last(x, g, b):            # LayerNorm over the feature dim
        mu = jnp.mean(x, axis=-1, keepdims=True)
        var = jnp.mean((x - mu) ** 2, axis=-1, keepdims=True)
        return (x - mu) * lax.rsqrt(var + eps) * g + b

    def ln_2d(x, g, b):              # LayerNorm over the last TWO dims (T, D)
        mu = jnp.mean(x)
        var = jnp.mean((x - mu) ** 2)
        return (x - mu) * lax.rsqrt(var + eps) * g + b

    z = z_ref[0].astype(f32)         # (T, L)
    mask_add = mask_ref[0]           # (1, T) additive key-padding mask (-1e9 pad)
    cos = rope_cs_ref[0]             # (T, D)
    sin = rope_cs_ref[1]             # (T, D)
    rot_m = rope_r_ref[...]          # (D, D) signed pair-swap: x@R == rotate_half(x)

    def rope(x):
        # interleaved RoPE: y = x*cos + rotate_half(x)*sin, rotate_half via MXU.
        return x * cos + jnp.dot(x, rot_m, preferred_element_type=f32) * sin

    # ---- emb(z) / ff_z(z) -> LayerNorm((T, D)) -> RoPE --------------------
    fx = linear(z, pre_w_ref[0], pre_b_ref[0:1, :], act="silu")
    fx = rope(ln_2d(fx, pre_ln_ref[0, 0], pre_ln_ref[0, 1]))

    zz = linear(z, pre_w_ref[1], pre_b_ref[1:2, :], act="silu")
    zz = rope(ln_2d(zz, pre_ln_ref[1, 0], pre_ln_ref[1, 1]))

    d = fx.shape[-1]
    dh = d // nheads
    scale = 1.0 / (dh ** 0.5)

    def mha(q_in, kv_in, layer, base):
        wq = dec_w_ref[layer, base + 0]
        wk = dec_w_ref[layer, base + 1]
        wv = dec_w_ref[layer, base + 2]
        wo = dec_w_ref[layer, base + 3]
        bq = dec_b_ref[layer, base + 0:base + 1, :]
        bk = dec_b_ref[layer, base + 1:base + 2, :]
        bv = dec_b_ref[layer, base + 2:base + 3, :]
        bo = dec_b_ref[layer, base + 3:base + 4, :]
        q = jnp.dot(q_in, wq, preferred_element_type=f32) + bq    # (T, D)
        k = jnp.dot(kv_in, wk, preferred_element_type=f32) + bk   # (S, D)
        v = jnp.dot(kv_in, wv, preferred_element_type=f32) + bv   # (S, D)
        out = bo                                                  # (1, D) broadcast
        for h in range(nheads):
            sl = slice(h * dh, (h + 1) * dh)
            s = lax.dot_general(q[:, sl], k[:, sl],
                                (((1,), (1,)), ((), ())),
                                preferred_element_type=f32) * scale
            s = s + mask_add
            s = s - jnp.max(s, axis=-1, keepdims=True)
            p = jnp.exp(s)
            p = p * pl.reciprocal(jnp.sum(p, axis=-1, keepdims=True), approx=True)
            oh = jnp.dot(p, v[:, sl], preferred_element_type=f32)        # (T, dh)
            # fold the head-concat into the output projection
            out = out + jnp.dot(oh, wo[sl, :], preferred_element_type=f32)
        return out

    x = fx
    for l in range(nlayers):
        ln1 = dec_ln_ref[l, 0]
        ln2 = dec_ln_ref[l, 1]
        ln3 = dec_ln_ref[l, 2]
        a = mha(x, x, l, 0)                                   # self-attention
        x = ln_last(x + a, ln1[0:1], ln1[1:2])
        a = mha(x, zz, l, 4)                                  # cross-attention
        x = ln_last(x + a, ln2[0:1], ln2[1:2])
        f = linear(x, dec_w_ref[l, 8], dec_b_ref[l, 8:9, :], act="silu")
        x = ln_last(x + f, ln3[0:1], ln3[1:2])

    # ---- ff -> split -> heads ---------------------------------------------
    y = linear(x, ff_w_ref[...], ff_b_ref[...], act="silu")   # (T, 2E)
    e = y.shape[-1] // 2
    x_vis = y[:, :e]
    x_spc = y[:, e:]

    def head(xh, w12_ref, b12_ref, ln12_ref, w3_ref, b3_ref, ln3_ref, out_ref):
        h = linear(xh, w12_ref[0], b12_ref[0:1, :], act="silu")
        h = ln_2d(h, ln12_ref[0, 0], ln12_ref[0, 1])
        h = linear(h, w12_ref[1], b12_ref[1:2, :], act="silu")
        h = ln_2d(h, ln12_ref[1, 0], ln12_ref[1, 1])
        h = linear(h, w3_ref[...], b3_ref[...])
        h = jnp.tanh(ln_2d(h, ln3_ref[0], ln3_ref[1]))        # LN((T, out)) + Tanh
        out_ref[0] = h.astype(out_ref.dtype)

    head(x_vis, vis_w12_ref, vis_b12_ref, vis_ln12_ref,
         vis_w3_ref, vis_b3_ref, vis_ln3_ref, vis_out_ref)
    head(x_spc, spc_w12_ref, spc_b12_ref, spc_ln12_ref,
         spc_w3_ref, spc_b3_ref, spc_ln3_ref, spc_out_ref)


# ----------------------------------------------------------------------------
# Host-side glue
# ----------------------------------------------------------------------------

def _rope_tables(t, d, offset=1, theta=10000.0):
    freqs = 1.0 / (theta ** (jnp.arange(0, d, 2, dtype=jnp.float32) / d))   # (D/2,)
    pos = jnp.arange(t, dtype=jnp.float32) + offset                          # (T,)
    ang = pos[:, None] * freqs[None, :]                                      # (T, D/2)
    ang = jnp.repeat(ang, 2, axis=-1)                                        # interleaved (T, D)
    cos, sin = jnp.cos(ang), jnp.sin(ang)
    # signed pair-swap matrix: (x @ R)[2i] = -x[2i+1], (x @ R)[2i+1] = x[2i]
    idx = jnp.arange(d)
    rows = jnp.where(idx % 2 == 0, idx + 1, idx - 1)
    sign = jnp.where(idx % 2 == 0, -1.0, 1.0).astype(jnp.float32)
    r = jnp.zeros((d, d), jnp.float32).at[rows, idx].set(sign)
    return jnp.stack([cos, sin], axis=0), r


def px_z_forward(params, cfg, z, mask_bool):
    b, t, _ = z.shape
    d = cfg["hidden_ndim"]
    assert d % cfg["nheads"] == 0

    rope_cs, rope_r = _rope_tables(t, d, offset=1)
    mask_add = jnp.where(mask_bool, -1e9, 0.0).astype(jnp.float32).reshape(b, 1, t)

    def full_spec(shape):
        nd = len(shape)
        return pl.BlockSpec(tuple(shape), lambda i, nd=nd: (0,) * nd)

    def batch_spec(shape):
        nd = len(shape)
        return pl.BlockSpec((1,) + tuple(shape[1:]),
                            lambda i, nd=nd: (i,) + (0,) * (nd - 1))

    inputs = (
        z, mask_add, rope_cs, rope_r,
        params["pre_w"], params["pre_b"], params["pre_ln"],
        params["dec_w"], params["dec_b"], params["dec_ln"],
        params["ff_w"], params["ff_b"],
        params["vis_w12"], params["vis_b12"], params["vis_ln12"],
        params["vis_w3"], params["vis_b3"], params["vis_ln3"],
        params["spc_w12"], params["spc_b12"], params["spc_ln12"],
        params["spc_w3"], params["spc_b3"], params["spc_ln3"],
    )
    in_specs = [batch_spec(z.shape), batch_spec(mask_add.shape)]
    in_specs += [full_spec(x.shape) for x in inputs[2:]]

    vis_flat, spc_flat = pl.pallas_call(
        functools.partial(_px_z_kernel, nlayers=cfg["nlayers"],
                          nheads=cfg["nheads"], eps=1e-5),
        out_shape=(jax.ShapeDtypeStruct((b, t, 17 * 2), jnp.float32),
                   jax.ShapeDtypeStruct((b, t, 2 * 2), jnp.float32)),
        grid=(b,),
        in_specs=in_specs,
        out_specs=(batch_spec((b, t, 17 * 2)), batch_spec((b, t, 2 * 2))),
        compiler_params=pltpu.CompilerParams(dimension_semantics=("parallel",)),
    )(*inputs)

    return vis_flat.reshape(b, t, 17, 2), spc_flat.reshape(b, t, 2, 2)


# ----------------------------------------------------------------------------
# Deterministic packed parameter init
# ----------------------------------------------------------------------------

def init_params(key, cfg):
    t, d = cfg["seq_len"], cfg["hidden_ndim"]
    l, e = cfg["latent_ndim"], cfg["emb_hidden_ndim"]
    nl = cfg["nlayers"]
    keys = iter(jax.random.split(key, 64))

    def w(shape, scale=0.05):
        return jax.random.normal(next(keys), shape, jnp.float32) * scale

    def ln_pair(shape):  # stacked (gamma, beta)
        return jnp.stack([jnp.ones(shape, jnp.float32),
                          jnp.zeros(shape, jnp.float32)], axis=0)

    return {
        # emb / ff_z : Linear(L,D)+SiLU then LayerNorm((T,D))
        "pre_w": w((2, l, d)),
        "pre_b": jnp.zeros((2, d), jnp.float32),
        "pre_ln": jnp.stack([ln_pair((t, d)), ln_pair((t, d))], axis=0),      # (2,2,T,D)
        # decoder stack: per layer 9 weight mats (self q,k,v,o | cross q,k,v,o | ff)
        "dec_w": w((nl, 9, d, d)),
        "dec_b": jnp.zeros((nl, 9, d), jnp.float32),
        "dec_ln": jnp.stack([jnp.stack([ln_pair((d,)) for _ in range(3)], axis=0)
                             for _ in range(nl)], axis=0),                    # (NL,3,2,D)
        # ff: Linear(D, 2E)+SiLU
        "ff_w": w((d, 2 * e)),
        "ff_b": jnp.zeros((1, 2 * e), jnp.float32),
        # lin_vis head
        "vis_w12": w((2, e, e)),
        "vis_b12": jnp.zeros((2, e), jnp.float32),
        "vis_ln12": jnp.stack([ln_pair((t, e)), ln_pair((t, e))], axis=0),
        "vis_w3": w((e, 17 * 2)),
        "vis_b3": jnp.zeros((1, 17 * 2), jnp.float32),
        "vis_ln3": ln_pair((t, 17 * 2)),
        # lin_spc head
        "spc_w12": w((2, e, e)),
        "spc_b12": jnp.zeros((2, e), jnp.float32),
        "spc_ln12": jnp.stack([ln_pair((t, e)), ln_pair((t, e))], axis=0),
        "spc_w3": w((e, 2 * 2)),
        "spc_b3": jnp.zeros((1, 2 * 2), jnp.float32),
        "spc_ln3": ln_pair((t, 2 * 2)),
    }


# ----------------------------------------------------------------------------
# main
# ----------------------------------------------------------------------------

if __name__ == "__main__":
    cfg = dict(seq_len=16, hidden_ndim=32, latent_ndim=16, emb_hidden_ndim=32,
               nheads=2, nlayers=2)
    B = 2

    key = jax.random.PRNGKey(0)
    k_param, k_z = jax.random.split(key)
    params = init_params(k_param, cfg)

    z = jax.random.normal(k_z, (B, cfg["seq_len"], cfg["latent_ndim"]), jnp.float32)
    # key-padding mask: True = padded position (last two steps of sample 1 padded)
    mask = jnp.zeros((B, cfg["seq_len"]), dtype=bool).at[1, -2:].set(True)

    fwd = jax.jit(lambda p, zz, mm: px_z_forward(p, cfg, zz, mm))
    vis, spc = fwd(params, z, mask)
    jax.block_until_ready((vis, spc))

    assert vis.shape == (B, cfg["seq_len"], 17, 2), vis.shape
    assert spc.shape == (B, cfg["seq_len"], 2, 2), spc.shape
    assert bool(jnp.all(jnp.isfinite(vis))) and bool(jnp.all(jnp.isfinite(spc)))
    print("KERNEL_OK")
</pallas_src>

<mosaic_0001>
module attributes {stable_mosaic.version = 11 : i64} {
  func.func @_px_z_kernel(%arg0: i32, %arg1: memref<1x16x16xf32, #tpu.memory_space<vmem>>, %arg2: memref<1x1x16xf32, #tpu.memory_space<vmem>>, %arg3: memref<2x16x32xf32, #tpu.memory_space<vmem>>, %arg4: memref<32x32xf32, #tpu.memory_space<vmem>>, %arg5: memref<2x16x32xf32, #tpu.memory_space<vmem>>, %arg6: memref<2x32xf32, #tpu.memory_space<vmem>>, %arg7: memref<2x2x16x32xf32, #tpu.memory_space<vmem>>, %arg8: memref<2x9x32x32xf32, #tpu.memory_space<vmem>>, %arg9: memref<2x9x32xf32, #tpu.memory_space<vmem>>, %arg10: memref<2x3x2x32xf32, #tpu.memory_space<vmem>>, %arg11: memref<32x64xf32, #tpu.memory_space<vmem>>, %arg12: memref<1x64xf32, #tpu.memory_space<vmem>>, %arg13: memref<2x32x32xf32, #tpu.memory_space<vmem>>, %arg14: memref<2x32xf32, #tpu.memory_space<vmem>>, %arg15: memref<2x2x16x32xf32, #tpu.memory_space<vmem>>, %arg16: memref<32x34xf32, #tpu.memory_space<vmem>>, %arg17: memref<1x34xf32, #tpu.memory_space<vmem>>, %arg18: memref<2x16x34xf32, #tpu.memory_space<vmem>>, %arg19: memref<2x32x32xf32, #tpu.memory_space<vmem>>, %arg20: memref<2x32xf32, #tpu.memory_space<vmem>>, %arg21: memref<2x2x16x32xf32, #tpu.memory_space<vmem>>, %arg22: memref<32x4xf32, #tpu.memory_space<vmem>>, %arg23: memref<1x4xf32, #tpu.memory_space<vmem>>, %arg24: memref<2x16x4xf32, #tpu.memory_space<vmem>>, %arg25: memref<1x16x34xf32, #tpu.memory_space<vmem>>, %arg26: memref<1x16x4xf32, #tpu.memory_space<vmem>>) attributes {dimension_semantics = [#tpu.dimension_semantics<parallel>], iteration_bounds = array<i64: 2>, scalar_prefetch = 0 : i64, scratch_operands = 0 : i64, tpu.core_type = #tpu.core_type<tc>, window_params = [{transform_indices = @transform_0, window_bounds = array<i64: 1, 16, 16>}, {transform_indices = @transform_1, window_bounds = array<i64: 1, 1, 16>}, {pipeline_mode = #tpu.pipeline_mode<synchronous>, transform_indices = @transform_2, window_bounds = array<i64: 2, 16, 32>}, {pipeline_mode = #tpu.pipeline_mode<synchronous>, transform_indices = @transform_3, window_bounds = array<i64: 32, 32>}, {pipeline_mode = #tpu.pipeline_mode<synchronous>, transform_indices = @transform_4, window_bounds = array<i64: 2, 16, 32>}, {pipeline_mode = #tpu.pipeline_mode<synchronous>, transform_indices = @transform_5, window_bounds = array<i64: 2, 32>}, {pipeline_mode = #tpu.pipeline_mode<synchronous>, transform_indices = @transform_6, window_bounds = array<i64: 2, 2, 16, 32>}, {pipeline_mode = #tpu.pipeline_mode<synchronous>, transform_indices = @transform_7, window_bounds = array<i64: 2, 9, 32, 32>}, {pipeline_mode = #tpu.pipeline_mode<synchronous>, transform_indices = @transform_8, window_bounds = array<i64: 2, 9, 32>}, {pipeline_mode = #tpu.pipeline_mode<synchronous>, transform_indices = @transform_9, window_bounds = array<i64: 2, 3, 2, 32>}, {pipeline_mode = #tpu.pipeline_mode<synchronous>, transform_indices = @transform_10, window_bounds = array<i64: 32, 64>}, {pipeline_mode = #tpu.pipeline_mode<synchronous>, transform_indices = @transform_11, window_bounds = array<i64: 1, 64>}, {pipeline_mode = #tpu.pipeline_mode<synchronous>, transform_indices = @transform_12, window_bounds = array<i64: 2, 32, 32>}, {pipeline_mode = #tpu.pipeline_mode<synchronous>, transform_indices = @transform_13, window_bounds = array<i64: 2, 32>}, {pipeline_mode = #tpu.pipeline_mode<synchronous>, transform_indices = @transform_14, window_bounds = array<i64: 2, 2, 16, 32>}, {pipeline_mode = #tpu.pipeline_mode<synchronous>, transform_indices = @transform_15, window_bounds = array<i64: 32, 34>}, {pipeline_mode = #tpu.pipeline_mode<synchronous>, transform_indices = @transform_16, window_bounds = array<i64: 1, 34>}, {pipeline_mode = #tpu.pipeline_mode<synchronous>, transform_indices = @transform_17, window_bounds = array<i64: 2, 16, 34>}, {pipeline_mode = #tpu.pipeline_mode<synchronous>, transform_indices = @transform_18, window_bounds = array<i64: 2, 32, 32>}, {pipeline_mode = #tpu.pipeline_mode<synchronous>, transform_indices = @transform_19, window_bounds = array<i64: 2, 32>}, {pipeline_mode = #tpu.pipeline_mode<synchronous>, transform_indices = @transform_20, window_bounds = array<i64: 2, 2, 16, 32>}, {pipeline_mode = #tpu.pipeline_mode<synchronous>, transform_indices = @transform_21, window_bounds = array<i64: 32, 4>}, {pipeline_mode = #tpu.pipeline_mode<synchronous>, transform_indices = @transform_22, window_bounds = array<i64: 1, 4>}, {pipeline_mode = #tpu.pipeline_mode<synchronous>, transform_indices = @transform_23, window_bounds = array<i64: 2, 16, 4>}, {transform_indices = @transform_24, window_bounds = array<i64: 1, 16, 34>}, {transform_indices = @transform_25, window_bounds = array<i64: 1, 16, 4>}]} {
    %c0 = arith.constant 0 : index
    %c0_0 = arith.constant 0 : index
    %c0_1 = arith.constant 0 : index
    %0 = vector.load %arg1[%c0, %c0_0, %c0_1] : memref<1x16x16xf32, #tpu.memory_space<vmem>>, vector<1x16x16xf32>
    %1 = vector.shape_cast %0 : vector<1x16x16xf32> to vector<16x16xf32>
    %c0_2 = arith.constant 0 : index
    %c0_3 = arith.constant 0 : index
    %c0_4 = arith.constant 0 : index
    %2 = vector.load %arg2[%c0_2, %c0_3, %c0_4] : memref<1x1x16xf32, #tpu.memory_space<vmem>>, vector<1x1x16xf32>
    %3 = vector.shape_cast %2 : vector<1x1x16xf32> to vector<1x16xf32>
    %c0_5 = arith.constant 0 : index
    %c0_6 = arith.constant 0 : index
    %c0_7 = arith.constant 0 : index
    %4 = vector.load %arg3[%c0_5, %c0_6, %c0_7] : memref<2x16x32xf32, #tpu.memory_space<vmem>>, vector<1x16x32xf32>
    %5 = vector.shape_cast %4 : vector<1x16x32xf32> to vector<16x32xf32>
    %c1 = arith.constant 1 : index
    %c0_8 = arith.constant 0 : index
    %c0_9 = arith.constant 0 : index
    %6 = vector.load %arg3[%c1, %c0_8, %c0_9] : memref<2x16x32xf32, #tpu.memory_space<vmem>>, vector<1x16x32xf32>
    %7 = vector.shape_cast %6 : vector<1x16x32xf32> to vector<16x32xf32>
    %c0_10 = arith.constant 0 : index
    %c0_11 = arith.constant 0 : index
    %8 = vector.load %arg4[%c0_10, %c0_11] : memref<32x32xf32, #tpu.memory_space<vmem>>, vector<32x32xf32>
    %c0_12 = arith.constant 0 : index
    %c0_13 = arith.constant 0 : index
    %c0_14 = arith.constant 0 : index
    %9 = vector.load %arg5[%c0_12, %c0_13, %c0_14] : memref<2x16x32xf32, #tpu.memory_space<vmem>>, vector<1x16x32xf32>
    %10 = vector.shape_cast %9 : vector<1x16x32xf32> to vector<16x32xf32>
    %c0_15 = arith.constant 0 : index
    %c0_16 = arith.constant 0 : index
    %11 = vector.load %arg6[%c0_15, %c0_16] : memref<2x32xf32, #tpu.memory_space<vmem>>, vector<1x32xf32>
    %cst = arith.constant dense<0.000000e+00> : vector<16x32xf32>
    %12 = tpu.matmul %1, %10, %cst {dimension_numbers = #tpu.dot_dimension_numbers<[1], [0], [0], [1], [0, 0, 1, 1], [], []>} : vector<16x16xf32>, vector<16x32xf32>, vector<16x32xf32> -> vector<16x32xf32>
    %13 = vector.broadcast %11 : vector<1x32xf32> to vector<16x32xf32>
    %14 = arith.addf %12, %13 : vector<16x32xf32>
    %15 = arith.negf %14 : vector<16x32xf32>
    %16 = math.exp %15 : vector<16x32xf32>
    %cst_17 = arith.constant 1.000000e+00 : f32
    %17 = vector.broadcast %cst_17 : f32 to vector<16x32xf32>
    %18 = arith.addf %17, %16 : vector<16x32xf32>
    %19 = arith.divf %17, %18 : vector<16x32xf32>
    %20 = arith.mulf %14, %19 : vector<16x32xf32>
    %c0_18 = arith.constant 0 : index
    %c0_19 = arith.constant 0 : index
    %c0_20 = arith.constant 0 : index
    %c0_21 = arith.constant 0 : index
    %21 = vector.load %arg7[%c0_18, %c0_19, %c0_20, %c0_21] : memref<2x2x16x32xf32, #tpu.memory_space<vmem>>, vector<1x1x16x32xf32>
    %22 = vector.shape_cast %21 : vector<1x1x16x32xf32> to vector<16x32xf32>
    %c0_22 = arith.constant 0 : index
    %c1_23 = arith.constant 1 : index
    %c0_24 = arith.constant 0 : index
    %c0_25 = arith.constant 0 : index
    %23 = vector.load %arg7[%c0_22, %c1_23, %c0_24, %c0_25] : memref<2x2x16x32xf32, #tpu.memory_space<vmem>>, vector<1x1x16x32xf32>
    %24 = vector.shape_cast %23 : vector<1x1x16x32xf32> to vector<16x32xf32>
    %25 = vector.shape_cast %20 : vector<16x32xf32> to vector<1x16x32xf32>
    %cst_26 = arith.constant dense<0.000000e+00> : vector<1xf32>
    %26 = vector.multi_reduction <add>, %25, %cst_26 [1, 2] : vector<1x16x32xf32> to vector<1xf32>
    %27 = vector.shape_cast %26 : vector<1xf32> to vector<1x1x1xf32>
    %28 = vector.extract %27[0, 0, 0] : f32 from vector<1x1x1xf32>
    %cst_27 = arith.constant 5.120000e+02 : f32
    %29 = arith.divf %28, %cst_27 : f32
    %30 = vector.broadcast %29 : f32 to vector<16x32xf32>
    %31 = arith.subf %20, %30 : vector<16x32xf32>
    %32 = arith.mulf %31, %31 : vector<16x32xf32>
    %33 = vector.shape_cast %32 : vector<16x32xf32> to vector<1x16x32xf32>
    %cst_28 = arith.constant dense<0.000000e+00> : vector<1xf32>
    %34 = vector.multi_reduction <add>, %33, %cst_28 [1, 2] : vector<1x16x32xf32> to vector<1xf32>
    %35 = vector.shape_cast %34 : vector<1xf32> to vector<1x1x1xf32>
    %36 = vector.extract %35[0, 0, 0] : f32 from vector<1x1x1xf32>
    %cst_29 = arith.constant 5.120000e+02 : f32
    %37 = arith.divf %36, %cst_29 : f32
    %38 = vector.broadcast %29 : f32 to vector<16x32xf32>
    %39 = arith.subf %20, %38 : vector<16x32xf32>
    %cst_30 = arith.constant 9.99999974E-6 : f32
    %40 = arith.addf %37, %cst_30 : f32
    %41 = math.rsqrt %40 : f32
    %42 = vector.broadcast %41 : f32 to vector<16x32xf32>
    %43 = arith.mulf %39, %42 : vector<16x32xf32>
    %44 = arith.mulf %43, %22 : vector<16x32xf32>
    %45 = arith.addf %44, %24 : vector<16x32xf32>
    %46 = arith.mulf %45, %5 : vector<16x32xf32>
    %cst_31 = arith.constant dense<0.000000e+00> : vector<16x32xf32>
    %47 = tpu.matmul %45, %8, %cst_31 {dimension_numbers = #tpu.dot_dimension_numbers<[1], [0], [0], [1], [0, 0, 1, 1], [], []>} : vector<16x32xf32>, vector<32x32xf32>, vector<16x32xf32> -> vector<16x32xf32>
    %48 = arith.mulf %47, %7 : vector<16x32xf32>
    %49 = arith.addf %46, %48 : vector<16x32xf32>
    %c1_32 = arith.constant 1 : index
    %c0_33 = arith.constant 0 : index
    %c0_34 = arith.constant 0 : index
    %50 = vector.load %arg5[%c1_32, %c0_33, %c0_34] : memref<2x16x32xf32, #tpu.memory_space<vmem>>, vector<1x16x32xf32>
    %51 = vector.shape_cast %50 : vector<1x16x32xf32> to vector<16x32xf32>
    %c1_35 = arith.constant 1 : index
    %c0_36 = arith.constant 0 : index
    %52 = vector.load %arg6[%c1_35, %c0_36] : memref<2x32xf32, #tpu.memory_space<vmem>>, vector<1x32xf32>
    %cst_37 = arith.constant dense<0.000000e+00> : vector<16x32xf32>
    %53 = tpu.matmul %1, %51, %cst_37 {dimension_numbers = #tpu.dot_dimension_numbers<[1], [0], [0], [1], [0, 0, 1, 1], [], []>} : vector<16x16xf32>, vector<16x32xf32>, vector<16x32xf32> -> vector<16x32xf32>
    %54 = vector.broadcast %52 : vector<1x32xf32> to vector<16x32xf32>
    %55 = arith.addf %53, %54 : vector<16x32xf32>
    %56 = arith.negf %55 : vector<16x32xf32>
    %57 = math.exp %56 : vector<16x32xf32>
    %cst_38 = arith.constant 1.000000e+00 : f32
    %58 = vector.broadcast %cst_38 : f32 to vector<16x32xf32>
    %59 = arith.addf %58, %57 : vector<16x32xf32>
    %60 = arith.divf %58, %59 : vector<16x32xf32>
    %61 = arith.mulf %55, %60 : vector<16x32xf32>
    %c1_39 = arith.constant 1 : index
    %c0_40 = arith.constant 0 : index
    %c0_41 = arith.constant 0 : index
    %c0_42 = arith.constant 0 : index
    %62 = vector.load %arg7[%c1_39, %c0_40, %c0_41, %c0_42] : memref<2x2x16x32xf32, #tpu.memory_space<vmem>>, vector<1x1x16x32xf32>
    %63 = vector.shape_cast %62 : vector<1x1x16x32xf32> to vector<16x32xf32>
    %c1_43 = arith.constant 1 : index
    %c1_44 = arith.constant 1 : index
    %c0_45 = arith.constant 0 : index
    %c0_46 = arith.constant 0 : index
    %64 = vector.load %arg7[%c1_43, %c1_44, %c0_45, %c0_46] : memref<2x2x16x32xf32, #tpu.memory_space<vmem>>, vector<1x1x16x32xf32>
    %65 = vector.shape_cast %64 : vector<1x1x16x32xf32> to vector<16x32xf32>
    %66 = vector.shape_cast %61 : vector<16x32xf32> to vector<1x16x32xf32>
    %cst_47 = arith.constant dense<0.000000e+00> : vector<1xf32>
    %67 = vector.multi_reduction <add>, %66, %cst_47 [1, 2] : vector<1x16x32xf32> to vector<1xf32>
    %68 = vector.shape_cast %67 : vector<1xf32> to vector<1x1x1xf32>
    %69 = vector.extract %68[0, 0, 0] : f32 from vector<1x1x1xf32>
    %cst_48 = arith.constant 5.120000e+02 : f32
    %70 = arith.divf %69, %cst_48 : f32
    %71 = vector.broadcast %70 : f32 to vector<16x32xf32>
    %72 = arith.subf %61, %71 : vector<16x32xf32>
    %73 = arith.mulf %72, %72 : vector<16x32xf32>
    %74 = vector.shape_cast %73 : vector<16x32xf32> to vector<1x16x32xf32>
    %cst_49 = arith.constant dense<0.000000e+00> : vector<1xf32>
    %75 = vector.multi_reduction <add>, %74, %cst_49 [1, 2] : vector<1x16x32xf32> to vector<1xf32>
    %76 = vector.shape_cast %75 : vector<1xf32> to vector<1x1x1xf32>
    %77 = vector.extract %76[0, 0, 0] : f32 from vector<1x1x1xf32>
    %cst_50 = arith.constant 5.120000e+02 : f32
    %78 = arith.divf %77, %cst_50 : f32
    %79 = vector.broadcast %70 : f32 to vector<16x32xf32>
    %80 = arith.subf %61, %79 : vector<16x32xf32>
    %cst_51 = arith.constant 9.99999974E-6 : f32
    %81 = arith.addf %78, %cst_51 : f32
    %82 = math.rsqrt %81 : f32
    %83 = vector.broadcast %82 : f32 to vector<16x32xf32>
    %84 = arith.mulf %80, %83 : vector<16x32xf32>
    %85 = arith.mulf %84, %63 : vector<16x32xf32>
    %86 = arith.addf %85, %65 : vector<16x32xf32>
    %87 = arith.mulf %86, %5 : vector<16x32xf32>
    %cst_52 = arith.constant dense<0.000000e+00> : vector<16x32xf32>
    %88 = tpu.matmul %86, %8, %cst_52 {dimension_numbers = #tpu.dot_dimension_numbers<[1], [0], [0], [1], [0, 0, 1, 1], [], []>} : vector<16x32xf32>, vector<32x32xf32>, vector<16x32xf32> -> vector<16x32xf32>
    %89 = arith.mulf %88, %7 : vector<16x32xf32>
    %90 = arith.addf %87, %89 : vector<16x32xf32>
    %c0_53 = arith.constant 0 : index
    %c0_54 = arith.constant 0 : index
    %c0_55 = arith.constant 0 : index
    %c0_56 = arith.constant 0 : index
    %91 = vector.load %arg10[%c0_53, %c0_54, %c0_55, %c0_56] : memref<2x3x2x32xf32, #tpu.memory_space<vmem>>, vector<1x1x2x32xf32>
    %92 = vector.shape_cast %91 : vector<1x1x2x32xf32> to vector<2x32xf32>
    %c0_57 = arith.constant 0 : index
    %c1_58 = arith.constant 1 : index
    %c0_59 = arith.constant 0 : index
    %c0_60 = arith.constant 0 : index
    %93 = vector.load %arg10[%c0_57, %c1_58, %c0_59, %c0_60] : memref<2x3x2x32xf32, #tpu.memory_space<vmem>>, vector<1x1x2x32xf32>
    %94 = vector.shape_cast %93 : vector<1x1x2x32xf32> to vector<2x32xf32>
    %c0_61 = arith.constant 0 : index
    %c2 = arith.constant 2 : index
    %c0_62 = arith.constant 0 : index
    %c0_63 = arith.constant 0 : index
    %95 = vector.load %arg10[%c0_61, %c2, %c0_62, %c0_63] : memref<2x3x2x32xf32, #tpu.memory_space<vmem>>, vector<1x1x2x32xf32>
    %96 = vector.shape_cast %95 : vector<1x1x2x32xf32> to vector<2x32xf32>
    %c0_64 = arith.constant 0 : index
    %c0_65 = arith.constant 0 : index
    %c0_66 = arith.constant 0 : index
    %c0_67 = arith.constant 0 : index
    %97 = vector.load %arg8[%c0_64, %c0_65, %c0_66, %c0_67] : memref<2x9x32x32xf32, #tpu.memory_space<vmem>>, vector<1x1x32x32xf32>
    %98 = vector.shape_cast %97 : vector<1x1x32x32xf32> to vector<32x32xf32>
    %c0_68 = arith.constant 0 : index
    %c1_69 = arith.constant 1 : index
    %c0_70 = arith.constant 0 : index
    %c0_71 = arith.constant 0 : index
    %99 = vector.load %arg8[%c0_68, %c1_69, %c0_70, %c0_71] : memref<2x9x32x32xf32, #tpu.memory_space<vmem>>, vector<1x1x32x32xf32>
    %100 = vector.shape_cast %99 : vector<1x1x32x32xf32> to vector<32x32xf32>
    %c0_72 = arith.constant 0 : index
    %c2_73 = arith.constant 2 : index
    %c0_74 = arith.constant 0 : index
    %c0_75 = arith.constant 0 : index
    %101 = vector.load %arg8[%c0_72, %c2_73, %c0_74, %c0_75] : memref<2x9x32x32xf32, #tpu.memory_space<vmem>>, vector<1x1x32x32xf32>
    %102 = vector.shape_cast %101 : vector<1x1x32x32xf32> to vector<32x32xf32>
    %c0_76 = arith.constant 0 : index
    %c3 = arith.constant 3 : index
    %c0_77 = arith.constant 0 : index
    %c0_78 = arith.constant 0 : index
    %103 = vector.load %arg8[%c0_76, %c3, %c0_77, %c0_78] : memref<2x9x32x32xf32, #tpu.memory_space<vmem>>, vector<1x1x32x32xf32>
    %104 = vector.shape_cast %103 : vector<1x1x32x32xf32> to vector<32x32xf32>
    %c0_79 = arith.constant 0 : index
    %c0_80 = arith.constant 0 : index
    %c0_81 = arith.constant 0 : index
    %105 = vector.load %arg9[%c0_79, %c0_80, %c0_81] : memref<2x9x32xf32, #tpu.memory_space<vmem>>, vector<1x1x32xf32>
    %106 = vector.shape_cast %105 : vector<1x1x32xf32> to vector<1x32xf32>
    %c0_82 = arith.constant 0 : index
    %c1_83 = arith.constant 1 : index
    %c0_84 = arith.constant 0 : index
    %107 = vector.load %arg9[%c0_82, %c1_83, %c0_84] : memref<2x9x32xf32, #tpu.memory_space<vmem>>, vector<1x1x32xf32>
    %108 = vector.shape_cast %107 : vector<1x1x32xf32> to vector<1x32xf32>
    %c0_85 = arith.constant 0 : index
    %c2_86 = arith.constant 2 : index
    %c0_87 = arith.constant 0 : index
    %109 = vector.load %arg9[%c0_85, %c2_86, %c0_87] : memref<2x9x32xf32, #tpu.memory_space<vmem>>, vector<1x1x32xf32>
    %110 = vector.shape_cast %109 : vector<1x1x32xf32> to vector<1x32xf32>
    %c0_88 = arith.constant 0 : index
    %c3_89 = arith.constant 3 : index
    %c0_90 = arith.constant 0 : index
    %111 = vector.load %arg9[%c0_88, %c3_89, %c0_90] : memref<2x9x32xf32, #tpu.memory_space<vmem>>, vector<1x1x32xf32>
    %112 = vector.shape_cast %111 : vector<1x1x32xf32> to vector<1x32xf32>
    %cst_91 = arith.constant dense<0.000000e+00> : vector<16x32xf32>
    %113 = tpu.matmul %49, %98, %cst_91 {dimension_numbers = #tpu.dot_dimension_numbers<[1], [0], [0], [1], [0, 0, 1, 1], [], []>} : vector<16x32xf32>, vector<32x32xf32>, vector<16x32xf32> -> vector<16x32xf32>
    %114 = vector.broadcast %106 : vector<1x32xf32> to vector<16x32xf32>
    %115 = arith.addf %113, %114 : vector<16x32xf32>
    %cst_92 = arith.constant dense<0.000000e+00> : vector<16x32xf32>
    %116 = tpu.matmul %49, %100, %cst_92 {dimension_numbers = #tpu.dot_dimension_numbers<[1], [0], [0], [1], [0, 0, 1, 1], [], []>} : vector<16x32xf32>, vector<32x32xf32>, vector<16x32xf32> -> vector<16x32xf32>
    %117 = vector.broadcast %108 : vector<1x32xf32> to vector<16x32xf32>
    %118 = arith.addf %116, %117 : vector<16x32xf32>
    %cst_93 = arith.constant dense<0.000000e+00> : vector<16x32xf32>
    %119 = tpu.matmul %49, %102, %cst_93 {dimension_numbers = #tpu.dot_dimension_numbers<[1], [0], [0], [1], [0, 0, 1, 1], [], []>} : vector<16x32xf32>, vector<32x32xf32>, vector<16x32xf32> -> vector<16x32xf32>
    %120 = vector.broadcast %110 : vector<1x32xf32> to vector<16x32xf32>
    %121 = arith.addf %119, %120 : vector<16x32xf32>
    %122 = vector.extract_strided_slice %115 {offsets = [0, 0], sizes = [16, 16], strides = [1, 1]} : vector<16x32xf32> to vector<16x16xf32>
    %123 = vector.extract_strided_slice %118 {offsets = [0, 0], sizes = [16, 16], strides = [1, 1]} : vector<16x32xf32> to vector<16x16xf32>
    %cst_94 = arith.constant dense<0.000000e+00> : vector<16x16xf32>
    %124 = tpu.matmul %122, %123, %cst_94 {dimension_numbers = #tpu.dot_dimension_numbers<[1], [1], [0], [0], [0, 0, 1, 0], [], []>} : vector<16x16xf32>, vector<16x16xf32>, vector<16x16xf32> -> vector<16x16xf32>
    %cst_95 = arith.constant 2.500000e-01 : f32
    %125 = vector.broadcast %cst_95 : f32 to vector<16x16xf32>
    %126 = arith.mulf %124, %125 : vector<16x16xf32>
    %127 = vector.broadcast %3 : vector<1x16xf32> to vector<16x16xf32>
    %128 = arith.addf %126, %127 : vector<16x16xf32>
    %cst_96 = arith.constant dense<0xFF800000> : vector<16xf32>
    %129 = vector.multi_reduction <maximumf>, %128, %cst_96 [1] : vector<16x16xf32> to vector<16xf32>
    %130 = vector.shape_cast %129 : vector<16xf32> to vector<16x1xf32>
    %131 = vector.broadcast %130 : vector<16x1xf32> to vector<16x16xf32>
    %132 = arith.subf %128, %131 : vector<16x16xf32>
    %133 = math.exp %132 : vector<16x16xf32>
    %cst_97 = arith.constant dense<0.000000e+00> : vector<16xf32>
    %134 = vector.multi_reduction <add>, %133, %cst_97 [1] : vector<16x16xf32> to vector<16xf32>
    %135 = vector.shape_cast %134 : vector<16xf32> to vector<16x1xf32>
    %136 = tpu.reciprocal %135 {approx = true} : vector<16x1xf32> -> vector<16x1xf32>
    %137 = vector.broadcast %136 : vector<16x1xf32> to vector<16x16xf32>
    %138 = arith.mulf %133, %137 : vector<16x16xf32>
    %139 = vector.extract_strided_slice %121 {offsets = [0, 0], sizes = [16, 16], strides = [1, 1]} : vector<16x32xf32> to vector<16x16xf32>
    %cst_98 = arith.constant dense<0.000000e+00> : vector<16x16xf32>
    %140 = tpu.matmul %138, %139, %cst_98 {dimension_numbers = #tpu.dot_dimension_numbers<[1], [0], [0], [1], [0, 0, 1, 1], [], []>} : vector<16x16xf32>, vector<16x16xf32>, vector<16x16xf32> -> vector<16x16xf32>
    %141 = vector.extract_strided_slice %104 {offsets = [0, 0], sizes = [16, 32], strides = [1, 1]} : vector<32x32xf32> to vector<16x32xf32>
    %cst_99 = arith.constant dense<0.000000e+00> : vector<16x32xf32>
    %142 = tpu.matmul %140, %141, %cst_99 {dimension_numbers = #tpu.dot_dimension_numbers<[1], [0], [0], [1], [0, 0, 1, 1], [], []>} : vector<16x16xf32>, vector<16x32xf32>, vector<16x32xf32> -> vector<16x32xf32>
    %143 = vector.broadcast %112 : vector<1x32xf32> to vector<16x32xf32>
    %144 = arith.addf %143, %142 : vector<16x32xf32>
    %145 = vector.extract_strided_slice %115 {offsets = [0, 16], sizes = [16, 16], strides = [1, 1]} : vector<16x32xf32> to vector<16x16xf32>
    %146 = vector.extract_strided_slice %118 {offsets = [0, 16], sizes = [16, 16], strides = [1, 1]} : vector<16x32xf32> to vector<16x16xf32>
    %cst_100 = arith.constant dense<0.000000e+00> : vector<16x16xf32>
    %147 = tpu.matmul %145, %146, %cst_100 {dimension_numbers = #tpu.dot_dimension_numbers<[1], [1], [0], [0], [0, 0, 1, 0], [], []>} : vector<16x16xf32>, vector<16x16xf32>, vector<16x16xf32> -> vector<16x16xf32>
    %cst_101 = arith.constant 2.500000e-01 : f32
    %148 = vector.broadcast %cst_101 : f32 to vector<16x16xf32>
    %149 = arith.mulf %147, %148 : vector<16x16xf32>
    %150 = vector.broadcast %3 : vector<1x16xf32> to vector<16x16xf32>
    %151 = arith.addf %149, %150 : vector<16x16xf32>
    %cst_102 = arith.constant dense<0xFF800000> : vector<16xf32>
    %152 = vector.multi_reduction <maximumf>, %151, %cst_102 [1] : vector<16x16xf32> to vector<16xf32>
    %153 = vector.shape_cast %152 : vector<16xf32> to vector<16x1xf32>
    %154 = vector.broadcast %153 : vector<16x1xf32> to vector<16x16xf32>
    %155 = arith.subf %151, %154 : vector<16x16xf32>
    %156 = math.exp %155 : vector<16x16xf32>
    %cst_103 = arith.constant dense<0.000000e+00> : vector<16xf32>
    %157 = vector.multi_reduction <add>, %156, %cst_103 [1] : vector<16x16xf32> to vector<16xf32>
    %158 = vector.shape_cast %157 : vector<16xf32> to vector<16x1xf32>
    %159 = tpu.reciprocal %158 {approx = true} : vector<16x1xf32> -> vector<16x1xf32>
    %160 = vector.broadcast %159 : vector<16x1xf32> to vector<16x16xf32>
    %161 = arith.mulf %156, %160 : vector<16x16xf32>
    %162 = vector.extract_strided_slice %121 {offsets = [0, 16], sizes = [16, 16], strides = [1, 1]} : vector<16x32xf32> to vector<16x16xf32>
    %cst_104 = arith.constant dense<0.000000e+00> : vector<16x16xf32>
    %163 = tpu.matmul %161, %162, %cst_104 {dimension_numbers = #tpu.dot_dimension_numbers<[1], [0], [0], [1], [0, 0, 1, 1], [], []>} : vector<16x16xf32>, vector<16x16xf32>, vector<16x16xf32> -> vector<16x16xf32>
    %164 = vector.extract_strided_slice %104 {offsets = [16, 0], sizes = [16, 32], strides = [1, 1]} : vector<32x32xf32> to vector<16x32xf32>
    %cst_105 = arith.constant dense<0.000000e+00> : vector<16x32xf32>
    %165 = tpu.matmul %163, %164, %cst_105 {dimension_numbers = #tpu.dot_dimension_numbers<[1], [0], [0], [1], [0, 0, 1, 1], [], []>} : vector<16x16xf32>, vector<16x32xf32>, vector<16x32xf32> -> vector<16x32xf32>
    %166 = arith.addf %144, %165 : vector<16x32xf32>
    %167 = arith.addf %49, %166 : vector<16x32xf32>
    %168 = vector.extract_strided_slice %92 {offsets = [0, 0], sizes = [1, 32], strides = [1, 1]} : vector<2x32xf32> to vector<1x32xf32>
    %169 = vector.extract_strided_slice %92 {offsets = [1, 0], sizes = [1, 32], strides = [1, 1]} : vector<2x32xf32> to vector<1x32xf32>
    %cst_106 = arith.constant dense<0.000000e+00> : vector<16xf32>
    %170 = vector.multi_reduction <add>, %167, %cst_106 [1] : vector<16x32xf32> to vector<16xf32>
    %171 = vector.shape_cast %170 : vector<16xf32> to vector<16x1xf32>
    %cst_107 = arith.constant 3.200000e+01 : f32
    %172 = vector.broadcast %cst_107 : f32 to vector<16x1xf32>
    %173 = arith.divf %171, %172 : vector<16x1xf32>
    %174 = vector.broadcast %173 : vector<16x1xf32> to vector<16x32xf32>
    %175 = arith.subf %167, %174 : vector<16x32xf32>
    %176 = arith.mulf %175, %175 : vector<16x32xf32>
    %cst_108 = arith.constant dense<0.000000e+00> : vector<16xf32>
    %177 = vector.multi_reduction <add>, %176, %cst_108 [1] : vector<16x32xf32> to vector<16xf32>
    %178 = vector.shape_cast %177 : vector<16xf32> to vector<16x1xf32>
    %cst_109 = arith.constant 3.200000e+01 : f32
    %179 = vector.broadcast %cst_109 : f32 to vector<16x1xf32>
    %180 = arith.divf %178, %179 : vector<16x1xf32>
    %181 = vector.broadcast %173 : vector<16x1xf32> to vector<16x32xf32>
    %182 = arith.subf %167, %181 : vector<16x32xf32>
    %cst_110 = arith.constant 9.99999974E-6 : f32
    %183 = vector.broadcast %cst_110 : f32 to vector<16x1xf32>
    %184 = arith.addf %180, %183 : vector<16x1xf32>
    %185 = math.rsqrt %184 : vector<16x1xf32>
    %186 = vector.broadcast %185 : vector<16x1xf32> to vector<16x32xf32>
    %187 = arith.mulf %182, %186 : vector<16x32xf32>
    %188 = vector.broadcast %168 : vector<1x32xf32> to vector<16x32xf32>
    %189 = arith.mulf %187, %188 : vector<16x32xf32>
    %190 = vector.broadcast %169 : vector<1x32xf32> to vector<16x32xf32>
    %191 = arith.addf %189, %190 : vector<16x32xf32>
    %c0_111 = arith.constant 0 : index
    %c4 = arith.constant 4 : index
    %c0_112 = arith.constant 0 : index
    %c0_113 = arith.constant 0 : index
    %192 = vector.load %arg8[%c0_111, %c4, %c0_112, %c0_113] : memref<2x9x32x32xf32, #tpu.memory_space<vmem>>, vector<1x1x32x32xf32>
    %193 = vector.shape_cast %192 : vector<1x1x32x32xf32> to vector<32x32xf32>
    %c0_114 = arith.constant 0 : index
    %c5 = arith.constant 5 : index
    %c0_115 = arith.constant 0 : index
    %c0_116 = arith.constant 0 : index
    %194 = vector.load %arg8[%c0_114, %c5, %c0_115, %c0_116] : memref<2x9x32x32xf32, #tpu.memory_space<vmem>>, vector<1x1x32x32xf32>
    %195 = vector.shape_cast %194 : vector<1x1x32x32xf32> to vector<32x32xf32>
    %c0_117 = arith.constant 0 : index
    %c6 = arith.constant 6 : index
    %c0_118 = arith.constant 0 : index
    %c0_119 = arith.constant 0 : index
    %196 = vector.load %arg8[%c0_117, %c6, %c0_118, %c0_119] : memref<2x9x32x32xf32, #tpu.memory_space<vmem>>, vector<1x1x32x32xf32>
    %197 = vector.shape_cast %196 : vector<1x1x32x32xf32> to vector<32x32xf32>
    %c0_120 = arith.constant 0 : index
    %c7 = arith.constant 7 : index
    %c0_121 = arith.constant 0 : index
    %c0_122 = arith.constant 0 : index
    %198 = vector.load %arg8[%c0_120, %c7, %c0_121, %c0_122] : memref<2x9x32x32xf32, #tpu.memory_space<vmem>>, vector<1x1x32x32xf32>
    %199 = vector.shape_cast %198 : vector<1x1x32x32xf32> to vector<32x32xf32>
    %c0_123 = arith.constant 0 : index
    %c4_124 = arith.constant 4 : index
    %c0_125 = arith.constant 0 : index
    %200 = vector.load %arg9[%c0_123, %c4_124, %c0_125] : memref<2x9x32xf32, #tpu.memory_space<vmem>>, vector<1x1x32xf32>
    %201 = vector.shape_cast %200 : vector<1x1x32xf32> to vector<1x32xf32>
    %c0_126 = arith.constant 0 : index
    %c5_127 = arith.constant 5 : index
    %c0_128 = arith.constant 0 : index
    %202 = vector.load %arg9[%c0_126, %c5_127, %c0_128] : memref<2x9x32xf32, #tpu.memory_space<vmem>>, vector<1x1x32xf32>
    %203 = vector.shape_cast %202 : vector<1x1x32xf32> to vector<1x32xf32>
    %c0_129 = arith.constant 0 : index
    %c6_130 = arith.constant 6 : index
    %c0_131 = arith.constant 0 : index
    %204 = vector.load %arg9[%c0_129, %c6_130, %c0_131] : memref<2x9x32xf32, #tpu.memory_space<vmem>>, vector<1x1x32xf32>
    %205 = vector.shape_cast %204 : vector<1x1x32xf32> to vector<1x32xf32>
    %c0_132 = arith.constant 0 : index
    %c7_133 = arith.constant 7 : index
    %c0_134 = arith.constant 0 : index
    %206 = vector.load %arg9[%c0_132, %c7_133, %c0_134] : memref<2x9x32xf32, #tpu.memory_space<vmem>>, vector<1x1x32xf32>
    %207 = vector.shape_cast %206 : vector<1x1x32xf32> to vector<1x32xf32>
    %cst_135 = arith.constant dense<0.000000e+00> : vector<16x32xf32>
    %208 = tpu.matmul %191, %193, %cst_135 {dimension_numbers = #tpu.dot_dimension_numbers<[1], [0], [0], [1], [0, 0, 1, 1], [], []>} : vector<16x32xf32>, vector<32x32xf32>, vector<16x32xf32> -> vector<16x32xf32>
    %209 = vector.broadcast %201 : vector<1x32xf32> to vector<16x32xf32>
    %210 = arith.addf %208, %209 : vector<16x32xf32>
    %cst_136 = arith.constant dense<0.000000e+00> : vector<16x32xf32>
    %211 = tpu.matmul %90, %195, %cst_136 {dimension_numbers = #tpu.dot_dimension_numbers<[1], [0], [0], [1], [0, 0, 1, 1], [], []>} : vector<16x32xf32>, vector<32x32xf32>, vector<16x32xf32> -> vector<16x32xf32>
    %212 = vector.broadcast %203 : vector<1x32xf32> to vector<16x32xf32>
    %213 = arith.addf %211, %212 : vector<16x32xf32>
    %cst_137 = arith.constant dense<0.000000e+00> : vector<16x32xf32>
    %214 = tpu.matmul %90, %197, %cst_137 {dimension_numbers = #tpu.dot_dimension_numbers<[1], [0], [0], [1], [0, 0, 1, 1], [], []>} : vector<16x32xf32>, vector<32x32xf32>, vector<16x32xf32> -> vector<16x32xf32>
    %215 = vector.broadcast %205 : vector<1x32xf32> to vector<16x32xf32>
    %216 = arith.addf %214, %215 : vector<16x32xf32>
    %217 = vector.extract_strided_slice %210 {offsets = [0, 0], sizes = [16, 16], strides = [1, 1]} : vector<16x32xf32> to vector<16x16xf32>
    %218 = vector.extract_strided_slice %213 {offsets = [0, 0], sizes = [16, 16], strides = [1, 1]} : vector<16x32xf32> to vector<16x16xf32>
    %cst_138 = arith.constant dense<0.000000e+00> : vector<16x16xf32>
    %219 = tpu.matmul %217, %218, %cst_138 {dimension_numbers = #tpu.dot_dimension_numbers<[1], [1], [0], [0], [0, 0, 1, 0], [], []>} : vector<16x16xf32>, vector<16x16xf32>, vector<16x16xf32> -> vector<16x16xf32>
    %cst_139 = arith.constant 2.500000e-01 : f32
    %220 = vector.broadcast %cst_139 : f32 to vector<16x16xf32>
    %221 = arith.mulf %219, %220 : vector<16x16xf32>
    %222 = vector.broadcast %3 : vector<1x16xf32> to vector<16x16xf32>
    %223 = arith.addf %221, %222 : vector<16x16xf32>
    %cst_140 = arith.constant dense<0xFF800000> : vector<16xf32>
    %224 = vector.multi_reduction <maximumf>, %223, %cst_140 [1] : vector<16x16xf32> to vector<16xf32>
    %225 = vector.shape_cast %224 : vector<16xf32> to vector<16x1xf32>
    %226 = vector.broadcast %225 : vector<16x1xf32> to vector<16x16xf32>
    %227 = arith.subf %223, %226 : vector<16x16xf32>
    %228 = math.exp %227 : vector<16x16xf32>
    %cst_141 = arith.constant dense<0.000000e+00> : vector<16xf32>
    %229 = vector.multi_reduction <add>, %228, %cst_141 [1] : vector<16x16xf32> to vector<16xf32>
    %230 = vector.shape_cast %229 : vector<16xf32> to vector<16x1xf32>
    %231 = tpu.reciprocal %230 {approx = true} : vector<16x1xf32> -> vector<16x1xf32>
    %232 = vector.broadcast %231 : vector<16x1xf32> to vector<16x16xf32>
    %233 = arith.mulf %228, %232 : vector<16x16xf32>
    %234 = vector.extract_strided_slice %216 {offsets = [0, 0], sizes = [16, 16], strides = [1, 1]} : vector<16x32xf32> to vector<16x16xf32>
    %cst_142 = arith.constant dense<0.000000e+00> : vector<16x16xf32>
    %235 = tpu.matmul %233, %234, %cst_142 {dimension_numbers = #tpu.dot_dimension_numbers<[1], [0], [0], [1], [0, 0, 1, 1], [], []>} : vector<16x16xf32>, vector<16x16xf32>, vector<16x16xf32> -> vector<16x16xf32>
    %236 = vector.extract_strided_slice %199 {offsets = [0, 0], sizes = [16, 32], strides = [1, 1]} : vector<32x32xf32> to vector<16x32xf32>
    %cst_143 = arith.constant dense<0.000000e+00> : vector<16x32xf32>
    %237 = tpu.matmul %235, %236, %cst_143 {dimension_numbers = #tpu.dot_dimension_numbers<[1], [0], [0], [1], [0, 0, 1, 1], [], []>} : vector<16x16xf32>, vector<16x32xf32>, vector<16x32xf32> -> vector<16x32xf32>
    %238 = vector.broadcast %207 : vector<1x32xf32> to vector<16x32xf32>
    %239 = arith.addf %238, %237 : vector<16x32xf32>
    %240 = vector.extract_strided_slice %210 {offsets = [0, 16], sizes = [16, 16], strides = [1, 1]} : vector<16x32xf32> to vector<16x16xf32>
    %241 = vector.extract_strided_slice %213 {offsets = [0, 16], sizes = [16, 16], strides = [1, 1]} : vector<16x32xf32> to vector<16x16xf32>
    %cst_144 = arith.constant dense<0.000000e+00> : vector<16x16xf32>
    %242 = tpu.matmul %240, %241, %cst_144 {dimension_numbers = #tpu.dot_dimension_numbers<[1], [1], [0], [0], [0, 0, 1, 0], [], []>} : vector<16x16xf32>, vector<16x16xf32>, vector<16x16xf32> -> vector<16x16xf32>
    %cst_145 = arith.constant 2.500000e-01 : f32
    %243 = vector.broadcast %cst_145 : f32 to vector<16x16xf32>
    %244 = arith.mulf %242, %243 : vector<16x16xf32>
    %245 = vector.broadcast %3 : vector<1x16xf32> to vector<16x16xf32>
    %246 = arith.addf %244, %245 : vector<16x16xf32>
    %cst_146 = arith.constant dense<0xFF800000> : vector<16xf32>
    %247 = vector.multi_reduction <maximumf>, %246, %cst_146 [1] : vector<16x16xf32> to vector<16xf32>
    %248 = vector.shape_cast %247 : vector<16xf32> to vector<16x1xf32>
    %249 = vector.broadcast %248 : vector<16x1xf32> to vector<16x16xf32>
    %250 = arith.subf %246, %249 : vector<16x16xf32>
    %251 = math.exp %250 : vector<16x16xf32>
    %cst_147 = arith.constant dense<0.000000e+00> : vector<16xf32>
    %252 = vector.multi_reduction <add>, %251, %cst_147 [1] : vector<16x16xf32> to vector<16xf32>
    %253 = vector.shape_cast %252 : vector<16xf32> to vector<16x1xf32>
    %254 = tpu.reciprocal %253 {approx = true} : vector<16x1xf32> -> vector<16x1xf32>
    %255 = vector.broadcast %254 : vector<16x1xf32> to vector<16x16xf32>
    %256 = arith.mulf %251, %255 : vector<16x16xf32>
    %257 = vector.extract_strided_slice %216 {offsets = [0, 16], sizes = [16, 16], strides = [1, 1]} : vector<16x32xf32> to vector<16x16xf32>
    %cst_148 = arith.constant dense<0.000000e+00> : vector<16x16xf32>
    %258 = tpu.matmul %256, %257, %cst_148 {dimension_numbers = #tpu.dot_dimension_numbers<[1], [0], [0], [1], [0, 0, 1, 1], [], []>} : vector<16x16xf32>, vector<16x16xf32>, vector<16x16xf32> -> vector<16x16xf32>
    %259 = vector.extract_strided_slice %199 {offsets = [16, 0], sizes = [16, 32], strides = [1, 1]} : vector<32x32xf32> to vector<16x32xf32>
    %cst_149 = arith.constant dense<0.000000e+00> : vector<16x32xf32>
    %260 = tpu.matmul %258, %259, %cst_149 {dimension_numbers = #tpu.dot_dimension_numbers<[1], [0], [0], [1], [0, 0, 1, 1], [], []>} : vector<16x16xf32>, vector<16x32xf32>, vector<16x32xf32> -> vector<16x32xf32>
    %261 = arith.addf %239, %260 : vector<16x32xf32>
    %262 = arith.addf %191, %261 : vector<16x32xf32>
    %263 = vector.extract_strided_slice %94 {offsets = [0, 0], sizes = [1, 32], strides = [1, 1]} : vector<2x32xf32> to vector<1x32xf32>
    %264 = vector.extract_strided_slice %94 {offsets = [1, 0], sizes = [1, 32], strides = [1, 1]} : vector<2x32xf32> to vector<1x32xf32>
    %cst_150 = arith.constant dense<0.000000e+00> : vector<16xf32>
    %265 = vector.multi_reduction <add>, %262, %cst_150 [1] : vector<16x32xf32> to vector<16xf32>
    %266 = vector.shape_cast %265 : vector<16xf32> to vector<16x1xf32>
    %cst_151 = arith.constant 3.200000e+01 : f32
    %267 = vector.broadcast %cst_151 : f32 to vector<16x1xf32>
    %268 = arith.divf %266, %267 : vector<16x1xf32>
    %269 = vector.broadcast %268 : vector<16x1xf32> to vector<16x32xf32>
    %270 = arith.subf %262, %269 : vector<16x32xf32>
    %271 = arith.mulf %270, %270 : vector<16x32xf32>
    %cst_152 = arith.constant dense<0.000000e+00> : vector<16xf32>
    %272 = vector.multi_reduction <add>, %271, %cst_152 [1] : vector<16x32xf32> to vector<16xf32>
    %273 = vector.shape_cast %272 : vector<16xf32> to vector<16x1xf32>
    %cst_153 = arith.constant 3.200000e+01 : f32
    %274 = vector.broadcast %cst_153 : f32 to vector<16x1xf32>
    %275 = arith.divf %273, %274 : vector<16x1xf32>
    %276 = vector.broadcast %268 : vector<16x1xf32> to vector<16x32xf32>
    %277 = arith.subf %262, %276 : vector<16x32xf32>
    %cst_154 = arith.constant 9.99999974E-6 : f32
    %278 = vector.broadcast %cst_154 : f32 to vector<16x1xf32>
    %279 = arith.addf %275, %278 : vector<16x1xf32>
    %280 = math.rsqrt %279 : vector<16x1xf32>
    %281 = vector.broadcast %280 : vector<16x1xf32> to vector<16x32xf32>
    %282 = arith.mulf %277, %281 : vector<16x32xf32>
    %283 = vector.broadcast %263 : vector<1x32xf32> to vector<16x32xf32>
    %284 = arith.mulf %282, %283 : vector<16x32xf32>
    %285 = vector.broadcast %264 : vector<1x32xf32> to vector<16x32xf32>
    %286 = arith.addf %284, %285 : vector<16x32xf32>
    %c0_155 = arith.constant 0 : index
    %c8 = arith.constant 8 : index
    %c0_156 = arith.constant 0 : index
    %c0_157 = arith.constant 0 : index
    %287 = vector.load %arg8[%c0_155, %c8, %c0_156, %c0_157] : memref<2x9x32x32xf32, #tpu.memory_space<vmem>>, vector<1x1x32x32xf32>
    %288 = vector.shape_cast %287 : vector<1x1x32x32xf32> to vector<32x32xf32>
    %c0_158 = arith.constant 0 : index
    %c8_159 = arith.constant 8 : index
    %c0_160 = arith.constant 0 : index
    %289 = vector.load %arg9[%c0_158, %c8_159, %c0_160] : memref<2x9x32xf32, #tpu.memory_space<vmem>>, vector<1x1x32xf32>
    %290 = vector.shape_cast %289 : vector<1x1x32xf32> to vector<1x32xf32>
    %cst_161 = arith.constant dense<0.000000e+00> : vector<16x32xf32>
    %291 = tpu.matmul %286, %288, %cst_161 {dimension_numbers = #tpu.dot_dimension_numbers<[1], [0], [0], [1], [0, 0, 1, 1], [], []>} : vector<16x32xf32>, vector<32x32xf32>, vector<16x32xf32> -> vector<16x32xf32>
    %292 = vector.broadcast %290 : vector<1x32xf32> to vector<16x32xf32>
    %293 = arith.addf %291, %292 : vector<16x32xf32>
    %294 = arith.negf %293 : vector<16x32xf32>
    %295 = math.exp %294 : vector<16x32xf32>
    %cst_162 = arith.constant 1.000000e+00 : f32
    %296 = vector.broadcast %cst_162 : f32 to vector<16x32xf32>
    %297 = arith.addf %296, %295 : vector<16x32xf32>
    %298 = arith.divf %296, %297 : vector<16x32xf32>
    %299 = arith.mulf %293, %298 : vector<16x32xf32>
    %300 = arith.addf %286, %299 : vector<16x32xf32>
    %301 = vector.extract_strided_slice %96 {offsets = [0, 0], sizes = [1, 32], strides = [1, 1]} : vector<2x32xf32> to vector<1x32xf32>
    %302 = vector.extract_strided_slice %96 {offsets = [1, 0], sizes = [1, 32], strides = [1, 1]} : vector<2x32xf32> to vector<1x32xf32>
    %cst_163 = arith.constant dense<0.000000e+00> : vector<16xf32>
    %303 = vector.multi_reduction <add>, %300, %cst_163 [1] : vector<16x32xf32> to vector<16xf32>
    %304 = vector.shape_cast %303 : vector<16xf32> to vector<16x1xf32>
    %cst_164 = arith.constant 3.200000e+01 : f32
    %305 = vector.broadcast %cst_164 : f32 to vector<16x1xf32>
    %306 = arith.divf %304, %305 : vector<16x1xf32>
    %307 = vector.broadcast %306 : vector<16x1xf32> to vector<16x32xf32>
    %308 = arith.subf %300, %307 : vector<16x32xf32>
    %309 = arith.mulf %308, %308 : vector<16x32xf32>
    %cst_165 = arith.constant dense<0.000000e+00> : vector<16xf32>
    %310 = vector.multi_reduction <add>, %309, %cst_165 [1] : vector<16x32xf32> to vector<16xf32>
    %311 = vector.shape_cast %310 : vector<16xf32> to vector<16x1xf32>
    %cst_166 = arith.constant 3.200000e+01 : f32
    %312 = vector.broadcast %cst_166 : f32 to vector<16x1xf32>
    %313 = arith.divf %311, %312 : vector<16x1xf32>
    %314 = vector.broadcast %306 : vector<16x1xf32> to vector<16x32xf32>
    %315 = arith.subf %300, %314 : vector<16x32xf32>
    %cst_167 = arith.constant 9.99999974E-6 : f32
    %316 = vector.broadcast %cst_167 : f32 to vector<16x1xf32>
    %317 = arith.addf %313, %316 : vector<16x1xf32>
    %318 = math.rsqrt %317 : vector<16x1xf32>
    %319 = vector.broadcast %318 : vector<16x1xf32> to vector<16x32xf32>
    %320 = arith.mulf %315, %319 : vector<16x32xf32>
    %321 = vector.broadcast %301 : vector<1x32xf32> to vector<16x32xf32>
    %322 = arith.mulf %320, %321 : vector<16x32xf32>
    %323 = vector.broadcast %302 : vector<1x32xf32> to vector<16x32xf32>
    %324 = arith.addf %322, %323 : vector<16x32xf32>
    %c1_168 = arith.constant 1 : index
    %c0_169 = arith.constant 0 : index
    %c0_170 = arith.constant 0 : index
    %c0_171 = arith.constant 0 : index
    %325 = vector.load %arg10[%c1_168, %c0_169, %c0_170, %c0_171] : memref<2x3x2x32xf32, #tpu.memory_space<vmem>>, vector<1x1x2x32xf32>
    %326 = vector.shape_cast %325 : vector<1x1x2x32xf32> to vector<2x32xf32>
    %c1_172 = arith.constant 1 : index
    %c1_173 = arith.constant 1 : index
    %c0_174 = arith.constant 0 : index
    %c0_175 = arith.constant 0 : index
    %327 = vector.load %arg10[%c1_172, %c1_173, %c0_174, %c0_175] : memref<2x3x2x32xf32, #tpu.memory_space<vmem>>, vector<1x1x2x32xf32>
    %328 = vector.shape_cast %327 : vector<1x1x2x32xf32> to vector<2x32xf32>
    %c1_176 = arith.constant 1 : index
    %c2_177 = arith.constant 2 : index
    %c0_178 = arith.constant 0 : index
    %c0_179 = arith.constant 0 : index
    %329 = vector.load %arg10[%c1_176, %c2_177, %c0_178, %c0_179] : memref<2x3x2x32xf32, #tpu.memory_space<vmem>>, vector<1x1x2x32xf32>
    %330 = vector.shape_cast %329 : vector<1x1x2x32xf32> to vector<2x32xf32>
    %c1_180 = arith.constant 1 : index
    %c0_181 = arith.constant 0 : index
    %c0_182 = arith.constant 0 : index
    %c0_183 = arith.constant 0 : index
    %331 = vector.load %arg8[%c1_180, %c0_181, %c0_182, %c0_183] : memref<2x9x32x32xf32, #tpu.memory_space<vmem>>, vector<1x1x32x32xf32>
    %332 = vector.shape_cast %331 : vector<1x1x32x32xf32> to vector<32x32xf32>
    %c1_184 = arith.constant 1 : index
    %c1_185 = arith.constant 1 : index
    %c0_186 = arith.constant 0 : index
    %c0_187 = arith.constant 0 : index
    %333 = vector.load %arg8[%c1_184, %c1_185, %c0_186, %c0_187] : memref<2x9x32x32xf32, #tpu.memory_space<vmem>>, vector<1x1x32x32xf32>
    %334 = vector.shape_cast %333 : vector<1x1x32x32xf32> to vector<32x32xf32>
    %c1_188 = arith.constant 1 : index
    %c2_189 = arith.constant 2 : index
    %c0_190 = arith.constant 0 : index
    %c0_191 = arith.constant 0 : index
    %335 = vector.load %arg8[%c1_188, %c2_189, %c0_190, %c0_191] : memref<2x9x32x32xf32, #tpu.memory_space<vmem>>, vector<1x1x32x32xf32>
    %336 = vector.shape_cast %335 : vector<1x1x32x32xf32> to vector<32x32xf32>
    %c1_192 = arith.constant 1 : index
    %c3_193 = arith.constant 3 : index
    %c0_194 = arith.constant 0 : index
    %c0_195 = arith.constant 0 : index
    %337 = vector.load %arg8[%c1_192, %c3_193, %c0_194, %c0_195] : memref<2x9x32x32xf32, #tpu.memory_space<vmem>>, vector<1x1x32x32xf32>
    %338 = vector.shape_cast %337 : vector<1x1x32x32xf32> to vector<32x32xf32>
    %c1_196 = arith.constant 1 : index
    %c0_197 = arith.constant 0 : index
    %c0_198 = arith.constant 0 : index
    %339 = vector.load %arg9[%c1_196, %c0_197, %c0_198] : memref<2x9x32xf32, #tpu.memory_space<vmem>>, vector<1x1x32xf32>
    %340 = vector.shape_cast %339 : vector<1x1x32xf32> to vector<1x32xf32>
    %c1_199 = arith.constant 1 : index
    %c1_200 = arith.constant 1 : index
    %c0_201 = arith.constant 0 : index
    %341 = vector.load %arg9[%c1_199, %c1_200, %c0_201] : memref<2x9x32xf32, #tpu.memory_space<vmem>>, vector<1x1x32xf32>
    %342 = vector.shape_cast %341 : vector<1x1x32xf32> to vector<1x32xf32>
    %c1_202 = arith.constant 1 : index
    %c2_203 = arith.constant 2 : index
    %c0_204 = arith.constant 0 : index
    %343 = vector.load %arg9[%c1_202, %c2_203, %c0_204] : memref<2x9x32xf32, #tpu.memory_space<vmem>>, vector<1x1x32xf32>
    %344 = vector.shape_cast %343 : vector<1x1x32xf32> to vector<1x32xf32>
    %c1_205 = arith.constant 1 : index
    %c3_206 = arith.constant 3 : index
    %c0_207 = arith.constant 0 : index
    %345 = vector.load %arg9[%c1_205, %c3_206, %c0_207] : memref<2x9x32xf32, #tpu.memory_space<vmem>>, vector<1x1x32xf32>
    %346 = vector.shape_cast %345 : vector<1x1x32xf32> to vector<1x32xf32>
    %cst_208 = arith.constant dense<0.000000e+00> : vector<16x32xf32>
    %347 = tpu.matmul %324, %332, %cst_208 {dimension_numbers = #tpu.dot_dimension_numbers<[1], [0], [0], [1], [0, 0, 1, 1], [], []>} : vector<16x32xf32>, vector<32x32xf32>, vector<16x32xf32> -> vector<16x32xf32>
    %348 = vector.broadcast %340 : vector<1x32xf32> to vector<16x32xf32>
    %349 = arith.addf %347, %348 : vector<16x32xf32>
    %cst_209 = arith.constant dense<0.000000e+00> : vector<16x32xf32>
    %350 = tpu.matmul %324, %334, %cst_209 {dimension_numbers = #tpu.dot_dimension_numbers<[1], [0], [0], [1], [0, 0, 1, 1], [], []>} : vector<16x32xf32>, vector<32x32xf32>, vector<16x32xf32> -> vector<16x32xf32>
    %351 = vector.broadcast %342 : vector<1x32xf32> to vector<16x32xf32>
    %352 = arith.addf %350, %351 : vector<16x32xf32>
    %cst_210 = arith.constant dense<0.000000e+00> : vector<16x32xf32>
    %353 = tpu.matmul %324, %336, %cst_210 {dimension_numbers = #tpu.dot_dimension_numbers<[1], [0], [0], [1], [0, 0, 1, 1], [], []>} : vector<16x32xf32>, vector<32x32xf32>, vector<16x32xf32> -> vector<16x32xf32>
    %354 = vector.broadcast %344 : vector<1x32xf32> to vector<16x32xf32>
    %355 = arith.addf %353, %354 : vector<16x32xf32>
    %356 = vector.extract_strided_slice %349 {offsets = [0, 0], sizes = [16, 16], strides = [1, 1]} : vector<16x32xf32> to vector<16x16xf32>
    %357 = vector.extract_strided_slice %352 {offsets = [0, 0], sizes = [16, 16], strides = [1, 1]} : vector<16x32xf32> to vector<16x16xf32>
    %cst_211 = arith.constant dense<0.000000e+00> : vector<16x16xf32>
    %358 = tpu.matmul %356, %357, %cst_211 {dimension_numbers = #tpu.dot_dimension_numbers<[1], [1], [0], [0], [0, 0, 1, 0], [], []>} : vector<16x16xf32>, vector<16x16xf32>, vector<16x16xf32> -> vector<16x16xf32>
    %cst_212 = arith.constant 2.500000e-01 : f32
    %359 = vector.broadcast %cst_212 : f32 to vector<16x16xf32>
    %360 = arith.mulf %358, %359 : vector<16x16xf32>
    %361 = vector.broadcast %3 : vector<1x16xf32> to vector<16x16xf32>
    %362 = arith.addf %360, %361 : vector<16x16xf32>
    %cst_213 = arith.constant dense<0xFF800000> : vector<16xf32>
    %363 = vector.multi_reduction <maximumf>, %362, %cst_213 [1] : vector<16x16xf32> to vector<16xf32>
    %364 = vector.shape_cast %363 : vector<16xf32> to vector<16x1xf32>
    %365 = vector.broadcast %364 : vector<16x1xf32> to vector<16x16xf32>
    %366 = arith.subf %362, %365 : vector<16x16xf32>
    %367 = math.exp %366 : vector<16x16xf32>
    %cst_214 = arith.constant dense<0.000000e+00> : vector<16xf32>
    %368 = vector.multi_reduction <add>, %367, %cst_214 [1] : vector<16x16xf32> to vector<16xf32>
    %369 = vector.shape_cast %368 : vector<16xf32> to vector<16x1xf32>
    %370 = tpu.reciprocal %369 {approx = true} : vector<16x1xf32> -> vector<16x1xf32>
    %371 = vector.broadcast %370 : vector<16x1xf32> to vector<16x16xf32>
    %372 = arith.mulf %367, %371 : vector<16x16xf32>
    %373 = vector.extract_strided_slice %355 {offsets = [0, 0], sizes = [16, 16], strides = [1, 1]} : vector<16x32xf32> to vector<16x16xf32>
    %cst_215 = arith.constant dense<0.000000e+00> : vector<16x16xf32>
    %374 = tpu.matmul %372, %373, %cst_215 {dimension_numbers = #tpu.dot_dimension_numbers<[1], [0], [0], [1], [0, 0, 1, 1], [], []>} : vector<16x16xf32>, vector<16x16xf32>, vector<16x16xf32> -> vector<16x16xf32>
    %375 = vector.extract_strided_slice %338 {offsets = [0, 0], sizes = [16, 32], strides = [1, 1]} : vector<32x32xf32> to vector<16x32xf32>
    %cst_216 = arith.constant dense<0.000000e+00> : vector<16x32xf32>
    %376 = tpu.matmul %374, %375, %cst_216 {dimension_numbers = #tpu.dot_dimension_numbers<[1], [0], [0], [1], [0, 0, 1, 1], [], []>} : vector<16x16xf32>, vector<16x32xf32>, vector<16x32xf32> -> vector<16x32xf32>
    %377 = vector.broadcast %346 : vector<1x32xf32> to vector<16x32xf32>
    %378 = arith.addf %377, %376 : vector<16x32xf32>
    %379 = vector.extract_strided_slice %349 {offsets = [0, 16], sizes = [16, 16], strides = [1, 1]} : vector<16x32xf32> to vector<16x16xf32>
    %380 = vector.extract_strided_slice %352 {offsets = [0, 16], sizes = [16, 16], strides = [1, 1]} : vector<16x32xf32> to vector<16x16xf32>
    %cst_217 = arith.constant dense<0.000000e+00> : vector<16x16xf32>
    %381 = tpu.matmul %379, %380, %cst_217 {dimension_numbers = #tpu.dot_dimension_numbers<[1], [1], [0], [0], [0, 0, 1, 0], [], []>} : vector<16x16xf32>, vector<16x16xf32>, vector<16x16xf32> -> vector<16x16xf32>
    %cst_218 = arith.constant 2.500000e-01 : f32
    %382 = vector.broadcast %cst_218 : f32 to vector<16x16xf32>
    %383 = arith.mulf %381, %382 : vector<16x16xf32>
    %384 = vector.broadcast %3 : vector<1x16xf32> to vector<16x16xf32>
    %385 = arith.addf %383, %384 : vector<16x16xf32>
    %cst_219 = arith.constant dense<0xFF800000> : vector<16xf32>
    %386 = vector.multi_reduction <maximumf>, %385, %cst_219 [1] : vector<16x16xf32> to vector<16xf32>
    %387 = vector.shape_cast %386 : vector<16xf32> to vector<16x1xf32>
    %388 = vector.broadcast %387 : vector<16x1xf32> to vector<16x16xf32>
    %389 = arith.subf %385, %388 : vector<16x16xf32>
    %390 = math.exp %389 : vector<16x16xf32>
    %cst_220 = arith.constant dense<0.000000e+00> : vector<16xf32>
    %391 = vector.multi_reduction <add>, %390, %cst_220 [1] : vector<16x16xf32> to vector<16xf32>
    %392 = vector.shape_cast %391 : vector<16xf32> to vector<16x1xf32>
    %393 = tpu.reciprocal %392 {approx = true} : vector<16x1xf32> -> vector<16x1xf32>
    %394 = vector.broadcast %393 : vector<16x1xf32> to vector<16x16xf32>
    %395 = arith.mulf %390, %394 : vector<16x16xf32>
    %396 = vector.extract_strided_slice %355 {offsets = [0, 16], sizes = [16, 16], strides = [1, 1]} : vector<16x32xf32> to vector<16x16xf32>
    %cst_221 = arith.constant dense<0.000000e+00> : vector<16x16xf32>
    %397 = tpu.matmul %395, %396, %cst_221 {dimension_numbers = #tpu.dot_dimension_numbers<[1], [0], [0], [1], [0, 0, 1, 1], [], []>} : vector<16x16xf32>, vector<16x16xf32>, vector<16x16xf32> -> vector<16x16xf32>
    %398 = vector.extract_strided_slice %338 {offsets = [16, 0], sizes = [16, 32], strides = [1, 1]} : vector<32x32xf32> to vector<16x32xf32>
    %cst_222 = arith.constant dense<0.000000e+00> : vector<16x32xf32>
    %399 = tpu.matmul %397, %398, %cst_222 {dimension_numbers = #tpu.dot_dimension_numbers<[1], [0], [0], [1], [0, 0, 1, 1], [], []>} : vector<16x16xf32>, vector<16x32xf32>, vector<16x32xf32> -> vector<16x32xf32>
    %400 = arith.addf %378, %399 : vector<16x32xf32>
    %401 = arith.addf %324, %400 : vector<16x32xf32>
    %402 = vector.extract_strided_slice %326 {offsets = [0, 0], sizes = [1, 32], strides = [1, 1]} : vector<2x32xf32> to vector<1x32xf32>
    %403 = vector.extract_strided_slice %326 {offsets = [1, 0], sizes = [1, 32], strides = [1, 1]} : vector<2x32xf32> to vector<1x32xf32>
    %cst_223 = arith.constant dense<0.000000e+00> : vector<16xf32>
    %404 = vector.multi_reduction <add>, %401, %cst_223 [1] : vector<16x32xf32> to vector<16xf32>
    %405 = vector.shape_cast %404 : vector<16xf32> to vector<16x1xf32>
    %cst_224 = arith.constant 3.200000e+01 : f32
    %406 = vector.broadcast %cst_224 : f32 to vector<16x1xf32>
    %407 = arith.divf %405, %406 : vector<16x1xf32>
    %408 = vector.broadcast %407 : vector<16x1xf32> to vector<16x32xf32>
    %409 = arith.subf %401, %408 : vector<16x32xf32>
    %410 = arith.mulf %409, %409 : vector<16x32xf32>
    %cst_225 = arith.constant dense<0.000000e+00> : vector<16xf32>
    %411 = vector.multi_reduction <add>, %410, %cst_225 [1] : vector<16x32xf32> to vector<16xf32>
    %412 = vector.shape_cast %411 : vector<16xf32> to vector<16x1xf32>
    %cst_226 = arith.constant 3.200000e+01 : f32
    %413 = vector.broadcast %cst_226 : f32 to vector<16x1xf32>
    %414 = arith.divf %412, %413 : vector<16x1xf32>
    %415 = vector.broadcast %407 : vector<16x1xf32> to vector<16x32xf32>
    %416 = arith.subf %401, %415 : vector<16x32xf32>
    %cst_227 = arith.constant 9.99999974E-6 : f32
    %417 = vector.broadcast %cst_227 : f32 to vector<16x1xf32>
    %418 = arith.addf %414, %417 : vector<16x1xf32>
    %419 = math.rsqrt %418 : vector<16x1xf32>
    %420 = vector.broadcast %419 : vector<16x1xf32> to vector<16x32xf32>
    %421 = arith.mulf %416, %420 : vector<16x32xf32>
    %422 = vector.broadcast %402 : vector<1x32xf32> to vector<16x32xf32>
    %423 = arith.mulf %421, %422 : vector<16x32xf32>
    %424 = vector.broadcast %403 : vector<1x32xf32> to vector<16x32xf32>
    %425 = arith.addf %423, %424 : vector<16x32xf32>
    %c1_228 = arith.constant 1 : index
    %c4_229 = arith.constant 4 : index
    %c0_230 = arith.constant 0 : index
    %c0_231 = arith.constant 0 : index
    %426 = vector.load %arg8[%c1_228, %c4_229, %c0_230, %c0_231] : memref<2x9x32x32xf32, #tpu.memory_space<vmem>>, vector<1x1x32x32xf32>
    %427 = vector.shape_cast %426 : vector<1x1x32x32xf32> to vector<32x32xf32>
    %c1_232 = arith.constant 1 : index
    %c5_233 = arith.constant 5 : index
    %c0_234 = arith.constant 0 : index
    %c0_235 = arith.constant 0 : index
    %428 = vector.load %arg8[%c1_232, %c5_233, %c0_234, %c0_235] : memref<2x9x32x32xf32, #tpu.memory_space<vmem>>, vector<1x1x32x32xf32>
    %429 = vector.shape_cast %428 : vector<1x1x32x32xf32> to vector<32x32xf32>
    %c1_236 = arith.constant 1 : index
    %c6_237 = arith.constant 6 : index
    %c0_238 = arith.constant 0 : index
    %c0_239 = arith.constant 0 : index
    %430 = vector.load %arg8[%c1_236, %c6_237, %c0_238, %c0_239] : memref<2x9x32x32xf32, #tpu.memory_space<vmem>>, vector<1x1x32x32xf32>
    %431 = vector.shape_cast %430 : vector<1x1x32x32xf32> to vector<32x32xf32>
    %c1_240 = arith.constant 1 : index
    %c7_241 = arith.constant 7 : index
    %c0_242 = arith.constant 0 : index
    %c0_243 = arith.constant 0 : index
    %432 = vector.load %arg8[%c1_240, %c7_241, %c0_242, %c0_243] : memref<2x9x32x32xf32, #tpu.memory_space<vmem>>, vector<1x1x32x32xf32>
    %433 = vector.shape_cast %432 : vector<1x1x32x32xf32> to vector<32x32xf32>
    %c1_244 = arith.constant 1 : index
    %c4_245 = arith.constant 4 : index
    %c0_246 = arith.constant 0 : index
    %434 = vector.load %arg9[%c1_244, %c4_245, %c0_246] : memref<2x9x32xf32, #tpu.memory_space<vmem>>, vector<1x1x32xf32>
    %435 = vector.shape_cast %434 : vector<1x1x32xf32> to vector<1x32xf32>
    %c1_247 = arith.constant 1 : index
    %c5_248 = arith.constant 5 : index
    %c0_249 = arith.constant 0 : index
    %436 = vector.load %arg9[%c1_247, %c5_248, %c0_249] : memref<2x9x32xf32, #tpu.memory_space<vmem>>, vector<1x1x32xf32>
    %437 = vector.shape_cast %436 : vector<1x1x32xf32> to vector<1x32xf32>
    %c1_250 = arith.constant 1 : index
    %c6_251 = arith.constant 6 : index
    %c0_252 = arith.constant 0 : index
    %438 = vector.load %arg9[%c1_250, %c6_251, %c0_252] : memref<2x9x32xf32, #tpu.memory_space<vmem>>, vector<1x1x32xf32>
    %439 = vector.shape_cast %438 : vector<1x1x32xf32> to vector<1x32xf32>
    %c1_253 = arith.constant 1 : index
    %c7_254 = arith.constant 7 : index
    %c0_255 = arith.constant 0 : index
    %440 = vector.load %arg9[%c1_253, %c7_254, %c0_255] : memref<2x9x32xf32, #tpu.memory_space<vmem>>, vector<1x1x32xf32>
    %441 = vector.shape_cast %440 : vector<1x1x32xf32> to vector<1x32xf32>
    %cst_256 = arith.constant dense<0.000000e+00> : vector<16x32xf32>
    %442 = tpu.matmul %425, %427, %cst_256 {dimension_numbers = #tpu.dot_dimension_numbers<[1], [0], [0], [1], [0, 0, 1, 1], [], []>} : vector<16x32xf32>, vector<32x32xf32>, vector<16x32xf32> -> vector<16x32xf32>
    %443 = vector.broadcast %435 : vector<1x32xf32> to vector<16x32xf32>
    %444 = arith.addf %442, %443 : vector<16x32xf32>
    %cst_257 = arith.constant dense<0.000000e+00> : vector<16x32xf32>
    %445 = tpu.matmul %90, %429, %cst_257 {dimension_numbers = #tpu.dot_dimension_numbers<[1], [0], [0], [1], [0, 0, 1, 1], [], []>} : vector<16x32xf32>, vector<32x32xf32>, vector<16x32xf32> -> vector<16x32xf32>
    %446 = vector.broadcast %437 : vector<1x32xf32> to vector<16x32xf32>
    %447 = arith.addf %445, %446 : vector<16x32xf32>
    %cst_258 = arith.constant dense<0.000000e+00> : vector<16x32xf32>
    %448 = tpu.matmul %90, %431, %cst_258 {dimension_numbers = #tpu.dot_dimension_numbers<[1], [0], [0], [1], [0, 0, 1, 1], [], []>} : vector<16x32xf32>, vector<32x32xf32>, vector<16x32xf32> -> vector<16x32xf32>
    %449 = vector.broadcast %439 : vector<1x32xf32> to vector<16x32xf32>
    %450 = arith.addf %448, %449 : vector<16x32xf32>
    %451 = vector.extract_strided_slice %444 {offsets = [0, 0], sizes = [16, 16], strides = [1, 1]} : vector<16x32xf32> to vector<16x16xf32>
    %452 = vector.extract_strided_slice %447 {offsets = [0, 0], sizes = [16, 16], strides = [1, 1]} : vector<16x32xf32> to vector<16x16xf32>
    %cst_259 = arith.constant dense<0.000000e+00> : vector<16x16xf32>
    %453 = tpu.matmul %451, %452, %cst_259 {dimension_numbers = #tpu.dot_dimension_numbers<[1], [1], [0], [0], [0, 0, 1, 0], [], []>} : vector<16x16xf32>, vector<16x16xf32>, vector<16x16xf32> -> vector<16x16xf32>
    %cst_260 = arith.constant 2.500000e-01 : f32
    %454 = vector.broadcast %cst_260 : f32 to vector<16x16xf32>
    %455 = arith.mulf %453, %454 : vector<16x16xf32>
    %456 = vector.broadcast %3 : vector<1x16xf32> to vector<16x16xf32>
    %457 = arith.addf %455, %456 : vector<16x16xf32>
    %cst_261 = arith.constant dense<0xFF800000> : vector<16xf32>
    %458 = vector.multi_reduction <maximumf>, %457, %cst_261 [1] : vector<16x16xf32> to vector<16xf32>
    %459 = vector.shape_cast %458 : vector<16xf32> to vector<16x1xf32>
    %460 = vector.broadcast %459 : vector<16x1xf32> to vector<16x16xf32>
    %461 = arith.subf %457, %460 : vector<16x16xf32>
    %462 = math.exp %461 : vector<16x16xf32>
    %cst_262 = arith.constant dense<0.000000e+00> : vector<16xf32>
    %463 = vector.multi_reduction <add>, %462, %cst_262 [1] : vector<16x16xf32> to vector<16xf32>
    %464 = vector.shape_cast %463 : vector<16xf32> to vector<16x1xf32>
    %465 = tpu.reciprocal %464 {approx = true} : vector<16x1xf32> -> vector<16x1xf32>
    %466 = vector.broadcast %465 : vector<16x1xf32> to vector<16x16xf32>
    %467 = arith.mulf %462, %466 : vector<16x16xf32>
    %468 = vector.extract_strided_slice %450 {offsets = [0, 0], sizes = [16, 16], strides = [1, 1]} : vector<16x32xf32> to vector<16x16xf32>
    %cst_263 = arith.constant dense<0.000000e+00> : vector<16x16xf32>
    %469 = tpu.matmul %467, %468, %cst_263 {dimension_numbers = #tpu.dot_dimension_numbers<[1], [0], [0], [1], [0, 0, 1, 1], [], []>} : vector<16x16xf32>, vector<16x16xf32>, vector<16x16xf32> -> vector<16x16xf32>
    %470 = vector.extract_strided_slice %433 {offsets = [0, 0], sizes = [16, 32], strides = [1, 1]} : vector<32x32xf32> to vector<16x32xf32>
    %cst_264 = arith.constant dense<0.000000e+00> : vector<16x32xf32>
    %471 = tpu.matmul %469, %470, %cst_264 {dimension_numbers = #tpu.dot_dimension_numbers<[1], [0], [0], [1], [0, 0, 1, 1], [], []>} : vector<16x16xf32>, vector<16x32xf32>, vector<16x32xf32> -> vector<16x32xf32>
    %472 = vector.broadcast %441 : vector<1x32xf32> to vector<16x32xf32>
    %473 = arith.addf %472, %471 : vector<16x32xf32>
    %474 = vector.extract_strided_slice %444 {offsets = [0, 16], sizes = [16, 16], strides = [1, 1]} : vector<16x32xf32> to vector<16x16xf32>
    %475 = vector.extract_strided_slice %447 {offsets = [0, 16], sizes = [16, 16], strides = [1, 1]} : vector<16x32xf32> to vector<16x16xf32>
    %cst_265 = arith.constant dense<0.000000e+00> : vector<16x16xf32>
    %476 = tpu.matmul %474, %475, %cst_265 {dimension_numbers = #tpu.dot_dimension_numbers<[1], [1], [0], [0], [0, 0, 1, 0], [], []>} : vector<16x16xf32>, vector<16x16xf32>, vector<16x16xf32> -> vector<16x16xf32>
    %cst_266 = arith.constant 2.500000e-01 : f32
    %477 = vector.broadcast %cst_266 : f32 to vector<16x16xf32>
    %478 = arith.mulf %476, %477 : vector<16x16xf32>
    %479 = vector.broadcast %3 : vector<1x16xf32> to vector<16x16xf32>
    %480 = arith.addf %478, %479 : vector<16x16xf32>
    %cst_267 = arith.constant dense<0xFF800000> : vector<16xf32>
    %481 = vector.multi_reduction <maximumf>, %480, %cst_267 [1] : vector<16x16xf32> to vector<16xf32>
    %482 = vector.shape_cast %481 : vector<16xf32> to vector<16x1xf32>
    %483 = vector.broadcast %482 : vector<16x1xf32> to vector<16x16xf32>
    %484 = arith.subf %480, %483 : vector<16x16xf32>
    %485 = math.exp %484 : vector<16x16xf32>
    %cst_268 = arith.constant dense<0.000000e+00> : vector<16xf32>
    %486 = vector.multi_reduction <add>, %485, %cst_268 [1] : vector<16x16xf32> to vector<16xf32>
    %487 = vector.shape_cast %486 : vector<16xf32> to vector<16x1xf32>
    %488 = tpu.reciprocal %487 {approx = true} : vector<16x1xf32> -> vector<16x1xf32>
    %489 = vector.broadcast %488 : vector<16x1xf32> to vector<16x16xf32>
    %490 = arith.mulf %485, %489 : vector<16x16xf32>
    %491 = vector.extract_strided_slice %450 {offsets = [0, 16], sizes = [16, 16], strides = [1, 1]} : vector<16x32xf32> to vector<16x16xf32>
    %cst_269 = arith.constant dense<0.000000e+00> : vector<16x16xf32>
    %492 = tpu.matmul %490, %491, %cst_269 {dimension_numbers = #tpu.dot_dimension_numbers<[1], [0], [0], [1], [0, 0, 1, 1], [], []>} : vector<16x16xf32>, vector<16x16xf32>, vector<16x16xf32> -> vector<16x16xf32>
    %493 = vector.extract_strided_slice %433 {offsets = [16, 0], sizes = [16, 32], strides = [1, 1]} : vector<32x32xf32> to vector<16x32xf32>
    %cst_270 = arith.constant dense<0.000000e+00> : vector<16x32xf32>
    %494 = tpu.matmul %492, %493, %cst_270 {dimension_numbers = #tpu.dot_dimension_numbers<[1], [0], [0], [1], [0, 0, 1, 1], [], []>} : vector<16x16xf32>, vector<16x32xf32>, vector<16x32xf32> -> vector<16x32xf32>
    %495 = arith.addf %473, %494 : vector<16x32xf32>
    %496 = arith.addf %425, %495 : vector<16x32xf32>
    %497 = vector.extract_strided_slice %328 {offsets = [0, 0], sizes = [1, 32], strides = [1, 1]} : vector<2x32xf32> to vector<1x32xf32>
    %498 = vector.extract_strided_slice %328 {offsets = [1, 0], sizes = [1, 32], strides = [1, 1]} : vector<2x32xf32> to vector<1x32xf32>
    %cst_271 = arith.constant dense<0.000000e+00> : vector<16xf32>
    %499 = vector.multi_reduction <add>, %496, %cst_271 [1] : vector<16x32xf32> to vector<16xf32>
    %500 = vector.shape_cast %499 : vector<16xf32> to vector<16x1xf32>
    %cst_272 = arith.constant 3.200000e+01 : f32
    %501 = vector.broadcast %cst_272 : f32 to vector<16x1xf32>
    %502 = arith.divf %500, %501 : vector<16x1xf32>
    %503 = vector.broadcast %502 : vector<16x1xf32> to vector<16x32xf32>
    %504 = arith.subf %496, %503 : vector<16x32xf32>
    %505 = arith.mulf %504, %504 : vector<16x32xf32>
    %cst_273 = arith.constant dense<0.000000e+00> : vector<16xf32>
    %506 = vector.multi_reduction <add>, %505, %cst_273 [1] : vector<16x32xf32> to vector<16xf32>
    %507 = vector.shape_cast %506 : vector<16xf32> to vector<16x1xf32>
    %cst_274 = arith.constant 3.200000e+01 : f32
    %508 = vector.broadcast %cst_274 : f32 to vector<16x1xf32>
    %509 = arith.divf %507, %508 : vector<16x1xf32>
    %510 = vector.broadcast %502 : vector<16x1xf32> to vector<16x32xf32>
    %511 = arith.subf %496, %510 : vector<16x32xf32>
    %cst_275 = arith.constant 9.99999974E-6 : f32
    %512 = vector.broadcast %cst_275 : f32 to vector<16x1xf32>
    %513 = arith.addf %509, %512 : vector<16x1xf32>
    %514 = math.rsqrt %513 : vector<16x1xf32>
    %515 = vector.broadcast %514 : vector<16x1xf32> to vector<16x32xf32>
    %516 = arith.mulf %511, %515 : vector<16x32xf32>
    %517 = vector.broadcast %497 : vector<1x32xf32> to vector<16x32xf32>
    %518 = arith.mulf %516, %517 : vector<16x32xf32>
    %519 = vector.broadcast %498 : vector<1x32xf32> to vector<16x32xf32>
    %520 = arith.addf %518, %519 : vector<16x32xf32>
    %c1_276 = arith.constant 1 : index
    %c8_277 = arith.constant 8 : index
    %c0_278 = arith.constant 0 : index
    %c0_279 = arith.constant 0 : index
    %521 = vector.load %arg8[%c1_276, %c8_277, %c0_278, %c0_279] : memref<2x9x32x32xf32, #tpu.memory_space<vmem>>, vector<1x1x32x32xf32>
    %522 = vector.shape_cast %521 : vector<1x1x32x32xf32> to vector<32x32xf32>
    %c1_280 = arith.constant 1 : index
    %c8_281 = arith.constant 8 : index
    %c0_282 = arith.constant 0 : index
    %523 = vector.load %arg9[%c1_280, %c8_281, %c0_282] : memref<2x9x32xf32, #tpu.memory_space<vmem>>, vector<1x1x32xf32>
    %524 = vector.shape_cast %523 : vector<1x1x32xf32> to vector<1x32xf32>
    %cst_283 = arith.constant dense<0.000000e+00> : vector<16x32xf32>
    %525 = tpu.matmul %520, %522, %cst_283 {dimension_numbers = #tpu.dot_dimension_numbers<[1], [0], [0], [1], [0, 0, 1, 1], [], []>} : vector<16x32xf32>, vector<32x32xf32>, vector<16x32xf32> -> vector<16x32xf32>
    %526 = vector.broadcast %524 : vector<1x32xf32> to vector<16x32xf32>
    %527 = arith.addf %525, %526 : vector<16x32xf32>
    %528 = arith.negf %527 : vector<16x32xf32>
    %529 = math.exp %528 : vector<16x32xf32>
    %cst_284 = arith.constant 1.000000e+00 : f32
    %530 = vector.broadcast %cst_284 : f32 to vector<16x32xf32>
    %531 = arith.addf %530, %529 : vector<16x32xf32>
    %532 = arith.divf %530, %531 : vector<16x32xf32>
    %533 = arith.mulf %527, %532 : vector<16x32xf32>
    %534 = arith.addf %520, %533 : vector<16x32xf32>
    %535 = vector.extract_strided_slice %330 {offsets = [0, 0], sizes = [1, 32], strides = [1, 1]} : vector<2x32xf32> to vector<1x32xf32>
    %536 = vector.extract_strided_slice %330 {offsets = [1, 0], sizes = [1, 32], strides = [1, 1]} : vector<2x32xf32> to vector<1x32xf32>
    %cst_285 = arith.constant dense<0.000000e+00> : vector<16xf32>
    %537 = vector.multi_reduction <add>, %534, %cst_285 [1] : vector<16x32xf32> to vector<16xf32>
    %538 = vector.shape_cast %537 : vector<16xf32> to vector<16x1xf32>
    %cst_286 = arith.constant 3.200000e+01 : f32
    %539 = vector.broadcast %cst_286 : f32 to vector<16x1xf32>
    %540 = arith.divf %538, %539 : vector<16x1xf32>
    %541 = vector.broadcast %540 : vector<16x1xf32> to vector<16x32xf32>
    %542 = arith.subf %534, %541 : vector<16x32xf32>
    %543 = arith.mulf %542, %542 : vector<16x32xf32>
    %cst_287 = arith.constant dense<0.000000e+00> : vector<16xf32>
    %544 = vector.multi_reduction <add>, %543, %cst_287 [1] : vector<16x32xf32> to vector<16xf32>
    %545 = vector.shape_cast %544 : vector<16xf32> to vector<16x1xf32>
    %cst_288 = arith.constant 3.200000e+01 : f32
    %546 = vector.broadcast %cst_288 : f32 to vector<16x1xf32>
    %547 = arith.divf %545, %546 : vector<16x1xf32>
    %548 = vector.broadcast %540 : vector<16x1xf32> to vector<16x32xf32>
    %549 = arith.subf %534, %548 : vector<16x32xf32>
    %cst_289 = arith.constant 9.99999974E-6 : f32
    %550 = vector.broadcast %cst_289 : f32 to vector<16x1xf32>
    %551 = arith.addf %547, %550 : vector<16x1xf32>
    %552 = math.rsqrt %551 : vector<16x1xf32>
    %553 = vector.broadcast %552 : vector<16x1xf32> to vector<16x32xf32>
    %554 = arith.mulf %549, %553 : vector<16x32xf32>
    %555 = vector.broadcast %535 : vector<1x32xf32> to vector<16x32xf32>
    %556 = arith.mulf %554, %555 : vector<16x32xf32>
    %557 = vector.broadcast %536 : vector<1x32xf32> to vector<16x32xf32>
    %558 = arith.addf %556, %557 : vector<16x32xf32>
    %c0_290 = arith.constant 0 : index
    %c0_291 = arith.constant 0 : index
    %559 = vector.load %arg11[%c0_290, %c0_291] : memref<32x64xf32, #tpu.memory_space<vmem>>, vector<32x64xf32>
    %c0_292 = arith.constant 0 : index
    %c0_293 = arith.constant 0 : index
    %560 = vector.load %arg12[%c0_292, %c0_293] : memref<1x64xf32, #tpu.memory_space<vmem>>, vector<1x64xf32>
    %cst_294 = arith.constant dense<0.000000e+00> : vector<16x64xf32>
    %561 = tpu.matmul %558, %559, %cst_294 {dimension_numbers = #tpu.dot_dimension_numbers<[1], [0], [0], [1], [0, 0, 1, 1], [], []>} : vector<16x32xf32>, vector<32x64xf32>, vector<16x64xf32> -> vector<16x64xf32>
    %562 = vector.broadcast %560 : vector<1x64xf32> to vector<16x64xf32>
    %563 = arith.addf %561, %562 : vector<16x64xf32>
    %564 = arith.negf %563 : vector<16x64xf32>
    %565 = math.exp %564 : vector<16x64xf32>
    %cst_295 = arith.constant 1.000000e+00 : f32
    %566 = vector.broadcast %cst_295 : f32 to vector<16x64xf32>
    %567 = arith.addf %566, %565 : vector<16x64xf32>
    %568 = arith.divf %566, %567 : vector<16x64xf32>
    %569 = arith.mulf %563, %568 : vector<16x64xf32>
    %570 = vector.extract_strided_slice %569 {offsets = [0, 0], sizes = [16, 32], strides = [1, 1]} : vector<16x64xf32> to vector<16x32xf32>
    %571 = vector.extract_strided_slice %569 {offsets = [0, 32], sizes = [16, 32], strides = [1, 1]} : vector<16x64xf32> to vector<16x32xf32>
    %c0_296 = arith.constant 0 : index
    %c0_297 = arith.constant 0 : index
    %c0_298 = arith.constant 0 : index
    %572 = vector.load %arg13[%c0_296, %c0_297, %c0_298] : memref<2x32x32xf32, #tpu.memory_space<vmem>>, vector<1x32x32xf32>
    %573 = vector.shape_cast %572 : vector<1x32x32xf32> to vector<32x32xf32>
    %c0_299 = arith.constant 0 : index
    %c0_300 = arith.constant 0 : index
    %574 = vector.load %arg14[%c0_299, %c0_300] : memref<2x32xf32, #tpu.memory_space<vmem>>, vector<1x32xf32>
    %cst_301 = arith.constant dense<0.000000e+00> : vector<16x32xf32>
    %575 = tpu.matmul %570, %573, %cst_301 {dimension_numbers = #tpu.dot_dimension_numbers<[1], [0], [0], [1], [0, 0, 1, 1], [], []>} : vector<16x32xf32>, vector<32x32xf32>, vector<16x32xf32> -> vector<16x32xf32>
    %576 = vector.broadcast %574 : vector<1x32xf32> to vector<16x32xf32>
    %577 = arith.addf %575, %576 : vector<16x32xf32>
    %578 = arith.negf %577 : vector<16x32xf32>
    %579 = math.exp %578 : vector<16x32xf32>
    %cst_302 = arith.constant 1.000000e+00 : f32
    %580 = vector.broadcast %cst_302 : f32 to vector<16x32xf32>
    %581 = arith.addf %580, %579 : vector<16x32xf32>
    %582 = arith.divf %580, %581 : vector<16x32xf32>
    %583 = arith.mulf %577, %582 : vector<16x32xf32>
    %c0_303 = arith.constant 0 : index
    %c0_304 = arith.constant 0 : index
    %c0_305 = arith.constant 0 : index
    %c0_306 = arith.constant 0 : index
    %584 = vector.load %arg15[%c0_303, %c0_304, %c0_305, %c0_306] : memref<2x2x16x32xf32, #tpu.memory_space<vmem>>, vector<1x1x16x32xf32>
    %585 = vector.shape_cast %584 : vector<1x1x16x32xf32> to vector<16x32xf32>
    %c0_307 = arith.constant 0 : index
    %c1_308 = arith.constant 1 : index
    %c0_309 = arith.constant 0 : index
    %c0_310 = arith.constant 0 : index
    %586 = vector.load %arg15[%c0_307, %c1_308, %c0_309, %c0_310] : memref<2x2x16x32xf32, #tpu.memory_space<vmem>>, vector<1x1x16x32xf32>
    %587 = vector.shape_cast %586 : vector<1x1x16x32xf32> to vector<16x32xf32>
    %588 = vector.shape_cast %583 : vector<16x32xf32> to vector<1x16x32xf32>
    %cst_311 = arith.constant dense<0.000000e+00> : vector<1xf32>
    %589 = vector.multi_reduction <add>, %588, %cst_311 [1, 2] : vector<1x16x32xf32> to vector<1xf32>
    %590 = vector.shape_cast %589 : vector<1xf32> to vector<1x1x1xf32>
    %591 = vector.extract %590[0, 0, 0] : f32 from vector<1x1x1xf32>
    %cst_312 = arith.constant 5.120000e+02 : f32
    %592 = arith.divf %591, %cst_312 : f32
    %593 = vector.broadcast %592 : f32 to vector<16x32xf32>
    %594 = arith.subf %583, %593 : vector<16x32xf32>
    %595 = arith.mulf %594, %594 : vector<16x32xf32>
    %596 = vector.shape_cast %595 : vector<16x32xf32> to vector<1x16x32xf32>
    %cst_313 = arith.constant dense<0.000000e+00> : vector<1xf32>
    %597 = vector.multi_reduction <add>, %596, %cst_313 [1, 2] : vector<1x16x32xf32> to vector<1xf32>
    %598 = vector.shape_cast %597 : vector<1xf32> to vector<1x1x1xf32>
    %599 = vector.extract %598[0, 0, 0] : f32 from vector<1x1x1xf32>
    %cst_314 = arith.constant 5.120000e+02 : f32
    %600 = arith.divf %599, %cst_314 : f32
    %601 = vector.broadcast %592 : f32 to vector<16x32xf32>
    %602 = arith.subf %583, %601 : vector<16x32xf32>
    %cst_315 = arith.constant 9.99999974E-6 : f32
    %603 = arith.addf %600, %cst_315 : f32
    %604 = math.rsqrt %603 : f32
    %605 = vector.broadcast %604 : f32 to vector<16x32xf32>
    %606 = arith.mulf %602, %605 : vector<16x32xf32>
    %607 = arith.mulf %606, %585 : vector<16x32xf32>
    %608 = arith.addf %607, %587 : vector<16x32xf32>
    %c1_316 = arith.constant 1 : index
    %c0_317 = arith.constant 0 : index
    %c0_318 = arith.constant 0 : index
    %609 = vector.load %arg13[%c1_316, %c0_317, %c0_318] : memref<2x32x32xf32, #tpu.memory_space<vmem>>, vector<1x32x32xf32>
    %610 = vector.shape_cast %609 : vector<1x32x32xf32> to vector<32x32xf32>
    %c1_319 = arith.constant 1 : index
    %c0_320 = arith.constant 0 : index
    %611 = vector.load %arg14[%c1_319, %c0_320] : memref<2x32xf32, #tpu.memory_space<vmem>>, vector<1x32xf32>
    %cst_321 = arith.constant dense<0.000000e+00> : vector<16x32xf32>
    %612 = tpu.matmul %608, %610, %cst_321 {dimension_numbers = #tpu.dot_dimension_numbers<[1], [0], [0], [1], [0, 0, 1, 1], [], []>} : vector<16x32xf32>, vector<32x32xf32>, vector<16x32xf32> -> vector<16x32xf32>
    %613 = vector.broadcast %611 : vector<1x32xf32> to vector<16x32xf32>
    %614 = arith.addf %612, %613 : vector<16x32xf32>
    %615 = arith.negf %614 : vector<16x32xf32>
    %616 = math.exp %615 : vector<16x32xf32>
    %cst_322 = arith.constant 1.000000e+00 : f32
    %617 = vector.broadcast %cst_322 : f32 to vector<16x32xf32>
    %618 = arith.addf %617, %616 : vector<16x32xf32>
    %619 = arith.divf %617, %618 : vector<16x32xf32>
    %620 = arith.mulf %614, %619 : vector<16x32xf32>
    %c1_323 = arith.constant 1 : index
    %c0_324 = arith.constant 0 : index
    %c0_325 = arith.constant 0 : index
    %c0_326 = arith.constant 0 : index
    %621 = vector.load %arg15[%c1_323, %c0_324, %c0_325, %c0_326] : memref<2x2x16x32xf32, #tpu.memory_space<vmem>>, vector<1x1x16x32xf32>
    %622 = vector.shape_cast %621 : vector<1x1x16x32xf32> to vector<16x32xf32>
    %c1_327 = arith.constant 1 : index
    %c1_328 = arith.constant 1 : index
    %c0_329 = arith.constant 0 : index
    %c0_330 = arith.constant 0 : index
    %623 = vector.load %arg15[%c1_327, %c1_328, %c0_329, %c0_330] : memref<2x2x16x32xf32, #tpu.memory_space<vmem>>, vector<1x1x16x32xf32>
    %624 = vector.shape_cast %623 : vector<1x1x16x32xf32> to vector<16x32xf32>
    %625 = vector.shape_cast %620 : vector<16x32xf32> to vector<1x16x32xf32>
    %cst_331 = arith.constant dense<0.000000e+00> : vector<1xf32>
    %626 = vector.multi_reduction <add>, %625, %cst_331 [1, 2] : vector<1x16x32xf32> to vector<1xf32>
    %627 = vector.shape_cast %626 : vector<1xf32> to vector<1x1x1xf32>
    %628 = vector.extract %627[0, 0, 0] : f32 from vector<1x1x1xf32>
    %cst_332 = arith.constant 5.120000e+02 : f32
    %629 = arith.divf %628, %cst_332 : f32
    %630 = vector.broadcast %629 : f32 to vector<16x32xf32>
    %631 = arith.subf %620, %630 : vector<16x32xf32>
    %632 = arith.mulf %631, %631 : vector<16x32xf32>
    %633 = vector.shape_cast %632 : vector<16x32xf32> to vector<1x16x32xf32>
    %cst_333 = arith.constant dense<0.000000e+00> : vector<1xf32>
    %634 = vector.multi_reduction <add>, %633, %cst_333 [1, 2] : vector<1x16x32xf32> to vector<1xf32>
    %635 = vector.shape_cast %634 : vector<1xf32> to vector<1x1x1xf32>
    %636 = vector.extract %635[0, 0, 0] : f32 from vector<1x1x1xf32>
    %cst_334 = arith.constant 5.120000e+02 : f32
    %637 = arith.divf %636, %cst_334 : f32
    %638 = vector.broadcast %629 : f32 to vector<16x32xf32>
    %639 = arith.subf %620, %638 : vector<16x32xf32>
    %cst_335 = arith.constant 9.99999974E-6 : f32
    %640 = arith.addf %637, %cst_335 : f32
    %641 = math.rsqrt %640 : f32
    %642 = vector.broadcast %641 : f32 to vector<16x32xf32>
    %643 = arith.mulf %639, %642 : vector<16x32xf32>
    %644 = arith.mulf %643, %622 : vector<16x32xf32>
    %645 = arith.addf %644, %624 : vector<16x32xf32>
    %c0_336 = arith.constant 0 : index
    %c0_337 = arith.constant 0 : index
    %646 = vector.load %arg16[%c0_336, %c0_337] : memref<32x34xf32, #tpu.memory_space<vmem>>, vector<32x34xf32>
    %c0_338 = arith.constant 0 : index
    %c0_339 = arith.constant 0 : index
    %647 = vector.load %arg17[%c0_338, %c0_339] : memref<1x34xf32, #tpu.memory_space<vmem>>, vector<1x34xf32>
    %cst_340 = arith.constant dense<0.000000e+00> : vector<16x34xf32>
    %648 = tpu.matmul %645, %646, %cst_340 {dimension_numbers = #tpu.dot_dimension_numbers<[1], [0], [0], [1], [0, 0, 1, 1], [], []>} : vector<16x32xf32>, vector<32x34xf32>, vector<16x34xf32> -> vector<16x34xf32>
    %649 = vector.broadcast %647 : vector<1x34xf32> to vector<16x34xf32>
    %650 = arith.addf %648, %649 : vector<16x34xf32>
    %c0_341 = arith.constant 0 : index
    %c0_342 = arith.constant 0 : index
    %c0_343 = arith.constant 0 : index
    %651 = vector.load %arg18[%c0_341, %c0_342, %c0_343] : memref<2x16x34xf32, #tpu.memory_space<vmem>>, vector<1x16x34xf32>
    %652 = vector.shape_cast %651 : vector<1x16x34xf32> to vector<16x34xf32>
    %c1_344 = arith.constant 1 : index
    %c0_345 = arith.constant 0 : index
    %c0_346 = arith.constant 0 : index
    %653 = vector.load %arg18[%c1_344, %c0_345, %c0_346] : memref<2x16x34xf32, #tpu.memory_space<vmem>>, vector<1x16x34xf32>
    %654 = vector.shape_cast %653 : vector<1x16x34xf32> to vector<16x34xf32>
    %655 = vector.shape_cast %650 : vector<16x34xf32> to vector<1x16x34xf32>
    %cst_347 = arith.constant dense<0.000000e+00> : vector<1xf32>
    %656 = vector.multi_reduction <add>, %655, %cst_347 [1, 2] : vector<1x16x34xf32> to vector<1xf32>
    %657 = vector.shape_cast %656 : vector<1xf32> to vector<1x1x1xf32>
    %658 = vector.extract %657[0, 0, 0] : f32 from vector<1x1x1xf32>
    %cst_348 = arith.constant 5.440000e+02 : f32
    %659 = arith.divf %658, %cst_348 : f32
    %660 = vector.broadcast %659 : f32 to vector<16x34xf32>
    %661 = arith.subf %650, %660 : vector<16x34xf32>
    %662 = arith.mulf %661, %661 : vector<16x34xf32>
    %663 = vector.shape_cast %662 : vector<16x34xf32> to vector<1x16x34xf32>
    %cst_349 = arith.constant dense<0.000000e+00> : vector<1xf32>
    %664 = vector.multi_reduction <add>, %663, %cst_349 [1, 2] : vector<1x16x34xf32> to vector<1xf32>
    %665 = vector.shape_cast %664 : vector<1xf32> to vector<1x1x1xf32>
    %666 = vector.extract %665[0, 0, 0] : f32 from vector<1x1x1xf32>
    %cst_350 = arith.constant 5.440000e+02 : f32
    %667 = arith.divf %666, %cst_350 : f32
    %668 = vector.broadcast %659 : f32 to vector<16x34xf32>
    %669 = arith.subf %650, %668 : vector<16x34xf32>
    %cst_351 = arith.constant 9.99999974E-6 : f32
    %670 = arith.addf %667, %cst_351 : f32
    %671 = math.rsqrt %670 : f32
    %672 = vector.broadcast %671 : f32 to vector<16x34xf32>
    %673 = arith.mulf %669, %672 : vector<16x34xf32>
    %674 = arith.mulf %673, %652 : vector<16x34xf32>
    %675 = arith.addf %674, %654 : vector<16x34xf32>
    %676 = math.tanh %675 : vector<16x34xf32>
    %c0_352 = arith.constant 0 : index
    %c0_353 = arith.constant 0 : index
    %c0_354 = arith.constant 0 : index
    %677 = vector.load %arg25[%c0_352, %c0_353, %c0_354] : memref<1x16x34xf32, #tpu.memory_space<vmem>>, vector<1x16x34xf32>
    %678 = vector.shape_cast %677 : vector<1x16x34xf32> to vector<16x34xf32>
    %679 = vector.shape_cast %676 : vector<16x34xf32> to vector<1x16x34xf32>
    tpu.vector_store %arg25[%c0_352, %c0_353, %c0_354], %679 {strides = array<i32>} : memref<1x16x34xf32, #tpu.memory_space<vmem>>, vector<1x16x34xf32>,
    %c0_355 = arith.constant 0 : index
    %c0_356 = arith.constant 0 : index
    %c0_357 = arith.constant 0 : index
    %680 = vector.load %arg19[%c0_355, %c0_356, %c0_357] : memref<2x32x32xf32, #tpu.memory_space<vmem>>, vector<1x32x32xf32>
    %681 = vector.shape_cast %680 : vector<1x32x32xf32> to vector<32x32xf32>
    %c0_358 = arith.constant 0 : index
    %c0_359 = arith.constant 0 : index
    %682 = vector.load %arg20[%c0_358, %c0_359] : memref<2x32xf32, #tpu.memory_space<vmem>>, vector<1x32xf32>
    %cst_360 = arith.constant dense<0.000000e+00> : vector<16x32xf32>
    %683 = tpu.matmul %571, %681, %cst_360 {dimension_numbers = #tpu.dot_dimension_numbers<[1], [0], [0], [1], [0, 0, 1, 1], [], []>} : vector<16x32xf32>, vector<32x32xf32>, vector<16x32xf32> -> vector<16x32xf32>
    %684 = vector.broadcast %682 : vector<1x32xf32> to vector<16x32xf32>
    %685 = arith.addf %683, %684 : vector<16x32xf32>
    %686 = arith.negf %685 : vector<16x32xf32>
    %687 = math.exp %686 : vector<16x32xf32>
    %cst_361 = arith.constant 1.000000e+00 : f32
    %688 = vector.broadcast %cst_361 : f32 to vector<16x32xf32>
    %689 = arith.addf %688, %687 : vector<16x32xf32>
    %690 = arith.divf %688, %689 : vector<16x32xf32>
    %691 = arith.mulf %685, %690 : vector<16x32xf32>
    %c0_362 = arith.constant 0 : index
    %c0_363 = arith.constant 0 : index
    %c0_364 = arith.constant 0 : index
    %c0_365 = arith.constant 0 : index
    %692 = vector.load %arg21[%c0_362, %c0_363, %c0_364, %c0_365] : memref<2x2x16x32xf32, #tpu.memory_space<vmem>>, vector<1x1x16x32xf32>
    %693 = vector.shape_cast %692 : vector<1x1x16x32xf32> to vector<16x32xf32>
    %c0_366 = arith.constant 0 : index
    %c1_367 = arith.constant 1 : index
    %c0_368 = arith.constant 0 : index
    %c0_369 = arith.constant 0 : index
    %694 = vector.load %arg21[%c0_366, %c1_367, %c0_368, %c0_369] : memref<2x2x16x32xf32, #tpu.memory_space<vmem>>, vector<1x1x16x32xf32>
    %695 = vector.shape_cast %694 : vector<1x1x16x32xf32> to vector<16x32xf32>
    %696 = vector.shape_cast %691 : vector<16x32xf32> to vector<1x16x32xf32>
    %cst_370 = arith.constant dense<0.000000e+00> : vector<1xf32>
    %697 = vector.multi_reduction <add>, %696, %cst_370 [1, 2] : vector<1x16x32xf32> to vector<1xf32>
    %698 = vector.shape_cast %697 : vector<1xf32> to vector<1x1x1xf32>
    %699 = vector.extract %698[0, 0, 0] : f32 from vector<1x1x1xf32>
    %cst_371 = arith.constant 5.120000e+02 : f32
    %700 = arith.divf %699, %cst_371 : f32
    %701 = vector.broadcast %700 : f32 to vector<16x32xf32>
    %702 = arith.subf %691, %701 : vector<16x32xf32>
    %703 = arith.mulf %702, %702 : vector<16x32xf32>
    %704 = vector.shape_cast %703 : vector<16x32xf32> to vector<1x16x32xf32>
    %cst_372 = arith.constant dense<0.000000e+00> : vector<1xf32>
    %705 = vector.multi_reduction <add>, %704, %cst_372 [1, 2] : vector<1x16x32xf32> to vector<1xf32>
    %706 = vector.shape_cast %705 : vector<1xf32> to vector<1x1x1xf32>
    %707 = vector.extract %706[0, 0, 0] : f32 from vector<1x1x1xf32>
    %cst_373 = arith.constant 5.120000e+02 : f32
    %708 = arith.divf %707, %cst_373 : f32
    %709 = vector.broadcast %700 : f32 to vector<16x32xf32>
    %710 = arith.subf %691, %709 : vector<16x32xf32>
    %cst_374 = arith.constant 9.99999974E-6 : f32
    %711 = arith.addf %708, %cst_374 : f32
    %712 = math.rsqrt %711 : f32
    %713 = vector.broadcast %712 : f32 to vector<16x32xf32>
    %714 = arith.mulf %710, %713 : vector<16x32xf32>
    %715 = arith.mulf %714, %693 : vector<16x32xf32>
    %716 = arith.addf %715, %695 : vector<16x32xf32>
    %c1_375 = arith.constant 1 : index
    %c0_376 = arith.constant 0 : index
    %c0_377 = arith.constant 0 : index
    %717 = vector.load %arg19[%c1_375, %c0_376, %c0_377] : memref<2x32x32xf32, #tpu.memory_space<vmem>>, vector<1x32x32xf32>
    %718 = vector.shape_cast %717 : vector<1x32x32xf32> to vector<32x32xf32>
    %c1_378 = arith.constant 1 : index
    %c0_379 = arith.constant 0 : index
    %719 = vector.load %arg20[%c1_378, %c0_379] : memref<2x32xf32, #tpu.memory_space<vmem>>, vector<1x32xf32>
    %cst_380 = arith.constant dense<0.000000e+00> : vector<16x32xf32>
    %720 = tpu.matmul %716, %718, %cst_380 {dimension_numbers = #tpu.dot_dimension_numbers<[1], [0], [0], [1], [0, 0, 1, 1], [], []>} : vector<16x32xf32>, vector<32x32xf32>, vector<16x32xf32> -> vector<16x32xf32>
    %721 = vector.broadcast %719 : vector<1x32xf32> to vector<16x32xf32>
    %722 = arith.addf %720, %721 : vector<16x32xf32>
    %723 = arith.negf %722 : vector<16x32xf32>
    %724 = math.exp %723 : vector<16x32xf32>
    %cst_381 = arith.constant 1.000000e+00 : f32
    %725 = vector.broadcast %cst_381 : f32 to vector<16x32xf32>
    %726 = arith.addf %725, %724 : vector<16x32xf32>
    %727 = arith.divf %725, %726 : vector<16x32xf32>
    %728 = arith.mulf %722, %727 : vector<16x32xf32>
    %c1_382 = arith.constant 1 : index
    %c0_383 = arith.constant 0 : index
    %c0_384 = arith.constant 0 : index
    %c0_385 = arith.constant 0 : index
    %729 = vector.load %arg21[%c1_382, %c0_383, %c0_384, %c0_385] : memref<2x2x16x32xf32, #tpu.memory_space<vmem>>, vector<1x1x16x32xf32>
    %730 = vector.shape_cast %729 : vector<1x1x16x32xf32> to vector<16x32xf32>
    %c1_386 = arith.constant 1 : index
    %c1_387 = arith.constant 1 : index
    %c0_388 = arith.constant 0 : index
    %c0_389 = arith.constant 0 : index
    %731 = vector.load %arg21[%c1_386, %c1_387, %c0_388, %c0_389] : memref<2x2x16x32xf32, #tpu.memory_space<vmem>>, vector<1x1x16x32xf32>
    %732 = vector.shape_cast %731 : vector<1x1x16x32xf32> to vector<16x32xf32>
    %733 = vector.shape_cast %728 : vector<16x32xf32> to vector<1x16x32xf32>
    %cst_390 = arith.constant dense<0.000000e+00> : vector<1xf32>
    %734 = vector.multi_reduction <add>, %733, %cst_390 [1, 2] : vector<1x16x32xf32> to vector<1xf32>
    %735 = vector.shape_cast %734 : vector<1xf32> to vector<1x1x1xf32>
    %736 = vector.extract %735[0, 0, 0] : f32 from vector<1x1x1xf32>
    %cst_391 = arith.constant 5.120000e+02 : f32
    %737 = arith.divf %736, %cst_391 : f32
    %738 = vector.broadcast %737 : f32 to vector<16x32xf32>
    %739 = arith.subf %728, %738 : vector<16x32xf32>
    %740 = arith.mulf %739, %739 : vector<16x32xf32>
    %741 = vector.shape_cast %740 : vector<16x32xf32> to vector<1x16x32xf32>
    %cst_392 = arith.constant dense<0.000000e+00> : vector<1xf32>
    %742 = vector.multi_reduction <add>, %741, %cst_392 [1, 2] : vector<1x16x32xf32> to vector<1xf32>
    %743 = vector.shape_cast %742 : vector<1xf32> to vector<1x1x1xf32>
    %744 = vector.extract %743[0, 0, 0] : f32 from vector<1x1x1xf32>
    %cst_393 = arith.constant 5.120000e+02 : f32
    %745 = arith.divf %744, %cst_393 : f32
    %746 = vector.broadcast %737 : f32 to vector<16x32xf32>
    %747 = arith.subf %728, %746 : vector<16x32xf32>
    %cst_394 = arith.constant 9.99999974E-6 : f32
    %748 = arith.addf %745, %cst_394 : f32
    %749 = math.rsqrt %748 : f32
    %750 = vector.broadcast %749 : f32 to vector<16x32xf32>
    %751 = arith.mulf %747, %750 : vector<16x32xf32>
    %752 = arith.mulf %751, %730 : vector<16x32xf32>
    %753 = arith.addf %752, %732 : vector<16x32xf32>
    %c0_395 = arith.constant 0 : index
    %c0_396 = arith.constant 0 : index
    %754 = vector.load %arg22[%c0_395, %c0_396] : memref<32x4xf32, #tpu.memory_space<vmem>>, vector<32x4xf32>
    %c0_397 = arith.constant 0 : index
    %c0_398 = arith.constant 0 : index
    %755 = vector.load %arg23[%c0_397, %c0_398] : memref<1x4xf32, #tpu.memory_space<vmem>>, vector<1x4xf32>
    %cst_399 = arith.constant dense<0.000000e+00> : vector<16x4xf32>
    %756 = tpu.matmul %753, %754, %cst_399 {dimension_numbers = #tpu.dot_dimension_numbers<[1], [0], [0], [1], [0, 0, 1, 1], [], []>} : vector<16x32xf32>, vector<32x4xf32>, vector<16x4xf32> -> vector<16x4xf32>
    %757 = vector.broadcast %755 : vector<1x4xf32> to vector<16x4xf32>
    %758 = arith.addf %756, %757 : vector<16x4xf32>
    %c0_400 = arith.constant 0 : index
    %c0_401 = arith.constant 0 : index
    %c0_402 = arith.constant 0 : index
    %759 = vector.load %arg24[%c0_400, %c0_401, %c0_402] : memref<2x16x4xf32, #tpu.memory_space<vmem>>, vector<1x16x4xf32>
    %760 = vector.shape_cast %759 : vector<1x16x4xf32> to vector<16x4xf32>
    %c1_403 = arith.constant 1 : index
    %c0_404 = arith.constant 0 : index
    %c0_405 = arith.constant 0 : index
    %761 = vector.load %arg24[%c1_403, %c0_404, %c0_405] : memref<2x16x4xf32, #tpu.memory_space<vmem>>, vector<1x16x4xf32>
    %762 = vector.shape_cast %761 : vector<1x16x4xf32> to vector<16x4xf32>
    %763 = vector.shape_cast %758 : vector<16x4xf32> to vector<1x16x4xf32>
    %cst_406 = arith.constant dense<0.000000e+00> : vector<1xf32>
    %764 = vector.multi_reduction <add>, %763, %cst_406 [1, 2] : vector<1x16x4xf32> to vector<1xf32>
    %765 = vector.shape_cast %764 : vector<1xf32> to vector<1x1x1xf32>
    %766 = vector.extract %765[0, 0, 0] : f32 from vector<1x1x1xf32>
    %cst_407 = arith.constant 6.400000e+01 : f32
    %767 = arith.divf %766, %cst_407 : f32
    %768 = vector.broadcast %767 : f32 to vector<16x4xf32>
    %769 = arith.subf %758, %768 : vector<16x4xf32>
    %770 = arith.mulf %769, %769 : vector<16x4xf32>
    %771 = vector.shape_cast %770 : vector<16x4xf32> to vector<1x16x4xf32>
    %cst_408 = arith.constant dense<0.000000e+00> : vector<1xf32>
    %772 = vector.multi_reduction <add>, %771, %cst_408 [1, 2] : vector<1x16x4xf32> to vector<1xf32>
    %773 = vector.shape_cast %772 : vector<1xf32> to vector<1x1x1xf32>
    %774 = vector.extract %773[0, 0, 0] : f32 from vector<1x1x1xf32>
    %cst_409 = arith.constant 6.400000e+01 : f32
    %775 = arith.divf %774, %cst_409 : f32
    %776 = vector.broadcast %767 : f32 to vector<16x4xf32>
    %777 = arith.subf %758, %776 : vector<16x4xf32>
    %cst_410 = arith.constant 9.99999974E-6 : f32
    %778 = arith.addf %775, %cst_410 : f32
    %779 = math.rsqrt %778 : f32
    %780 = vector.broadcast %779 : f32 to vector<16x4xf32>
    %781 = arith.mulf %777, %780 : vector<16x4xf32>
    %782 = arith.mulf %781, %760 : vector<16x4xf32>
    %783 = arith.addf %782, %762 : vector<16x4xf32>
    %784 = math.tanh %783 : vector<16x4xf32>
    %c0_411 = arith.constant 0 : index
    %c0_412 = arith.constant 0 : index
    %c0_413 = arith.constant 0 : index
    %785 = vector.load %arg26[%c0_411, %c0_412, %c0_413] : memref<1x16x4xf32, #tpu.memory_space<vmem>>, vector<1x16x4xf32>
    %786 = vector.shape_cast %785 : vector<1x16x4xf32> to vector<16x4xf32>
    %787 = vector.shape_cast %784 : vector<16x4xf32> to vector<1x16x4xf32>
    tpu.vector_store %arg26[%c0_411, %c0_412, %c0_413], %787 {strides = array<i32>} : memref<1x16x4xf32, #tpu.memory_space<vmem>>, vector<1x16x4xf32>,
    return
  }
  func.func @transform_0(%arg0: i32) -> (i32, i32, i32) {
    %c0_i32 = arith.constant 0 : i32
    %c0_i32_0 = arith.constant 0 : i32
    %c0_i32_1 = arith.constant 0 : i32
    return %arg0, %c0_i32, %c0_i32_0 : i32, i32, i32
  }
  func.func @transform_1(%arg0: i32) -> (i32, i32, i32) {
    %c0_i32 = arith.constant 0 : i32
    %c0_i32_0 = arith.constant 0 : i32
    %c0_i32_1 = arith.constant 0 : i32
    return %arg0, %c0_i32, %c0_i32_0 : i32, i32, i32
  }
  func.func @transform_2(%arg0: i32) -> (i32, i32, i32) {
    %c0_i32 = arith.constant 0 : i32
    %c0_i32_0 = arith.constant 0 : i32
    %c0_i32_1 = arith.constant 0 : i32
    %c0_i32_2 = arith.constant 0 : i32
    return %c0_i32, %c0_i32_0, %c0_i32_1 : i32, i32, i32
  }
  func.func @transform_3(%arg0: i32) -> (i32, i32) {
    %c0_i32 = arith.constant 0 : i32
    %c0_i32_0 = arith.constant 0 : i32
    %c0_i32_1 = arith.constant 0 : i32
    return %c0_i32, %c0_i32_0 : i32, i32
  }
  func.func @transform_4(%arg0: i32) -> (i32, i32, i32) {
    %c0_i32 = arith.constant 0 : i32
    %c0_i32_0 = arith.constant 0 : i32
    %c0_i32_1 = arith.constant 0 : i32
    %c0_i32_2 = arith.constant 0 : i32
    return %c0_i32, %c0_i32_0, %c0_i32_1 : i32, i32, i32
  }
  func.func @transform_5(%arg0: i32) -> (i32, i32) {
    %c0_i32 = arith.constant 0 : i32
    %c0_i32_0 = arith.constant 0 : i32
    %c0_i32_1 = arith.constant 0 : i32
    return %c0_i32, %c0_i32_0 : i32, i32
  }
  func.func @transform_6(%arg0: i32) -> (i32, i32, i32, i32) {
    %c0_i32 = arith.constant 0 : i32
    %c0_i32_0 = arith.constant 0 : i32
    %c0_i32_1 = arith.constant 0 : i32
    %c0_i32_2 = arith.constant 0 : i32
    %c0_i32_3 = arith.constant 0 : i32
    return %c0_i32, %c0_i32_0, %c0_i32_1, %c0_i32_2 : i32, i32, i32, i32
  }
  func.func @transform_7(%arg0: i32) -> (i32, i32, i32, i32) {
    %c0_i32 = arith.constant 0 : i32
    %c0_i32_0 = arith.constant 0 : i32
    %c0_i32_1 = arith.constant 0 : i32
    %c0_i32_2 = arith.constant 0 : i32
    %c0_i32_3 = arith.constant 0 : i32
    return %c0_i32, %c0_i32_0, %c0_i32_1, %c0_i32_2 : i32, i32, i32, i32
  }
  func.func @transform_8(%arg0: i32) -> (i32, i32, i32) {
    %c0_i32 = arith.constant 0 : i32
    %c0_i32_0 = arith.constant 0 : i32
    %c0_i32_1 = arith.constant 0 : i32
    %c0_i32_2 = arith.constant 0 : i32
    return %c0_i32, %c0_i32_0, %c0_i32_1 : i32, i32, i32
  }
  func.func @transform_9(%arg0: i32) -> (i32, i32, i32, i32) {
    %c0_i32 = arith.constant 0 : i32
    %c0_i32_0 = arith.constant 0 : i32
    %c0_i32_1 = arith.constant 0 : i32
    %c0_i32_2 = arith.constant 0 : i32
    %c0_i32_3 = arith.constant 0 : i32
    return %c0_i32, %c0_i32_0, %c0_i32_1, %c0_i32_2 : i32, i32, i32, i32
  }
  func.func @transform_10(%arg0: i32) -> (i32, i32) {
    %c0_i32 = arith.constant 0 : i32
    %c0_i32_0 = arith.constant 0 : i32
    %c0_i32_1 = arith.constant 0 : i32
    return %c0_i32, %c0_i32_0 : i32, i32
  }
  func.func @transform_11(%arg0: i32) -> (i32, i32) {
    %c0_i32 = arith.constant 0 : i32
    %c0_i32_0 = arith.constant 0 : i32
    %c0_i32_1 = arith.constant 0 : i32
    return %c0_i32, %c0_i32_0 : i32, i32
  }
  func.func @transform_12(%arg0: i32) -> (i32, i32, i32) {
    %c0_i32 = arith.constant 0 : i32
    %c0_i32_0 = arith.constant 0 : i32
    %c0_i32_1 = arith.constant 0 : i32
    %c0_i32_2 = arith.constant 0 : i32
    return %c0_i32, %c0_i32_0, %c0_i32_1 : i32, i32, i32
  }
  func.func @transform_13(%arg0: i32) -> (i32, i32) {
    %c0_i32 = arith.constant 0 : i32
    %c0_i32_0 = arith.constant 0 : i32
    %c0_i32_1 = arith.constant 0 : i32
    return %c0_i32, %c0_i32_0 : i32, i32
  }
  func.func @transform_14(%arg0: i32) -> (i32, i32, i32, i32) {
    %c0_i32 = arith.constant 0 : i32
    %c0_i32_0 = arith.constant 0 : i32
    %c0_i32_1 = arith.constant 0 : i32
    %c0_i32_2 = arith.constant 0 : i32
    %c0_i32_3 = arith.constant 0 : i32
    return %c0_i32, %c0_i32_0, %c0_i32_1, %c0_i32_2 : i32, i32, i32, i32
  }
  func.func @transform_15(%arg0: i32) -> (i32, i32) {
    %c0_i32 = arith.constant 0 : i32
    %c0_i32_0 = arith.constant 0 : i32
    %c0_i32_1 = arith.constant 0 : i32
    return %c0_i32, %c0_i32_0 : i32, i32
  }
  func.func @transform_16(%arg0: i32) -> (i32, i32) {
    %c0_i32 = arith.constant 0 : i32
    %c0_i32_0 = arith.constant 0 : i32
    %c0_i32_1 = arith.constant 0 : i32
    return %c0_i32, %c0_i32_0 : i32, i32
  }
  func.func @transform_17(%arg0: i32) -> (i32, i32, i32) {
    %c0_i32 = arith.constant 0 : i32
    %c0_i32_0 = arith.constant 0 : i32
    %c0_i32_1 = arith.constant 0 : i32
    %c0_i32_2 = arith.constant 0 : i32
    return %c0_i32, %c0_i32_0, %c0_i32_1 : i32, i32, i32
  }
  func.func @transform_18(%arg0: i32) -> (i32, i32, i32) {
    %c0_i32 = arith.constant 0 : i32
    %c0_i32_0 = arith.constant 0 : i32
    %c0_i32_1 = arith.constant 0 : i32
    %c0_i32_2 = arith.constant 0 : i32
    return %c0_i32, %c0_i32_0, %c0_i32_1 : i32, i32, i32
  }
  func.func @transform_19(%arg0: i32) -> (i32, i32) {
    %c0_i32 = arith.constant 0 : i32
    %c0_i32_0 = arith.constant 0 : i32
    %c0_i32_1 = arith.constant 0 : i32
    return %c0_i32, %c0_i32_0 : i32, i32
  }
  func.func @transform_20(%arg0: i32) -> (i32, i32, i32, i32) {
    %c0_i32 = arith.constant 0 : i32
    %c0_i32_0 = arith.constant 0 : i32
    %c0_i32_1 = arith.constant 0 : i32
    %c0_i32_2 = arith.constant 0 : i32
    %c0_i32_3 = arith.constant 0 : i32
    return %c0_i32, %c0_i32_0, %c0_i32_1, %c0_i32_2 : i32, i32, i32, i32
  }
  func.func @transform_21(%arg0: i32) -> (i32, i32) {
    %c0_i32 = arith.constant 0 : i32
    %c0_i32_0 = arith.constant 0 : i32
    %c0_i32_1 = arith.constant 0 : i32
    return %c0_i32, %c0_i32_0 : i32, i32
  }
  func.func @transform_22(%arg0: i32) -> (i32, i32) {
    %c0_i32 = arith.constant 0 : i32
    %c0_i32_0 = arith.constant 0 : i32
    %c0_i32_1 = arith.constant 0 : i32
    return %c0_i32, %c0_i32_0 : i32, i32
  }
  func.func @transform_23(%arg0: i32) -> (i32, i32, i32) {
    %c0_i32 = arith.constant 0 : i32
    %c0_i32_0 = arith.constant 0 : i32
    %c0_i32_1 = arith.constant 0 : i32
    %c0_i32_2 = arith.constant 0 : i32
    return %c0_i32, %c0_i32_0, %c0_i32_1 : i32, i32, i32
  }
  func.func @transform_24(%arg0: i32) -> (i32, i32, i32) {
    %c0_i32 = arith.constant 0 : i32
    %c0_i32_0 = arith.constant 0 : i32
    %c0_i32_1 = arith.constant 0 : i32
    return %arg0, %c0_i32, %c0_i32_0 : i32, i32, i32
  }
  func.func @transform_25(%arg0: i32) -> (i32, i32, i32) {
    %c0_i32 = arith.constant 0 : i32
    %c0_i32_0 = arith.constant 0 : i32
    %c0_i32_1 = arith.constant 0 : i32
    return %arg0, %c0_i32, %c0_i32_0 : i32, i32, i32
  }
}

</mosaic_0001>

<llo_original>
// kernel: _lambda_.1
$region0: #{_lambda_.1}
  #allocation0 [shape = 'u32[]', space=smem, size = 0x4, offset = 0x4, fixed_abs, tag = 'smem constant byte address 0x4 - core index']
  #allocation1 [shape = 'u32[144,128]{1,0:T(1,128)}', space=vmem, size = 0x12000, scoped, tag = 'internal scratch']
  %s0 = inlined_call_operand.vmem [shape: f32[2,16,16], index: 0, kind: input, shape index: {}]
  %s1 = inlined_call_operand.vmem [shape: f32[2,1,16], index: 1, kind: input, shape index: {}]
  %s2 = inlined_call_operand.vmem [shape: f32[2,16,32], index: 2, kind: input, shape index: {}]
  %s3 = inlined_call_operand.vmem [shape: f32[32,32], index: 3, kind: input, shape index: {}]
  %s4 = inlined_call_operand.vmem [shape: f32[2,16,32], index: 4, kind: input, shape index: {}]
  %s5 = inlined_call_operand.vmem [shape: f32[2,32], index: 5, kind: input, shape index: {}]
  %s6 = inlined_call_operand.vmem [shape: f32[2,2,16,32], index: 6, kind: input, shape index: {}]
  %s7 = inlined_call_operand.vmem [shape: f32[2,9,32,32], index: 7, kind: input, shape index: {}]
  %s8 = inlined_call_operand.vmem [shape: f32[2,9,32], index: 8, kind: input, shape index: {}]
  %s9 = inlined_call_operand.vmem [shape: f32[2,3,2,32], index: 9, kind: input, shape index: {}]
  %s10 = inlined_call_operand.vmem [shape: f32[32,64], index: 10, kind: input, shape index: {}]
  %s11 = inlined_call_operand.vmem [shape: f32[1,64], index: 11, kind: input, shape index: {}]
  %s12 = inlined_call_operand.vmem [shape: f32[2,32,32], index: 12, kind: input, shape index: {}]
  %s13 = inlined_call_operand.vmem [shape: f32[2,32], index: 13, kind: input, shape index: {}]
  %s14 = inlined_call_operand.vmem [shape: f32[2,2,16,32], index: 14, kind: input, shape index: {}]
  %s15 = inlined_call_operand.vmem [shape: f32[32,34], index: 15, kind: input, shape index: {}]
  %s16 = inlined_call_operand.vmem [shape: f32[1,34], index: 16, kind: input, shape index: {}]
  %s17 = inlined_call_operand.vmem [shape: f32[2,16,34], index: 17, kind: input, shape index: {}]
  %s18 = inlined_call_operand.vmem [shape: f32[2,32,32], index: 18, kind: input, shape index: {}]
  %s19 = inlined_call_operand.vmem [shape: f32[2,32], index: 19, kind: input, shape index: {}]
  %s20 = inlined_call_operand.vmem [shape: f32[2,2,16,32], index: 20, kind: input, shape index: {}]
  %s21 = inlined_call_operand.vmem [shape: f32[32,4], index: 21, kind: input, shape index: {}]
  %s22 = inlined_call_operand.vmem [shape: f32[1,4], index: 22, kind: input, shape index: {}]
  %s23 = inlined_call_operand.vmem [shape: f32[2,16,4], index: 23, kind: input, shape index: {}]
  %s24 = inlined_call_operand.vmem [shape: f32[2,16,34], index: 24, kind: output, shape index: {0}]
  %s25 = inlined_call_operand.vmem [shape: f32[2,16,4], index: 25, kind: output, shape index: {1}]
  %26 = xla_tuple %s24, %s25
  %s27 = sld [smem:[#allocation0]]
  $region137: #{_lambda_.1} parent=0
    _
  %s29 = ssub.s32 1, %s27
  %s30 = scalar_select 0, %s29, %s27
  loop: start=0, step=1, limit=4
  $region2: #{_lambda_.1} parent=0 // loop_pre_header
    _
  $region3: #{_lambda_.1} parent=0 // loop_header
    %s32 = sphi 0, %s36
    %p33 = scmp.ge.s32.totalorder %s32, 4
    %s42 = sphi 0, %s44
    %s45 = sphi 0, %s42
    %s46 = sphi 0, %s45
    %s62 = sphi 0, %s46
    %s68 = sphi 0, %s70
    %s71 = sphi 0, %s68
    %s72 = sphi 0, %s71
    %s88 = sphi 0, %s72
    %s92 = sphi 0, %s92
    %s94 = sphi 0, %s92
    %s95 = sphi 0, %s94
    %s109 = sphi 0, %s95
    %s113 = sphi 0, %s113
    %s115 = sphi 0, %s113
    %s116 = sphi 0, %s115
    %s130 = sphi 0, %s116
    %s134 = sphi 0, %s134
    %s136 = sphi 0, %s134
    %s137 = sphi 0, %s136
    %s151 = sphi 0, %s137
    %s155 = sphi 0, %s155
    %s157 = sphi 0, %s155
    %s158 = sphi 0, %s157
    %s172 = sphi 0, %s158
    %s176 = sphi 0, %s176
    %s178 = sphi 0, %s176
    %s179 = sphi 0, %s178
    %s193 = sphi 0, %s179
    %s197 = sphi 0, %s197
    %s199 = sphi 0, %s197
    %s200 = sphi 0, %s199
    %s214 = sphi 0, %s200
    %s218 = sphi 0, %s218
    %s220 = sphi 0, %s218
    %s221 = sphi 0, %s220
    %s235 = sphi 0, %s221
    %s239 = sphi 0, %s239
    %s241 = sphi 0, %s239
    %s242 = sphi 0, %s241
    %s256 = sphi 0, %s242
    %s260 = sphi 0, %s260
    %s262 = sphi 0, %s260
    %s263 = sphi 0, %s262
    %s277 = sphi 0, %s263
    %s281 = sphi 0, %s281
    %s283 = sphi 0, %s281
    %s284 = sphi 0, %s283
    %s298 = sphi 0, %s284
    %s302 = sphi 0, %s302
    %s304 = sphi 0, %s302
    %s305 = sphi 0, %s304
    %s319 = sphi 0, %s305
    %s323 = sphi 0, %s323
    %s325 = sphi 0, %s323
    %s326 = sphi 0, %s325
    %s340 = sphi 0, %s326
    %s344 = sphi 0, %s344
    %s346 = sphi 0, %s344
    %s347 = sphi 0, %s346
    %s361 = sphi 0, %s347
    %s365 = sphi 0, %s365
    %s367 = sphi 0, %s365
    %s368 = sphi 0, %s367
    %s382 = sphi 0, %s368
    %s386 = sphi 0, %s386
    %s388 = sphi 0, %s386
    %s389 = sphi 0, %s388
    %s403 = sphi 0, %s389
    %s407 = sphi 0, %s407
    %s409 = sphi 0, %s407
    %s410 = sphi 0, %s409
    %s424 = sphi 0, %s410
    %s428 = sphi 0, %s428
    %s430 = sphi 0, %s428
    %s431 = sphi 0, %s430
    %s445 = sphi 0, %s431
    %s449 = sphi 0, %s449
    %s451 = sphi 0, %s449
    %s452 = sphi 0, %s451
    %s466 = sphi 0, %s452
    %s470 = sphi 0, %s470
    %s472 = sphi 0, %s470
    %s473 = sphi 0, %s472
    %s487 = sphi 0, %s473
    %s491 = sphi 0, %s491
    %s493 = sphi 0, %s491
    %s494 = sphi 0, %s493
    %s508 = sphi 0, %s494
    %s512 = sphi 0, %s512
    %s514 = sphi 0, %s512
    %s515 = sphi 0, %s514
    %s529 = sphi 0, %s515
    %s533 = sphi 0, %s533
    %s535 = sphi 0, %s533
    %s536 = sphi 0, %s535
    %s550 = sphi 0, %s536
    %s556 = sphi 0, %s558
    %s559 = sphi 0, %s556
    %s560 = sphi 0, %s559
    %s576 = sphi 0, %s560
    %s582 = sphi 0, %s584
    %s585 = sphi 0, %s582
    %s586 = sphi 0, %s585
    %s602 = sphi 0, %s586
  $region4: #{_lambda_.1} parent=0 // loop_header_branch
    %35 = sbr.rel (%p33) target = $region8
  $region5: #{_lambda_.1} parent=0 // loop_body
    %s37 = ssub.s32 %s32, 1
    %s38 = ssub.s32 %s32, 2
    %s39 = sadd.s32 %s32, 1
    %s40 = ssub.s32 %s32, %s39
    %p41 = scmp.eq.s32.totalorder %s40, 0
    %s43 = sadd.s32 %s42, 1
    %s44 = scalar_select %p41, %s42, %s43
    %p47 = pneg %p41
    %p48 = scmp.eq.s32.totalorder %s32, 1
    %p49 = por %p47, %p48
    %p50 = scmp.ne.s32.totalorder %s42, %s45
    %p51 = scmp.eq.s32.totalorder %s32, 0
    %p52 = por %p50, %p51
    %p53 = scmp.ne.s32.totalorder %s42, %s45
    %p54 = scmp.eq.s32.totalorder %s37, 1
    %p55 = por %p53, %p54
    %p56 = scmp.ne.s32.totalorder %s45, %s46
    %p57 = scmp.eq.s32.totalorder %s37, 0
    %p58 = por %p56, %p57
    %p59 = scmp.ne.s32.totalorder %s45, %s46
    %p60 = scmp.eq.s32.totalorder %s38, 1
    %p61 = por %p59, %p60
    %p63 = scmp.ne.s32.totalorder %s46, %s62
    %p64 = scmp.eq.s32.totalorder %s38, 0
    %p65 = por %p63, %p64
    %s66 = ssub.s32 %s32, %s39
    %p67 = scmp.eq.s32.totalorder %s66, 0
    %s69 = sadd.s32 %s68, 1
    %s70 = scalar_select %p67, %s68, %s69
    %p73 = pneg %p67
    %p74 = scmp.eq.s32.totalorder %s32, 1
    %p75 = por %p73, %p74
    %p76 = scmp.ne.s32.totalorder %s68, %s71
    %p77 = scmp.eq.s32.totalorder %s32, 0
    %p78 = por %p76, %p77
    %p79 = scmp.ne.s32.totalorder %s68, %s71
    %p80 = scmp.eq.s32.totalorder %s37, 1
    %p81 = por %p79, %p80
    %p82 = scmp.ne.s32.totalorder %s71, %s72
    %p83 = scmp.eq.s32.totalorder %s37, 0
    %p84 = por %p82, %p83
    %p85 = scmp.ne.s32.totalorder %s71, %s72
    %p86 = scmp.eq.s32.totalorder %s38, 1
    %p87 = por %p85, %p86
    %p89 = scmp.ne.s32.totalorder %s72, %s88
    %p90 = scmp.eq.s32.totalorder %s38, 0
    %p91 = por %p89, %p90
    %s93 = sadd.s32 %s92, 1
    %p96 = scmp.eq.s32.totalorder %s32, 1
    %p97 = scmp.ne.s32.totalorder %s92, %s94
    %p98 = scmp.eq.s32.totalorder %s32, 0
    %p99 = por %p97, %p98
    %p100 = scmp.ne.s32.totalorder %s92, %s94
    %p101 = scmp.eq.s32.totalorder %s37, 1
    %p102 = por %p100, %p101
    %p103 = scmp.ne.s32.totalorder %s94, %s95
    %p104 = scmp.eq.s32.totalorder %s37, 0
    %p105 = por %p103, %p104
    %p106 = scmp.ne.s32.totalorder %s94, %s95
    %p107 = scmp.eq.s32.totalorder %s38, 1
    %p108 = por %p106, %p107
    %p110 = scmp.ne.s32.totalorder %s95, %s109
    %p111 = scmp.eq.s32.totalorder %s38, 0
    %p112 = por %p110, %p111
    %s114 = sadd.s32 %s113, 1
    %p117 = scmp.eq.s32.totalorder %s32, 1
    %p118 = scmp.ne.s32.totalorder %s113, %s115
    %p119 = scmp.eq.s32.totalorder %s32, 0
    %p120 = por %p118, %p119
    %p121 = scmp.ne.s32.totalorder %s113, %s115
    %p122 = scmp.eq.s32.totalorder %s37, 1
    %p123 = por %p121, %p122
    %p124 = scmp.ne.s32.totalorder %s115, %s116
    %p125 = scmp.eq.s32.totalorder %s37, 0
    %p126 = por %p124, %p125
    %p127 = scmp.ne.s32.totalorder %s115, %s116
    %p128 = scmp.eq.s32.totalorder %s38, 1
    %p129 = por %p127, %p128
    %p131 = scmp.ne.s32.totalorder %s116, %s130
    %p132 = scmp.eq.s32.totalorder %s38, 0
    %p133 = por %p131, %p132
    %s135 = sadd.s32 %s134, 1
    %p138 = scmp.eq.s32.totalorder %s32, 1
    %p139 = scmp.ne.s32.totalorder %s134, %s136
    %p140 = scmp.eq.s32.totalorder %s32, 0
    %p141 = por %p139, %p140
    %p142 = scmp.ne.s32.totalorder %s134, %s136
    %p143 = scmp.eq.s32.totalorder %s37, 1
    %p144 = por %p142, %p143
    %p145 = scmp.ne.s32.totalorder %s136, %s137
    %p146 = scmp.eq.s32.totalorder %s37, 0
    %p147 = por %p145, %p146
    %p148 = scmp.ne.s32.totalorder %s136, %s137
    %p149 = scmp.eq.s32.totalorder %s38, 1
    %p150 = por %p148, %p149
    %p152 = scmp.ne.s32.totalorder %s137, %s151
    %p153 = scmp.eq.s32.totalorder %s38, 0
    %p154 = por %p152, %p153
    %s156 = sadd.s32 %s155, 1
    %p159 = scmp.eq.s32.totalorder %s32, 1
    %p160 = scmp.ne.s32.totalorder %s155, %s157
    %p161 = scmp.eq.s32.totalorder %s32, 0
    %p162 = por %p160, %p161
    %p163 = scmp.ne.s32.totalorder %s155, %s157
    %p164 = scmp.eq.s32.totalorder %s37, 1
    %p165 = por %p163, %p164
    %p166 = scmp.ne.s32.totalorder %s157, %s158
    %p167 = scmp.eq.s32.totalorder %s37, 0
    %p168 = por %p166, %p167
    %p169 = scmp.ne.s32.totalorder %s157, %s158
    %p170 = scmp.eq.s32.totalorder %s38, 1
    %p171 = por %p169, %p170
    %p173 = scmp.ne.s32.totalorder %s158, %s172
    %p174 = scmp.eq.s32.totalorder %s38, 0
    %p175 = por %p173, %p174
    %s177 = sadd.s32 %s176, 1
    %p180 = scmp.eq.s32.totalorder %s32, 1
    %p181 = scmp.ne.s32.totalorder %s176, %s178
    %p182 = scmp.eq.s32.totalorder %s32, 0
    %p183 = por %p181, %p182
    %p184 = scmp.ne.s32.totalorder %s176, %s178
    %p185 = scmp.eq.s32.totalorder %s37, 1
    %p186 = por %p184, %p185
    %p187 = scmp.ne.s32.totalorder %s178, %s179
    %p188 = scmp.eq.s32.totalorder %s37, 0
    %p189 = por %p187, %p188
    %p190 = scmp.ne.s32.totalorder %s178, %s179
    %p191 = scmp.eq.s32.totalorder %s38, 1
    %p192 = por %p190, %p191
    %p194 = scmp.ne.s32.totalorder %s179, %s193
    %p195 = scmp.eq.s32.totalorder %s38, 0
    %p196 = por %p194, %p195
    %s198 = sadd.s32 %s197, 1
    %p201 = scmp.eq.s32.totalorder %s32, 1
    %p202 = scmp.ne.s32.totalorder %s197, %s199
    %p203 = scmp.eq.s32.totalorder %s32, 0
    %p204 = por %p202, %p203
    %p205 = scmp.ne.s32.totalorder %s197, %s199
    %p206 = scmp.eq.s32.totalorder %s37, 1
    %p207 = por %p205, %p206
    %p208 = scmp.ne.s32.totalorder %s199, %s200
    %p209 = scmp.eq.s32.totalorder %s37, 0
    %p210 = por %p208, %p209
    %p211 = scmp.ne.s32.totalorder %s199, %s200
    %p212 = scmp.eq.s32.totalorder %s38, 1
    %p213 = por %p211, %p212
    %p215 = scmp.ne.s32.totalorder %s200, %s214
    %p216 = scmp.eq.s32.totalorder %s38, 0
    %p217 = por %p215, %p216
    %s219 = sadd.s32 %s218, 1
    %p222 = scmp.eq.s32.totalorder %s32, 1
    %p223 = scmp.ne.s32.totalorder %s218, %s220
    %p224 = scmp.eq.s32.totalorder %s32, 0
    %p225 = por %p223, %p224
    %p226 = scmp.ne.s32.totalorder %s218, %s220
    %p227 = scmp.eq.s32.totalorder %s37, 1
    %p228 = por %p226, %p227
    %p229 = scmp.ne.s32.totalorder %s220, %s221
    %p230 = scmp.eq.s32.totalorder %s37, 0
    %p231 = por %p229, %p230
    %p232 = scmp.ne.s32.totalorder %s220, %s221
    %p233 = scmp.eq.s32.totalorder %s38, 1
    %p234 = por %p232, %p233
    %p236 = scmp.ne.s32.totalorder %s221, %s235
    %p237 = scmp.eq.s32.totalorder %s38, 0
    %p238 = por %p236, %p237
    %s240 = sadd.s32 %s239, 1
    %p243 = scmp.eq.s32.totalorder %s32, 1
    %p244 = scmp.ne.s32.totalorder %s239, %s241
    %p245 = scmp.eq.s32.totalorder %s32, 0
    %p246 = por %p244, %p245
    %p247 = scmp.ne.s32.totalorder %s239, %s241
    %p248 = scmp.eq.s32.totalorder %s37, 1
    %p249 = por %p247, %p248
    %p250 = scmp.ne.s32.totalorder %s241, %s242
    %p251 = scmp.eq.s32.totalorder %s37, 0
    %p252 = por %p250, %p251
    %p253 = scmp.ne.s32.totalorder %s241, %s242
    %p254 = scmp.eq.s32.totalorder %s38, 1
    %p255 = por %p253, %p254
    %p257 = scmp.ne.s32.totalorder %s242, %s256
    %p258 = scmp.eq.s32.totalorder %s38, 0
    %p259 = por %p257, %p258
    %s261 = sadd.s32 %s260, 1
    %p264 = scmp.eq.s32.totalorder %s32, 1
    %p265 = scmp.ne.s32.totalorder %s260, %s262
    %p266 = scmp.eq.s32.totalorder %s32, 0
    %p267 = por %p265, %p266
    %p268 = scmp.ne.s32.totalorder %s260, %s262
    %p269 = scmp.eq.s32.totalorder %s37, 1
    %p270 = por %p268, %p269
    %p271 = scmp.ne.s32.totalorder %s262, %s263
    %p272 = scmp.eq.s32.totalorder %s37, 0
    %p273 = por %p271, %p272
    %p274 = scmp.ne.s32.totalorder %s262, %s263
    %p275 = scmp.eq.s32.totalorder %s38, 1
    %p276 = por %p274, %p275
    %p278 = scmp.ne.s32.totalorder %s263, %s277
    %p279 = scmp.eq.s32.totalorder %s38, 0
    %p280 = por %p278, %p279
    %s282 = sadd.s32 %s281, 1
    %p285 = scmp.eq.s32.totalorder %s32, 1
    %p286 = scmp.ne.s32.totalorder %s281, %s283
    %p287 = scmp.eq.s32.totalorder %s32, 0
    %p288 = por %p286, %p287
    %p289 = scmp.ne.s32.totalorder %s281, %s283
    %p290 = scmp.eq.s32.totalorder %s37, 1
    %p291 = por %p289, %p290
    %p292 = scmp.ne.s32.totalorder %s283, %s284
    %p293 = scmp.eq.s32.totalorder %s37, 0
    %p294 = por %p292, %p293
    %p295 = scmp.ne.s32.totalorder %s283, %s284
    %p296 = scmp.eq.s32.totalorder %s38, 1
    %p297 = por %p295, %p296
    %p299 = scmp.ne.s32.totalorder %s284, %s298
    %p300 = scmp.eq.s32.totalorder %s38, 0
    %p301 = por %p299, %p300
    %s303 = sadd.s32 %s302, 1
    %p306 = scmp.eq.s32.totalorder %s32, 1
    %p307 = scmp.ne.s32.totalorder %s302, %s304
    %p308 = scmp.eq.s32.totalorder %s32, 0
    %p309 = por %p307, %p308
    %p310 = scmp.ne.s32.totalorder %s302, %s304
    %p311 = scmp.eq.s32.totalorder %s37, 1
    %p312 = por %p310, %p311
    %p313 = scmp.ne.s32.totalorder %s304, %s305
    %p314 = scmp.eq.s32.totalorder %s37, 0
    %p315 = por %p313, %p314
    %p316 = scmp.ne.s32.totalorder %s304, %s305
    %p317 = scmp.eq.s32.totalorder %s38, 1
    %p318 = por %p316, %p317
    %p320 = scmp.ne.s32.totalorder %s305, %s319
    %p321 = scmp.eq.s32.totalorder %s38, 0
    %p322 = por %p320, %p321
    %s324 = sadd.s32 %s323, 1
    %p327 = scmp.eq.s32.totalorder %s32, 1
    %p328 = scmp.ne.s32.totalorder %s323, %s325
    %p329 = scmp.eq.s32.totalorder %s32, 0
    %p330 = por %p328, %p329
    %p331 = scmp.ne.s32.totalorder %s323, %s325
    %p332 = scmp.eq.s32.totalorder %s37, 1
    %p333 = por %p331, %p332
    %p334 = scmp.ne.s32.totalorder %s325, %s326
    %p335 = scmp.eq.s32.totalorder %s37, 0
    %p336 = por %p334, %p335
    %p337 = scmp.ne.s32.totalorder %s325, %s326
    %p338 = scmp.eq.s32.totalorder %s38, 1
    %p339 = por %p337, %p338
    %p341 = scmp.ne.s32.totalorder %s326, %s340
    %p342 = scmp.eq.s32.totalorder %s38, 0
    %p343 = por %p341, %p342
    %s345 = sadd.s32 %s344, 1
    %p348 = scmp.eq.s32.totalorder %s32, 1
    %p349 = scmp.ne.s32.totalorder %s344, %s346
    %p350 = scmp.eq.s32.totalorder %s32, 0
    %p351 = por %p349, %p350
    %p352 = scmp.ne.s32.totalorder %s344, %s346
    %p353 = scmp.eq.s32.totalorder %s37, 1
    %p354 = por %p352, %p353
    %p355 = scmp.ne.s32.totalorder %s346, %s347
    %p356 = scmp.eq.s32.totalorder %s37, 0
    %p357 = por %p355, %p356
    %p358 = scmp.ne.s32.totalorder %s346, %s347
    %p359 = scmp.eq.s32.totalorder %s38, 1
    %p360 = por %p358, %p359
    %p362 = scmp.ne.s32.totalorder %s347, %s361
    %p363 = scmp.eq.s32.totalorder %s38, 0
    %p364 = por %p362, %p363
    %s366 = sadd.s32 %s365, 1
    %p369 = scmp.eq.s32.totalorder %s32, 1
    %p370 = scmp.ne.s32.totalorder %s365, %s367
    %p371 = scmp.eq.s32.totalorder %s32, 0
    %p372 = por %p370, %p371
    %p373 = scmp.ne.s32.totalorder %s365, %s367
    %p374 = scmp.eq.s32.totalorder %s37, 1
    %p375 = por %p373, %p374
    %p376 = scmp.ne.s32.totalorder %s367, %s368
    %p377 = scmp.eq.s32.totalorder %s37, 0
    %p378 = por %p376, %p377
    %p379 = scmp.ne.s32.totalorder %s367, %s368
    %p380 = scmp.eq.s32.totalorder %s38, 1
    %p381 = por %p379, %p380
    %p383 = scmp.ne.s32.totalorder %s368, %s382
    %p384 = scmp.eq.s32.totalorder %s38, 0
    %p385 = por %p383, %p384
    %s387 = sadd.s32 %s386, 1
    %p390 = scmp.eq.s32.totalorder %s32, 1
    %p391 = scmp.ne.s32.totalorder %s386, %s388
    %p392 = scmp.eq.s32.totalorder %s32, 0
    %p393 = por %p391, %p392
    %p394 = scmp.ne.s32.totalorder %s386, %s388
    %p395 = scmp.eq.s32.totalorder %s37, 1
    %p396 = por %p394, %p395
    %p397 = scmp.ne.s32.totalorder %s388, %s389
    %p398 = scmp.eq.s32.totalorder %s37, 0
    %p399 = por %p397, %p398
    %p400 = scmp.ne.s32.totalorder %s388, %s389
    %p401 = scmp.eq.s32.totalorder %s38, 1
    %p402 = por %p400, %p401
    %p404 = scmp.ne.s32.totalorder %s389, %s403
    %p405 = scmp.eq.s32.totalorder %s38, 0
    %p406 = por %p404, %p405
    %s408 = sadd.s32 %s407, 1
    %p411 = scmp.eq.s32.totalorder %s32, 1
    %p412 = scmp.ne.s32.totalorder %s407, %s409
    %p413 = scmp.eq.s32.totalorder %s32, 0
    %p414 = por %p412, %p413
    %p415 = scmp.ne.s32.totalorder %s407, %s409
    %p416 = scmp.eq.s32.totalorder %s37, 1
    %p417 = por %p415, %p416
    %p418 = scmp.ne.s32.totalorder %s409, %s410
    %p419 = scmp.eq.s32.totalorder %s37, 0
    %p420 = por %p418, %p419
    %p421 = scmp.ne.s32.totalorder %s409, %s410
    %p422 = scmp.eq.s32.totalorder %s38, 1
    %p423 = por %p421, %p422
    %p425 = scmp.ne.s32.totalorder %s410, %s424
    %p426 = scmp.eq.s32.totalorder %s38, 0
    %p427 = por %p425, %p426
    %s429 = sadd.s32 %s428, 1
    %p432 = scmp.eq.s32.totalorder %s32, 1
    %p433 = scmp.ne.s32.totalorder %s428, %s430
    %p434 = scmp.eq.s32.totalorder %s32, 0
    %p435 = por %p433, %p434
    %p436 = scmp.ne.s32.totalorder %s428, %s430
    %p437 = scmp.eq.s32.totalorder %s37, 1
    %p438 = por %p436, %p437
    %p439 = scmp.ne.s32.totalorder %s430, %s431
    %p440 = scmp.eq.s32.totalorder %s37, 0
    %p441 = por %p439, %p440
    %p442 = scmp.ne.s32.totalorder %s430, %s431
    %p443 = scmp.eq.s32.totalorder %s38, 1
    %p444 = por %p442, %p443
    %p446 = scmp.ne.s32.totalorder %s431, %s445
    %p447 = scmp.eq.s32.totalorder %s38, 0
    %p448 = por %p446, %p447
    %s450 = sadd.s32 %s449, 1
    %p453 = scmp.eq.s32.totalorder %s32, 1
    %p454 = scmp.ne.s32.totalorder %s449, %s451
    %p455 = scmp.eq.s32.totalorder %s32, 0
    %p456 = por %p454, %p455
    %p457 = scmp.ne.s32.totalorder %s449, %s451
    %p458 = scmp.eq.s32.totalorder %s37, 1
    %p459 = por %p457, %p458
    %p460 = scmp.ne.s32.totalorder %s451, %s452
    %p461 = scmp.eq.s32.totalorder %s37, 0
    %p462 = por %p460, %p461
    %p463 = scmp.ne.s32.totalorder %s451, %s452
    %p464 = scmp.eq.s32.totalorder %s38, 1
    %p465 = por %p463, %p464
    %p467 = scmp.ne.s32.totalorder %s452, %s466
    %p468 = scmp.eq.s32.totalorder %s38, 0
    %p469 = por %p467, %p468
    %s471 = sadd.s32 %s470, 1
    %p474 = scmp.eq.s32.totalorder %s32, 1
    %p475 = scmp.ne.s32.totalorder %s470, %s472
    %p476 = scmp.eq.s32.totalorder %s32, 0
    %p477 = por %p475, %p476
    %p478 = scmp.ne.s32.totalorder %s470, %s472
    %p479 = scmp.eq.s32.totalorder %s37, 1
    %p480 = por %p478, %p479
    %p481 = scmp.ne.s32.totalorder %s472, %s473
    %p482 = scmp.eq.s32.totalorder %s37, 0
    %p483 = por %p481, %p482
    %p484 = scmp.ne.s32.totalorder %s472, %s473
    %p485 = scmp.eq.s32.totalorder %s38, 1
    %p486 = por %p484, %p485
    %p488 = scmp.ne.s32.totalorder %s473, %s487
    %p489 = scmp.eq.s32.totalorder %s38, 0
    %p490 = por %p488, %p489
    %s492 = sadd.s32 %s491, 1
    %p495 = scmp.eq.s32.totalorder %s32, 1
    %p496 = scmp.ne.s32.totalorder %s491, %s493
    %p497 = scmp.eq.s32.totalorder %s32, 0
    %p498 = por %p496, %p497
    %p499 = scmp.ne.s32.totalorder %s491, %s493
    %p500 = scmp.eq.s32.totalorder %s37, 1
    %p501 = por %p499, %p500
    %p502 = scmp.ne.s32.totalorder %s493, %s494
    %p503 = scmp.eq.s32.totalorder %s37, 0
    %p504 = por %p502, %p503
    %p505 = scmp.ne.s32.totalorder %s493, %s494
    %p506 = scmp.eq.s32.totalorder %s38, 1
    %p507 = por %p505, %p506
    %p509 = scmp.ne.s32.totalorder %s494, %s508
    %p510 = scmp.eq.s32.totalorder %s38, 0
    %p511 = por %p509, %p510
    %s513 = sadd.s32 %s512, 1
    %p516 = scmp.eq.s32.totalorder %s32, 1
    %p517 = scmp.ne.s32.totalorder %s512, %s514
    %p518 = scmp.eq.s32.totalorder %s32, 0
    %p519 = por %p517, %p518
    %p520 = scmp.ne.s32.totalorder %s512, %s514
    %p521 = scmp.eq.s32.totalorder %s37, 1
    %p522 = por %p520, %p521
    %p523 = scmp.ne.s32.totalorder %s514, %s515
    %p524 = scmp.eq.s32.totalorder %s37, 0
    %p525 = por %p523, %p524
    %p526 = scmp.ne.s32.totalorder %s514, %s515
    %p527 = scmp.eq.s32.totalorder %s38, 1
    %p528 = por %p526, %p527
    %p530 = scmp.ne.s32.totalorder %s515, %s529
    %p531 = scmp.eq.s32.totalorder %s38, 0
    %p532 = por %p530, %p531
    %s534 = sadd.s32 %s533, 1
    %p537 = scmp.eq.s32.totalorder %s32, 1
    %p538 = scmp.ne.s32.totalorder %s533, %s535
    %p539 = scmp.eq.s32.totalorder %s32, 0
    %p540 = por %p538, %p539
    %p541 = scmp.ne.s32.totalorder %s533, %s535
    %p542 = scmp.eq.s32.totalorder %s37, 1
    %p543 = por %p541, %p542
    %p544 = scmp.ne.s32.totalorder %s535, %s536
    %p545 = scmp.eq.s32.totalorder %s37, 0
    %p546 = por %p544, %p545
    %p547 = scmp.ne.s32.totalorder %s535, %s536
    %p548 = scmp.eq.s32.totalorder %s38, 1
    %p549 = por %p547, %p548
    %p551 = scmp.ne.s32.totalorder %s536, %s550
    %p552 = scmp.eq.s32.totalorder %s38, 0
    %p553 = por %p551, %p552
    %s554 = ssub.s32 %s32, %s39
    %p555 = scmp.eq.s32.totalorder %s554, 0
    %s557 = sadd.s32 %s556, 1
    %s558 = scalar_select %p555, %s556, %s557
    %p561 = pneg %p555
    %p562 = scmp.eq.s32.totalorder %s32, 1
    %p563 = por %p561, %p562
    %p564 = scmp.ne.s32.totalorder %s556, %s559
    %p565 = scmp.eq.s32.totalorder %s32, 0
    %p566 = por %p564, %p565
    %p567 = scmp.ne.s32.totalorder %s556, %s559
    %p568 = scmp.eq.s32.totalorder %s37, 1
    %p569 = por %p567, %p568
    %p570 = scmp.ne.s32.totalorder %s559, %s560
    %p571 = scmp.eq.s32.totalorder %s37, 0
    %p572 = por %p570, %p571
    %p573 = scmp.ne.s32.totalorder %s559, %s560
    %p574 = scmp.eq.s32.totalorder %s38, 1
    %p575 = por %p573, %p574
    %p577 = scmp.ne.s32.totalorder %s560, %s576
    %p578 = scmp.eq.s32.totalorder %s38, 0
    %p579 = por %p577, %p578
    %s580 = ssub.s32 %s32, %s39
    %p581 = scmp.eq.s32.totalorder %s580, 0
    %s583 = sadd.s32 %s582, 1
    %s584 = scalar_select %p581, %s582, %s583
    %p587 = pneg %p581
    %p588 = scmp.eq.s32.totalorder %s32, 1
    %p589 = por %p587, %p588
    %p590 = scmp.ne.s32.totalorder %s582, %s585
    %p591 = scmp.eq.s32.totalorder %s32, 0
    %p592 = por %p590, %p591
    %p593 = scmp.ne.s32.totalorder %s582, %s585
    %p594 = scmp.eq.s32.totalorder %s37, 1
    %p595 = por %p593, %p594
    %p596 = scmp.ne.s32.totalorder %s585, %s586
    %p597 = scmp.eq.s32.totalorder %s37, 0
    %p598 = por %p596, %p597
    %p599 = scmp.ne.s32.totalorder %s585, %s586
    %p600 = scmp.eq.s32.totalorder %s38, 1
    %p601 = por %p599, %p600
    %p603 = scmp.ne.s32.totalorder %s586, %s602
    %p604 = scmp.eq.s32.totalorder %s38, 0
    %p605 = por %p603, %p604
    %p606 = scmp.le.s32.totalorder 1, %s32
    %p607 = scmp.lt.s32.totalorder %s32, 3
    %p608 = pnand %p606, %p607
    %p609 = pneg %p608
    // Predicated region
    $region9: #{_lambda_.1} parent=5 // pred_check
      _
    $region10: #{_lambda_.1} parent=5 // pred_check_branch
      %611 = sbr.rel (%p608) target = $region12
    $region11: #{_lambda_.1} parent=5 // pred_region
      %s612 = ssub.s32 %s32, 1
      // Predicated region
      $region13: #{_lambda_.1} parent=11 // pred_check
        %p613 = pneg %p105
      $region14: #{_lambda_.1} parent=11 // pred_check_branch
        %615 = sbr.rel (%p613) target = $region16
      $region15: #{_lambda_.1} parent=11 // pred_region
        _
      $region16: #{_lambda_.1} parent=11 // pred_fallthru
        _
      // Predicated region
      $region17: #{_lambda_.1} parent=11 // pred_check
        %p616 = pneg %p126
      $region18: #{_lambda_.1} parent=11 // pred_check_branch
        %618 = sbr.rel (%p616) target = $region20
      $region19: #{_lambda_.1} parent=11 // pred_region
        _
      $region20: #{_lambda_.1} parent=11 // pred_fallthru
        _
      // Predicated region
      $region21: #{_lambda_.1} parent=11 // pred_check
        %p619 = pneg %p147
      $region22: #{_lambda_.1} parent=11 // pred_check_branch
        %621 = sbr.rel (%p619) target = $region24
      $region23: #{_lambda_.1} parent=11 // pred_region
        _
      $region24: #{_lambda_.1} parent=11 // pred_fallthru
        _
      // Predicated region
      $region25: #{_lambda_.1} parent=11 // pred_check
        %p622 = pneg %p168
      $region26: #{_lambda_.1} parent=11 // pred_check_branch
        %624 = sbr.rel (%p622) target = $region28
      $region27: #{_lambda_.1} parent=11 // pred_region
        _
      $region28: #{_lambda_.1} parent=11 // pred_fallthru
        _
      // Predicated region
      $region29: #{_lambda_.1} parent=11 // pred_check
        %p625 = pneg %p189
      $region30: #{_lambda_.1} parent=11 // pred_check_branch
        %627 = sbr.rel (%p625) target = $region32
      $region31: #{_lambda_.1} parent=11 // pred_region
        _
      $region32: #{_lambda_.1} parent=11 // pred_fallthru
        _
      // Predicated region
      $region33: #{_lambda_.1} parent=11 // pred_check
        %p628 = pneg %p210
      $region34: #{_lambda_.1} parent=11 // pred_check_branch
        %630 = sbr.rel (%p628) target = $region36
      $region35: #{_lambda_.1} parent=11 // pred_region
        _
      $region36: #{_lambda_.1} parent=11 // pred_fallthru
        _
      // Predicated region
      $region37: #{_lambda_.1} parent=11 // pred_check
        %p631 = pneg %p231
      $region38: #{_lambda_.1} parent=11 // pred_check_branch
        %633 = sbr.rel (%p631) target = $region40
      $region39: #{_lambda_.1} parent=11 // pred_region
        _
      $region40: #{_lambda_.1} parent=11 // pred_fallthru
        _
      // Predicated region
      $region41: #{_lambda_.1} parent=11 // pred_check
        %p634 = pneg %p252
      $region42: #{_lambda_.1} parent=11 // pred_check_branch
        %636 = sbr.rel (%p634) target = $region44
      $region43: #{_lambda_.1} parent=11 // pred_region
        _
      $region44: #{_lambda_.1} parent=11 // pred_fallthru
        _
      // Predicated region
      $region45: #{_lambda_.1} parent=11 // pred_check
        %p637 = pneg %p273
      $region46: #{_lambda_.1} parent=11 // pred_check_branch
        %639 = sbr.rel (%p637) target = $region48
      $region47: #{_lambda_.1} parent=11 // pred_region
        _
      $region48: #{_lambda_.1} parent=11 // pred_fallthru
        _
      // Predicated region
      $region49: #{_lambda_.1} parent=11 // pred_check
        %p640 = pneg %p294
      $region50: #{_lambda_.1} parent=11 // pred_check_branch
        %642 = sbr.rel (%p640) target = $region52
      $region51: #{_lambda_.1} parent=11 // pred_region
        _
      $region52: #{_lambda_.1} parent=11 // pred_fallthru
        _
      // Predicated region
      $region53: #{_lambda_.1} parent=11 // pred_check
        %p643 = pneg %p315
      $region54: #{_lambda_.1} parent=11 // pred_check_branch
        %645 = sbr.rel (%p643) target = $region56
      $region55: #{_lambda_.1} parent=11 // pred_region
        _
      $region56: #{_lambda_.1} parent=11 // pred_fallthru
        _
      // Predicated region
      $region57: #{_lambda_.1} parent=11 // pred_check
        %p646 = pneg %p336
      $region58: #{_lambda_.1} parent=11 // pred_check_branch
        %648 = sbr.rel (%p646) target = $region60
      $region59: #{_lambda_.1} parent=11 // pred_region
        _
      $region60: #{_lambda_.1} parent=11 // pred_fallthru
        _
      // Predicated region
      $region61: #{_lambda_.1} parent=11 // pred_check
        %p649 = pneg %p357
      $region62: #{_lambda_.1} parent=11 // pred_check_branch
        %651 = sbr.rel (%p649) target = $region64
      $region63: #{_lambda_.1} parent=11 // pred_region
        _
      $region64: #{_lambda_.1} parent=11 // pred_fallthru
        _
      // Predicated region
      $region65: #{_lambda_.1} parent=11 // pred_check
        %p652 = pneg %p378
      $region66: #{_lambda_.1} parent=11 // pred_check_branch
        %654 = sbr.rel (%p652) target = $region68
      $region67: #{_lambda_.1} parent=11 // pred_region
        _
      $region68: #{_lambda_.1} parent=11 // pred_fallthru
        _
      // Predicated region
      $region69: #{_lambda_.1} parent=11 // pred_check
        %p655 = pneg %p399
      $region70: #{_lambda_.1} parent=11 // pred_check_branch
        %657 = sbr.rel (%p655) target = $region72
      $region71: #{_lambda_.1} parent=11 // pred_region
        _
      $region72: #{_lambda_.1} parent=11 // pred_fallthru
        _
      // Predicated region
      $region73: #{_lambda_.1} parent=11 // pred_check
        %p658 = pneg %p420
      $region74: #{_lambda_.1} parent=11 // pred_check_branch
        %660 = sbr.rel (%p658) target = $region76
      $region75: #{_lambda_.1} parent=11 // pred_region
        _
      $region76: #{_lambda_.1} parent=11 // pred_fallthru
        _
      // Predicated region
      $region77: #{_lambda_.1} parent=11 // pred_check
        %p661 = pneg %p441
      $region78: #{_lambda_.1} parent=11 // pred_check_branch
        %663 = sbr.rel (%p661) target = $region80
      $region79: #{_lambda_.1} parent=11 // pred_region
        _
      $region80: #{_lambda_.1} parent=11 // pred_fallthru
        _
      // Predicated region
      $region81: #{_lambda_.1} parent=11 // pred_check
        %p664 = pneg %p462
      $region82: #{_lambda_.1} parent=11 // pred_check_branch
        %666 = sbr.rel (%p664) target = $region84
      $region83: #{_lambda_.1} parent=11 // pred_region
        _
      $region84: #{_lambda_.1} parent=11 // pred_fallthru
        _
      // Predicated region
      $region85: #{_lambda_.1} parent=11 // pred_check
        %p667 = pneg %p483
      $region86: #{_lambda_.1} parent=11 // pred_check_branch
        %669 = sbr.rel (%p667) target = $region88
      $region87: #{_lambda_.1} parent=11 // pred_region
        _
      $region88: #{_lambda_.1} parent=11 // pred_fallthru
        _
      // Predicated region
      $region89: #{_lambda_.1} parent=11 // pred_check
        %p670 = pneg %p504
      $region90: #{_lambda_.1} parent=11 // pred_check_branch
        %672 = sbr.rel (%p670) target = $region92
      $region91: #{_lambda_.1} parent=11 // pred_region
        _
      $region92: #{_lambda_.1} parent=11 // pred_fallthru
        _
      // Predicated region
      $region93: #{_lambda_.1} parent=11 // pred_check
        %p673 = pneg %p525
      $region94: #{_lambda_.1} parent=11 // pred_check_branch
        %675 = sbr.rel (%p673) target = $region96
      $region95: #{_lambda_.1} parent=11 // pred_region
        _
      $region96: #{_lambda_.1} parent=11 // pred_fallthru
        _
      // Predicated region
      $region97: #{_lambda_.1} parent=11 // pred_check
        %p676 = pneg %p546
      $region98: #{_lambda_.1} parent=11 // pred_check_branch
        %678 = sbr.rel (%p676) target = $region100
      $region99: #{_lambda_.1} parent=11 // pred_region
        _
      $region100: #{_lambda_.1} parent=11 // pred_fallthru
        _
    $region12: #{_lambda_.1} parent=5 // pred_fallthru
      _
    %p679 = scmp.lt.s32.totalorder %s32, 2
    // Predicated region
    $region101: #{_lambda_.1} parent=5 // pred_check
      %p680 = pneg %p679
    $region102: #{_lambda_.1} parent=5 // pred_check_branch
      %682 = sbr.rel (%p680) target = $region104
    $region103: #{_lambda_.1} parent=5 // pred_region
      // Predicated region
      $region105: #{_lambda_.1} parent=103 // pred_check
        %p683 = pneg %p52
      $region106: #{_lambda_.1} parent=103 // pred_check_branch
        %685 = sbr.rel (%p683) target = $region108
      $region107: #{_lambda_.1} parent=103 // pred_region
        %p686 = scmp.lt.s32.totalorder %s32, 1
        %s687 = scalar_select %p686, %s32, 1
        %s688 = smul.addr %s687, 2
        %s689 = smul.addr %s688, 8
        %s690 = scalar_lea.vmem %s0, %s689
      $region108: #{_lambda_.1} parent=103 // pred_fallthru
        _
      // Predicated region
      $region109: #{_lambda_.1} parent=103 // pred_check
        %p691 = pneg %p78
      $region110: #{_lambda_.1} parent=103 // pred_check_branch
        %693 = sbr.rel (%p691) target = $region112
      $region111: #{_lambda_.1} parent=103 // pred_region
        %p694 = scmp.lt.s32.totalorder %s32, 1
        %s695 = scalar_select %p694, %s32, 1
        %s696 = scalar_lea.vmem %s1, %s695
      $region112: #{_lambda_.1} parent=103 // pred_fallthru
        _
    $region104: #{_lambda_.1} parent=5 // pred_fallthru
      _
    %p697 = scmp.le.s32.totalorder 1, %s32
    %p698 = scmp.lt.s32.totalorder %s32, 3
    %p699 = pnand %p697, %p698
    %p700 = pneg %p699
    // Predicated region
    $region113: #{_lambda_.1} parent=5 // pred_check
      _
    $region114: #{_lambda_.1} parent=5 // pred_check_branch
      %702 = sbr.rel (%p699) target = $region116
    $region115: #{_lambda_.1} parent=5 // pred_region
      %s703 = ssub.s32 %s32, 1
      %p704 = scmp.lt.s32.totalorder %s37, 1
      %s705 = scalar_select %p704, %s37, 1
      %s706 = smul.addr %s705, 2
      %s707 = smul.addr %s706, 8
      %s708 = scalar_lea.vmem %s0, %s707
      %p709 = pneg %p58
      %p710 = pneg %p55
      %p711 = scmp.lt.s32.totalorder %s37, 1
      %s712 = scalar_select %p711, %s37, 1
      %s713 = scalar_lea.vmem %s1, %s712
      %p714 = pneg %p84
      %p715 = pneg %p81
      %p716 = pneg %p105
      %p717 = pneg %p102
      %p718 = pneg %p126
      %p719 = pneg %p123
      %p720 = pneg %p147
      %p721 = pneg %p144
      %p722 = pneg %p168
      %p723 = pneg %p165
      %p724 = pneg %p189
      %p725 = pneg %p186
      %p726 = pneg %p210
      %p727 = pneg %p207
      %p728 = pneg %p231
      %p729 = pneg %p228
      %p730 = pneg %p252
      %p731 = pneg %p249
      %p732 = pneg %p273
      %p733 = pneg %p270
      %p734 = pneg %p294
      %p735 = pneg %p291
      %p736 = pneg %p315
      %p737 = pneg %p312
      %p738 = pneg %p336
      %p739 = pneg %p333
      %p740 = pneg %p357
      %p741 = pneg %p354
      %p742 = pneg %p378
      %p743 = pneg %p375
      %p744 = pneg %p399
      %p745 = pneg %p396
      %p746 = pneg %p420
      %p747 = pneg %p417
      %p748 = pneg %p441
      %p749 = pneg %p438
      %p750 = pneg %p462
      %p751 = pneg %p459
      %p752 = pneg %p483
      %p753 = pneg %p480
      %p754 = pneg %p504
      %p755 = pneg %p501
      %p756 = pneg %p525
      %p757 = pneg %p522
      %p758 = pneg %p546
      %p759 = pneg %p543
      %p760 = pneg %p572
      %p761 = pneg %p569
      %p762 = scmp.lt.s32.totalorder %s37, 1
      %s763 = scalar_select %p762, %s37, 1
      %s764 = smul.addr %s763, 2
      %s765 = smul.addr %s764, 8
      %s766 = scalar_lea.vmem %s24, %s765
      %p767 = pneg %p598
      %p768 = pneg %p595
      %p769 = scmp.lt.s32.totalorder %s37, 1
      %s770 = scalar_select %p769, %s37, 1
      %s771 = smul.addr %s770, 2
      %s772 = smul.addr %s771, 8
      %s773 = scalar_lea.vmem %s25, %s772
      %p774 = scmp.lt.s32.totalorder %s37, 1
      %s775 = scalar_select %p774, %s37, 1
      %s776 = smul.addr %s775, 2
      %s777 = smul.addr %s776, 8
      %s778 = scalar_lea.vmem %s0, %s777
      %p779 = scmp.lt.s32.totalorder %s37, 1
      %s780 = scalar_select %p779, %s37, 1
      %s781 = scalar_lea.vmem %s1, %s780
      %p782 = scmp.lt.s32.totalorder %s37, 1
      %s783 = scalar_select %p782, %s37, 1
      %s784 = smul.addr %s783, 2
      %s785 = smul.addr %s784, 8
      %s786 = scalar_lea.vmem %s24, %s785
      %p787 = scmp.lt.s32.totalorder %s37, 1
      %s788 = scalar_select %p787, %s37, 1
      %s789 = smul.addr %s788, 2
      %s790 = smul.addr %s789, 8
      %s791 = scalar_lea.vmem %s25, %s790
      %v792 = vld [vmem:[%s778] sm:$0xff]
      %v793 = vld [vmem:[%s778 + $0x8] sm:$0xff]
      %v794 = vld [vmem:[%s781] sm:$0x1]
      %v795 = vld [vmem:[%s2] sm:$0xff]
      %v796 = vld [vmem:[%s2 + $0x8] sm:$0xff]
      %s797 = scalar_lea.vmem %s2, 16
      %v798 = vld [vmem:[%s797] sm:$0xff]
      %v799 = vld [vmem:[%s797 + $0x8] sm:$0xff]
      %v800 = vld [vmem:[%s3] sm:$0xff]
      %v801 = vld [vmem:[%s3 + $0x8] sm:$0xff]
      %v802 = vld [vmem:[%s3 + $0x10] sm:$0xff]
      %v803 = vld [vmem:[%s3 + $0x18] sm:$0xff]
      %v804 = vld [vmem:[%s4] sm:$0xff]
      %v805 = vld [vmem:[%s4 + $0x8] sm:$0xff]
      %v806 = vld [vmem:[%s5] sm:$0x1]
      %v807 = vlaneseq
      %v808 = vshrl.u32 %v807, 7
      %v809 = vsub.s32 0, %v808
      %v810 = vrot.slane %v806, %v809
      %vm811 = vcmask 130048
      %v813 = vsel %vm811, %v792, 0
      %v816 = vsel %vm811, %v793, 0
      %818 = vmatprep.subr.mxu0 0.0
      %819 = vmatpush1.msra.mxu0 %v804
      %820 = vmatprep.subr.mxu0 0.0
      %821 = vmatpush1.msra.mxu0 %v805
      %822 = vmatprep.subr.mxu0 0.0
      %823 = vmatpush1.msra.mxu0 0.0
      %824 = vmatprep.subr.mxu0 0.0
      %825 = vmatpush1.msra.mxu0 0.0
      %826 = vmatprep.subr.mxu0 0.0
      %827 = vmatpush1.msra.mxu0 0.0
      %828 = vmatprep.subr.mxu0 0.0
      %829 = vmatpush1.msra.mxu0 0.0
      %830 = vmatprep.subr.mxu0 0.0
      %831 = vmatpush1.msra.mxu0 0.0
      %832 = vmatprep.subr.mxu0 0.0
      %833 = vmatpush1.msra.mxu0 0.0
      %834 = vmatprep.subr.mxu0 0.0
      %835 = vmatpush1.msra.mxu0 0.0
      %836 = vmatprep.subr.mxu0 0.0
      %837 = vmatpush1.msra.mxu0 0.0
      %838 = vmatprep.subr.mxu0 0.0
      %839 = vmatpush1.msra.mxu0 0.0
      %840 = vmatprep.subr.mxu0 0.0
      %841 = vmatpush1.msra.mxu0 0.0
      %842 = vmatprep.subr.mxu0 0.0
      %843 = vmatpush1.msra.mxu0 0.0
      %844 = vmatprep.subr.mxu0 0.0
      %845 = vmatpush1.msra.mxu0 0.0
      %846 = vmatprep.subr.mxu0 0.0
      %847 = vmatpush1.msra.mxu0 0.0
      %848 = vmatprep.subr.mxu0 0.0
      %849 = vmatpush1.msra.mxu0 0.0
      %850 = vmatprep.subr.mxu0 0.0
      %851 = vmatpush1.msra.mxu0 0.0
      %852 = vmatprep.subr.mxu0 0.0
      %853 = vmatpush1.msra.mxu0 0.0
      %854 = vmatprep.subr.mxu0 0.0
      %855 = vmatpush1.msra.mxu0 0.0
      %856 = vmatprep.subr.mxu0 0.0
      %857 = vmatpush1.msra.mxu0 0.0
      %858 = vmatprep.subr.mxu0 0.0
      %859 = vmatpush1.msra.mxu0 0.0
      %860 = vmatprep.subr.mxu0 0.0
      %861 = vmatpush1.msra.mxu0 0.0
      %862 = vmatprep.subr.mxu0 0.0
      %863 = vmatpush1.msra.mxu0 0.0
      %864 = vmatprep.subr.mxu0 0.0
      %865 = vmatpush1.msra.mxu0 0.0
      %866 = vmatprep.subr.mxu0 0.0
      %867 = vmatpush1.msra.mxu0 0.0
      %868 = vmatprep.subr.mxu0 0.0
      %869 = vmatpush1.msra.mxu0 0.0
      %870 = vmatprep.subr.mxu0 0.0
      %871 = vmatpush1.msra.mxu0 0.0
      %872 = vmatprep.subr.mxu0 0.0
      %873 = vmatpush1.msra.mxu0 0.0
      %874 = vmatprep.subr.mxu0 0.0
      %875 = vmatpush1.msra.mxu0 0.0
      %876 = vmatprep.subr.mxu0 0.0
      %877 = vmatpush1.msra.mxu0 0.0
      %878 = vmatprep.subr.mxu0 0.0
      %879 = vmatpush1.msra.mxu0 0.0
      %880 = vmatprep.subr.mxu0 0.0
      %881 = vmatpush1.msra.mxu0 0.0
      %882 = vmatprep.mubr.f32.mxu0 0.0
      %883 = vmatmul.mubr.f32.gmra.mrb[0].mxu0 %v813
      %v884 = vpop.f32.mrb[0].mxu0
      %v885 = vadd.f32 %v810, %v884
      %v886 = vpop.f32.mrb[0].mxu0
      %887 = vmatprep.mubr.f32.mxu0 0.0
      %888 = vmatmul.mubr.f32.gmra.mrb[0].mxu0 %v816
      %v889 = vpop.f32.mrb[0].mxu0
      %v890 = vadd.f32 %v810, %v889
      %v891 = vpop.f32.mrb[0].mxu0
      %892 = vdwg.mxu0
      %v893 = vxor.u32 %v885, 2147483648
      %v894 = vxor.u32 %v890, 2147483648
      %v895 = vmul.f32 %v893, 1.442695
      %v896 = vpow.pop %v895
      %v897 = vmul.f32 %v894, 1.442695
      %v898 = vpow.pop %v897
      %v899 = vadd.f32 %v896, 1.0
      %v900 = vadd.f32 %v898, 1.0
      %v901 = vrcp.pop %v899
      %v902 = vmul.f32 1.0, %v901
      %v903 = vrcp.pop %v900
      %v904 = vmul.f32 1.0, %v903
      %v905 = vmul.f32 %v885, %v902
      %v906 = vmul.f32 %v890, %v904
      %v907 = vld [vmem:[%s6] sm:$0xff]
      %v908 = vld [vmem:[%s6 + $0x8] sm:$0xff]
      %s909 = scalar_lea.vmem %s6, 16
      %v910 = vld [vmem:[%s909] sm:$0xff]
      %v911 = vld [vmem:[%s909 + $0x8] sm:$0xff]
      %vm912 = vcmask 261120
      %v913 = vsel %vm912, %v905, 0.0
      %v914 = vsel %vm912, %v906, 0.0
      %v915 = vadd.f32 %v913, %v914
      %916 = vadd.xlane.f32.xlu0 %v915
      %v917 = vpop.xlane.xlu0 %916
      %v918 = vrot.slane %v917, 4
      %v919 = vadd.f32 %v917, %v918
      %v920 = vrot.slane %v919, 2
      %v921 = vadd.f32 %v919, %v920
      %v922 = vrot.slane %v921, 1
      %v923 = vadd.f32 %v921, %v922
      %s924 = vtos %v923
      %v925 = vrcp.pop 512.0
      %s926 = vtos %v925
      %s927 = smul.f32 %s924, %s926
      %v928 = vstv %s927
      %v929 = vsub.f32 %v905, %v928
      %v930 = vsub.f32 %v906, %v928
      %v931 = vmul.f32 %v929, %v929
      %v932 = vmul.f32 %v930, %v930
      %v933 = vsel %vm912, %v931, 0.0
      %v934 = vsel %vm912, %v932, 0.0
      %v935 = vadd.f32 %v933, %v934
      %936 = vadd.xlane.f32.xlu0 %v935
      %v937 = vpop.xlane.xlu0 %936
      %v938 = vrot.slane %v937, 4
      %v939 = vadd.f32 %v937, %v938
      %v940 = vrot.slane %v939, 2
      %v941 = vadd.f32 %v939, %v940
      %v942 = vrot.slane %v941, 1
      %v943 = vadd.f32 %v941, %v942
      %s944 = vtos %v943
      %v945 = vrcp.pop 512.0
      %s946 = vtos %v945
      %s947 = smul.f32 %s944, %s946
      %s948 = sadd.f32 %s947, 1e-05
      %v949 = vstv %s948
      %v950 = vrsqrt.pop %v949
      %s951 = vtos %v950
      %v952 = vstv %s951
      %v953 = vmul.f32 %v929, %v952
      %v954 = vmul.f32 %v930, %v952
      %v955 = vmul.f32 %v953, %v907
      %v956 = vmul.f32 %v954, %v908
      %v957 = vadd.f32 %v955, %v910
      %v958 = vadd.f32 %v956, %v911
      %v959 = vmul.f32 %v957, %v795
      %v960 = vmul.f32 %v958, %v796
      %v962 = vsel %vm912, %v957, 0
      %v965 = vsel %vm912, %v958, 0
      %967 = vmatprep.subr.mxu0 0.0
      %968 = vmatpush1.msra.mxu0 %v800
      %969 = vmatprep.subr.mxu0 0.0
      %970 = vmatpush1.msra.mxu0 %v801
      %971 = vmatprep.subr.mxu0 0.0
      %972 = vmatpush1.msra.mxu0 %v802
      %973 = vmatprep.subr.mxu0 0.0
      %974 = vmatpush1.msra.mxu0 %v803
      %975 = vmatprep.subr.mxu0 0.0
      %976 = vmatpush1.msra.mxu0 0.0
      %977 = vmatprep.subr.mxu0 0.0
      %978 = vmatpush1.msra.mxu0 0.0
      %979 = vmatprep.subr.mxu0 0.0
      %980 = vmatpush1.msra.mxu0 0.0
      %981 = vmatprep.subr.mxu0 0.0
      %982 = vmatpush1.msra.mxu0 0.0
      %983 = vmatprep.subr.mxu0 0.0
      %984 = vmatpush1.msra.mxu0 0.0
      %985 = vmatprep.subr.mxu0 0.0
      %986 = vmatpush1.msra.mxu0 0.0
      %987 = vmatprep.subr.mxu0 0.0
      %988 = vmatpush1.msra.mxu0 0.0
      %989 = vmatprep.subr.mxu0 0.0
      %990 = vmatpush1.msra.mxu0 0.0
      %991 = vmatprep.subr.mxu0 0.0
      %992 = vmatpush1.msra.mxu0 0.0
      %993 = vmatprep.subr.mxu0 0.0
      %994 = vmatpush1.msra.mxu0 0.0
      %995 = vmatprep.subr.mxu0 0.0
      %996 = vmatpush1.msra.mxu0 0.0
      %997 = vmatprep.subr.mxu0 0.0
      %998 = vmatpush1.msra.mxu0 0.0
      %999 = vmatprep.subr.mxu0 0.0
      %1000 = vmatpush1.msra.mxu0 0.0
      %1001 = vmatprep.subr.mxu0 0.0
      %1002 = vmatpush1.msra.mxu0 0.0
      %1003 = vmatprep.subr.mxu0 0.0
      %1004 = vmatpush1.msra.mxu0 0.0
      %1005 = vmatprep.subr.mxu0 0.0
      %1006 = vmatpush1.msra.mxu0 0.0
      %1007 = vmatprep.subr.mxu0 0.0
      %1008 = vmatpush1.msra.mxu0 0.0
      %1009 = vmatprep.subr.mxu0 0.0
      %1010 = vmatpush1.msra.mxu0 0.0
      %1011 = vmatprep.subr.mxu0 0.0
      %1012 = vmatpush1.msra.mxu0 0.0
      %1013 = vmatprep.subr.mxu0 0.0
      %1014 = vmatpush1.msra.mxu0 0.0
      %1015 = vmatprep.subr.mxu0 0.0
      %1016 = vmatpush1.msra.mxu0 0.0
      %1017 = vmatprep.subr.mxu0 0.0
      %1018 = vmatpush1.msra.mxu0 0.0
      %1019 = vmatprep.subr.mxu0 0.0
      %1020 = vmatpush1.msra.mxu0 0.0
      %1021 = vmatprep.subr.mxu0 0.0
      %1022 = vmatpush1.msra.mxu0 0.0
      %1023 = vmatprep.subr.mxu0 0.0
      %1024 = vmatpush1.msra.mxu0 0.0
      %1025 = vmatprep.subr.mxu0 0.0
      %1026 = vmatpush1.msra.mxu0 0.0
      %1027 = vmatprep.subr.mxu0 0.0
      %1028 = vmatpush1.msra.mxu0 0.0
      %1029 = vmatprep.subr.mxu0 0.0
      %1030 = vmatpush1.msra.mxu0 0.0
      %1031 = vmatprep.mubr.f32.mxu0 0.0
      %1032 = vmatmul.mubr.f32.gmra.mrb[0].mxu0 %v962
      %v1033 = vpop.f32.mrb[0].mxu0
      %v1034 = vadd.f32 0.0, %v1033
      %v1035 = vpop.f32.mrb[0].mxu0
      %1036 = vmatprep.mubr.f32.mxu0 0.0
      %1037 = vmatmul.mubr.f32.gmra.mrb[0].mxu0 %v965
      %v1038 = vpop.f32.mrb[0].mxu0
      %v1039 = vadd.f32 0.0, %v1038
      %v1040 = vpop.f32.mrb[0].mxu0
      %1041 = vdwg.mxu0
      %v1042 = vmul.f32 %v1034, %v798
      %v1043 = vmul.f32 %v1039, %v799
      %v1044 = vadd.f32 %v959, %v1042
      %v1045 = vadd.f32 %v960, %v1043
      %s1046 = scalar_lea.vmem %s4, 16
      %v1047 = vld [vmem:[%s1046] sm:$0xff]
      %v1048 = vld [vmem:[%s1046 + $0x8] sm:$0xff]
      %v1049 = vld [vmem:[%s5 + $0x1] sm:$0x1]
      %v1050 = vlaneseq
      %v1051 = vshrl.u32 %v1050, 7
      %v1052 = vsub.s32 0, %v1051
      %v1053 = vrot.slane %v1049, %v1052
      %1054 = vmatprep.subr.mxu0 0.0
      %1055 = vmatpush1.msra.mxu0 %v1047
      %1056 = vmatprep.subr.mxu0 0.0
      %1057 = vmatpush1.msra.mxu0 %v1048
      %1058 = vmatprep.subr.mxu0 0.0
      %1059 = vmatpush1.msra.mxu0 0.0
      %1060 = vmatprep.subr.mxu0 0.0
      %1061 = vmatpush1.msra.mxu0 0.0
      %1062 = vmatprep.subr.mxu0 0.0
      %1063 = vmatpush1.msra.mxu0 0.0
      %1064 = vmatprep.subr.mxu0 0.0
      %1065 = vmatpush1.msra.mxu0 0.0
      %1066 = vmatprep.subr.mxu0 0.0
      %1067 = vmatpush1.msra.mxu0 0.0
      %1068 = vmatprep.subr.mxu0 0.0
      %1069 = vmatpush1.msra.mxu0 0.0
      %1070 = vmatprep.subr.mxu0 0.0
      %1071 = vmatpush1.msra.mxu0 0.0
      %1072 = vmatprep.subr.mxu0 0.0
      %1073 = vmatpush1.msra.mxu0 0.0
      %1074 = vmatprep.subr.mxu0 0.0
      %1075 = vmatpush1.msra.mxu0 0.0
      %1076 = vmatprep.subr.mxu0 0.0
      %1077 = vmatpush1.msra.mxu0 0.0
      %1078 = vmatprep.subr.mxu0 0.0
      %1079 = vmatpush1.msra.mxu0 0.0
      %1080 = vmatprep.subr.mxu0 0.0
      %1081 = vmatpush1.msra.mxu0 0.0
      %1082 = vmatprep.subr.mxu0 0.0
      %1083 = vmatpush1.msra.mxu0 0.0
      %1084 = vmatprep.subr.mxu0 0.0
      %1085 = vmatpush1.msra.mxu0 0.0
      %1086 = vmatprep.subr.mxu0 0.0
      %1087 = vmatpush1.msra.mxu0 0.0
      %1088 = vmatprep.subr.mxu0 0.0
      %1089 = vmatpush1.msra.mxu0 0.0
      %1090 = vmatprep.subr.mxu0 0.0
      %1091 = vmatpush1.msra.mxu0 0.0
      %1092 = vmatprep.subr.mxu0 0.0
      %1093 = vmatpush1.msra.mxu0 0.0
      %1094 = vmatprep.subr.mxu0 0.0
      %1095 = vmatpush1.msra.mxu0 0.0
      %1096 = vmatprep.subr.mxu0 0.0
      %1097 = vmatpush1.msra.mxu0 0.0
      %1098 = vmatprep.subr.mxu0 0.0
      %1099 = vmatpush1.msra.mxu0 0.0
      %1100 = vmatprep.subr.mxu0 0.0
      %1101 = vmatpush1.msra.mxu0 0.0
      %1102 = vmatprep.subr.mxu0 0.0
      %1103 = vmatpush1.msra.mxu0 0.0
      %1104 = vmatprep.subr.mxu0 0.0
      %1105 = vmatpush1.msra.mxu0 0.0
      %1106 = vmatprep.subr.mxu0 0.0
      %1107 = vmatpush1.msra.mxu0 0.0
      %1108 = vmatprep.subr.mxu0 0.0
      %1109 = vmatpush1.msra.mxu0 0.0
      %1110 = vmatprep.subr.mxu0 0.0
      %1111 = vmatpush1.msra.mxu0 0.0
      %1112 = vmatprep.subr.mxu0 0.0
      %1113 = vmatpush1.msra.mxu0 0.0
      %1114 = vmatprep.subr.mxu0 0.0
      %1115 = vmatpush1.msra.mxu0 0.0
      %1116 = vmatprep.subr.mxu0 0.0
      %1117 = vmatpush1.msra.mxu0 0.0
      %1118 = vmatprep.mubr.f32.mxu0 0.0
      %1119 = vmatmul.mubr.f32.gmra.mrb[0].mxu0 %v813
      %v1120 = vpop.f32.mrb[0].mxu0
      %v1121 = vadd.f32 %v1053, %v1120
      %v1122 = vpop.f32.mrb[0].mxu0
      %1123 = vmatprep.mubr.f32.mxu0 0.0
      %1124 = vmatmul.mubr.f32.gmra.mrb[0].mxu0 %v816
      %v1125 = vpop.f32.mrb[0].mxu0
      %v1126 = vadd.f32 %v1053, %v1125
      %v1127 = vpop.f32.mrb[0].mxu0
      %1128 = vdwg.mxu0
      %v1129 = vxor.u32 %v1121, 2147483648
      %v1130 = vxor.u32 %v1126, 2147483648
      %v1131 = vmul.f32 %v1129, 1.442695
      %v1132 = vpow.pop %v1131
      %v1133 = vmul.f32 %v1130, 1.442695
      %v1134 = vpow.pop %v1133
      %v1135 = vadd.f32 %v1132, 1.0
      %v1136 = vadd.f32 %v1134, 1.0
      %v1137 = vrcp.pop %v1135
      %v1138 = vmul.f32 1.0, %v1137
      %v1139 = vrcp.pop %v1136
      %v1140 = vmul.f32 1.0, %v1139
      %v1141 = vmul.f32 %v1121, %v1138
      %v1142 = vmul.f32 %v1126, %v1140
      %s1143 = scalar_lea.vmem %s6, 32
      %v1144 = vld [vmem:[%s1143] sm:$0xff]
      %v1145 = vld [vmem:[%s1143 + $0x8] sm:$0xff]
      %s1146 = scalar_lea.vmem %s6, 48
      %v1147 = vld [vmem:[%s1146] sm:$0xff]
      %v1148 = vld [vmem:[%s1146 + $0x8] sm:$0xff]
      %v1149 = vsel %vm912, %v1141, 0.0
      %v1150 = vsel %vm912, %v1142, 0.0
      %v1151 = vadd.f32 %v1149, %v1150
      %1152 = vadd.xlane.f32.xlu0 %v1151
      %v1153 = vpop.xlane.xlu0 %1152
      %v1154 = vrot.slane %v1153, 4
      %v1155 = vadd.f32 %v1153, %v1154
      %v1156 = vrot.slane %v1155, 2
      %v1157 = vadd.f32 %v1155, %v1156
      %v1158 = vrot.slane %v1157, 1
      %v1159 = vadd.f32 %v1157, %v1158
      %s1160 = vtos %v1159
      %v1161 = vrcp.pop 512.0
      %s1162 = vtos %v1161
      %s1163 = smul.f32 %s1160, %s1162
      %v1164 = vstv %s1163
      %v1165 = vsub.f32 %v1141, %v1164
      %v1166 = vsub.f32 %v1142, %v1164
      %v1167 = vmul.f32 %v1165, %v1165
      %v1168 = vmul.f32 %v1166, %v1166
      %v1169 = vsel %vm912, %v1167, 0.0
      %v1170 = vsel %vm912, %v1168, 0.0
      %v1171 = vadd.f32 %v1169, %v1170
      %1172 = vadd.xlane.f32.xlu0 %v1171
      %v1173 = vpop.xlane.xlu0 %1172
      %v1174 = vrot.slane %v1173, 4
      %v1175 = vadd.f32 %v1173, %v1174
      %v1176 = vrot.slane %v1175, 2
      %v1177 = vadd.f32 %v1175, %v1176
      %v1178 = vrot.slane %v1177, 1
      %v1179 = vadd.f32 %v1177, %v1178
      %s1180 = vtos %v1179
      %v1181 = vrcp.pop 512.0
      %s1182 = vtos %v1181
      %s1183 = smul.f32 %s1180, %s1182
      %s1184 = sadd.f32 %s1183, 1e-05
      %v1185 = vstv %s1184
      %v1186 = vrsqrt.pop %v1185
      %s1187 = vtos %v1186
      %v1188 = vstv %s1187
      %v1189 = vmul.f32 %v1165, %v1188
      %v1190 = vmul.f32 %v1166, %v1188
      %v1191 = vmul.f32 %v1189, %v1144
      %v1192 = vmul.f32 %v1190, %v1145
      %v1193 = vadd.f32 %v1191, %v1147
      %v1194 = vadd.f32 %v1192, %v1148
      %v1195 = vmul.f32 %v1193, %v795
      %v1196 = vmul.f32 %v1194, %v796
      %v1198 = vsel %vm912, %v1193, 0
      %v1201 = vsel %vm912, %v1194, 0
      %1203 = vmatprep.subr.mxu0 0.0
      %1204 = vmatpush1.msra.mxu0 %v800
      %1205 = vmatprep.subr.mxu0 0.0
      %1206 = vmatpush1.msra.mxu0 %v801
      %1207 = vmatprep.subr.mxu0 0.0
      %1208 = vmatpush1.msra.mxu0 %v802
      %1209 = vmatprep.subr.mxu0 0.0
      %1210 = vmatpush1.msra.mxu0 %v803
      %1211 = vmatprep.subr.mxu0 0.0
      %1212 = vmatpush1.msra.mxu0 0.0
      %1213 = vmatprep.subr.mxu0 0.0
      %1214 = vmatpush1.msra.mxu0 0.0
      %1215 = vmatprep.subr.mxu0 0.0
      %1216 = vmatpush1.msra.mxu0 0.0
      %1217 = vmatprep.subr.mxu0 0.0
      %1218 = vmatpush1.msra.mxu0 0.0
      %1219 = vmatprep.subr.mxu0 0.0
      %1220 = vmatpush1.msra.mxu0 0.0
      %1221 = vmatprep.subr.mxu0 0.0
      %1222 = vmatpush1.msra.mxu0 0.0
      %1223 = vmatprep.subr.mxu0 0.0
      %1224 = vmatpush1.msra.mxu0 0.0
      %1225 = vmatprep.subr.mxu0 0.0
      %1226 = vmatpush1.msra.mxu0 0.0
      %1227 = vmatprep.subr.mxu0 0.0
      %1228 = vmatpush1.msra.mxu0 0.0
      %1229 = vmatprep.subr.mxu0 0.0
      %1230 = vmatpush1.msra.mxu0 0.0
      %1231 = vmatprep.subr.mxu0 0.0
      %1232 = vmatpush1.msra.mxu0 0.0
      %1233 = vmatprep.subr.mxu0 0.0
      %1234 = vmatpush1.msra.mxu0 0.0
      %1235 = vmatprep.subr.mxu0 0.0
      %1236 = vmatpush1.msra.mxu0 0.0
      %1237 = vmatprep.subr.mxu0 0.0
      %1238 = vmatpush1.msra.mxu0 0.0
      %1239 = vmatprep.subr.mxu0 0.0
      %1240 = vmatpush1.msra.mxu0 0.0
      %1241 = vmatprep.subr.mxu0 0.0
      %1242 = vmatpush1.msra.mxu0 0.0
      %1243 = vmatprep.subr.mxu0 0.0
      %1244 = vmatpush1.msra.mxu0 0.0
      %1245 = vmatprep.subr.mxu0 0.0
      %1246 = vmatpush1.msra.mxu0 0.0
      %1247 = vmatprep.subr.mxu0 0.0
      %1248 = vmatpush1.msra.mxu0 0.0
      %1249 = vmatprep.subr.mxu0 0.0
      %1250 = vmatpush1.msra.mxu0 0.0
      %1251 = vmatprep.subr.mxu0 0.0
      %1252 = vmatpush1.msra.mxu0 0.0
      %1253 = vmatprep.subr.mxu0 0.0
      %1254 = vmatpush1.msra.mxu0 0.0
      %1255 = vmatprep.subr.mxu0 0.0
      %1256 = vmatpush1.msra.mxu0 0.0
      %1257 = vmatprep.subr.mxu0 0.0
      %1258 = vmatpush1.msra.mxu0 0.0
      %1259 = vmatprep.subr.mxu0 0.0
      %1260 = vmatpush1.msra.mxu0 0.0
      %1261 = vmatprep.subr.mxu0 0.0
      %1262 = vmatpush1.msra.mxu0 0.0
      %1263 = vmatprep.subr.mxu0 0.0
      %1264 = vmatpush1.msra.mxu0 0.0
      %1265 = vmatprep.subr.mxu0 0.0
      %1266 = vmatpush1.msra.mxu0 0.0
      %1267 = vmatprep.mubr.f32.mxu0 0.0
      %1268 = vmatmul.mubr.f32.gmra.mrb[0].mxu0 %v1198
      %v1269 = vpop.f32.mrb[0].mxu0
      %v1270 = vadd.f32 0.0, %v1269
      %v1271 = vpop.f32.mrb[0].mxu0
      %1272 = vmatprep.mubr.f32.mxu0 0.0
      %1273 = vmatmul.mubr.f32.gmra.mrb[0].mxu0 %v1201
      %v1274 = vpop.f32.mrb[0].mxu0
      %v1275 = vadd.f32 0.0, %v1274
      %v1276 = vpop.f32.mrb[0].mxu0
      %1277 = vdwg.mxu0
      %v1278 = vmul.f32 %v1270, %v798
      %v1279 = vmul.f32 %v1275, %v799
      %v1280 = vadd.f32 %v1195, %v1278
      %v1281 = vadd.f32 %v1196, %v1279
      %v1282 = vld [vmem:[%s9] sm:$0x3]
      %s1283 = scalar_lea.vmem %s9, 2
      %v1284 = vld [vmem:[%s1283] sm:$0x3]
      %s1285 = scalar_lea.vmem %s9, 4
      %v1286 = vld [vmem:[%s1285] sm:$0x3]
      %v1287 = vld [vmem:[%s7] sm:$0xff]
      %v1288 = vld [vmem:[%s7 + $0x8] sm:$0xff]
      %v1289 = vld [vmem:[%s7 + $0x10] sm:$0xff]
      %v1290 = vld [vmem:[%s7 + $0x18] sm:$0xff]
      %s1291 = scalar_lea.vmem %s7, 32
      %v1292 = vld [vmem:[%s1291] sm:$0xff]
      %v1293 = vld [vmem:[%s1291 + $0x8] sm:$0xff]
      %v1294 = vld [vmem:[%s1291 + $0x10] sm:$0xff]
      %v1295 = vld [vmem:[%s1291 + $0x18] sm:$0xff]
      %s1296 = scalar_lea.vmem %s7, 64
      %v1297 = vld [vmem:[%s1296] sm:$0xff]
      %v1298 = vld [vmem:[%s1296 + $0x8] sm:$0xff]
      %v1299 = vld [vmem:[%s1296 + $0x10] sm:$0xff]
      %v1300 = vld [vmem:[%s1296 + $0x18] sm:$0xff]
      %s1301 = scalar_lea.vmem %s7, 96
      %v1302 = vld [vmem:[%s1301] sm:$0xff]
      %v1303 = vld [vmem:[%s1301 + $0x8] sm:$0xff]
      %v1304 = vld [vmem:[%s1301 + $0x10] sm:$0xff]
      %v1305 = vld [vmem:[%s1301 + $0x18] sm:$0xff]
      %v1306 = vld [vmem:[%s8] sm:$0x1]
      %v1307 = vld [vmem:[%s8 + $0x1] sm:$0x1]
      %v1308 = vld [vmem:[%s8 + $0x2] sm:$0x1]
      %v1309 = vld [vmem:[%s8 + $0x3] sm:$0x1]
      %v1310 = vlaneseq
      %v1311 = vshrl.u32 %v1310, 7
      %v1312 = vsub.s32 0, %v1311
      %v1313 = vrot.slane %v1306, %v1312
      %v1315 = vsel %vm912, %v1044, 0
      %v1318 = vsel %vm912, %v1045, 0
      %1320 = vmatprep.subr.mxu0 0.0
      %1321 = vmatpush1.msra.mxu0 %v1287
      %1322 = vmatprep.subr.mxu0 0.0
      %1323 = vmatpush1.msra.mxu0 %v1288
      %1324 = vmatprep.subr.mxu0 0.0
      %1325 = vmatpush1.msra.mxu0 %v1289
      %1326 = vmatprep.subr.mxu0 0.0
      %1327 = vmatpush1.msra.mxu0 %v1290
      %1328 = vmatprep.subr.mxu0 0.0
      %1329 = vmatpush1.msra.mxu0 0.0
      %1330 = vmatprep.subr.mxu0 0.0
      %1331 = vmatpush1.msra.mxu0 0.0
      %1332 = vmatprep.subr.mxu0 0.0
      %1333 = vmatpush1.msra.mxu0 0.0
      %1334 = vmatprep.subr.mxu0 0.0
      %1335 = vmatpush1.msra.mxu0 0.0
      %1336 = vmatprep.subr.mxu0 0.0
      %1337 = vmatpush1.msra.mxu0 0.0
      %1338 = vmatprep.subr.mxu0 0.0
      %1339 = vmatpush1.msra.mxu0 0.0
      %1340 = vmatprep.subr.mxu0 0.0
      %1341 = vmatpush1.msra.mxu0 0.0
      %1342 = vmatprep.subr.mxu0 0.0
      %1343 = vmatpush1.msra.mxu0 0.0
      %1344 = vmatprep.subr.mxu0 0.0
      %1345 = vmatpush1.msra.mxu0 0.0
      %1346 = vmatprep.subr.mxu0 0.0
      %1347 = vmatpush1.msra.mxu0 0.0
      %1348 = vmatprep.subr.mxu0 0.0
      %1349 = vmatpush1.msra.mxu0 0.0
      %1350 = vmatprep.subr.mxu0 0.0
      %1351 = vmatpush1.msra.mxu0 0.0
      %1352 = vmatprep.subr.mxu0 0.0
      %1353 = vmatpush1.msra.mxu0 0.0
      %1354 = vmatprep.subr.mxu0 0.0
      %1355 = vmatpush1.msra.mxu0 0.0
      %1356 = vmatprep.subr.mxu0 0.0
      %1357 = vmatpush1.msra.mxu0 0.0
      %1358 = vmatprep.subr.mxu0 0.0
      %1359 = vmatpush1.msra.mxu0 0.0
      %1360 = vmatprep.subr.mxu0 0.0
      %1361 = vmatpush1.msra.mxu0 0.0
      %1362 = vmatprep.subr.mxu0 0.0
      %1363 = vmatpush1.msra.mxu0 0.0
      %1364 = vmatprep.subr.mxu0 0.0
      %1365 = vmatpush1.msra.mxu0 0.0
      %1366 = vmatprep.subr.mxu0 0.0
      %1367 = vmatpush1.msra.mxu0 0.0
      %1368 = vmatprep.subr.mxu0 0.0
      %1369 = vmatpush1.msra.mxu0 0.0
      %1370 = vmatprep.subr.mxu0 0.0
      %1371 = vmatpush1.msra.mxu0 0.0
      %1372 = vmatprep.subr.mxu0 0.0
      %1373 = vmatpush1.msra.mxu0 0.0
      %1374 = vmatprep.subr.mxu0 0.0
      %1375 = vmatpush1.msra.mxu0 0.0
      %1376 = vmatprep.subr.mxu0 0.0
      %1377 = vmatpush1.msra.mxu0 0.0
      %1378 = vmatprep.subr.mxu0 0.0
      %1379 = vmatpush1.msra.mxu0 0.0
      %1380 = vmatprep.subr.mxu0 0.0
      %1381 = vmatpush1.msra.mxu0 0.0
      %1382 = vmatprep.subr.mxu0 0.0
      %1383 = vmatpush1.msra.mxu0 0.0
      %1384 = vmatprep.mubr.f32.mxu0 0.0
      %1385 = vmatmul.mubr.f32.gmra.mrb[0].mxu0 %v1315
      %v1386 = vpop.f32.mrb[0].mxu0
      %v1387 = vadd.f32 %v1313, %v1386
      %v1388 = vpop.f32.mrb[0].mxu0
      %1389 = vmatprep.mubr.f32.mxu0 0.0
      %1390 = vmatmul.mubr.f32.gmra.mrb[0].mxu0 %v1318
      %v1391 = vpop.f32.mrb[0].mxu0
      %v1392 = vadd.f32 %v1313, %v1391
      %v1393 = vpop.f32.mrb[0].mxu0
      %1394 = vdwg.mxu0
      %v1395 = vlaneseq
      %v1396 = vshrl.u32 %v1395, 7
      %v1397 = vsub.s32 0, %v1396
      %v1398 = vrot.slane %v1307, %v1397
      %1399 = vmatprep.subr.mxu0 0.0
      %1400 = vmatpush1.msra.mxu0 %v1292
      %1401 = vmatprep.subr.mxu0 0.0
      %1402 = vmatpush1.msra.mxu0 %v1293
      %1403 = vmatprep.subr.mxu0 0.0
      %1404 = vmatpush1.msra.mxu0 %v1294
      %1405 = vmatprep.subr.mxu0 0.0
      %1406 = vmatpush1.msra.mxu0 %v1295
      %1407 = vmatprep.subr.mxu0 0.0
      %1408 = vmatpush1.msra.mxu0 0.0
      %1409 = vmatprep.subr.mxu0 0.0
      %1410 = vmatpush1.msra.mxu0 0.0
      %1411 = vmatprep.subr.mxu0 0.0
      %1412 = vmatpush1.msra.mxu0 0.0
      %1413 = vmatprep.subr.mxu0 0.0
      %1414 = vmatpush1.msra.mxu0 0.0
      %1415 = vmatprep.subr.mxu0 0.0
      %1416 = vmatpush1.msra.mxu0 0.0
      %1417 = vmatprep.subr.mxu0 0.0
      %1418 = vmatpush1.msra.mxu0 0.0
      %1419 = vmatprep.subr.mxu0 0.0
      %1420 = vmatpush1.msra.mxu0 0.0
      %1421 = vmatprep.subr.mxu0 0.0
      %1422 = vmatpush1.msra.mxu0 0.0
      %1423 = vmatprep.subr.mxu0 0.0
      %1424 = vmatpush1.msra.mxu0 0.0
      %1425 = vmatprep.subr.mxu0 0.0
      %1426 = vmatpush1.msra.mxu0 0.0
      %1427 = vmatprep.subr.mxu0 0.0
      %1428 = vmatpush1.msra.mxu0 0.0
      %1429 = vmatprep.subr.mxu0 0.0
      %1430 = vmatpush1.msra.mxu0 0.0
      %1431 = vmatprep.subr.mxu0 0.0
      %1432 = vmatpush1.msra.mxu0 0.0
      %1433 = vmatprep.subr.mxu0 0.0
      %1434 = vmatpush1.msra.mxu0 0.0
      %1435 = vmatprep.subr.mxu0 0.0
      %1436 = vmatpush1.msra.mxu0 0.0
      %1437 = vmatprep.subr.mxu0 0.0
      %1438 = vmatpush1.msra.mxu0 0.0
      %1439 = vmatprep.subr.mxu0 0.0
      %1440 = vmatpush1.msra.mxu0 0.0
      %1441 = vmatprep.subr.mxu0 0.0
      %1442 = vmatpush1.msra.mxu0 0.0
      %1443 = vmatprep.subr.mxu0 0.0
      %1444 = vmatpush1.msra.mxu0 0.0
      %1445 = vmatprep.subr.mxu0 0.0
      %1446 = vmatpush1.msra.mxu0 0.0
      %1447 = vmatprep.subr.mxu0 0.0
      %1448 = vmatpush1.msra.mxu0 0.0
      %1449 = vmatprep.subr.mxu0 0.0
      %1450 = vmatpush1.msra.mxu0 0.0
      %1451 = vmatprep.subr.mxu0 0.0
      %1452 = vmatpush1.msra.mxu0 0.0
      %1453 = vmatprep.subr.mxu0 0.0
      %1454 = vmatpush1.msra.mxu0 0.0
      %1455 = vmatprep.subr.mxu0 0.0
      %1456 = vmatpush1.msra.mxu0 0.0
      %1457 = vmatprep.subr.mxu0 0.0
      %1458 = vmatpush1.msra.mxu0 0.0
      %1459 = vmatprep.subr.mxu0 0.0
      %1460 = vmatpush1.msra.mxu0 0.0
      %1461 = vmatprep.subr.mxu0 0.0
      %1462 = vmatpush1.msra.mxu0 0.0
      %1463 = vmatprep.mubr.f32.mxu0 0.0
      %1464 = vmatmul.mubr.f32.gmra.mrb[0].mxu0 %v1315
      %v1465 = vpop.f32.mrb[0].mxu0
      %v1466 = vadd.f32 %v1398, %v1465
      %v1467 = vpop.f32.mrb[0].mxu0
      %1468 = vmatprep.mubr.f32.mxu0 0.0
      %1469 = vmatmul.mubr.f32.gmra.mrb[0].mxu0 %v1318
      %v1470 = vpop.f32.mrb[0].mxu0
      %v1471 = vadd.f32 %v1398, %v1470
      %v1472 = vpop.f32.mrb[0].mxu0
      %1473 = vdwg.mxu0
      %v1474 = vlaneseq
      %v1475 = vshrl.u32 %v1474, 7
      %v1476 = vsub.s32 0, %v1475
      %v1477 = vrot.slane %v1308, %v1476
      %1478 = vmatprep.subr.mxu0 0.0
      %1479 = vmatpush1.msra.mxu0 %v1297
      %1480 = vmatprep.subr.mxu0 0.0
      %1481 = vmatpush1.msra.mxu0 %v1298
      %1482 = vmatprep.subr.mxu0 0.0
      %1483 = vmatpush1.msra.mxu0 %v1299
      %1484 = vmatprep.subr.mxu0 0.0
      %1485 = vmatpush1.msra.mxu0 %v1300
      %1486 = vmatprep.subr.mxu0 0.0
      %1487 = vmatpush1.msra.mxu0 0.0
      %1488 = vmatprep.subr.mxu0 0.0
      %1489 = vmatpush1.msra.mxu0 0.0
      %1490 = vmatprep.subr.mxu0 0.0
      %1491 = vmatpush1.msra.mxu0 0.0
      %1492 = vmatprep.subr.mxu0 0.0
      %1493 = vmatpush1.msra.mxu0 0.0
      %1494 = vmatprep.subr.mxu0 0.0
      %1495 = vmatpush1.msra.mxu0 0.0
      %1496 = vmatprep.subr.mxu0 0.0
      %1497 = vmatpush1.msra.mxu0 0.0
      %1498 = vmatprep.subr.mxu0 0.0
      %1499 = vmatpush1.msra.mxu0 0.0
      %1500 = vmatprep.subr.mxu0 0.0
      %1501 = vmatpush1.msra.mxu0 0.0
      %1502 = vmatprep.subr.mxu0 0.0
      %1503 = vmatpush1.msra.mxu0 0.0
      %1504 = vmatprep.subr.mxu0 0.0
      %1505 = vmatpush1.msra.mxu0 0.0
      %1506 = vmatprep.subr.mxu0 0.0
      %1507 = vmatpush1.msra.mxu0 0.0
      %1508 = vmatprep.subr.mxu0 0.0
      %1509 = vmatpush1.msra.mxu0 0.0
      %1510 = vmatprep.subr.mxu0 0.0
      %1511 = vmatpush1.msra.mxu0 0.0
      %1512 = vmatprep.subr.mxu0 0.0
      %1513 = vmatpush1.msra.mxu0 0.0
      %1514 = vmatprep.subr.mxu0 0.0
      %1515 = vmatpush1.msra.mxu0 0.0
      %1516 = vmatprep.subr.mxu0 0.0
      %1517 = vmatpush1.msra.mxu0 0.0
      %1518 = vmatprep.subr.mxu0 0.0
      %1519 = vmatpush1.msra.mxu0 0.0
      %1520 = vmatprep.subr.mxu0 0.0
      %1521 = vmatpush1.msra.mxu0 0.0
      %1522 = vmatprep.subr.mxu0 0.0
      %1523 = vmatpush1.msra.mxu0 0.0
      %1524 = vmatprep.subr.mxu0 0.0
      %1525 = vmatpush1.msra.mxu0 0.0
      %1526 = vmatprep.subr.mxu0 0.0
      %1527 = vmatpush1.msra.mxu0 0.0
      %1528 = vmatprep.subr.mxu0 0.0
      %1529 = vmatpush1.msra.mxu0 0.0
      %1530 = vmatprep.subr.mxu0 0.0
      %1531 = vmatpush1.msra.mxu0 0.0
      %1532 = vmatprep.subr.mxu0 0.0
      %1533 = vmatpush1.msra.mxu0 0.0
      %1534 = vmatprep.subr.mxu0 0.0
      %1535 = vmatpush1.msra.mxu0 0.0
      %1536 = vmatprep.subr.mxu0 0.0
      %1537 = vmatpush1.msra.mxu0 0.0
      %1538 = vmatprep.subr.mxu0 0.0
      %1539 = vmatpush1.msra.mxu0 0.0
      %1540 = vmatprep.subr.mxu0 0.0
      %1541 = vmatpush1.msra.mxu0 0.0
      %1542 = vmatprep.mubr.f32.mxu0 0.0
      %1543 = vmatmul.mubr.f32.gmra.mrb[0].mxu0 %v1315
      %v1544 = vpop.f32.mrb[0].mxu0
      %v1545 = vadd.f32 %v1477, %v1544
      %v1546 = vpop.f32.mrb[0].mxu0
      %1547 = vmatprep.mubr.f32.mxu0 0.0
      %1548 = vmatmul.mubr.f32.gmra.mrb[0].mxu0 %v1318
      %v1549 = vpop.f32.mrb[0].mxu0
      %v1550 = vadd.f32 %v1477, %v1549
      %v1551 = vpop.f32.mrb[0].mxu0
      %1552 = vdwg.mxu0
      %v1554 = vsel %vm811, %v1387, 0
      %v1557 = vsel %vm811, %v1392, 0
      %v1560 = vsel %vm811, %v1466, 0
      %v1563 = vsel %vm811, %v1471, 0
      %1565 = vmatprep.subr.mxu0 0.0
      %1566 = vmatpush1.xpose.msra.mxu0 %v1560
      %1567 = vmatprep.subr.mxu0 0.0
      %1568 = vmatpush1.xpose.msra.mxu0 %v1563
      %1569 = vmatprep.subr.mxu0 0.0
      %1570 = vmatpush1.xpose.msra.mxu0 0.0
      %1571 = vmatprep.subr.mxu0 0.0
      %1572 = vmatpush1.xpose.msra.mxu0 0.0
      %1573 = vmatprep.subr.mxu0 0.0
      %1574 = vmatpush1.xpose.msra.mxu0 0.0
      %1575 = vmatprep.subr.mxu0 0.0
      %1576 = vmatpush1.xpose.msra.mxu0 0.0
      %1577 = vmatprep.subr.mxu0 0.0
      %1578 = vmatpush1.xpose.msra.mxu0 0.0
      %1579 = vmatprep.subr.mxu0 0.0
      %1580 = vmatpush1.xpose.msra.mxu0 0.0
      %1581 = vmatprep.subr.mxu0 0.0
      %1582 = vmatpush1.xpose.msra.mxu0 0.0
      %1583 = vmatprep.subr.mxu0 0.0
      %1584 = vmatpush1.xpose.msra.mxu0 0.0
      %1585 = vmatprep.subr.mxu0 0.0
      %1586 = vmatpush1.xpose.msra.mxu0 0.0
      %1587 = vmatprep.subr.mxu0 0.0
      %1588 = vmatpush1.xpose.msra.mxu0 0.0
      %1589 = vmatprep.subr.mxu0 0.0
      %1590 = vmatpush1.xpose.msra.mxu0 0.0
      %1591 = vmatprep.subr.mxu0 0.0
      %1592 = vmatpush1.xpose.msra.mxu0 0.0
      %1593 = vmatprep.subr.mxu0 0.0
      %1594 = vmatpush1.xpose.msra.mxu0 0.0
      %1595 = vmatprep.subr.mxu0 0.0
      %1596 = vmatpush1.xpose.msra.mxu0 0.0
      %1597 = vmatprep.subr.mxu0 0.0
      %1598 = vmatpush1.xpose.msra.mxu0 0.0
      %1599 = vmatprep.subr.mxu0 0.0
      %1600 = vmatpush1.xpose.msra.mxu0 0.0
      %1601 = vmatprep.subr.mxu0 0.0
      %1602 = vmatpush1.xpose.msra.mxu0 0.0
      %1603 = vmatprep.subr.mxu0 0.0
      %1604 = vmatpush1.xpose.msra.mxu0 0.0
      %1605 = vmatprep.subr.mxu0 0.0
      %1606 = vmatpush1.xpose.msra.mxu0 0.0
      %1607 = vmatprep.subr.mxu0 0.0
      %1608 = vmatpush1.xpose.msra.mxu0 0.0
      %1609 = vmatprep.subr.mxu0 0.0
      %1610 = vmatpush1.xpose.msra.mxu0 0.0
      %1611 = vmatprep.subr.mxu0 0.0
      %1612 = vmatpush1.xpose.msra.mxu0 0.0
      %1613 = vmatprep.subr.mxu0 0.0
      %1614 = vmatpush1.xpose.msra.mxu0 0.0
      %1615 = vmatprep.subr.mxu0 0.0
      %1616 = vmatpush1.xpose.msra.mxu0 0.0
      %1617 = vmatprep.subr.mxu0 0.0
      %1618 = vmatpush1.xpose.msra.mxu0 0.0
      %1619 = vmatprep.subr.mxu0 0.0
      %1620 = vmatpush1.xpose.msra.mxu0 0.0
      %1621 = vmatprep.subr.mxu0 0.0
      %1622 = vmatpush1.xpose.msra.mxu0 0.0
      %1623 = vmatprep.subr.mxu0 0.0
      %1624 = vmatpush1.xpose.msra.mxu0 0.0
      %1625 = vmatprep.subr.mxu0 0.0
      %1626 = vmatpush1.xpose.msra.mxu0 0.0
      %1627 = vmatprep.subr.mxu0 0.0
      %1628 = vmatpush1.xpose.msra.mxu0 0.0
      %1629 = vmatprep.mubr.f32.mxu0 0.0
      %1630 = vmatmul.mubr.f32.gmra.mrb[0].mxu0 %v1554
      %v1631 = vpop.f32.mrb[0].mxu0
      %v1632 = vadd.f32 0.0, %v1631
      %v1633 = vpop.f32.mrb[0].mxu0
      %1634 = vmatprep.mubr.f32.mxu0 0.0
      %1635 = vmatmul.mubr.f32.gmra.mrb[0].mxu0 %v1557
      %v1636 = vpop.f32.mrb[0].mxu0
      %v1637 = vadd.f32 0.0, %v1636
      %v1638 = vpop.f32.mrb[0].mxu0
      %1639 = vdwg.mxu0
      %v1640 = vmul.f32 %v1632, 0.25
      %v1641 = vmul.f32 %v1637, 0.25
      %v1643 = vlaneseq
      %v1644 = vshrl.u32 %v1643, 7
      %v1645 = vsub.s32 0, %v1644
      %v1646 = vrot.slane %v794, %v1645
      %v1648 = vadd.f32 %v1640, %v1646
      %v1649 = vadd.f32 %v1641, %v1646
      %v1650 = vsel %vm811, %v1648, -inf
      %1651 = vmax.xlane.f32.xlu0 %v1650
      %v1652 = vpop.xlane.xlu0 %1651
      %v1653 = vsel %vm811, %v1649, -inf
      %1654 = vmax.xlane.f32.xlu0 %v1653
      %v1655 = vpop.xlane.xlu0 %1654
      %v1656 = vsub.f32 %v1648, %v1652
      %v1657 = vsub.f32 %v1649, %v1655
      %v1658 = vmul.f32 %v1656, 1.442695
      %v1659 = vpow.pop %v1658
      %v1660 = vmul.f32 %v1657, 1.442695
      %v1661 = vpow.pop %v1660
      %v1662 = vsel %vm811, %v1659, 0.0
      %1663 = vadd.xlane.f32.xlu0 %v1662
      %v1664 = vpop.xlane.xlu0 %1663
      %v1665 = vsel %vm811, %v1661, 0.0
      %1666 = vadd.xlane.f32.xlu0 %v1665
      %v1667 = vpop.xlane.xlu0 %1666
      %v1668 = vrcp.pop %v1664
      %v1669 = vrcp.pop %v1667
      %v1670 = vmul.f32 %v1659, %v1668
      %v1671 = vmul.f32 %v1661, %v1669
      %v1673 = vsel %vm811, %v1670, 0
      %v1676 = vsel %vm811, %v1671, 0
      %1678 = vmatprep.subr.mxu0 0.0
      %1679 = vmatpush1.msra.mxu0 %v1545
      %1680 = vmatprep.subr.mxu0 0.0
      %1681 = vmatpush1.msra.mxu0 %v1550
      %1682 = vmatprep.subr.mxu0 0.0
      %1683 = vmatpush1.msra.mxu0 0.0
      %1684 = vmatprep.subr.mxu0 0.0
      %1685 = vmatpush1.msra.mxu0 0.0
      %1686 = vmatprep.subr.mxu0 0.0
      %1687 = vmatpush1.msra.mxu0 0.0
      %1688 = vmatprep.subr.mxu0 0.0
      %1689 = vmatpush1.msra.mxu0 0.0
      %1690 = vmatprep.subr.mxu0 0.0
      %1691 = vmatpush1.msra.mxu0 0.0
      %1692 = vmatprep.subr.mxu0 0.0
      %1693 = vmatpush1.msra.mxu0 0.0
      %1694 = vmatprep.subr.mxu0 0.0
      %1695 = vmatpush1.msra.mxu0 0.0
      %1696 = vmatprep.subr.mxu0 0.0
      %1697 = vmatpush1.msra.mxu0 0.0
      %1698 = vmatprep.subr.mxu0 0.0
      %1699 = vmatpush1.msra.mxu0 0.0
      %1700 = vmatprep.subr.mxu0 0.0
      %1701 = vmatpush1.msra.mxu0 0.0
      %1702 = vmatprep.subr.mxu0 0.0
      %1703 = vmatpush1.msra.mxu0 0.0
      %1704 = vmatprep.subr.mxu0 0.0
      %1705 = vmatpush1.msra.mxu0 0.0
      %1706 = vmatprep.subr.mxu0 0.0
      %1707 = vmatpush1.msra.mxu0 0.0
      %1708 = vmatprep.subr.mxu0 0.0
      %1709 = vmatpush1.msra.mxu0 0.0
      %1710 = vmatprep.subr.mxu0 0.0
      %1711 = vmatpush1.msra.mxu0 0.0
      %1712 = vmatprep.subr.mxu0 0.0
      %1713 = vmatpush1.msra.mxu0 0.0
      %1714 = vmatprep.subr.mxu0 0.0
      %1715 = vmatpush1.msra.mxu0 0.0
      %1716 = vmatprep.subr.mxu0 0.0
      %1717 = vmatpush1.msra.mxu0 0.0
      %1718 = vmatprep.subr.mxu0 0.0
      %1719 = vmatpush1.msra.mxu0 0.0
      %1720 = vmatprep.subr.mxu0 0.0
      %1721 = vmatpush1.msra.mxu0 0.0
      %1722 = vmatprep.subr.mxu0 0.0
      %1723 = vmatpush1.msra.mxu0 0.0
      %1724 = vmatprep.subr.mxu0 0.0
      %1725 = vmatpush1.msra.mxu0 0.0
      %1726 = vmatprep.subr.mxu0 0.0
      %1727 = vmatpush1.msra.mxu0 0.0
      %1728 = vmatprep.subr.mxu0 0.0
      %1729 = vmatpush1.msra.mxu0 0.0
      %1730 = vmatprep.subr.mxu0 0.0
      %1731 = vmatpush1.msra.mxu0 0.0
      %1732 = vmatprep.subr.mxu0 0.0
      %1733 = vmatpush1.msra.mxu0 0.0
      %1734 = vmatprep.subr.mxu0 0.0
      %1735 = vmatpush1.msra.mxu0 0.0
      %1736 = vmatprep.subr.mxu0 0.0
      %1737 = vmatpush1.msra.mxu0 0.0
      %1738 = vmatprep.subr.mxu0 0.0
      %1739 = vmatpush1.msra.mxu0 0.0
      %1740 = vmatprep.subr.mxu0 0.0
      %1741 = vmatpush1.msra.mxu0 0.0
      %1742 = vmatprep.mubr.f32.mxu0 0.0
      %1743 = vmatmul.mubr.f32.gmra.mrb[0].mxu0 %v1673
      %v1744 = vpop.f32.mrb[0].mxu0
      %v1745 = vadd.f32 0.0, %v1744
      %v1746 = vpop.f32.mrb[0].mxu0
      %1747 = vmatprep.mubr.f32.mxu0 0.0
      %1748 = vmatmul.mubr.f32.gmra.mrb[0].mxu0 %v1676
      %v1749 = vpop.f32.mrb[0].mxu0
      %v1750 = vadd.f32 0.0, %v1749
      %v1751 = vpop.f32.mrb[0].mxu0
      %1752 = vdwg.mxu0
      %v1754 = vsel %vm811, %v1745, 0
      %v1757 = vsel %vm811, %v1750, 0
      %1759 = vmatprep.subr.mxu0 0.0
      %1760 = vmatpush1.msra.mxu0 %v1302
      %1761 = vmatprep.subr.mxu0 0.0
      %1762 = vmatpush1.msra.mxu0 %v1303
      %1763 = vmatprep.subr.mxu0 0.0
      %1764 = vmatpush1.msra.mxu0 0.0
      %1765 = vmatprep.subr.mxu0 0.0
      %1766 = vmatpush1.msra.mxu0 0.0
      %1767 = vmatprep.subr.mxu0 0.0
      %1768 = vmatpush1.msra.mxu0 0.0
      %1769 = vmatprep.subr.mxu0 0.0
      %1770 = vmatpush1.msra.mxu0 0.0
      %1771 = vmatprep.subr.mxu0 0.0
      %1772 = vmatpush1.msra.mxu0 0.0
      %1773 = vmatprep.subr.mxu0 0.0
      %1774 = vmatpush1.msra.mxu0 0.0
      %1775 = vmatprep.subr.mxu0 0.0
      %1776 = vmatpush1.msra.mxu0 0.0
      %1777 = vmatprep.subr.mxu0 0.0
      %1778 = vmatpush1.msra.mxu0 0.0
      %1779 = vmatprep.subr.mxu0 0.0
      %1780 = vmatpush1.msra.mxu0 0.0
      %1781 = vmatprep.subr.mxu0 0.0
      %1782 = vmatpush1.msra.mxu0 0.0
      %1783 = vmatprep.subr.mxu0 0.0
      %1784 = vmatpush1.msra.mxu0 0.0
      %1785 = vmatprep.subr.mxu0 0.0
      %1786 = vmatpush1.msra.mxu0 0.0
      %1787 = vmatprep.subr.mxu0 0.0
      %1788 = vmatpush1.msra.mxu0 0.0
      %1789 = vmatprep.subr.mxu0 0.0
      %1790 = vmatpush1.msra.mxu0 0.0
      %1791 = vmatprep.subr.mxu0 0.0
      %1792 = vmatpush1.msra.mxu0 0.0
      %1793 = vmatprep.subr.mxu0 0.0
      %1794 = vmatpush1.msra.mxu0 0.0
      %1795 = vmatprep.subr.mxu0 0.0
      %1796 = vmatpush1.msra.mxu0 0.0
      %1797 = vmatprep.subr.mxu0 0.0
      %1798 = vmatpush1.msra.mxu0 0.0
      %1799 = vmatprep.subr.mxu0 0.0
      %1800 = vmatpush1.msra.mxu0 0.0
      %1801 = vmatprep.subr.mxu0 0.0
      %1802 = vmatpush1.msra.mxu0 0.0
      %1803 = vmatprep.subr.mxu0 0.0
      %1804 = vmatpush1.msra.mxu0 0.0
      %1805 = vmatprep.subr.mxu0 0.0
      %1806 = vmatpush1.msra.mxu0 0.0
      %1807 = vmatprep.subr.mxu0 0.0
      %1808 = vmatpush1.msra.mxu0 0.0
      %1809 = vmatprep.subr.mxu0 0.0
      %1810 = vmatpush1.msra.mxu0 0.0
      %1811 = vmatprep.subr.mxu0 0.0
      %1812 = vmatpush1.msra.mxu0 0.0
      %1813 = vmatprep.subr.mxu0 0.0
      %1814 = vmatpush1.msra.mxu0 0.0
      %1815 = vmatprep.subr.mxu0 0.0
      %1816 = vmatpush1.msra.mxu0 0.0
      %1817 = vmatprep.subr.mxu0 0.0
      %1818 = vmatpush1.msra.mxu0 0.0
      %1819 = vmatprep.subr.mxu0 0.0
      %1820 = vmatpush1.msra.mxu0 0.0
      %1821 = vmatprep.subr.mxu0 0.0
      %1822 = vmatpush1.msra.mxu0 0.0
      %1823 = vmatprep.mubr.f32.mxu0 0.0
      %1824 = vmatmul.mubr.f32.gmra.mrb[0].mxu0 %v1754
      %v1825 = vpop.f32.mrb[0].mxu0
      %v1826 = vadd.f32 0.0, %v1825
      %v1827 = vpop.f32.mrb[0].mxu0
      %1828 = vmatprep.mubr.f32.mxu0 0.0
      %1829 = vmatmul.mubr.f32.gmra.mrb[0].mxu0 %v1757
      %v1830 = vpop.f32.mrb[0].mxu0
      %v1831 = vadd.f32 0.0, %v1830
      %v1832 = vpop.f32.mrb[0].mxu0
      %1833 = vdwg.mxu0
      %v1834 = vlaneseq
      %v1835 = vshrl.u32 %v1834, 7
      %v1836 = vsub.s32 0, %v1835
      %v1837 = vrot.slane %v1309, %v1836
      %v1838 = vadd.f32 %v1837, %v1826
      %v1839 = vadd.f32 %v1837, %v1831
      %1840 = vrot.lane.b32.xlu0 %v1387, 112
      %v1841 = vpop.permute.xlu0 %1840
      %1842 = vrot.lane.b32.xlu0 %v1392, 112
      %v1843 = vpop.permute.xlu0 %1842
      %1844 = vrot.lane.b32.xlu0 %v1466, 112
      %v1845 = vpop.permute.xlu0 %1844
      %1846 = vrot.lane.b32.xlu0 %v1471, 112
      %v1847 = vpop.permute.xlu0 %1846
      %v1848 = vsel %vm811, %v1841, 0
      %v1850 = vsel %vm811, %v1843, 0
      %v1852 = vsel %vm811, %v1845, 0
      %v1854 = vsel %vm811, %v1847, 0
      %1856 = vmatprep.subr.mxu0 0.0
      %1857 = vmatpush1.xpose.msra.mxu0 %v1852
      %1858 = vmatprep.subr.mxu0 0.0
      %1859 = vmatpush1.xpose.msra.mxu0 %v1854
      %1860 = vmatprep.subr.mxu0 0.0
      %1861 = vmatpush1.xpose.msra.mxu0 0.0
      %1862 = vmatprep.subr.mxu0 0.0
      %1863 = vmatpush1.xpose.msra.mxu0 0.0
      %1864 = vmatprep.subr.mxu0 0.0
      %1865 = vmatpush1.xpose.msra.mxu0 0.0
      %1866 = vmatprep.subr.mxu0 0.0
      %1867 = vmatpush1.xpose.msra.mxu0 0.0
      %1868 = vmatprep.subr.mxu0 0.0
      %1869 = vmatpush1.xpose.msra.mxu0 0.0
      %1870 = vmatprep.subr.mxu0 0.0
      %1871 = vmatpush1.xpose.msra.mxu0 0.0
      %1872 = vmatprep.subr.mxu0 0.0
      %1873 = vmatpush1.xpose.msra.mxu0 0.0
      %1874 = vmatprep.subr.mxu0 0.0
      %1875 = vmatpush1.xpose.msra.mxu0 0.0
      %1876 = vmatprep.subr.mxu0 0.0
      %1877 = vmatpush1.xpose.msra.mxu0 0.0
      %1878 = vmatprep.subr.mxu0 0.0
      %1879 = vmatpush1.xpose.msra.mxu0 0.0
      %1880 = vmatprep.subr.mxu0 0.0
      %1881 = vmatpush1.xpose.msra.mxu0 0.0
      %1882 = vmatprep.subr.mxu0 0.0
      %1883 = vmatpush1.xpose.msra.mxu0 0.0
      %1884 = vmatprep.subr.mxu0 0.0
      %1885 = vmatpush1.xpose.msra.mxu0 0.0
      %1886 = vmatprep.subr.mxu0 0.0
      %1887 = vmatpush1.xpose.msra.mxu0 0.0
      %1888 = vmatprep.subr.mxu0 0.0
      %1889 = vmatpush1.xpose.msra.mxu0 0.0
      %1890 = vmatprep.subr.mxu0 0.0
      %1891 = vmatpush1.xpose.msra.mxu0 0.0
      %1892 = vmatprep.subr.mxu0 0.0
      %1893 = vmatpush1.xpose.msra.mxu0 0.0
      %1894 = vmatprep.subr.mxu0 0.0
      %1895 = vmatpush1.xpose.msra.mxu0 0.0
      %1896 = vmatprep.subr.mxu0 0.0
      %1897 = vmatpush1.xpose.msra.mxu0 0.0
      %1898 = vmatprep.subr.mxu0 0.0
      %1899 = vmatpush1.xpose.msra.mxu0 0.0
      %1900 = vmatprep.subr.mxu0 0.0
      %1901 = vmatpush1.xpose.msra.mxu0 0.0
      %1902 = vmatprep.subr.mxu0 0.0
      %1903 = vmatpush1.xpose.msra.mxu0 0.0
      %1904 = vmatprep.subr.mxu0 0.0
      %1905 = vmatpush1.xpose.msra.mxu0 0.0
      %1906 = vmatprep.subr.mxu0 0.0
      %1907 = vmatpush1.xpose.msra.mxu0 0.0
      %1908 = vmatprep.subr.mxu0 0.0
      %1909 = vmatpush1.xpose.msra.mxu0 0.0
      %1910 = vmatprep.subr.mxu0 0.0
      %1911 = vmatpush1.xpose.msra.mxu0 0.0
      %1912 = vmatprep.subr.mxu0 0.0
      %1913 = vmatpush1.xpose.msra.mxu0 0.0
      %1914 = vmatprep.subr.mxu0 0.0
      %1915 = vmatpush1.xpose.msra.mxu0 0.0
      %1916 = vmatprep.subr.mxu0 0.0
      %1917 = vmatpush1.xpose.msra.mxu0 0.0
      %1918 = vmatprep.subr.mxu0 0.0
      %1919 = vmatpush1.xpose.msra.mxu0 0.0
      %1920 = vmatprep.mubr.f32.mxu0 0.0
      %1921 = vmatmul.mubr.f32.gmra.mrb[0].mxu0 %v1848
      %v1922 = vpop.f32.mrb[0].mxu0
      %v1923 = vadd.f32 0.0, %v1922
      %v1924 = vpop.f32.mrb[0].mxu0
      %1925 = vmatprep.mubr.f32.mxu0 0.0
      %1926 = vmatmul.mubr.f32.gmra.mrb[0].mxu0 %v1850
      %v1927 = vpop.f32.mrb[0].mxu0
      %v1928 = vadd.f32 0.0, %v1927
      %v1929 = vpop.f32.mrb[0].mxu0
      %1930 = vdwg.mxu0
      %v1931 = vmul.f32 %v1923, 0.25
      %v1932 = vmul.f32 %v1928, 0.25
      %v1933 = vadd.f32 %v1931, %v1646
      %v1934 = vadd.f32 %v1932, %v1646
      %v1935 = vsel %vm811, %v1933, -inf
      %1936 = vmax.xlane.f32.xlu0 %v1935
      %v1937 = vpop.xlane.xlu0 %1936
      %v1938 = vsel %vm811, %v1934, -inf
      %1939 = vmax.xlane.f32.xlu0 %v1938
      %v1940 = vpop.xlane.xlu0 %1939
      %v1941 = vsub.f32 %v1933, %v1937
      %v1942 = vsub.f32 %v1934, %v1940
      %v1943 = vmul.f32 %v1941, 1.442695
      %v1944 = vpow.pop %v1943
      %v1945 = vmul.f32 %v1942, 1.442695
      %v1946 = vpow.pop %v1945
      %v1947 = vsel %vm811, %v1944, 0.0
      %1948 = vadd.xlane.f32.xlu0 %v1947
      %v1949 = vpop.xlane.xlu0 %1948
      %v1950 = vsel %vm811, %v1946, 0.0
      %1951 = vadd.xlane.f32.xlu0 %v1950
      %v1952 = vpop.xlane.xlu0 %1951
      %v1953 = vrcp.pop %v1949
      %v1954 = vrcp.pop %v1952
      %v1955 = vmul.f32 %v1944, %v1953
      %v1956 = vmul.f32 %v1946, %v1954
      %1959 = vrot.lane.b32.xlu0 %v1545, 112
      %v1960 = vpop.permute.xlu0 %1959
      %1961 = vrot.lane.b32.xlu0 %v1550, 112
      %v1962 = vpop.permute.xlu0 %1961
      %v1966 = vsel %vm811, %v1955, 0
      %v1969 = vsel %vm811, %v1956, 0
      %1971 = vmatprep.subr.mxu0 0.0
      %1972 = vmatpush1.msra.mxu0 %v1960
      %1973 = vmatprep.subr.mxu0 0.0
      %1974 = vmatpush1.msra.mxu0 %v1962
      %1975 = vmatprep.subr.mxu0 0.0
      %1976 = vmatpush1.msra.mxu0 0.0
      %1977 = vmatprep.subr.mxu0 0.0
      %1978 = vmatpush1.msra.mxu0 0.0
      %1979 = vmatprep.subr.mxu0 0.0
      %1980 = vmatpush1.msra.mxu0 0.0
      %1981 = vmatprep.subr.mxu0 0.0
      %1982 = vmatpush1.msra.mxu0 0.0
      %1983 = vmatprep.subr.mxu0 0.0
      %1984 = vmatpush1.msra.mxu0 0.0
      %1985 = vmatprep.subr.mxu0 0.0
      %1986 = vmatpush1.msra.mxu0 0.0
      %1987 = vmatprep.subr.mxu0 0.0
      %1988 = vmatpush1.msra.mxu0 0.0
      %1989 = vmatprep.subr.mxu0 0.0
      %1990 = vmatpush1.msra.mxu0 0.0
      %1991 = vmatprep.subr.mxu0 0.0
      %1992 = vmatpush1.msra.mxu0 0.0
      %1993 = vmatprep.subr.mxu0 0.0
      %1994 = vmatpush1.msra.mxu0 0.0
      %1995 = vmatprep.subr.mxu0 0.0
      %1996 = vmatpush1.msra.mxu0 0.0
      %1997 = vmatprep.subr.mxu0 0.0
      %1998 = vmatpush1.msra.mxu0 0.0
      %1999 = vmatprep.subr.mxu0 0.0
      %2000 = vmatpush1.msra.mxu0 0.0
      %2001 = vmatprep.subr.mxu0 0.0
      %2002 = vmatpush1.msra.mxu0 0.0
      %2003 = vmatprep.subr.mxu0 0.0
      %2004 = vmatpush1.msra.mxu0 0.0
      %2005 = vmatprep.subr.mxu0 0.0
      %2006 = vmatpush1.msra.mxu0 0.0
      %2007 = vmatprep.subr.mxu0 0.0
      %2008 = vmatpush1.msra.mxu0 0.0
      %2009 = vmatprep.subr.mxu0 0.0
      %2010 = vmatpush1.msra.mxu0 0.0
      %2011 = vmatprep.subr.mxu0 0.0
      %2012 = vmatpush1.msra.mxu0 0.0
      %2013 = vmatprep.subr.mxu0 0.0
      %2014 = vmatpush1.msra.mxu0 0.0
      %2015 = vmatprep.subr.mxu0 0.0
      %2016 = vmatpush1.msra.mxu0 0.0
      %2017 = vmatprep.subr.mxu0 0.0
      %2018 = vmatpush1.msra.mxu0 0.0
      %2019 = vmatprep.subr.mxu0 0.0
      %2020 = vmatpush1.msra.mxu0 0.0
      %2021 = vmatprep.subr.mxu0 0.0
      %2022 = vmatpush1.msra.mxu0 0.0
      %2023 = vmatprep.subr.mxu0 0.0
      %2024 = vmatpush1.msra.mxu0 0.0
      %2025 = vmatprep.subr.mxu0 0.0
      %2026 = vmatpush1.msra.mxu0 0.0
      %2027 = vmatprep.subr.mxu0 0.0
      %2028 = vmatpush1.msra.mxu0 0.0
      %2029 = vmatprep.subr.mxu0 0.0
      %2030 = vmatpush1.msra.mxu0 0.0
      %2031 = vmatprep.subr.mxu0 0.0
      %2032 = vmatpush1.msra.mxu0 0.0
      %2033 = vmatprep.subr.mxu0 0.0
      %2034 = vmatpush1.msra.mxu0 0.0
      %2035 = vmatprep.mubr.f32.mxu0 0.0
      %2036 = vmatmul.mubr.f32.gmra.mrb[0].mxu0 %v1966
      %v2037 = vpop.f32.mrb[0].mxu0
      %v2038 = vadd.f32 0.0, %v2037
      %v2039 = vpop.f32.mrb[0].mxu0
      %2040 = vmatprep.mubr.f32.mxu0 0.0
      %2041 = vmatmul.mubr.f32.gmra.mrb[0].mxu0 %v1969
      %v2042 = vpop.f32.mrb[0].mxu0
      %v2043 = vadd.f32 0.0, %v2042
      %v2044 = vpop.f32.mrb[0].mxu0
      %2045 = vdwg.mxu0
      %v2047 = vsel %vm811, %v2038, 0
      %v2050 = vsel %vm811, %v2043, 0
      %2052 = vmatprep.subr.mxu0 0.0
      %2053 = vmatpush1.msra.mxu0 %v1304
      %2054 = vmatprep.subr.mxu0 0.0
      %2055 = vmatpush1.msra.mxu0 %v1305
      %2056 = vmatprep.subr.mxu0 0.0
      %2057 = vmatpush1.msra.mxu0 0.0
      %2058 = vmatprep.subr.mxu0 0.0
      %2059 = vmatpush1.msra.mxu0 0.0
      %2060 = vmatprep.subr.mxu0 0.0
      %2061 = vmatpush1.msra.mxu0 0.0
      %2062 = vmatprep.subr.mxu0 0.0
      %2063 = vmatpush1.msra.mxu0 0.0
      %2064 = vmatprep.subr.mxu0 0.0
      %2065 = vmatpush1.msra.mxu0 0.0
      %2066 = vmatprep.subr.mxu0 0.0
      %2067 = vmatpush1.msra.mxu0 0.0
      %2068 = vmatprep.subr.mxu0 0.0
      %2069 = vmatpush1.msra.mxu0 0.0
      %2070 = vmatprep.subr.mxu0 0.0
      %2071 = vmatpush1.msra.mxu0 0.0
      %2072 = vmatprep.subr.mxu0 0.0
      %2073 = vmatpush1.msra.mxu0 0.0
      %2074 = vmatprep.subr.mxu0 0.0
      %2075 = vmatpush1.msra.mxu0 0.0
      %2076 = vmatprep.subr.mxu0 0.0
      %2077 = vmatpush1.msra.mxu0 0.0
      %2078 = vmatprep.subr.mxu0 0.0
      %2079 = vmatpush1.msra.mxu0 0.0
      %2080 = vmatprep.subr.mxu0 0.0
      %2081 = vmatpush1.msra.mxu0 0.0
      %2082 = vmatprep.subr.mxu0 0.0
      %2083 = vmatpush1.msra.mxu0 0.0
      %2084 = vmatprep.subr.mxu0 0.0
      %2085 = vmatpush1.msra.mxu0 0.0
      %2086 = vmatprep.subr.mxu0 0.0
      %2087 = vmatpush1.msra.mxu0 0.0
      %2088 = vmatprep.subr.mxu0 0.0
      %2089 = vmatpush1.msra.mxu0 0.0
      %2090 = vmatprep.subr.mxu0 0.0
      %2091 = vmatpush1.msra.mxu0 0.0
      %2092 = vmatprep.subr.mxu0 0.0
      %2093 = vmatpush1.msra.mxu0 0.0
      %2094 = vmatprep.subr.mxu0 0.0
      %2095 = vmatpush1.msra.mxu0 0.0
      %2096 = vmatprep.subr.mxu0 0.0
      %2097 = vmatpush1.msra.mxu0 0.0
      %2098 = vmatprep.subr.mxu0 0.0
      %2099 = vmatpush1.msra.mxu0 0.0
      %2100 = vmatprep.subr.mxu0 0.0
      %2101 = vmatpush1.msra.mxu0 0.0
      %2102 = vmatprep.subr.mxu0 0.0
      %2103 = vmatpush1.msra.mxu0 0.0
      %2104 = vmatprep.subr.mxu0 0.0
      %2105 = vmatpush1.msra.mxu0 0.0
      %2106 = vmatprep.subr.mxu0 0.0
      %2107 = vmatpush1.msra.mxu0 0.0
      %2108 = vmatprep.subr.mxu0 0.0
      %2109 = vmatpush1.msra.mxu0 0.0
      %2110 = vmatprep.subr.mxu0 0.0
      %2111 = vmatpush1.msra.mxu0 0.0
      %2112 = vmatprep.subr.mxu0 0.0
      %2113 = vmatpush1.msra.mxu0 0.0
      %2114 = vmatprep.subr.mxu0 0.0
      %2115 = vmatpush1.msra.mxu0 0.0
      %2116 = vmatprep.mubr.f32.mxu0 0.0
      %2117 = vmatmul.mubr.f32.gmra.mrb[0].mxu0 %v2047
      %v2118 = vpop.f32.mrb[0].mxu0
      %v2119 = vadd.f32 0.0, %v2118
      %v2120 = vpop.f32.mrb[0].mxu0
      %2121 = vmatprep.mubr.f32.mxu0 0.0
      %2122 = vmatmul.mubr.f32.gmra.mrb[0].mxu0 %v2050
      %v2123 = vpop.f32.mrb[0].mxu0
      %v2124 = vadd.f32 0.0, %v2123
      %v2125 = vpop.f32.mrb[0].mxu0
      %2126 = vdwg.mxu0
      %v2127 = vadd.f32 %v1838, %v2119
      %v2128 = vadd.f32 %v1839, %v2124
      %v2129 = vadd.f32 %v1044, %v2127
      %v2130 = vadd.f32 %v1045, %v2128
      %v2131 = vsel %vm912, %v2129, 0.0
      %2132 = vadd.xlane.f32.xlu0 %v2131
      %v2133 = vpop.xlane.xlu0 %2132
      %v2134 = vsel %vm912, %v2130, 0.0
      %2135 = vadd.xlane.f32.xlu0 %v2134
      %v2136 = vpop.xlane.xlu0 %2135
      %v2137 = vrcp.pop 32.0
      %v2138 = vmul.f32 %v2133, %v2137
      %v2139 = vmul.f32 %v2136, %v2137
      %v2140 = vsub.f32 %v2129, %v2138
      %v2141 = vsub.f32 %v2130, %v2139
      %v2142 = vmul.f32 %v2140, %v2140
      %v2143 = vmul.f32 %v2141, %v2141
      %v2144 = vsel %vm912, %v2142, 0.0
      %2145 = vadd.xlane.f32.xlu0 %v2144
      %v2146 = vpop.xlane.xlu0 %2145
      %v2147 = vsel %vm912, %v2143, 0.0
      %2148 = vadd.xlane.f32.xlu0 %v2147
      %v2149 = vpop.xlane.xlu0 %2148
      %v2150 = vmul.f32 %v2146, %v2137
      %v2151 = vmul.f32 %v2149, %v2137
      %v2152 = vadd.f32 %v2150, 1e-05
      %v2153 = vadd.f32 %v2151, 1e-05
      %v2154 = vrsqrt.pop %v2152
      %v2155 = vrsqrt.pop %v2153
      %v2156 = vmul.f32 %v2140, %v2154
      %v2157 = vmul.f32 %v2141, %v2155
      %v2158 = vlaneseq
      %v2159 = vshrl.u32 %v2158, 7
      %v2160 = vsub.s32 0, %v2159
      %v2161 = vrot.slane %v1282, %v2160
      %v2162 = vmul.f32 %v2156, %v2161
      %v2163 = vmul.f32 %v2157, %v2161
      %v2164 = vlaneseq
      %v2165 = vshrl.u32 %v2164, 7
      %v2166 = vsub.s32 1, %v2165
      %v2167 = vrot.slane %v1282, %v2166
      %v2168 = vadd.f32 %v2162, %v2167
      %v2169 = vadd.f32 %v2163, %v2167
      %s2170 = scalar_lea.vmem %s7, 128
      %v2171 = vld [vmem:[%s2170] sm:$0xff]
      %v2172 = vld [vmem:[%s2170 + $0x8] sm:$0xff]
      %v2173 = vld [vmem:[%s2170 + $0x10] sm:$0xff]
      %v2174 = vld [vmem:[%s2170 + $0x18] sm:$0xff]
      %s2175 = scalar_lea.vmem %s7, 160
      %v2176 = vld [vmem:[%s2175] sm:$0xff]
      %v2177 = vld [vmem:[%s2175 + $0x8] sm:$0xff]
      %v2178 = vld [vmem:[%s2175 + $0x10] sm:$0xff]
      %v2179 = vld [vmem:[%s2175 + $0x18] sm:$0xff]
      %s2180 = scalar_lea.vmem %s7, 192
      %v2181 = vld [vmem:[%s2180] sm:$0xff]
      %v2182 = vld [vmem:[%s2180 + $0x8] sm:$0xff]
      %v2183 = vld [vmem:[%s2180 + $0x10] sm:$0xff]
      %v2184 = vld [vmem:[%s2180 + $0x18] sm:$0xff]
      %s2185 = scalar_lea.vmem %s7, 224
      %v2186 = vld [vmem:[%s2185] sm:$0xff]
      %v2187 = vld [vmem:[%s2185 + $0x8] sm:$0xff]
      %v2188 = vld [vmem:[%s2185 + $0x10] sm:$0xff]
      %v2189 = vld [vmem:[%s2185 + $0x18] sm:$0xff]
      %v2190 = vld [vmem:[%s8 + $0x4] sm:$0x1]
      %v2191 = vld [vmem:[%s8 + $0x5] sm:$0x1]
      %v2192 = vld [vmem:[%s8 + $0x6] sm:$0x1]
      %v2193 = vld [vmem:[%s8 + $0x7] sm:$0x1]
      %v2194 = vlaneseq
      %v2195 = vshrl.u32 %v2194, 7
      %v2196 = vsub.s32 0, %v2195
      %v2197 = vrot.slane %v2190, %v2196
      %v2199 = vsel %vm912, %v2168, 0
      %v2202 = vsel %vm912, %v2169, 0
      %2204 = vmatprep.subr.mxu0 0.0
      %2205 = vmatpush1.msra.mxu0 %v2171
      %2206 = vmatprep.subr.mxu0 0.0
      %2207 = vmatpush1.msra.mxu0 %v2172
      %2208 = vmatprep.subr.mxu0 0.0
      %2209 = vmatpush1.msra.mxu0 %v2173
      %2210 = vmatprep.subr.mxu0 0.0
      %2211 = vmatpush1.msra.mxu0 %v2174
      %2212 = vmatprep.subr.mxu0 0.0
      %2213 = vmatpush1.msra.mxu0 0.0
      %2214 = vmatprep.subr.mxu0 0.0
      %2215 = vmatpush1.msra.mxu0 0.0
      %2216 = vmatprep.subr.mxu0 0.0
      %2217 = vmatpush1.msra.mxu0 0.0
      %2218 = vmatprep.subr.mxu0 0.0
      %2219 = vmatpush1.msra.mxu0 0.0
      %2220 = vmatprep.subr.mxu0 0.0
      %2221 = vmatpush1.msra.mxu0 0.0
      %2222 = vmatprep.subr.mxu0 0.0
      %2223 = vmatpush1.msra.mxu0 0.0
      %2224 = vmatprep.subr.mxu0 0.0
      %2225 = vmatpush1.msra.mxu0 0.0
      %2226 = vmatprep.subr.mxu0 0.0
      %2227 = vmatpush1.msra.mxu0 0.0
      %2228 = vmatprep.subr.mxu0 0.0
      %2229 = vmatpush1.msra.mxu0 0.0
      %2230 = vmatprep.subr.mxu0 0.0
      %2231 = vmatpush1.msra.mxu0 0.0
      %2232 = vmatprep.subr.mxu0 0.0
      %2233 = vmatpush1.msra.mxu0 0.0
      %2234 = vmatprep.subr.mxu0 0.0
      %2235 = vmatpush1.msra.mxu0 0.0
      %2236 = vmatprep.subr.mxu0 0.0
      %2237 = vmatpush1.msra.mxu0 0.0
      %2238 = vmatprep.subr.mxu0 0.0
      %2239 = vmatpush1.msra.mxu0 0.0
      %2240 = vmatprep.subr.mxu0 0.0
      %2241 = vmatpush1.msra.mxu0 0.0
      %2242 = vmatprep.subr.mxu0 0.0
      %2243 = vmatpush1.msra.mxu0 0.0
      %2244 = vmatprep.subr.mxu0 0.0
      %2245 = vmatpush1.msra.mxu0 0.0
      %2246 = vmatprep.subr.mxu0 0.0
      %2247 = vmatpush1.msra.mxu0 0.0
      %2248 = vmatprep.subr.mxu0 0.0
      %2249 = vmatpush1.msra.mxu0 0.0
      %2250 = vmatprep.subr.mxu0 0.0
      %2251 = vmatpush1.msra.mxu0 0.0
      %2252 = vmatprep.subr.mxu0 0.0
      %2253 = vmatpush1.msra.mxu0 0.0
      %2254 = vmatprep.subr.mxu0 0.0
      %2255 = vmatpush1.msra.mxu0 0.0
      %2256 = vmatprep.subr.mxu0 0.0
      %2257 = vmatpush1.msra.mxu0 0.0
      %2258 = vmatprep.subr.mxu0 0.0
      %2259 = vmatpush1.msra.mxu0 0.0
      %2260 = vmatprep.subr.mxu0 0.0
      %2261 = vmatpush1.msra.mxu0 0.0
      %2262 = vmatprep.subr.mxu0 0.0
      %2263 = vmatpush1.msra.mxu0 0.0
      %2264 = vmatprep.subr.mxu0 0.0
      %2265 = vmatpush1.msra.mxu0 0.0
      %2266 = vmatprep.subr.mxu0 0.0
      %2267 = vmatpush1.msra.mxu0 0.0
      %2268 = vmatprep.mubr.f32.mxu0 0.0
      %2269 = vmatmul.mubr.f32.gmra.mrb[0].mxu0 %v2199
      %v2270 = vpop.f32.mrb[0].mxu0
      %v2271 = vadd.f32 %v2197, %v2270
      %v2272 = vpop.f32.mrb[0].mxu0
      %2273 = vmatprep.mubr.f32.mxu0 0.0
      %2274 = vmatmul.mubr.f32.gmra.mrb[0].mxu0 %v2202
      %v2275 = vpop.f32.mrb[0].mxu0
      %v2276 = vadd.f32 %v2197, %v2275
      %v2277 = vpop.f32.mrb[0].mxu0
      %2278 = vdwg.mxu0
      %v2279 = vlaneseq
      %v2280 = vshrl.u32 %v2279, 7
      %v2281 = vsub.s32 0, %v2280
      %v2282 = vrot.slane %v2191, %v2281
      %v2284 = vsel %vm912, %v1280, 0
      %v2287 = vsel %vm912, %v1281, 0
      %2289 = vmatprep.subr.mxu0 0.0
      %2290 = vmatpush1.msra.mxu0 %v2176
      %2291 = vmatprep.subr.mxu0 0.0
      %2292 = vmatpush1.msra.mxu0 %v2177
      %2293 = vmatprep.subr.mxu0 0.0
      %2294 = vmatpush1.msra.mxu0 %v2178
      %2295 = vmatprep.subr.mxu0 0.0
      %2296 = vmatpush1.msra.mxu0 %v2179
      %2297 = vmatprep.subr.mxu0 0.0
      %2298 = vmatpush1.msra.mxu0 0.0
      %2299 = vmatprep.subr.mxu0 0.0
      %2300 = vmatpush1.msra.mxu0 0.0
      %2301 = vmatprep.subr.mxu0 0.0
      %2302 = vmatpush1.msra.mxu0 0.0
      %2303 = vmatprep.subr.mxu0 0.0
      %2304 = vmatpush1.msra.mxu0 0.0
      %2305 = vmatprep.subr.mxu0 0.0
      %2306 = vmatpush1.msra.mxu0 0.0
      %2307 = vmatprep.subr.mxu0 0.0
      %2308 = vmatpush1.msra.mxu0 0.0
      %2309 = vmatprep.subr.mxu0 0.0
      %2310 = vmatpush1.msra.mxu0 0.0
      %2311 = vmatprep.subr.mxu0 0.0
      %2312 = vmatpush1.msra.mxu0 0.0
      %2313 = vmatprep.subr.mxu0 0.0
      %2314 = vmatpush1.msra.mxu0 0.0
      %2315 = vmatprep.subr.mxu0 0.0
      %2316 = vmatpush1.msra.mxu0 0.0
      %2317 = vmatprep.subr.mxu0 0.0
      %2318 = vmatpush1.msra.mxu0 0.0
      %2319 = vmatprep.subr.mxu0 0.0
      %2320 = vmatpush1.msra.mxu0 0.0
      %2321 = vmatprep.subr.mxu0 0.0
      %2322 = vmatpush1.msra.mxu0 0.0
      %2323 = vmatprep.subr.mxu0 0.0
      %2324 = vmatpush1.msra.mxu0 0.0
      %2325 = vmatprep.subr.mxu0 0.0
      %2326 = vmatpush1.msra.mxu0 0.0
      %2327 = vmatprep.subr.mxu0 0.0
      %2328 = vmatpush1.msra.mxu0 0.0
      %2329 = vmatprep.subr.mxu0 0.0
      %2330 = vmatpush1.msra.mxu0 0.0
      %2331 = vmatprep.subr.mxu0 0.0
      %2332 = vmatpush1.msra.mxu0 0.0
      %2333 = vmatprep.subr.mxu0 0.0
      %2334 = vmatpush1.msra.mxu0 0.0
      %2335 = vmatprep.subr.mxu0 0.0
      %2336 = vmatpush1.msra.mxu0 0.0
      %2337 = vmatprep.subr.mxu0 0.0
      %2338 = vmatpush1.msra.mxu0 0.0
      %2339 = vmatprep.subr.mxu0 0.0
      %2340 = vmatpush1.msra.mxu0 0.0
      %2341 = vmatprep.subr.mxu0 0.0
      %2342 = vmatpush1.msra.mxu0 0.0
      %2343 = vmatprep.subr.mxu0 0.0
      %2344 = vmatpush1.msra.mxu0 0.0
      %2345 = vmatprep.subr.mxu0 0.0
      %2346 = vmatpush1.msra.mxu0 0.0
      %2347 = vmatprep.subr.mxu0 0.0
      %2348 = vmatpush1.msra.mxu0 0.0
      %2349 = vmatprep.subr.mxu0 0.0
      %2350 = vmatpush1.msra.mxu0 0.0
      %2351 = vmatprep.subr.mxu0 0.0
      %2352 = vmatpush1.msra.mxu0 0.0
      %2353 = vmatprep.mubr.f32.mxu0 0.0
      %2354 = vmatmul.mubr.f32.gmra.mrb[0].mxu0 %v2284
      %v2355 = vpop.f32.mrb[0].mxu0
      %v2356 = vadd.f32 %v2282, %v2355
      %v2357 = vpop.f32.mrb[0].mxu0
      %2358 = vmatprep.mubr.f32.mxu0 0.0
      %2359 = vmatmul.mubr.f32.gmra.mrb[0].mxu0 %v2287
      %v2360 = vpop.f32.mrb[0].mxu0
      %v2361 = vadd.f32 %v2282, %v2360
      %v2362 = vpop.f32.mrb[0].mxu0
      %2363 = vdwg.mxu0
      %v2364 = vlaneseq
      %v2365 = vshrl.u32 %v2364, 7
      %v2366 = vsub.s32 0, %v2365
      %v2367 = vrot.slane %v2192, %v2366
      %2368 = vmatprep.subr.mxu0 0.0
      %2369 = vmatpush1.msra.mxu0 %v2181
      %2370 = vmatprep.subr.mxu0 0.0
      %2371 = vmatpush1.msra.mxu0 %v2182
      %2372 = vmatprep.subr.mxu0 0.0
      %2373 = vmatpush1.msra.mxu0 %v2183
      %2374 = vmatprep.subr.mxu0 0.0
      %2375 = vmatpush1.msra.mxu0 %v2184
      %2376 = vmatprep.subr.mxu0 0.0
      %2377 = vmatpush1.msra.mxu0 0.0
      %2378 = vmatprep.subr.mxu0 0.0
      %2379 = vmatpush1.msra.mxu0 0.0
      %2380 = vmatprep.subr.mxu0 0.0
      %2381 = vmatpush1.msra.mxu0 0.0
      %2382 = vmatprep.subr.mxu0 0.0
      %2383 = vmatpush1.msra.mxu0 0.0
      %2384 = vmatprep.subr.mxu0 0.0
      %2385 = vmatpush1.msra.mxu0 0.0
      %2386 = vmatprep.subr.mxu0 0.0
      %2387 = vmatpush1.msra.mxu0 0.0
      %2388 = vmatprep.subr.mxu0 0.0
      %2389 = vmatpush1.msra.mxu0 0.0
      %2390 = vmatprep.subr.mxu0 0.0
      %2391 = vmatpush1.msra.mxu0 0.0
      %2392 = vmatprep.subr.mxu0 0.0
      %2393 = vmatpush1.msra.mxu0 0.0
      %2394 = vmatprep.subr.mxu0 0.0
      %2395 = vmatpush1.msra.mxu0 0.0
      %2396 = vmatprep.subr.mxu0 0.0
      %2397 = vmatpush1.msra.mxu0 0.0
      %2398 = vmatprep.subr.mxu0 0.0
      %2399 = vmatpush1.msra.mxu0 0.0
      %2400 = vmatprep.subr.mxu0 0.0
      %2401 = vmatpush1.msra.mxu0 0.0
      %2402 = vmatprep.subr.mxu0 0.0
      %2403 = vmatpush1.msra.mxu0 0.0
      %2404 = vmatprep.subr.mxu0 0.0
      %2405 = vmatpush1.msra.mxu0 0.0
      %2406 = vmatprep.subr.mxu0 0.0
      %2407 = vmatpush1.msra.mxu0 0.0
      %2408 = vmatprep.subr.mxu0 0.0
      %2409 = vmatpush1.msra.mxu0 0.0
      %2410 = vmatprep.subr.mxu0 0.0
      %2411 = vmatpush1.msra.mxu0 0.0
      %2412 = vmatprep.subr.mxu0 0.0
      %2413 = vmatpush1.msra.mxu0 0.0
      %2414 = vmatprep.subr.mxu0 0.0
      %2415 = vmatpush1.msra.mxu0 0.0
      %2416 = vmatprep.subr.mxu0 0.0
      %2417 = vmatpush1.msra.mxu0 0.0
      %2418 = vmatprep.subr.mxu0 0.0
      %2419 = vmatpush1.msra.mxu0 0.0
      %2420 = vmatprep.subr.mxu0 0.0
      %2421 = vmatpush1.msra.mxu0 0.0
      %2422 = vmatprep.subr.mxu0 0.0
      %2423 = vmatpush1.msra.mxu0 0.0
      %2424 = vmatprep.subr.mxu0 0.0
      %2425 = vmatpush1.msra.mxu0 0.0
      %2426 = vmatprep.subr.mxu0 0.0
      %2427 = vmatpush1.msra.mxu0 0.0
      %2428 = vmatprep.subr.mxu0 0.0
      %2429 = vmatpush1.msra.mxu0 0.0
      %2430 = vmatprep.subr.mxu0 0.0
      %2431 = vmatpush1.msra.mxu0 0.0
      %2432 = vmatprep.mubr.f32.mxu0 0.0
      %2433 = vmatmul.mubr.f32.gmra.mrb[0].mxu0 %v2284
      %v2434 = vpop.f32.mrb[0].mxu0
      %v2435 = vadd.f32 %v2367, %v2434
      %v2436 = vpop.f32.mrb[0].mxu0
      %2437 = vmatprep.mubr.f32.mxu0 0.0
      %2438 = vmatmul.mubr.f32.gmra.mrb[0].mxu0 %v2287
      %v2439 = vpop.f32.mrb[0].mxu0
      %v2440 = vadd.f32 %v2367, %v2439
      %v2441 = vpop.f32.mrb[0].mxu0
      %2442 = vdwg.mxu0
      %v2444 = vsel %vm811, %v2271, 0
      %v2447 = vsel %vm811, %v2276, 0
      %v2450 = vsel %vm811, %v2356, 0
      %v2453 = vsel %vm811, %v2361, 0
      %2455 = vmatprep.subr.mxu0 0.0
      %2456 = vmatpush1.xpose.msra.mxu0 %v2450
      %2457 = vmatprep.subr.mxu0 0.0
      %2458 = vmatpush1.xpose.msra.mxu0 %v2453
      %2459 = vmatprep.subr.mxu0 0.0
      %2460 = vmatpush1.xpose.msra.mxu0 0.0
      %2461 = vmatprep.subr.mxu0 0.0
      %2462 = vmatpush1.xpose.msra.mxu0 0.0
      %2463 = vmatprep.subr.mxu0 0.0
      %2464 = vmatpush1.xpose.msra.mxu0 0.0
      %2465 = vmatprep.subr.mxu0 0.0
      %2466 = vmatpush1.xpose.msra.mxu0 0.0
      %2467 = vmatprep.subr.mxu0 0.0
      %2468 = vmatpush1.xpose.msra.mxu0 0.0
      %2469 = vmatprep.subr.mxu0 0.0
      %2470 = vmatpush1.xpose.msra.mxu0 0.0
      %2471 = vmatprep.subr.mxu0 0.0
      %2472 = vmatpush1.xpose.msra.mxu0 0.0
      %2473 = vmatprep.subr.mxu0 0.0
      %2474 = vmatpush1.xpose.msra.mxu0 0.0
      %2475 = vmatprep.subr.mxu0 0.0
      %2476 = vmatpush1.xpose.msra.mxu0 0.0
      %2477 = vmatprep.subr.mxu0 0.0
      %2478 = vmatpush1.xpose.msra.mxu0 0.0
      %2479 = vmatprep.subr.mxu0 0.0
      %2480 = vmatpush1.xpose.msra.mxu0 0.0
      %2481 = vmatprep.subr.mxu0 0.0
      %2482 = vmatpush1.xpose.msra.mxu0 0.0
      %2483 = vmatprep.subr.mxu0 0.0
      %2484 = vmatpush1.xpose.msra.mxu0 0.0
      %2485 = vmatprep.subr.mxu0 0.0
      %2486 = vmatpush1.xpose.msra.mxu0 0.0
      %2487 = vmatprep.subr.mxu0 0.0
      %2488 = vmatpush1.xpose.msra.mxu0 0.0
      %2489 = vmatprep.subr.mxu0 0.0
      %2490 = vmatpush1.xpose.msra.mxu0 0.0
      %2491 = vmatprep.subr.mxu0 0.0
      %2492 = vmatpush1.xpose.msra.mxu0 0.0
      %2493 = vmatprep.subr.mxu0 0.0
      %2494 = vmatpush1.xpose.msra.mxu0 0.0
      %2495 = vmatprep.subr.mxu0 0.0
      %2496 = vmatpush1.xpose.msra.mxu0 0.0
      %2497 = vmatprep.subr.mxu0 0.0
      %2498 = vmatpush1.xpose.msra.mxu0 0.0
      %2499 = vmatprep.subr.mxu0 0.0
      %2500 = vmatpush1.xpose.msra.mxu0 0.0
      %2501 = vmatprep.subr.mxu0 0.0
      %2502 = vmatpush1.xpose.msra.mxu0 0.0
      %2503 = vmatprep.subr.mxu0 0.0
      %2504 = vmatpush1.xpose.msra.mxu0 0.0
      %2505 = vmatprep.subr.mxu0 0.0
      %2506 = vmatpush1.xpose.msra.mxu0 0.0
      %2507 = vmatprep.subr.mxu0 0.0
      %2508 = vmatpush1.xpose.msra.mxu0 0.0
      %2509 = vmatprep.subr.mxu0 0.0
      %2510 = vmatpush1.xpose.msra.mxu0 0.0
      %2511 = vmatprep.subr.mxu0 0.0
      %2512 = vmatpush1.xpose.msra.mxu0 0.0
      %2513 = vmatprep.subr.mxu0 0.0
      %2514 = vmatpush1.xpose.msra.mxu0 0.0
      %2515 = vmatprep.subr.mxu0 0.0
      %2516 = vmatpush1.xpose.msra.mxu0 0.0
      %2517 = vmatprep.subr.mxu0 0.0
      %2518 = vmatpush1.xpose.msra.mxu0 0.0
      %2519 = vmatprep.mubr.f32.mxu0 0.0
      %2520 = vmatmul.mubr.f32.gmra.mrb[0].mxu0 %v2444
      %v2521 = vpop.f32.mrb[0].mxu0
      %v2522 = vadd.f32 0.0, %v2521
      %v2523 = vpop.f32.mrb[0].mxu0
      %2524 = vmatprep.mubr.f32.mxu0 0.0
      %2525 = vmatmul.mubr.f32.gmra.mrb[0].mxu0 %v2447
      %v2526 = vpop.f32.mrb[0].mxu0
      %v2527 = vadd.f32 0.0, %v2526
      %v2528 = vpop.f32.mrb[0].mxu0
      %2529 = vdwg.mxu0
      %v2530 = vmul.f32 %v2522, 0.25
      %v2531 = vmul.f32 %v2527, 0.25
      %v2532 = vadd.f32 %v2530, %v1646
      %v2533 = vadd.f32 %v2531, %v1646
      %v2534 = vsel %vm811, %v2532, -inf
      %2535 = vmax.xlane.f32.xlu0 %v2534
      %v2536 = vpop.xlane.xlu0 %2535
      %v2537 = vsel %vm811, %v2533, -inf
      %2538 = vmax.xlane.f32.xlu0 %v2537
      %v2539 = vpop.xlane.xlu0 %2538
      %v2540 = vsub.f32 %v2532, %v2536
      %v2541 = vsub.f32 %v2533, %v2539
      %v2542 = vmul.f32 %v2540, 1.442695
      %v2543 = vpow.pop %v2542
      %v2544 = vmul.f32 %v2541, 1.442695
      %v2545 = vpow.pop %v2544
      %v2546 = vsel %vm811, %v2543, 0.0
      %2547 = vadd.xlane.f32.xlu0 %v2546
      %v2548 = vpop.xlane.xlu0 %2547
      %v2549 = vsel %vm811, %v2545, 0.0
      %2550 = vadd.xlane.f32.xlu0 %v2549
      %v2551 = vpop.xlane.xlu0 %2550
      %v2552 = vrcp.pop %v2548
      %v2553 = vrcp.pop %v2551
      %v2554 = vmul.f32 %v2543, %v2552
      %v2555 = vmul.f32 %v2545, %v2553
      %v2557 = vsel %vm811, %v2554, 0
      %v2560 = vsel %vm811, %v2555, 0
      %2562 = vmatprep.subr.mxu0 0.0
      %2563 = vmatpush1.msra.mxu0 %v2435
      %2564 = vmatprep.subr.mxu0 0.0
      %2565 = vmatpush1.msra.mxu0 %v2440
      %2566 = vmatprep.subr.mxu0 0.0
      %2567 = vmatpush1.msra.mxu0 0.0
      %2568 = vmatprep.subr.mxu0 0.0
      %2569 = vmatpush1.msra.mxu0 0.0
      %2570 = vmatprep.subr.mxu0 0.0
      %2571 = vmatpush1.msra.mxu0 0.0
      %2572 = vmatprep.subr.mxu0 0.0
      %2573 = vmatpush1.msra.mxu0 0.0
      %2574 = vmatprep.subr.mxu0 0.0
      %2575 = vmatpush1.msra.mxu0 0.0
      %2576 = vmatprep.subr.mxu0 0.0
      %2577 = vmatpush1.msra.mxu0 0.0
      %2578 = vmatprep.subr.mxu0 0.0
      %2579 = vmatpush1.msra.mxu0 0.0
      %2580 = vmatprep.subr.mxu0 0.0
      %2581 = vmatpush1.msra.mxu0 0.0
      %2582 = vmatprep.subr.mxu0 0.0
      %2583 = vmatpush1.msra.mxu0 0.0
      %2584 = vmatprep.subr.mxu0 0.0
      %2585 = vmatpush1.msra.mxu0 0.0
      %2586 = vmatprep.subr.mxu0 0.0
      %2587 = vmatpush1.msra.mxu0 0.0
      %2588 = vmatprep.subr.mxu0 0.0
      %2589 = vmatpush1.msra.mxu0 0.0
      %2590 = vmatprep.subr.mxu0 0.0
      %2591 = vmatpush1.msra.mxu0 0.0
      %2592 = vmatprep.subr.mxu0 0.0
      %2593 = vmatpush1.msra.mxu0 0.0
      %2594 = vmatprep.subr.mxu0 0.0
      %2595 = vmatpush1.msra.mxu0 0.0
      %2596 = vmatprep.subr.mxu0 0.0
      %2597 = vmatpush1.msra.mxu0 0.0
      %2598 = vmatprep.subr.mxu0 0.0
      %2599 = vmatpush1.msra.mxu0 0.0
      %2600 = vmatprep.subr.mxu0 0.0
      %2601 = vmatpush1.msra.mxu0 0.0
      %2602 = vmatprep.subr.mxu0 0.0
      %2603 = vmatpush1.msra.mxu0 0.0
      %2604 = vmatprep.subr.mxu0 0.0
      %2605 = vmatpush1.msra.mxu0 0.0
      %2606 = vmatprep.subr.mxu0 0.0
      %2607 = vmatpush1.msra.mxu0 0.0
      %2608 = vmatprep.subr.mxu0 0.0
      %2609 = vmatpush1.msra.mxu0 0.0
      %2610 = vmatprep.subr.mxu0 0.0
      %2611 = vmatpush1.msra.mxu0 0.0
      %2612 = vmatprep.subr.mxu0 0.0
      %2613 = vmatpush1.msra.mxu0 0.0
      %2614 = vmatprep.subr.mxu0 0.0
      %2615 = vmatpush1.msra.mxu0 0.0
      %2616 = vmatprep.subr.mxu0 0.0
      %2617 = vmatpush1.msra.mxu0 0.0
      %2618 = vmatprep.subr.mxu0 0.0
      %2619 = vmatpush1.msra.mxu0 0.0
      %2620 = vmatprep.subr.mxu0 0.0
      %2621 = vmatpush1.msra.mxu0 0.0
      %2622 = vmatprep.subr.mxu0 0.0
      %2623 = vmatpush1.msra.mxu0 0.0
      %2624 = vmatprep.subr.mxu0 0.0
      %2625 = vmatpush1.msra.mxu0 0.0
      %2626 = vmatprep.mubr.f32.mxu0 0.0
      %2627 = vmatmul.mubr.f32.gmra.mrb[0].mxu0 %v2557
      %v2628 = vpop.f32.mrb[0].mxu0
      %v2629 = vadd.f32 0.0, %v2628
      %v2630 = vpop.f32.mrb[0].mxu0
      %2631 = vmatprep.mubr.f32.mxu0 0.0
      %2632 = vmatmul.mubr.f32.gmra.mrb[0].mxu0 %v2560
      %v2633 = vpop.f32.mrb[0].mxu0
      %v2634 = vadd.f32 0.0, %v2633
      %v2635 = vpop.f32.mrb[0].mxu0
      %2636 = vdwg.mxu0
      %v2638 = vsel %vm811, %v2629, 0
      %v2641 = vsel %vm811, %v2634, 0
      %2643 = vmatprep.subr.mxu0 0.0
      %2644 = vmatpush1.msra.mxu0 %v2186
      %2645 = vmatprep.subr.mxu0 0.0
      %2646 = vmatpush1.msra.mxu0 %v2187
      %2647 = vmatprep.subr.mxu0 0.0
      %2648 = vmatpush1.msra.mxu0 0.0
      %2649 = vmatprep.subr.mxu0 0.0
      %2650 = vmatpush1.msra.mxu0 0.0
      %2651 = vmatprep.subr.mxu0 0.0
      %2652 = vmatpush1.msra.mxu0 0.0
      %2653 = vmatprep.subr.mxu0 0.0
      %2654 = vmatpush1.msra.mxu0 0.0
      %2655 = vmatprep.subr.mxu0 0.0
      %2656 = vmatpush1.msra.mxu0 0.0
      %2657 = vmatprep.subr.mxu0 0.0
      %2658 = vmatpush1.msra.mxu0 0.0
      %2659 = vmatprep.subr.mxu0 0.0
      %2660 = vmatpush1.msra.mxu0 0.0
      %2661 = vmatprep.subr.mxu0 0.0
      %2662 = vmatpush1.msra.mxu0 0.0
      %2663 = vmatprep.subr.mxu0 0.0
      %2664 = vmatpush1.msra.mxu0 0.0
      %2665 = vmatprep.subr.mxu0 0.0
      %2666 = vmatpush1.msra.mxu0 0.0
      %2667 = vmatprep.subr.mxu0 0.0
      %2668 = vmatpush1.msra.mxu0 0.0
      %2669 = vmatprep.subr.mxu0 0.0
      %2670 = vmatpush1.msra.mxu0 0.0
      %2671 = vmatprep.subr.mxu0 0.0
      %2672 = vmatpush1.msra.mxu0 0.0
      %2673 = vmatprep.subr.mxu0 0.0
      %2674 = vmatpush1.msra.mxu0 0.0
      %2675 = vmatprep.subr.mxu0 0.0
      %2676 = vmatpush1.msra.mxu0 0.0
      %2677 = vmatprep.subr.mxu0 0.0
      %2678 = vmatpush1.msra.mxu0 0.0
      %2679 = vmatprep.subr.mxu0 0.0
      %2680 = vmatpush1.msra.mxu0 0.0
      %2681 = vmatprep.subr.mxu0 0.0
      %2682 = vmatpush1.msra.mxu0 0.0
      %2683 = vmatprep.subr.mxu0 0.0
      %2684 = vmatpush1.msra.mxu0 0.0
      %2685 = vmatprep.subr.mxu0 0.0
      %2686 = vmatpush1.msra.mxu0 0.0
      %2687 = vmatprep.subr.mxu0 0.0
      %2688 = vmatpush1.msra.mxu0 0.0
      %2689 = vmatprep.subr.mxu0 0.0
      %2690 = vmatpush1.msra.mxu0 0.0
      %2691 = vmatprep.subr.mxu0 0.0
      %2692 = vmatpush1.msra.mxu0 0.0
      %2693 = vmatprep.subr.mxu0 0.0
      %2694 = vmatpush1.msra.mxu0 0.0
      %2695 = vmatprep.subr.mxu0 0.0
      %2696 = vmatpush1.msra.mxu0 0.0
      %2697 = vmatprep.subr.mxu0 0.0
      %2698 = vmatpush1.msra.mxu0 0.0
      %2699 = vmatprep.subr.mxu0 0.0
      %2700 = vmatpush1.msra.mxu0 0.0
      %2701 = vmatprep.subr.mxu0 0.0
      %2702 = vmatpush1.msra.mxu0 0.0
      %2703 = vmatprep.subr.mxu0 0.0
      %2704 = vmatpush1.msra.mxu0 0.0
      %2705 = vmatprep.subr.mxu0 0.0
      %2706 = vmatpush1.msra.mxu0 0.0
      %2707 = vmatprep.mubr.f32.mxu0 0.0
      %2708 = vmatmul.mubr.f32.gmra.mrb[0].mxu0 %v2638
      %v2709 = vpop.f32.mrb[0].mxu0
      %v2710 = vadd.f32 0.0, %v2709
      %v2711 = vpop.f32.mrb[0].mxu0
      %2712 = vmatprep.mubr.f32.mxu0 0.0
      %2713 = vmatmul.mubr.f32.gmra.mrb[0].mxu0 %v2641
      %v2714 = vpop.f32.mrb[0].mxu0
      %v2715 = vadd.f32 0.0, %v2714
      %v2716 = vpop.f32.mrb[0].mxu0
      %2717 = vdwg.mxu0
      %v2718 = vlaneseq
      %v2719 = vshrl.u32 %v2718, 7
      %v2720 = vsub.s32 0, %v2719
      %v2721 = vrot.slane %v2193, %v2720
      %v2722 = vadd.f32 %v2721, %v2710
      %v2723 = vadd.f32 %v2721, %v2715
      %2724 = vrot.lane.b32.xlu0 %v2271, 112
      %v2725 = vpop.permute.xlu0 %2724
      %2726 = vrot.lane.b32.xlu0 %v2276, 112
      %v2727 = vpop.permute.xlu0 %2726
      %2728 = vrot.lane.b32.xlu0 %v2356, 112
      %v2729 = vpop.permute.xlu0 %2728
      %2730 = vrot.lane.b32.xlu0 %v2361, 112
      %v2731 = vpop.permute.xlu0 %2730
      %v2732 = vsel %vm811, %v2725, 0
      %v2734 = vsel %vm811, %v2727, 0
      %v2736 = vsel %vm811, %v2729, 0
      %v2738 = vsel %vm811, %v2731, 0
      %2740 = vmatprep.subr.mxu0 0.0
      %2741 = vmatpush1.xpose.msra.mxu0 %v2736
      %2742 = vmatprep.subr.mxu0 0.0
      %2743 = vmatpush1.xpose.msra.mxu0 %v2738
      %2744 = vmatprep.subr.mxu0 0.0
      %2745 = vmatpush1.xpose.msra.mxu0 0.0
      %2746 = vmatprep.subr.mxu0 0.0
      %2747 = vmatpush1.xpose.msra.mxu0 0.0
      %2748 = vmatprep.subr.mxu0 0.0
      %2749 = vmatpush1.xpose.msra.mxu0 0.0
      %2750 = vmatprep.subr.mxu0 0.0
      %2751 = vmatpush1.xpose.msra.mxu0 0.0
      %2752 = vmatprep.subr.mxu0 0.0
      %2753 = vmatpush1.xpose.msra.mxu0 0.0
      %2754 = vmatprep.subr.mxu0 0.0
      %2755 = vmatpush1.xpose.msra.mxu0 0.0
      %2756 = vmatprep.subr.mxu0 0.0
      %2757 = vmatpush1.xpose.msra.mxu0 0.0
      %2758 = vmatprep.subr.mxu0 0.0
      %2759 = vmatpush1.xpose.msra.mxu0 0.0
      %2760 = vmatprep.subr.mxu0 0.0
      %2761 = vmatpush1.xpose.msra.mxu0 0.0
      %2762 = vmatprep.subr.mxu0 0.0
      %2763 = vmatpush1.xpose.msra.mxu0 0.0
      %2764 = vmatprep.subr.mxu0 0.0
      %2765 = vmatpush1.xpose.msra.mxu0 0.0
      %2766 = vmatprep.subr.mxu0 0.0
      %2767 = vmatpush1.xpose.msra.mxu0 0.0
      %2768 = vmatprep.subr.mxu0 0.0
      %2769 = vmatpush1.xpose.msra.mxu0 0.0
      %2770 = vmatprep.subr.mxu0 0.0
      %2771 = vmatpush1.xpose.msra.mxu0 0.0
      %2772 = vmatprep.subr.mxu0 0.0
      %2773 = vmatpush1.xpose.msra.mxu0 0.0
      %2774 = vmatprep.subr.mxu0 0.0
      %2775 = vmatpush1.xpose.msra.mxu0 0.0
      %2776 = vmatprep.subr.mxu0 0.0
      %2777 = vmatpush1.xpose.msra.mxu0 0.0
      %2778 = vmatprep.subr.mxu0 0.0
      %2779 = vmatpush1.xpose.msra.mxu0 0.0
      %2780 = vmatprep.subr.mxu0 0.0
      %2781 = vmatpush1.xpose.msra.mxu0 0.0
      %2782 = vmatprep.subr.mxu0 0.0
      %2783 = vmatpush1.xpose.msra.mxu0 0.0
      %2784 = vmatprep.subr.mxu0 0.0
      %2785 = vmatpush1.xpose.msra.mxu0 0.0
      %2786 = vmatprep.subr.mxu0 0.0
      %2787 = vmatpush1.xpose.msra.mxu0 0.0
      %2788 = vmatprep.subr.mxu0 0.0
      %2789 = vmatpush1.xpose.msra.mxu0 0.0
      %2790 = vmatprep.subr.mxu0 0.0
      %2791 = vmatpush1.xpose.msra.mxu0 0.0
      %2792 = vmatprep.subr.mxu0 0.0
      %2793 = vmatpush1.xpose.msra.mxu0 0.0
      %2794 = vmatprep.subr.mxu0 0.0
      %2795 = vmatpush1.xpose.msra.mxu0 0.0
      %2796 = vmatprep.subr.mxu0 0.0
      %2797 = vmatpush1.xpose.msra.mxu0 0.0
      %2798 = vmatprep.subr.mxu0 0.0
      %2799 = vmatpush1.xpose.msra.mxu0 0.0
      %2800 = vmatprep.subr.mxu0 0.0
      %2801 = vmatpush1.xpose.msra.mxu0 0.0
      %2802 = vmatprep.subr.mxu0 0.0
      %2803 = vmatpush1.xpose.msra.mxu0 0.0
      %2804 = vmatprep.mubr.f32.mxu0 0.0
      %2805 = vmatmul.mubr.f32.gmra.mrb[0].mxu0 %v2732
      %v2806 = vpop.f32.mrb[0].mxu0
      %v2807 = vadd.f32 0.0, %v2806
      %v2808 = vpop.f32.mrb[0].mxu0
      %2809 = vmatprep.mubr.f32.mxu0 0.0
      %2810 = vmatmul.mubr.f32.gmra.mrb[0].mxu0 %v2734
      %v2811 = vpop.f32.mrb[0].mxu0
      %v2812 = vadd.f32 0.0, %v2811
      %v2813 = vpop.f32.mrb[0].mxu0
      %2814 = vdwg.mxu0
      %v2815 = vmul.f32 %v2807, 0.25
      %v2816 = vmul.f32 %v2812, 0.25
      %v2817 = vadd.f32 %v2815, %v1646
      %v2818 = vadd.f32 %v2816, %v1646
      %v2819 = vsel %vm811, %v2817, -inf
      %2820 = vmax.xlane.f32.xlu0 %v2819
      %v2821 = vpop.xlane.xlu0 %2820
      %v2822 = vsel %vm811, %v2818, -inf
      %2823 = vmax.xlane.f32.xlu0 %v2822
      %v2824 = vpop.xlane.xlu0 %2823
      %v2825 = vsub.f32 %v2817, %v2821
      %v2826 = vsub.f32 %v2818, %v2824
      %v2827 = vmul.f32 %v2825, 1.442695
      %v2828 = vpow.pop %v2827
      %v2829 = vmul.f32 %v2826, 1.442695
      %v2830 = vpow.pop %v2829
      %v2831 = vsel %vm811, %v2828, 0.0
      %2832 = vadd.xlane.f32.xlu0 %v2831
      %v2833 = vpop.xlane.xlu0 %2832
      %v2834 = vsel %vm811, %v2830, 0.0
      %2835 = vadd.xlane.f32.xlu0 %v2834
      %v2836 = vpop.xlane.xlu0 %2835
      %v2837 = vrcp.pop %v2833
      %v2838 = vrcp.pop %v2836
      %v2839 = vmul.f32 %v2828, %v2837
      %v2840 = vmul.f32 %v2830, %v2838
      %2843 = vrot.lane.b32.xlu0 %v2435, 112
      %v2844 = vpop.permute.xlu0 %2843
      %2845 = vrot.lane.b32.xlu0 %v2440, 112
      %v2846 = vpop.permute.xlu0 %2845
      %v2850 = vsel %vm811, %v2839, 0
      %v2853 = vsel %vm811, %v2840, 0
      %2855 = vmatprep.subr.mxu0 0.0
      %2856 = vmatpush1.msra.mxu0 %v2844
      %2857 = vmatprep.subr.mxu0 0.0
      %2858 = vmatpush1.msra.mxu0 %v2846
      %2859 = vmatprep.subr.mxu0 0.0
      %2860 = vmatpush1.msra.mxu0 0.0
      %2861 = vmatprep.subr.mxu0 0.0
      %2862 = vmatpush1.msra.mxu0 0.0
      %2863 = vmatprep.subr.mxu0 0.0
      %2864 = vmatpush1.msra.mxu0 0.0
      %2865 = vmatprep.subr.mxu0 0.0
      %2866 = vmatpush1.msra.mxu0 0.0
      %2867 = vmatprep.subr.mxu0 0.0
      %2868 = vmatpush1.msra.mxu0 0.0
      %2869 = vmatprep.subr.mxu0 0.0
      %2870 = vmatpush1.msra.mxu0 0.0
      %2871 = vmatprep.subr.mxu0 0.0
      %2872 = vmatpush1.msra.mxu0 0.0
      %2873 = vmatprep.subr.mxu0 0.0
      %2874 = vmatpush1.msra.mxu0 0.0
      %2875 = vmatprep.subr.mxu0 0.0
      %2876 = vmatpush1.msra.mxu0 0.0
      %2877 = vmatprep.subr.mxu0 0.0
      %2878 = vmatpush1.msra.mxu0 0.0
      %2879 = vmatprep.subr.mxu0 0.0
      %2880 = vmatpush1.msra.mxu0 0.0
      %2881 = vmatprep.subr.mxu0 0.0
      %2882 = vmatpush1.msra.mxu0 0.0
      %2883 = vmatprep.subr.mxu0 0.0
      %2884 = vmatpush1.msra.mxu0 0.0
      %2885 = vmatprep.subr.mxu0 0.0
      %2886 = vmatpush1.msra.mxu0 0.0
      %2887 = vmatprep.subr.mxu0 0.0
      %2888 = vmatpush1.msra.mxu0 0.0
      %2889 = vmatprep.subr.mxu0 0.0
      %2890 = vmatpush1.msra.mxu0 0.0
      %2891 = vmatprep.subr.mxu0 0.0
      %2892 = vmatpush1.msra.mxu0 0.0
      %2893 = vmatprep.subr.mxu0 0.0
      %2894 = vmatpush1.msra.mxu0 0.0
      %2895 = vmatprep.subr.mxu0 0.0
      %2896 = vmatpush1.msra.mxu0 0.0
      %2897 = vmatprep.subr.mxu0 0.0
      %2898 = vmatpush1.msra.mxu0 0.0
      %2899 = vmatprep.subr.mxu0 0.0
      %2900 = vmatpush1.msra.mxu0 0.0
      %2901 = vmatprep.subr.mxu0 0.0
      %2902 = vmatpush1.msra.mxu0 0.0
      %2903 = vmatprep.subr.mxu0 0.0
      %2904 = vmatpush1.msra.mxu0 0.0
      %2905 = vmatprep.subr.mxu0 0.0
      %2906 = vmatpush1.msra.mxu0 0.0
      %2907 = vmatprep.subr.mxu0 0.0
      %2908 = vmatpush1.msra.mxu0 0.0
      %2909 = vmatprep.subr.mxu0 0.0
      %2910 = vmatpush1.msra.mxu0 0.0
      %2911 = vmatprep.subr.mxu0 0.0
      %2912 = vmatpush1.msra.mxu0 0.0
      %2913 = vmatprep.subr.mxu0 0.0
      %2914 = vmatpush1.msra.mxu0 0.0
      %2915 = vmatprep.subr.mxu0 0.0
      %2916 = vmatpush1.msra.mxu0 0.0
      %2917 = vmatprep.subr.mxu0 0.0
      %2918 = vmatpush1.msra.mxu0 0.0
      %2919 = vmatprep.mubr.f32.mxu0 0.0
      %2920 = vmatmul.mubr.f32.gmra.mrb[0].mxu0 %v2850
      %v2921 = vpop.f32.mrb[0].mxu0
      %v2922 = vadd.f32 0.0, %v2921
      %v2923 = vpop.f32.mrb[0].mxu0
      %2924 = vmatprep.mubr.f32.mxu0 0.0
      %2925 = vmatmul.mubr.f32.gmra.mrb[0].mxu0 %v2853
      %v2926 = vpop.f32.mrb[0].mxu0
      %v2927 = vadd.f32 0.0, %v2926
      %v2928 = vpop.f32.mrb[0].mxu0
      %2929 = vdwg.mxu0
      %v2931 = vsel %vm811, %v2922, 0
      %v2934 = vsel %vm811, %v2927, 0
      %2936 = vmatprep.subr.mxu0 0.0
      %2937 = vmatpush1.msra.mxu0 %v2188
      %2938 = vmatprep.subr.mxu0 0.0
      %2939 = vmatpush1.msra.mxu0 %v2189
      %2940 = vmatprep.subr.mxu0 0.0
      %2941 = vmatpush1.msra.mxu0 0.0
      %2942 = vmatprep.subr.mxu0 0.0
      %2943 = vmatpush1.msra.mxu0 0.0
      %2944 = vmatprep.subr.mxu0 0.0
      %2945 = vmatpush1.msra.mxu0 0.0
      %2946 = vmatprep.subr.mxu0 0.0
      %2947 = vmatpush1.msra.mxu0 0.0
      %2948 = vmatprep.subr.mxu0 0.0
      %2949 = vmatpush1.msra.mxu0 0.0
      %2950 = vmatprep.subr.mxu0 0.0
      %2951 = vmatpush1.msra.mxu0 0.0
      %2952 = vmatprep.subr.mxu0 0.0
      %2953 = vmatpush1.msra.mxu0 0.0
      %2954 = vmatprep.subr.mxu0 0.0
      %2955 = vmatpush1.msra.mxu0 0.0
      %2956 = vmatprep.subr.mxu0 0.0
      %2957 = vmatpush1.msra.mxu0 0.0
      %2958 = vmatprep.subr.mxu0 0.0
      %2959 = vmatpush1.msra.mxu0 0.0
      %2960 = vmatprep.subr.mxu0 0.0
      %2961 = vmatpush1.msra.mxu0 0.0
      %2962 = vmatprep.subr.mxu0 0.0
      %2963 = vmatpush1.msra.mxu0 0.0
      %2964 = vmatprep.subr.mxu0 0.0
      %2965 = vmatpush1.msra.mxu0 0.0
      %2966 = vmatprep.subr.mxu0 0.0
      %2967 = vmatpush1.msra.mxu0 0.0
      %2968 = vmatprep.subr.mxu0 0.0
      %2969 = vmatpush1.msra.mxu0 0.0
      %2970 = vmatprep.subr.mxu0 0.0
      %2971 = vmatpush1.msra.mxu0 0.0
      %2972 = vmatprep.subr.mxu0 0.0
      %2973 = vmatpush1.msra.mxu0 0.0
      %2974 = vmatprep.subr.mxu0 0.0
      %2975 = vmatpush1.msra.mxu0 0.0
      %2976 = vmatprep.subr.mxu0 0.0
      %2977 = vmatpush1.msra.mxu0 0.0
      %2978 = vmatprep.subr.mxu0 0.0
      %2979 = vmatpush1.msra.mxu0 0.0
      %2980 = vmatprep.subr.mxu0 0.0
      %2981 = vmatpush1.msra.mxu0 0.0
      %2982 = vmatprep.subr.mxu0 0.0
      %2983 = vmatpush1.msra.mxu0 0.0
      %2984 = vmatprep.subr.mxu0 0.0
      %2985 = vmatpush1.msra.mxu0 0.0
      %2986 = vmatprep.subr.mxu0 0.0
      %2987 = vmatpush1.msra.mxu0 0.0
      %2988 = vmatprep.subr.mxu0 0.0
      %2989 = vmatpush1.msra.mxu0 0.0
      %2990 = vmatprep.subr.mxu0 0.0
      %2991 = vmatpush1.msra.mxu0 0.0
      %2992 = vmatprep.subr.mxu0 0.0
      %2993 = vmatpush1.msra.mxu0 0.0
      %2994 = vmatprep.subr.mxu0 0.0
      %2995 = vmatpush1.msra.mxu0 0.0
      %2996 = vmatprep.subr.mxu0 0.0
      %2997 = vmatpush1.msra.mxu0 0.0
      %2998 = vmatprep.subr.mxu0 0.0
      %2999 = vmatpush1.msra.mxu0 0.0
      %3000 = vmatprep.mubr.f32.mxu0 0.0
      %3001 = vmatmul.mubr.f32.gmra.mrb[0].mxu0 %v2931
      %v3002 = vpop.f32.mrb[0].mxu0
      %v3003 = vadd.f32 0.0, %v3002
      %v3004 = vpop.f32.mrb[0].mxu0
      %3005 = vmatprep.mubr.f32.mxu0 0.0
      %3006 = vmatmul.mubr.f32.gmra.mrb[0].mxu0 %v2934
      %v3007 = vpop.f32.mrb[0].mxu0
      %v3008 = vadd.f32 0.0, %v3007
      %v3009 = vpop.f32.mrb[0].mxu0
      %3010 = vdwg.mxu0
      %v3011 = vadd.f32 %v2722, %v3003
      %v3012 = vadd.f32 %v2723, %v3008
      %v3013 = vadd.f32 %v2168, %v3011
      %v3014 = vadd.f32 %v2169, %v3012
      %v3015 = vsel %vm912, %v3013, 0.0
      %3016 = vadd.xlane.f32.xlu0 %v3015
      %v3017 = vpop.xlane.xlu0 %3016
      %v3018 = vsel %vm912, %v3014, 0.0
      %3019 = vadd.xlane.f32.xlu0 %v3018
      %v3020 = vpop.xlane.xlu0 %3019
      %v3021 = vmul.f32 %v3017, %v2137
      %v3022 = vmul.f32 %v3020, %v2137
      %v3023 = vsub.f32 %v3013, %v3021
      %v3024 = vsub.f32 %v3014, %v3022
      %v3025 = vmul.f32 %v3023, %v3023
      %v3026 = vmul.f32 %v3024, %v3024
      %v3027 = vsel %vm912, %v3025, 0.0
      %3028 = vadd.xlane.f32.xlu0 %v3027
      %v3029 = vpop.xlane.xlu0 %3028
      %v3030 = vsel %vm912, %v3026, 0.0
      %3031 = vadd.xlane.f32.xlu0 %v3030
      %v3032 = vpop.xlane.xlu0 %3031
      %v3033 = vmul.f32 %v3029, %v2137
      %v3034 = vmul.f32 %v3032, %v2137
      %v3035 = vadd.f32 %v3033, 1e-05
      %v3036 = vadd.f32 %v3034, 1e-05
      %v3037 = vrsqrt.pop %v3035
      %v3038 = vrsqrt.pop %v3036
      %v3039 = vmul.f32 %v3023, %v3037
      %v3040 = vmul.f32 %v3024, %v3038
      %v3041 = vlaneseq
      %v3042 = vshrl.u32 %v3041, 7
      %v3043 = vsub.s32 0, %v3042
      %v3044 = vrot.slane %v1284, %v3043
      %v3045 = vmul.f32 %v3039, %v3044
      %v3046 = vmul.f32 %v3040, %v3044
      %v3047 = vlaneseq
      %v3048 = vshrl.u32 %v3047, 7
      %v3049 = vsub.s32 1, %v3048
      %v3050 = vrot.slane %v1284, %v3049
      %v3051 = vadd.f32 %v3045, %v3050
      %v3052 = vadd.f32 %v3046, %v3050
      %s3053 = scalar_lea.vmem %s7, 256
      %v3054 = vld [vmem:[%s3053] sm:$0xff]
      %v3055 = vld [vmem:[%s3053 + $0x8] sm:$0xff]
      %v3056 = vld [vmem:[%s3053 + $0x10] sm:$0xff]
      %v3057 = vld [vmem:[%s3053 + $0x18] sm:$0xff]
      %v3058 = vld [vmem:[%s8 + $0x8] sm:$0x1]
      %v3059 = vlaneseq
      %v3060 = vshrl.u32 %v3059, 7
      %v3061 = vsub.s32 0, %v3060
      %v3062 = vrot.slane %v3058, %v3061
      %v3064 = vsel %vm912, %v3051, 0
      %v3067 = vsel %vm912, %v3052, 0
      %3069 = vmatprep.subr.mxu0 0.0
      %3070 = vmatpush1.msra.mxu0 %v3054
      %3071 = vmatprep.subr.mxu0 0.0
      %3072 = vmatpush1.msra.mxu0 %v3055
      %3073 = vmatprep.subr.mxu0 0.0
      %3074 = vmatpush1.msra.mxu0 %v3056
      %3075 = vmatprep.subr.mxu0 0.0
      %3076 = vmatpush1.msra.mxu0 %v3057
      %3077 = vmatprep.subr.mxu0 0.0
      %3078 = vmatpush1.msra.mxu0 0.0
      %3079 = vmatprep.subr.mxu0 0.0
      %3080 = vmatpush1.msra.mxu0 0.0
      %3081 = vmatprep.subr.mxu0 0.0
      %3082 = vmatpush1.msra.mxu0 0.0
      %3083 = vmatprep.subr.mxu0 0.0
      %3084 = vmatpush1.msra.mxu0 0.0
      %3085 = vmatprep.subr.mxu0 0.0
      %3086 = vmatpush1.msra.mxu0 0.0
      %3087 = vmatprep.subr.mxu0 0.0
      %3088 = vmatpush1.msra.mxu0 0.0
      %3089 = vmatprep.subr.mxu0 0.0
      %3090 = vmatpush1.msra.mxu0 0.0
      %3091 = vmatprep.subr.mxu0 0.0
      %3092 = vmatpush1.msra.mxu0 0.0
      %3093 = vmatprep.subr.mxu0 0.0
      %3094 = vmatpush1.msra.mxu0 0.0
      %3095 = vmatprep.subr.mxu0 0.0
      %3096 = vmatpush1.msra.mxu0 0.0
      %3097 = vmatprep.subr.mxu0 0.0
      %3098 = vmatpush1.msra.mxu0 0.0
      %3099 = vmatprep.subr.mxu0 0.0
      %3100 = vmatpush1.msra.mxu0 0.0
      %3101 = vmatprep.subr.mxu0 0.0
      %3102 = vmatpush1.msra.mxu0 0.0
      %3103 = vmatprep.subr.mxu0 0.0
      %3104 = vmatpush1.msra.mxu0 0.0
      %3105 = vmatprep.subr.mxu0 0.0
      %3106 = vmatpush1.msra.mxu0 0.0
      %3107 = vmatprep.subr.mxu0 0.0
      %3108 = vmatpush1.msra.mxu0 0.0
      %3109 = vmatprep.subr.mxu0 0.0
      %3110 = vmatpush1.msra.mxu0 0.0
      %3111 = vmatprep.subr.mxu0 0.0
      %3112 = vmatpush1.msra.mxu0 0.0
      %3113 = vmatprep.subr.mxu0 0.0
      %3114 = vmatpush1.msra.mxu0 0.0
      %3115 = vmatprep.subr.mxu0 0.0
      %3116 = vmatpush1.msra.mxu0 0.0
      %3117 = vmatprep.subr.mxu0 0.0
      %3118 = vmatpush1.msra.mxu0 0.0
      %3119 = vmatprep.subr.mxu0 0.0
      %3120 = vmatpush1.msra.mxu0 0.0
      %3121 = vmatprep.subr.mxu0 0.0
      %3122 = vmatpush1.msra.mxu0 0.0
      %3123 = vmatprep.subr.mxu0 0.0
      %3124 = vmatpush1.msra.mxu0 0.0
      %3125 = vmatprep.subr.mxu0 0.0
      %3126 = vmatpush1.msra.mxu0 0.0
      %3127 = vmatprep.subr.mxu0 0.0
      %3128 = vmatpush1.msra.mxu0 0.0
      %3129 = vmatprep.subr.mxu0 0.0
      %3130 = vmatpush1.msra.mxu0 0.0
      %3131 = vmatprep.subr.mxu0 0.0
      %3132 = vmatpush1.msra.mxu0 0.0
      %3133 = vmatprep.mubr.f32.mxu0 0.0
      %3134 = vmatmul.mubr.f32.gmra.mrb[0].mxu0 %v3064
      %v3135 = vpop.f32.mrb[0].mxu0
      %v3136 = vadd.f32 %v3062, %v3135
      %v3137 = vpop.f32.mrb[0].mxu0
      %3138 = vmatprep.mubr.f32.mxu0 0.0
      %3139 = vmatmul.mubr.f32.gmra.mrb[0].mxu0 %v3067
      %v3140 = vpop.f32.mrb[0].mxu0
      %v3141 = vadd.f32 %v3062, %v3140
      %v3142 = vpop.f32.mrb[0].mxu0
      %3143 = vdwg.mxu0
      %v3144 = vxor.u32 %v3136, 2147483648
      %v3145 = vxor.u32 %v3141, 2147483648
      %v3146 = vmul.f32 %v3144, 1.442695
      %v3147 = vpow.pop %v3146
      %v3148 = vmul.f32 %v3145, 1.442695
      %v3149 = vpow.pop %v3148
      %v3150 = vadd.f32 %v3147, 1.0
      %v3151 = vadd.f32 %v3149, 1.0
      %v3152 = vrcp.pop %v3150
      %v3153 = vmul.f32 1.0, %v3152
      %v3154 = vrcp.pop %v3151
      %v3155 = vmul.f32 1.0, %v3154
      %v3156 = vmul.f32 %v3136, %v3153
      %v3157 = vmul.f32 %v3141, %v3155
      %v3158 = vadd.f32 %v3051, %v3156
      %v3159 = vadd.f32 %v3052, %v3157
      %v3160 = vsel %vm912, %v3158, 0.0
      %3161 = vadd.xlane.f32.xlu0 %v3160
      %v3162 = vpop.xlane.xlu0 %3161
      %v3163 = vsel %vm912, %v3159, 0.0
      %3164 = vadd.xlane.f32.xlu0 %v3163
      %v3165 = vpop.xlane.xlu0 %3164
      %v3166 = vmul.f32 %v3162, %v2137
      %v3167 = vmul.f32 %v3165, %v2137
      %v3168 = vsub.f32 %v3158, %v3166
      %v3169 = vsub.f32 %v3159, %v3167
      %v3170 = vmul.f32 %v3168, %v3168
      %v3171 = vmul.f32 %v3169, %v3169
      %v3172 = vsel %vm912, %v3170, 0.0
      %3173 = vadd.xlane.f32.xlu0 %v3172
      %v3174 = vpop.xlane.xlu0 %3173
      %v3175 = vsel %vm912, %v3171, 0.0
      %3176 = vadd.xlane.f32.xlu0 %v3175
      %v3177 = vpop.xlane.xlu0 %3176
      %v3178 = vmul.f32 %v3174, %v2137
      %v3179 = vmul.f32 %v3177, %v2137
      %v3180 = vadd.f32 %v3178, 1e-05
      %v3181 = vadd.f32 %v3179, 1e-05
      %v3182 = vrsqrt.pop %v3180
      %v3183 = vrsqrt.pop %v3181
      %v3184 = vmul.f32 %v3168, %v3182
      %v3185 = vmul.f32 %v3169, %v3183
      %v3186 = vlaneseq
      %v3187 = vshrl.u32 %v3186, 7
      %v3188 = vsub.s32 0, %v3187
      %v3189 = vrot.slane %v1286, %v3188
      %v3190 = vmul.f32 %v3184, %v3189
      %v3191 = vmul.f32 %v3185, %v3189
      %v3192 = vlaneseq
      %v3193 = vshrl.u32 %v3192, 7
      %v3194 = vsub.s32 1, %v3193
      %v3195 = vrot.slane %v1286, %v3194
      %v3196 = vadd.f32 %v3190, %v3195
      %v3197 = vadd.f32 %v3191, %v3195
      %s3198 = scalar_lea.vmem %s9, 6
      %v3199 = vld [vmem:[%s3198] sm:$0x3]
      %s3200 = scalar_lea.vmem %s9, 8
      %v3201 = vld [vmem:[%s3200] sm:$0x3]
      %s3202 = scalar_lea.vmem %s9, 10
      %v3203 = vld [vmem:[%s3202] sm:$0x3]
      %s3204 = scalar_lea.vmem %s7, 288
      %v3205 = vld [vmem:[%s3204] sm:$0xff]
      %v3206 = vld [vmem:[%s3204 + $0x8] sm:$0xff]
      %v3207 = vld [vmem:[%s3204 + $0x10] sm:$0xff]
      %v3208 = vld [vmem:[%s3204 + $0x18] sm:$0xff]
      %s3209 = scalar_lea.vmem %s7, 320
      %v3210 = vld [vmem:[%s3209] sm:$0xff]
      %v3211 = vld [vmem:[%s3209 + $0x8] sm:$0xff]
      %v3212 = vld [vmem:[%s3209 + $0x10] sm:$0xff]
      %v3213 = vld [vmem:[%s3209 + $0x18] sm:$0xff]
      %s3214 = scalar_lea.vmem %s7, 352
      %v3215 = vld [vmem:[%s3214] sm:$0xff]
      %v3216 = vld [vmem:[%s3214 + $0x8] sm:$0xff]
      %v3217 = vld [vmem:[%s3214 + $0x10] sm:$0xff]
      %v3218 = vld [vmem:[%s3214 + $0x18] sm:$0xff]
      %s3219 = scalar_lea.vmem %s7, 384
      %v3220 = vld [vmem:[%s3219] sm:$0xff]
      %v3221 = vld [vmem:[%s3219 + $0x8] sm:$0xff]
      %v3222 = vld [vmem:[%s3219 + $0x10] sm:$0xff]
      %v3223 = vld [vmem:[%s3219 + $0x18] sm:$0xff]
      %s3224 = scalar_lea.vmem %s8, 16
      %v3225 = vld [vmem:[%s3224] sm:$0x1]
      %v3226 = vld [vmem:[%s3224 + $0x1] sm:$0x1]
      %v3227 = vld [vmem:[%s3224 + $0x2] sm:$0x1]
      %v3228 = vld [vmem:[%s3224 + $0x3] sm:$0x1]
      %v3229 = vlaneseq
      %v3230 = vshrl.u32 %v3229, 7
      %v3231 = vsub.s32 0, %v3230
      %v3232 = vrot.slane %v3225, %v3231
      %v3234 = vsel %vm912, %v3196, 0
      %v3237 = vsel %vm912, %v3197, 0
      %3239 = vmatprep.subr.mxu0 0.0
      %3240 = vmatpush1.msra.mxu0 %v3205
      %3241 = vmatprep.subr.mxu0 0.0
      %3242 = vmatpush1.msra.mxu0 %v3206
      %3243 = vmatprep.subr.mxu0 0.0
      %3244 = vmatpush1.msra.mxu0 %v3207
      %3245 = vmatprep.subr.mxu0 0.0
      %3246 = vmatpush1.msra.mxu0 %v3208
      %3247 = vmatprep.subr.mxu0 0.0
      %3248 = vmatpush1.msra.mxu0 0.0
      %3249 = vmatprep.subr.mxu0 0.0
      %3250 = vmatpush1.msra.mxu0 0.0
      %3251 = vmatprep.subr.mxu0 0.0
      %3252 = vmatpush1.msra.mxu0 0.0
      %3253 = vmatprep.subr.mxu0 0.0
      %3254 = vmatpush1.msra.mxu0 0.0
      %3255 = vmatprep.subr.mxu0 0.0
      %3256 = vmatpush1.msra.mxu0 0.0
      %3257 = vmatprep.subr.mxu0 0.0
      %3258 = vmatpush1.msra.mxu0 0.0
      %3259 = vmatprep.subr.mxu0 0.0
      %3260 = vmatpush1.msra.mxu0 0.0
      %3261 = vmatprep.subr.mxu0 0.0
      %3262 = vmatpush1.msra.mxu0 0.0
      %3263 = vmatprep.subr.mxu0 0.0
      %3264 = vmatpush1.msra.mxu0 0.0
      %3265 = vmatprep.subr.mxu0 0.0
      %3266 = vmatpush1.msra.mxu0 0.0
      %3267 = vmatprep.subr.mxu0 0.0
      %3268 = vmatpush1.msra.mxu0 0.0
      %3269 = vmatprep.subr.mxu0 0.0
      %3270 = vmatpush1.msra.mxu0 0.0
      %3271 = vmatprep.subr.mxu0 0.0
      %3272 = vmatpush1.msra.mxu0 0.0
      %3273 = vmatprep.subr.mxu0 0.0
      %3274 = vmatpush1.msra.mxu0 0.0
      %3275 = vmatprep.subr.mxu0 0.0
      %3276 = vmatpush1.msra.mxu0 0.0
      %3277 = vmatprep.subr.mxu0 0.0
      %3278 = vmatpush1.msra.mxu0 0.0
      %3279 = vmatprep.subr.mxu0 0.0
      %3280 = vmatpush1.msra.mxu0 0.0
      %3281 = vmatprep.subr.mxu0 0.0
      %3282 = vmatpush1.msra.mxu0 0.0
      %3283 = vmatprep.subr.mxu0 0.0
      %3284 = vmatpush1.msra.mxu0 0.0
      %3285 = vmatprep.subr.mxu0 0.0
      %3286 = vmatpush1.msra.mxu0 0.0
      %3287 = vmatprep.subr.mxu0 0.0
      %3288 = vmatpush1.msra.mxu0 0.0
      %3289 = vmatprep.subr.mxu0 0.0
      %3290 = vmatpush1.msra.mxu0 0.0
      %3291 = vmatprep.subr.mxu0 0.0
      %3292 = vmatpush1.msra.mxu0 0.0
      %3293 = vmatprep.subr.mxu0 0.0
      %3294 = vmatpush1.msra.mxu0 0.0
      %3295 = vmatprep.subr.mxu0 0.0
      %3296 = vmatpush1.msra.mxu0 0.0
      %3297 = vmatprep.subr.mxu0 0.0
      %3298 = vmatpush1.msra.mxu0 0.0
      %3299 = vmatprep.subr.mxu0 0.0
      %3300 = vmatpush1.msra.mxu0 0.0
      %3301 = vmatprep.subr.mxu0 0.0
      %3302 = vmatpush1.msra.mxu0 0.0
      %3303 = vmatprep.mubr.f32.mxu0 0.0
      %3304 = vmatmul.mubr.f32.gmra.mrb[0].mxu0 %v3234
      %v3305 = vpop.f32.mrb[0].mxu0
      %v3306 = vadd.f32 %v3232, %v3305
      %v3307 = vpop.f32.mrb[0].mxu0
      %3308 = vmatprep.mubr.f32.mxu0 0.0
      %3309 = vmatmul.mubr.f32.gmra.mrb[0].mxu0 %v3237
      %v3310 = vpop.f32.mrb[0].mxu0
      %v3311 = vadd.f32 %v3232, %v3310
      %v3312 = vpop.f32.mrb[0].mxu0
      %3313 = vdwg.mxu0
      %v3314 = vlaneseq
      %v3315 = vshrl.u32 %v3314, 7
      %v3316 = vsub.s32 0, %v3315
      %v3317 = vrot.slane %v3226, %v3316
      %3318 = vmatprep.subr.mxu0 0.0
      %3319 = vmatpush1.msra.mxu0 %v3210
      %3320 = vmatprep.subr.mxu0 0.0
      %3321 = vmatpush1.msra.mxu0 %v3211
      %3322 = vmatprep.subr.mxu0 0.0
      %3323 = vmatpush1.msra.mxu0 %v3212
      %3324 = vmatprep.subr.mxu0 0.0
      %3325 = vmatpush1.msra.mxu0 %v3213
      %3326 = vmatprep.subr.mxu0 0.0
      %3327 = vmatpush1.msra.mxu0 0.0
      %3328 = vmatprep.subr.mxu0 0.0
      %3329 = vmatpush1.msra.mxu0 0.0
      %3330 = vmatprep.subr.mxu0 0.0
      %3331 = vmatpush1.msra.mxu0 0.0
      %3332 = vmatprep.subr.mxu0 0.0
      %3333 = vmatpush1.msra.mxu0 0.0
      %3334 = vmatprep.subr.mxu0 0.0
      %3335 = vmatpush1.msra.mxu0 0.0
      %3336 = vmatprep.subr.mxu0 0.0
      %3337 = vmatpush1.msra.mxu0 0.0
      %3338 = vmatprep.subr.mxu0 0.0
      %3339 = vmatpush1.msra.mxu0 0.0
      %3340 = vmatprep.subr.mxu0 0.0
      %3341 = vmatpush1.msra.mxu0 0.0
      %3342 = vmatprep.subr.mxu0 0.0
      %3343 = vmatpush1.msra.mxu0 0.0
      %3344 = vmatprep.subr.mxu0 0.0
      %3345 = vmatpush1.msra.mxu0 0.0
      %3346 = vmatprep.subr.mxu0 0.0
      %3347 = vmatpush1.msra.mxu0 0.0
      %3348 = vmatprep.subr.mxu0 0.0
      %3349 = vmatpush1.msra.mxu0 0.0
      %3350 = vmatprep.subr.mxu0 0.0
      %3351 = vmatpush1.msra.mxu0 0.0
      %3352 = vmatprep.subr.mxu0 0.0
      %3353 = vmatpush1.msra.mxu0 0.0
      %3354 = vmatprep.subr.mxu0 0.0
      %3355 = vmatpush1.msra.mxu0 0.0
      %3356 = vmatprep.subr.mxu0 0.0
      %3357 = vmatpush1.msra.mxu0 0.0
      %3358 = vmatprep.subr.mxu0 0.0
      %3359 = vmatpush1.msra.mxu0 0.0
      %3360 = vmatprep.subr.mxu0 0.0
      %3361 = vmatpush1.msra.mxu0 0.0
      %3362 = vmatprep.subr.mxu0 0.0
      %3363 = vmatpush1.msra.mxu0 0.0
      %3364 = vmatprep.subr.mxu0 0.0
      %3365 = vmatpush1.msra.mxu0 0.0
      %3366 = vmatprep.subr.mxu0 0.0
      %3367 = vmatpush1.msra.mxu0 0.0
      %3368 = vmatprep.subr.mxu0 0.0
      %3369 = vmatpush1.msra.mxu0 0.0
      %3370 = vmatprep.subr.mxu0 0.0
      %3371 = vmatpush1.msra.mxu0 0.0
      %3372 = vmatprep.subr.mxu0 0.0
      %3373 = vmatpush1.msra.mxu0 0.0
      %3374 = vmatprep.subr.mxu0 0.0
      %3375 = vmatpush1.msra.mxu0 0.0
      %3376 = vmatprep.subr.mxu0 0.0
      %3377 = vmatpush1.msra.mxu0 0.0
      %3378 = vmatprep.subr.mxu0 0.0
      %3379 = vmatpush1.msra.mxu0 0.0
      %3380 = vmatprep.subr.mxu0 0.0
      %3381 = vmatpush1.msra.mxu0 0.0
      %3382 = vmatprep.mubr.f32.mxu0 0.0
      %3383 = vmatmul.mubr.f32.gmra.mrb[0].mxu0 %v3234
      %v3384 = vpop.f32.mrb[0].mxu0
      %v3385 = vadd.f32 %v3317, %v3384
      %v3386 = vpop.f32.mrb[0].mxu0
      %3387 = vmatprep.mubr.f32.mxu0 0.0
      %3388 = vmatmul.mubr.f32.gmra.mrb[0].mxu0 %v3237
      %v3389 = vpop.f32.mrb[0].mxu0
      %v3390 = vadd.f32 %v3317, %v3389
      %v3391 = vpop.f32.mrb[0].mxu0
      %3392 = vdwg.mxu0
      %v3393 = vlaneseq
      %v3394 = vshrl.u32 %v3393, 7
      %v3395 = vsub.s32 0, %v3394
      %v3396 = vrot.slane %v3227, %v3395
      %3397 = vmatprep.subr.mxu0 0.0
      %3398 = vmatpush1.msra.mxu0 %v3215
      %3399 = vmatprep.subr.mxu0 0.0
      %3400 = vmatpush1.msra.mxu0 %v3216
      %3401 = vmatprep.subr.mxu0 0.0
      %3402 = vmatpush1.msra.mxu0 %v3217
      %3403 = vmatprep.subr.mxu0 0.0
      %3404 = vmatpush1.msra.mxu0 %v3218
      %3405 = vmatprep.subr.mxu0 0.0
      %3406 = vmatpush1.msra.mxu0 0.0
      %3407 = vmatprep.subr.mxu0 0.0
      %3408 = vmatpush1.msra.mxu0 0.0
      %3409 = vmatprep.subr.mxu0 0.0
      %3410 = vmatpush1.msra.mxu0 0.0
      %3411 = vmatprep.subr.mxu0 0.0
      %3412 = vmatpush1.msra.mxu0 0.0
      %3413 = vmatprep.subr.mxu0 0.0
      %3414 = vmatpush1.msra.mxu0 0.0
      %3415 = vmatprep.subr.mxu0 0.0
      %3416 = vmatpush1.msra.mxu0 0.0
      %3417 = vmatprep.subr.mxu0 0.0
      %3418 = vmatpush1.msra.mxu0 0.0
      %3419 = vmatprep.subr.mxu0 0.0
      %3420 = vmatpush1.msra.mxu0 0.0
      %3421 = vmatprep.subr.mxu0 0.0
      %3422 = vmatpush1.msra.mxu0 0.0
      %3423 = vmatprep.subr.mxu0 0.0
      %3424 = vmatpush1.msra.mxu0 0.0
      %3425 = vmatprep.subr.mxu0 0.0
      %3426 = vmatpush1.msra.mxu0 0.0
      %3427 = vmatprep.subr.mxu0 0.0
      %3428 = vmatpush1.msra.mxu0 0.0
      %3429 = vmatprep.subr.mxu0 0.0
      %3430 = vmatpush1.msra.mxu0 0.0
      %3431 = vmatprep.subr.mxu0 0.0
      %3432 = vmatpush1.msra.mxu0 0.0
      %3433 = vmatprep.subr.mxu0 0.0
      %3434 = vmatpush1.msra.mxu0 0.0
      %3435 = vmatprep.subr.mxu0 0.0
      %3436 = vmatpush1.msra.mxu0 0.0
      %3437 = vmatprep.subr.mxu0 0.0
      %3438 = vmatpush1.msra.mxu0 0.0
      %3439 = vmatprep.subr.mxu0 0.0
      %3440 = vmatpush1.msra.mxu0 0.0
      %3441 = vmatprep.subr.mxu0 0.0
      %3442 = vmatpush1.msra.mxu0 0.0
      %3443 = vmatprep.subr.mxu0 0.0
      %3444 = vmatpush1.msra.mxu0 0.0
      %3445 = vmatprep.subr.mxu0 0.0
      %3446 = vmatpush1.msra.mxu0 0.0
      %3447 = vmatprep.subr.mxu0 0.0
      %3448 = vmatpush1.msra.mxu0 0.0
      %3449 = vmatprep.subr.mxu0 0.0
      %3450 = vmatpush1.msra.mxu0 0.0
      %3451 = vmatprep.subr.mxu0 0.0
      %3452 = vmatpush1.msra.mxu0 0.0
      %3453 = vmatprep.subr.mxu0 0.0
      %3454 = vmatpush1.msra.mxu0 0.0
      %3455 = vmatprep.subr.mxu0 0.0
      %3456 = vmatpush1.msra.mxu0 0.0
      %3457 = vmatprep.subr.mxu0 0.0
      %3458 = vmatpush1.msra.mxu0 0.0
      %3459 = vmatprep.subr.mxu0 0.0
      %3460 = vmatpush1.msra.mxu0 0.0
      %3461 = vmatprep.mubr.f32.mxu0 0.0
      %3462 = vmatmul.mubr.f32.gmra.mrb[0].mxu0 %v3234
      %v3463 = vpop.f32.mrb[0].mxu0
      %v3464 = vadd.f32 %v3396, %v3463
      %v3465 = vpop.f32.mrb[0].mxu0
      %3466 = vmatprep.mubr.f32.mxu0 0.0
      %3467 = vmatmul.mubr.f32.gmra.mrb[0].mxu0 %v3237
      %v3468 = vpop.f32.mrb[0].mxu0
      %v3469 = vadd.f32 %v3396, %v3468
      %v3470 = vpop.f32.mrb[0].mxu0
      %3471 = vdwg.mxu0
      %v3473 = vsel %vm811, %v3306, 0
      %v3476 = vsel %vm811, %v3311, 0
      %v3479 = vsel %vm811, %v3385, 0
      %v3482 = vsel %vm811, %v3390, 0
      %3484 = vmatprep.subr.mxu0 0.0
      %3485 = vmatpush1.xpose.msra.mxu0 %v3479
      %3486 = vmatprep.subr.mxu0 0.0
      %3487 = vmatpush1.xpose.msra.mxu0 %v3482
      %3488 = vmatprep.subr.mxu0 0.0
      %3489 = vmatpush1.xpose.msra.mxu0 0.0
      %3490 = vmatprep.subr.mxu0 0.0
      %3491 = vmatpush1.xpose.msra.mxu0 0.0
      %3492 = vmatprep.subr.mxu0 0.0
      %3493 = vmatpush1.xpose.msra.mxu0 0.0
      %3494 = vmatprep.subr.mxu0 0.0
      %3495 = vmatpush1.xpose.msra.mxu0 0.0
      %3496 = vmatprep.subr.mxu0 0.0
      %3497 = vmatpush1.xpose.msra.mxu0 0.0
      %3498 = vmatprep.subr.mxu0 0.0
      %3499 = vmatpush1.xpose.msra.mxu0 0.0
      %3500 = vmatprep.subr.mxu0 0.0
      %3501 = vmatpush1.xpose.msra.mxu0 0.0
      %3502 = vmatprep.subr.mxu0 0.0
      %3503 = vmatpush1.xpose.msra.mxu0 0.0
      %3504 = vmatprep.subr.mxu0 0.0
      %3505 = vmatpush1.xpose.msra.mxu0 0.0
      %3506 = vmatprep.subr.mxu0 0.0
      %3507 = vmatpush1.xpose.msra.mxu0 0.0
      %3508 = vmatprep.subr.mxu0 0.0
      %3509 = vmatpush1.xpose.msra.mxu0 0.0
      %3510 = vmatprep.subr.mxu0 0.0
      %3511 = vmatpush1.xpose.msra.mxu0 0.0
      %3512 = vmatprep.subr.mxu0 0.0
      %3513 = vmatpush1.xpose.msra.mxu0 0.0
      %3514 = vmatprep.subr.mxu0 0.0
      %3515 = vmatpush1.xpose.msra.mxu0 0.0
      %3516 = vmatprep.subr.mxu0 0.0
      %3517 = vmatpush1.xpose.msra.mxu0 0.0
      %3518 = vmatprep.subr.mxu0 0.0
      %3519 = vmatpush1.xpose.msra.mxu0 0.0
      %3520 = vmatprep.subr.mxu0 0.0
      %3521 = vmatpush1.xpose.msra.mxu0 0.0
      %3522 = vmatprep.subr.mxu0 0.0
      %3523 = vmatpush1.xpose.msra.mxu0 0.0
      %3524 = vmatprep.subr.mxu0 0.0
      %3525 = vmatpush1.xpose.msra.mxu0 0.0
      %3526 = vmatprep.subr.mxu0 0.0
      %3527 = vmatpush1.xpose.msra.mxu0 0.0
      %3528 = vmatprep.subr.mxu0 0.0
      %3529 = vmatpush1.xpose.msra.mxu0 0.0
      %3530 = vmatprep.subr.mxu0 0.0
      %3531 = vmatpush1.xpose.msra.mxu0 0.0
      %3532 = vmatprep.subr.mxu0 0.0
      %3533 = vmatpush1.xpose.msra.mxu0 0.0
      %3534 = vmatprep.subr.mxu0 0.0
      %3535 = vmatpush1.xpose.msra.mxu0 0.0
      %3536 = vmatprep.subr.mxu0 0.0
      %3537 = vmatpush1.xpose.msra.mxu0 0.0
      %3538 = vmatprep.subr.mxu0 0.0
      %3539 = vmatpush1.xpose.msra.mxu0 0.0
      %3540 = vmatprep.subr.mxu0 0.0
      %3541 = vmatpush1.xpose.msra.mxu0 0.0
      %3542 = vmatprep.subr.mxu0 0.0
      %3543 = vmatpush1.xpose.msra.mxu0 0.0
      %3544 = vmatprep.subr.mxu0 0.0
      %3545 = vmatpush1.xpose.msra.mxu0 0.0
      %3546 = vmatprep.subr.mxu0 0.0
      %3547 = vmatpush1.xpose.msra.mxu0 0.0
      %3548 = vmatprep.mubr.f32.mxu0 0.0
      %3549 = vmatmul.mubr.f32.gmra.mrb[0].mxu0 %v3473
      %v3550 = vpop.f32.mrb[0].mxu0
      %v3551 = vadd.f32 0.0, %v3550
      %v3552 = vpop.f32.mrb[0].mxu0
      %3553 = vmatprep.mubr.f32.mxu0 0.0
      %3554 = vmatmul.mubr.f32.gmra.mrb[0].mxu0 %v3476
      %v3555 = vpop.f32.mrb[0].mxu0
      %v3556 = vadd.f32 0.0, %v3555
      %v3557 = vpop.f32.mrb[0].mxu0
      %3558 = vdwg.mxu0
      %v3559 = vmul.f32 %v3551, 0.25
      %v3560 = vmul.f32 %v3556, 0.25
      %v3561 = vadd.f32 %v3559, %v1646
      %v3562 = vadd.f32 %v3560, %v1646
      %v3563 = vsel %vm811, %v3561, -inf
      %3564 = vmax.xlane.f32.xlu0 %v3563
      %v3565 = vpop.xlane.xlu0 %3564
      %v3566 = vsel %vm811, %v3562, -inf
      %3567 = vmax.xlane.f32.xlu0 %v3566
      %v3568 = vpop.xlane.xlu0 %3567
      %v3569 = vsub.f32 %v3561, %v3565
      %v3570 = vsub.f32 %v3562, %v3568
      %v3571 = vmul.f32 %v3569, 1.442695
      %v3572 = vpow.pop %v3571
      %v3573 = vmul.f32 %v3570, 1.442695
      %v3574 = vpow.pop %v3573
      %v3575 = vsel %vm811, %v3572, 0.0
      %3576 = vadd.xlane.f32.xlu0 %v3575
      %v3577 = vpop.xlane.xlu0 %3576
      %v3578 = vsel %vm811, %v3574, 0.0
      %3579 = vadd.xlane.f32.xlu0 %v3578
      %v3580 = vpop.xlane.xlu0 %3579
      %v3581 = vrcp.pop %v3577
      %v3582 = vrcp.pop %v3580
      %v3583 = vmul.f32 %v3572, %v3581
      %v3584 = vmul.f32 %v3574, %v3582
      %v3586 = vsel %vm811, %v3583, 0
      %v3589 = vsel %vm811, %v3584, 0
      %3591 = vmatprep.subr.mxu0 0.0
      %3592 = vmatpush1.msra.mxu0 %v3464
      %3593 = vmatprep.subr.mxu0 0.0
      %3594 = vmatpush1.msra.mxu0 %v3469
      %3595 = vmatprep.subr.mxu0 0.0
      %3596 = vmatpush1.msra.mxu0 0.0
      %3597 = vmatprep.subr.mxu0 0.0
      %3598 = vmatpush1.msra.mxu0 0.0
      %3599 = vmatprep.subr.mxu0 0.0
      %3600 = vmatpush1.msra.mxu0 0.0
      %3601 = vmatprep.subr.mxu0 0.0
      %3602 = vmatpush1.msra.mxu0 0.0
      %3603 = vmatprep.subr.mxu0 0.0
      %3604 = vmatpush1.msra.mxu0 0.0
      %3605 = vmatprep.subr.mxu0 0.0
      %3606 = vmatpush1.msra.mxu0 0.0
      %3607 = vmatprep.subr.mxu0 0.0
      %3608 = vmatpush1.msra.mxu0 0.0
      %3609 = vmatprep.subr.mxu0 0.0
      %3610 = vmatpush1.msra.mxu0 0.0
      %3611 = vmatprep.subr.mxu0 0.0
      %3612 = vmatpush1.msra.mxu0 0.0
      %3613 = vmatprep.subr.mxu0 0.0
      %3614 = vmatpush1.msra.mxu0 0.0
      %3615 = vmatprep.subr.mxu0 0.0
      %3616 = vmatpush1.msra.mxu0 0.0
      %3617 = vmatprep.subr.mxu0 0.0
      %3618 = vmatpush1.msra.mxu0 0.0
      %3619 = vmatprep.subr.mxu0 0.0
      %3620 = vmatpush1.msra.mxu0 0.0
      %3621 = vmatprep.subr.mxu0 0.0
      %3622 = vmatpush1.msra.mxu0 0.0
      %3623 = vmatprep.subr.mxu0 0.0
      %3624 = vmatpush1.msra.mxu0 0.0
      %3625 = vmatprep.subr.mxu0 0.0
      %3626 = vmatpush1.msra.mxu0 0.0
      %3627 = vmatprep.subr.mxu0 0.0
      %3628 = vmatpush1.msra.mxu0 0.0
      %3629 = vmatprep.subr.mxu0 0.0
      %3630 = vmatpush1.msra.mxu0 0.0
      %3631 = vmatprep.subr.mxu0 0.0
      %3632 = vmatpush1.msra.mxu0 0.0
      %3633 = vmatprep.subr.mxu0 0.0
      %3634 = vmatpush1.msra.mxu0 0.0
      %3635 = vmatprep.subr.mxu0 0.0
      %3636 = vmatpush1.msra.mxu0 0.0
      %3637 = vmatprep.subr.mxu0 0.0
      %3638 = vmatpush1.msra.mxu0 0.0
      %3639 = vmatprep.subr.mxu0 0.0
      %3640 = vmatpush1.msra.mxu0 0.0
      %3641 = vmatprep.subr.mxu0 0.0
      %3642 = vmatpush1.msra.mxu0 0.0
      %3643 = vmatprep.subr.mxu0 0.0
      %3644 = vmatpush1.msra.mxu0 0.0
      %3645 = vmatprep.subr.mxu0 0.0
      %3646 = vmatpush1.msra.mxu0 0.0
      %3647 = vmatprep.subr.mxu0 0.0
      %3648 = vmatpush1.msra.mxu0 0.0
      %3649 = vmatprep.subr.mxu0 0.0
      %3650 = vmatpush1.msra.mxu0 0.0
      %3651 = vmatprep.subr.mxu0 0.0
      %3652 = vmatpush1.msra.mxu0 0.0
      %3653 = vmatprep.subr.mxu0 0.0
      %3654 = vmatpush1.msra.mxu0 0.0
      %3655 = vmatprep.mubr.f32.mxu0 0.0
      %3656 = vmatmul.mubr.f32.gmra.mrb[0].mxu0 %v3586
      %v3657 = vpop.f32.mrb[0].mxu0
      %v3658 = vadd.f32 0.0, %v3657
      %v3659 = vpop.f32.mrb[0].mxu0
      %3660 = vmatprep.mubr.f32.mxu0 0.0
      %3661 = vmatmul.mubr.f32.gmra.mrb[0].mxu0 %v3589
      %v3662 = vpop.f32.mrb[0].mxu0
      %v3663 = vadd.f32 0.0, %v3662
      %v3664 = vpop.f32.mrb[0].mxu0
      %3665 = vdwg.mxu0
      %v3667 = vsel %vm811, %v3658, 0
      %v3670 = vsel %vm811, %v3663, 0
      %3672 = vmatprep.subr.mxu0 0.0
      %3673 = vmatpush1.msra.mxu0 %v3220
      %3674 = vmatprep.subr.mxu0 0.0
      %3675 = vmatpush1.msra.mxu0 %v3221
      %3676 = vmatprep.subr.mxu0 0.0
      %3677 = vmatpush1.msra.mxu0 0.0
      %3678 = vmatprep.subr.mxu0 0.0
      %3679 = vmatpush1.msra.mxu0 0.0
      %3680 = vmatprep.subr.mxu0 0.0
      %3681 = vmatpush1.msra.mxu0 0.0
      %3682 = vmatprep.subr.mxu0 0.0
      %3683 = vmatpush1.msra.mxu0 0.0
      %3684 = vmatprep.subr.mxu0 0.0
      %3685 = vmatpush1.msra.mxu0 0.0
      %3686 = vmatprep.subr.mxu0 0.0
      %3687 = vmatpush1.msra.mxu0 0.0
      %3688 = vmatprep.subr.mxu0 0.0
      %3689 = vmatpush1.msra.mxu0 0.0
      %3690 = vmatprep.subr.mxu0 0.0
      %3691 = vmatpush1.msra.mxu0 0.0
      %3692 = vmatprep.subr.mxu0 0.0
      %3693 = vmatpush1.msra.mxu0 0.0
      %3694 = vmatprep.subr.mxu0 0.0
      %3695 = vmatpush1.msra.mxu0 0.0
      %3696 = vmatprep.subr.mxu0 0.0
      %3697 = vmatpush1.msra.mxu0 0.0
      %3698 = vmatprep.subr.mxu0 0.0
      %3699 = vmatpush1.msra.mxu0 0.0
      %3700 = vmatprep.subr.mxu0 0.0
      %3701 = vmatpush1.msra.mxu0 0.0
      %3702 = vmatprep.subr.mxu0 0.0
      %3703 = vmatpush1.msra.mxu0 0.0
      %3704 = vmatprep.subr.mxu0 0.0
      %3705 = vmatpush1.msra.mxu0 0.0
      %3706 = vmatprep.subr.mxu0 0.0
      %3707 = vmatpush1.msra.mxu0 0.0
      %3708 = vmatprep.subr.mxu0 0.0
      %3709 = vmatpush1.msra.mxu0 0.0
      %3710 = vmatprep.subr.mxu0 0.0
      %3711 = vmatpush1.msra.mxu0 0.0
      %3712 = vmatprep.subr.mxu0 0.0
      %3713 = vmatpush1.msra.mxu0 0.0
      %3714 = vmatprep.subr.mxu0 0.0
      %3715 = vmatpush1.msra.mxu0 0.0
      %3716 = vmatprep.subr.mxu0 0.0
      %3717 = vmatpush1.msra.mxu0 0.0
      %3718 = vmatprep.subr.mxu0 0.0
      %3719 = vmatpush1.msra.mxu0 0.0
      %3720 = vmatprep.subr.mxu0 0.0
      %3721 = vmatpush1.msra.mxu0 0.0
      %3722 = vmatprep.subr.mxu0 0.0
      %3723 = vmatpush1.msra.mxu0 0.0
      %3724 = vmatprep.subr.mxu0 0.0
      %3725 = vmatpush1.msra.mxu0 0.0
      %3726 = vmatprep.subr.mxu0 0.0
      %3727 = vmatpush1.msra.mxu0 0.0
      %3728 = vmatprep.subr.mxu0 0.0
      %3729 = vmatpush1.msra.mxu0 0.0
      %3730 = vmatprep.subr.mxu0 0.0
      %3731 = vmatpush1.msra.mxu0 0.0
      %3732 = vmatprep.subr.mxu0 0.0
      %3733 = vmatpush1.msra.mxu0 0.0
      %3734 = vmatprep.subr.mxu0 0.0
      %3735 = vmatpush1.msra.mxu0 0.0
      %3736 = vmatprep.mubr.f32.mxu0 0.0
      %3737 = vmatmul.mubr.f32.gmra.mrb[0].mxu0 %v3667
      %v3738 = vpop.f32.mrb[0].mxu0
      %v3739 = vadd.f32 0.0, %v3738
      %v3740 = vpop.f32.mrb[0].mxu0
      %3741 = vmatprep.mubr.f32.mxu0 0.0
      %3742 = vmatmul.mubr.f32.gmra.mrb[0].mxu0 %v3670
      %v3743 = vpop.f32.mrb[0].mxu0
      %v3744 = vadd.f32 0.0, %v3743
      %v3745 = vpop.f32.mrb[0].mxu0
      %3746 = vdwg.mxu0
      %v3747 = vlaneseq
      %v3748 = vshrl.u32 %v3747, 7
      %v3749 = vsub.s32 0, %v3748
      %v3750 = vrot.slane %v3228, %v3749
      %v3751 = vadd.f32 %v3750, %v3739
      %v3752 = vadd.f32 %v3750, %v3744
      %3753 = vrot.lane.b32.xlu0 %v3306, 112
      %v3754 = vpop.permute.xlu0 %3753
      %3755 = vrot.lane.b32.xlu0 %v3311, 112
      %v3756 = vpop.permute.xlu0 %3755
      %3757 = vrot.lane.b32.xlu0 %v3385, 112
      %v3758 = vpop.permute.xlu0 %3757
      %3759 = vrot.lane.b32.xlu0 %v3390, 112
      %v3760 = vpop.permute.xlu0 %3759
      %v3761 = vsel %vm811, %v3754, 0
      %v3763 = vsel %vm811, %v3756, 0
      %v3765 = vsel %vm811, %v3758, 0
      %v3767 = vsel %vm811, %v3760, 0
      %3769 = vmatprep.subr.mxu0 0.0
      %3770 = vmatpush1.xpose.msra.mxu0 %v3765
      %3771 = vmatprep.subr.mxu0 0.0
      %3772 = vmatpush1.xpose.msra.mxu0 %v3767
      %3773 = vmatprep.subr.mxu0 0.0
      %3774 = vmatpush1.xpose.msra.mxu0 0.0
      %3775 = vmatprep.subr.mxu0 0.0
      %3776 = vmatpush1.xpose.msra.mxu0 0.0
      %3777 = vmatprep.subr.mxu0 0.0
      %3778 = vmatpush1.xpose.msra.mxu0 0.0
      %3779 = vmatprep.subr.mxu0 0.0
      %3780 = vmatpush1.xpose.msra.mxu0 0.0
      %3781 = vmatprep.subr.mxu0 0.0
      %3782 = vmatpush1.xpose.msra.mxu0 0.0
      %3783 = vmatprep.subr.mxu0 0.0
      %3784 = vmatpush1.xpose.msra.mxu0 0.0
      %3785 = vmatprep.subr.mxu0 0.0
      %3786 = vmatpush1.xpose.msra.mxu0 0.0
      %3787 = vmatprep.subr.mxu0 0.0
      %3788 = vmatpush1.xpose.msra.mxu0 0.0
      %3789 = vmatprep.subr.mxu0 0.0
      %3790 = vmatpush1.xpose.msra.mxu0 0.0
      %3791 = vmatprep.subr.mxu0 0.0
      %3792 = vmatpush1.xpose.msra.mxu0 0.0
      %3793 = vmatprep.subr.mxu0 0.0
      %3794 = vmatpush1.xpose.msra.mxu0 0.0
      %3795 = vmatprep.subr.mxu0 0.0
      %3796 = vmatpush1.xpose.msra.mxu0 0.0
      %3797 = vmatprep.subr.mxu0 0.0
      %3798 = vmatpush1.xpose.msra.mxu0 0.0
      %3799 = vmatprep.subr.mxu0 0.0
      %3800 = vmatpush1.xpose.msra.mxu0 0.0
      %3801 = vmatprep.subr.mxu0 0.0
      %3802 = vmatpush1.xpose.msra.mxu0 0.0
      %3803 = vmatprep.subr.mxu0 0.0
      %3804 = vmatpush1.xpose.msra.mxu0 0.0
      %3805 = vmatprep.subr.mxu0 0.0
      %3806 = vmatpush1.xpose.msra.mxu0 0.0
      %3807 = vmatprep.subr.mxu0 0.0
      %3808 = vmatpush1.xpose.msra.mxu0 0.0
      %3809 = vmatprep.subr.mxu0 0.0
      %3810 = vmatpush1.xpose.msra.mxu0 0.0
      %3811 = vmatprep.subr.mxu0 0.0
      %3812 = vmatpush1.xpose.msra.mxu0 0.0
      %3813 = vmatprep.subr.mxu0 0.0
      %3814 = vmatpush1.xpose.msra.mxu0 0.0
      %3815 = vmatprep.subr.mxu0 0.0
      %3816 = vmatpush1.xpose.msra.mxu0 0.0
      %3817 = vmatprep.subr.mxu0 0.0
      %3818 = vmatpush1.xpose.msra.mxu0 0.0
      %3819 = vmatprep.subr.mxu0 0.0
      %3820 = vmatpush1.xpose.msra.mxu0 0.0
      %3821 = vmatprep.subr.mxu0 0.0
      %3822 = vmatpush1.xpose.msra.mxu0 0.0
      %3823 = vmatprep.subr.mxu0 0.0
      %3824 = vmatpush1.xpose.msra.mxu0 0.0
      %3825 = vmatprep.subr.mxu0 0.0
      %3826 = vmatpush1.xpose.msra.mxu0 0.0
      %3827 = vmatprep.subr.mxu0 0.0
      %3828 = vmatpush1.xpose.msra.mxu0 0.0
      %3829 = vmatprep.subr.mxu0 0.0
      %3830 = vmatpush1.xpose.msra.mxu0 0.0
      %3831 = vmatprep.subr.mxu0 0.0
      %3832 = vmatpush1.xpose.msra.mxu0 0.0
      %3833 = vmatprep.mubr.f32.mxu0 0.0
      %3834 = vmatmul.mubr.f32.gmra.mrb[0].mxu0 %v3761
      %v3835 = vpop.f32.mrb[0].mxu0
      %v3836 = vadd.f32 0.0, %v3835
      %v3837 = vpop.f32.mrb[0].mxu0
      %3838 = vmatprep.mubr.f32.mxu0 0.0
      %3839 = vmatmul.mubr.f32.gmra.mrb[0].mxu0 %v3763
      %v3840 = vpop.f32.mrb[0].mxu0
      %v3841 = vadd.f32 0.0, %v3840
      %v3842 = vpop.f32.mrb[0].mxu0
      %3843 = vdwg.mxu0
      %v3844 = vmul.f32 %v3836, 0.25
      %v3845 = vmul.f32 %v3841, 0.25
      %v3846 = vadd.f32 %v3844, %v1646
      %v3847 = vadd.f32 %v3845, %v1646
      %v3848 = vsel %vm811, %v3846, -inf
      %3849 = vmax.xlane.f32.xlu0 %v3848
      %v3850 = vpop.xlane.xlu0 %3849
      %v3851 = vsel %vm811, %v3847, -inf
      %3852 = vmax.xlane.f32.xlu0 %v3851
      %v3853 = vpop.xlane.xlu0 %3852
      %v3854 = vsub.f32 %v3846, %v3850
      %v3855 = vsub.f32 %v3847, %v3853
      %v3856 = vmul.f32 %v3854, 1.442695
      %v3857 = vpow.pop %v3856
      %v3858 = vmul.f32 %v3855, 1.442695
      %v3859 = vpow.pop %v3858
      %v3860 = vsel %vm811, %v3857, 0.0
      %3861 = vadd.xlane.f32.xlu0 %v3860
      %v3862 = vpop.xlane.xlu0 %3861
      %v3863 = vsel %vm811, %v3859, 0.0
      %3864 = vadd.xlane.f32.xlu0 %v3863
      %v3865 = vpop.xlane.xlu0 %3864
      %v3866 = vrcp.pop %v3862
      %v3867 = vrcp.pop %v3865
      %v3868 = vmul.f32 %v3857, %v3866
      %v3869 = vmul.f32 %v3859, %v3867
      %3872 = vrot.lane.b32.xlu0 %v3464, 112
      %v3873 = vpop.permute.xlu0 %3872
      %3874 = vrot.lane.b32.xlu0 %v3469, 112
      %v3875 = vpop.permute.xlu0 %3874
      %v3879 = vsel %vm811, %v3868, 0
      %v3882 = vsel %vm811, %v3869, 0
      %3884 = vmatprep.subr.mxu0 0.0
      %3885 = vmatpush1.msra.mxu0 %v3873
      %3886 = vmatprep.subr.mxu0 0.0
      %3887 = vmatpush1.msra.mxu0 %v3875
      %3888 = vmatprep.subr.mxu0 0.0
      %3889 = vmatpush1.msra.mxu0 0.0
      %3890 = vmatprep.subr.mxu0 0.0
      %3891 = vmatpush1.msra.mxu0 0.0
      %3892 = vmatprep.subr.mxu0 0.0
      %3893 = vmatpush1.msra.mxu0 0.0
      %3894 = vmatprep.subr.mxu0 0.0
      %3895 = vmatpush1.msra.mxu0 0.0
      %3896 = vmatprep.subr.mxu0 0.0
      %3897 = vmatpush1.msra.mxu0 0.0
      %3898 = vmatprep.subr.mxu0 0.0
      %3899 = vmatpush1.msra.mxu0 0.0
      %3900 = vmatprep.subr.mxu0 0.0
      %3901 = vmatpush1.msra.mxu0 0.0
      %3902 = vmatprep.subr.mxu0 0.0
      %3903 = vmatpush1.msra.mxu0 0.0
      %3904 = vmatprep.subr.mxu0 0.0
      %3905 = vmatpush1.msra.mxu0 0.0
      %3906 = vmatprep.subr.mxu0 0.0
      %3907 = vmatpush1.msra.mxu0 0.0
      %3908 = vmatprep.subr.mxu0 0.0
      %3909 = vmatpush1.msra.mxu0 0.0
      %3910 = vmatprep.subr.mxu0 0.0
      %3911 = vmatpush1.msra.mxu0 0.0
      %3912 = vmatprep.subr.mxu0 0.0
      %3913 = vmatpush1.msra.mxu0 0.0
      %3914 = vmatprep.subr.mxu0 0.0
      %3915 = vmatpush1.msra.mxu0 0.0
      %3916 = vmatprep.subr.mxu0 0.0
      %3917 = vmatpush1.msra.mxu0 0.0
      %3918 = vmatprep.subr.mxu0 0.0
      %3919 = vmatpush1.msra.mxu0 0.0
      %3920 = vmatprep.subr.mxu0 0.0
      %3921 = vmatpush1.msra.mxu0 0.0
      %3922 = vmatprep.subr.mxu0 0.0
      %3923 = vmatpush1.msra.mxu0 0.0
      %3924 = vmatprep.subr.mxu0 0.0
      %3925 = vmatpush1.msra.mxu0 0.0
      %3926 = vmatprep.subr.mxu0 0.0
      %3927 = vmatpush1.msra.mxu0 0.0
      %3928 = vmatprep.subr.mxu0 0.0
      %3929 = vmatpush1.msra.mxu0 0.0
      %3930 = vmatprep.subr.mxu0 0.0
      %3931 = vmatpush1.msra.mxu0 0.0
      %3932 = vmatprep.subr.mxu0 0.0
      %3933 = vmatpush1.msra.mxu0 0.0
      %3934 = vmatprep.subr.mxu0 0.0
      %3935 = vmatpush1.msra.mxu0 0.0
      %3936 = vmatprep.subr.mxu0 0.0
      %3937 = vmatpush1.msra.mxu0 0.0
      %3938 = vmatprep.subr.mxu0 0.0
      %3939 = vmatpush1.msra.mxu0 0.0
      %3940 = vmatprep.subr.mxu0 0.0
      %3941 = vmatpush1.msra.mxu0 0.0
      %3942 = vmatprep.subr.mxu0 0.0
      %3943 = vmatpush1.msra.mxu0 0.0
      %3944 = vmatprep.subr.mxu0 0.0
      %3945 = vmatpush1.msra.mxu0 0.0
      %3946 = vmatprep.subr.mxu0 0.0
      %3947 = vmatpush1.msra.mxu0 0.0
      %3948 = vmatprep.mubr.f32.mxu0 0.0
      %3949 = vmatmul.mubr.f32.gmra.mrb[0].mxu0 %v3879
      %v3950 = vpop.f32.mrb[0].mxu0
      %v3951 = vadd.f32 0.0, %v3950
      %v3952 = vpop.f32.mrb[0].mxu0
      %3953 = vmatprep.mubr.f32.mxu0 0.0
      %3954 = vmatmul.mubr.f32.gmra.mrb[0].mxu0 %v3882
      %v3955 = vpop.f32.mrb[0].mxu0
      %v3956 = vadd.f32 0.0, %v3955
      %v3957 = vpop.f32.mrb[0].mxu0
      %3958 = vdwg.mxu0
      %v3960 = vsel %vm811, %v3951, 0
      %v3963 = vsel %vm811, %v3956, 0
      %3965 = vmatprep.subr.mxu0 0.0
      %3966 = vmatpush1.msra.mxu0 %v3222
      %3967 = vmatprep.subr.mxu0 0.0
      %3968 = vmatpush1.msra.mxu0 %v3223
      %3969 = vmatprep.subr.mxu0 0.0
      %3970 = vmatpush1.msra.mxu0 0.0
      %3971 = vmatprep.subr.mxu0 0.0
      %3972 = vmatpush1.msra.mxu0 0.0
      %3973 = vmatprep.subr.mxu0 0.0
      %3974 = vmatpush1.msra.mxu0 0.0
      %3975 = vmatprep.subr.mxu0 0.0
      %3976 = vmatpush1.msra.mxu0 0.0
      %3977 = vmatprep.subr.mxu0 0.0
      %3978 = vmatpush1.msra.mxu0 0.0
      %3979 = vmatprep.subr.mxu0 0.0
      %3980 = vmatpush1.msra.mxu0 0.0
      %3981 = vmatprep.subr.mxu0 0.0
      %3982 = vmatpush1.msra.mxu0 0.0
      %3983 = vmatprep.subr.mxu0 0.0
      %3984 = vmatpush1.msra.mxu0 0.0
      %3985 = vmatprep.subr.mxu0 0.0
      %3986 = vmatpush1.msra.mxu0 0.0
      %3987 = vmatprep.subr.mxu0 0.0
      %3988 = vmatpush1.msra.mxu0 0.0
      %3989 = vmatprep.subr.mxu0 0.0
      %3990 = vmatpush1.msra.mxu0 0.0
      %3991 = vmatprep.subr.mxu0 0.0
      %3992 = vmatpush1.msra.mxu0 0.0
      %3993 = vmatprep.subr.mxu0 0.0
      %3994 = vmatpush1.msra.mxu0 0.0
      %3995 = vmatprep.subr.mxu0 0.0
      %3996 = vmatpush1.msra.mxu0 0.0
      %3997 = vmatprep.subr.mxu0 0.0
      %3998 = vmatpush1.msra.mxu0 0.0
      %3999 = vmatprep.subr.mxu0 0.0
      %4000 = vmatpush1.msra.mxu0 0.0
      %4001 = vmatprep.subr.mxu0 0.0
      %4002 = vmatpush1.msra.mxu0 0.0
      %4003 = vmatprep.subr.mxu0 0.0
      %4004 = vmatpush1.msra.mxu0 0.0
      %4005 = vmatprep.subr.mxu0 0.0
      %4006 = vmatpush1.msra.mxu0 0.0
      %4007 = vmatprep.subr.mxu0 0.0
      %4008 = vmatpush1.msra.mxu0 0.0
      %4009 = vmatprep.subr.mxu0 0.0
      %4010 = vmatpush1.msra.mxu0 0.0
      %4011 = vmatprep.subr.mxu0 0.0
      %4012 = vmatpush1.msra.mxu0 0.0
      %4013 = vmatprep.subr.mxu0 0.0
      %4014 = vmatpush1.msra.mxu0 0.0
      %4015 = vmatprep.subr.mxu0 0.0
      %4016 = vmatpush1.msra.mxu0 0.0
      %4017 = vmatprep.subr.mxu0 0.0
      %4018 = vmatpush1.msra.mxu0 0.0
      %4019 = vmatprep.subr.mxu0 0.0
      %4020 = vmatpush1.msra.mxu0 0.0
      %4021 = vmatprep.subr.mxu0 0.0
      %4022 = vmatpush1.msra.mxu0 0.0
      %4023 = vmatprep.subr.mxu0 0.0
      %4024 = vmatpush1.msra.mxu0 0.0
      %4025 = vmatprep.subr.mxu0 0.0
      %4026 = vmatpush1.msra.mxu0 0.0
      %4027 = vmatprep.subr.mxu0 0.0
      %4028 = vmatpush1.msra.mxu0 0.0
      %4029 = vmatprep.mubr.f32.mxu0 0.0
      %4030 = vmatmul.mubr.f32.gmra.mrb[0].mxu0 %v3960
      %v4031 = vpop.f32.mrb[0].mxu0
      %v4032 = vadd.f32 0.0, %v4031
      %v4033 = vpop.f32.mrb[0].mxu0
      %4034 = vmatprep.mubr.f32.mxu0 0.0
      %4035 = vmatmul.mubr.f32.gmra.mrb[0].mxu0 %v3963
      %v4036 = vpop.f32.mrb[0].mxu0
      %v4037 = vadd.f32 0.0, %v4036
      %v4038 = vpop.f32.mrb[0].mxu0
      %4039 = vdwg.mxu0
      %v4040 = vadd.f32 %v3751, %v4032
      %v4041 = vadd.f32 %v3752, %v4037
      %v4042 = vadd.f32 %v3196, %v4040
      %v4043 = vadd.f32 %v3197, %v4041
      %v4044 = vsel %vm912, %v4042, 0.0
      %4045 = vadd.xlane.f32.xlu0 %v4044
      %v4046 = vpop.xlane.xlu0 %4045
      %v4047 = vsel %vm912, %v4043, 0.0
      %4048 = vadd.xlane.f32.xlu0 %v4047
      %v4049 = vpop.xlane.xlu0 %4048
      %v4050 = vmul.f32 %v4046, %v2137
      %v4051 = vmul.f32 %v4049, %v2137
      %v4052 = vsub.f32 %v4042, %v4050
      %v4053 = vsub.f32 %v4043, %v4051
      %v4054 = vmul.f32 %v4052, %v4052
      %v4055 = vmul.f32 %v4053, %v4053
      %v4056 = vsel %vm912, %v4054, 0.0
      %4057 = vadd.xlane.f32.xlu0 %v4056
      %v4058 = vpop.xlane.xlu0 %4057
      %v4059 = vsel %vm912, %v4055, 0.0
      %4060 = vadd.xlane.f32.xlu0 %v4059
      %v4061 = vpop.xlane.xlu0 %4060
      %v4062 = vmul.f32 %v4058, %v2137
      %v4063 = vmul.f32 %v4061, %v2137
      %v4064 = vadd.f32 %v4062, 1e-05
      %v4065 = vadd.f32 %v4063, 1e-05
      %v4066 = vrsqrt.pop %v4064
      %v4067 = vrsqrt.pop %v4065
      %v4068 = vmul.f32 %v4052, %v4066
      %v4069 = vmul.f32 %v4053, %v4067
      %v4070 = vlaneseq
      %v4071 = vshrl.u32 %v4070, 7
      %v4072 = vsub.s32 0, %v4071
      %v4073 = vrot.slane %v3199, %v4072
      %v4074 = vmul.f32 %v4068, %v4073
      %v4075 = vmul.f32 %v4069, %v4073
      %v4076 = vlaneseq
      %v4077 = vshrl.u32 %v4076, 7
      %v4078 = vsub.s32 1, %v4077
      %v4079 = vrot.slane %v3199, %v4078
      %v4080 = vadd.f32 %v4074, %v4079
      %v4081 = vadd.f32 %v4075, %v4079
      %s4082 = scalar_lea.vmem %s7, 416
      %v4083 = vld [vmem:[%s4082] sm:$0xff]
      %v4084 = vld [vmem:[%s4082 + $0x8] sm:$0xff]
      %v4085 = vld [vmem:[%s4082 + $0x10] sm:$0xff]
      %v4086 = vld [vmem:[%s4082 + $0x18] sm:$0xff]
      %s4087 = scalar_lea.vmem %s7, 448
      %v4088 = vld [vmem:[%s4087] sm:$0xff]
      %v4089 = vld [vmem:[%s4087 + $0x8] sm:$0xff]
      %v4090 = vld [vmem:[%s4087 + $0x10] sm:$0xff]
      %v4091 = vld [vmem:[%s4087 + $0x18] sm:$0xff]
      %s4092 = scalar_lea.vmem %s7, 480
      %v4093 = vld [vmem:[%s4092] sm:$0xff]
      %v4094 = vld [vmem:[%s4092 + $0x8] sm:$0xff]
      %v4095 = vld [vmem:[%s4092 + $0x10] sm:$0xff]
      %v4096 = vld [vmem:[%s4092 + $0x18] sm:$0xff]
      %s4097 = scalar_lea.vmem %s7, 512
      %v4098 = vld [vmem:[%s4097] sm:$0xff]
      %v4099 = vld [vmem:[%s4097 + $0x8] sm:$0xff]
      %v4100 = vld [vmem:[%s4097 + $0x10] sm:$0xff]
      %v4101 = vld [vmem:[%s4097 + $0x18] sm:$0xff]
      %v4102 = vld [vmem:[%s3224 + $0x4] sm:$0x1]
      %v4103 = vld [vmem:[%s3224 + $0x5] sm:$0x1]
      %v4104 = vld [vmem:[%s3224 + $0x6] sm:$0x1]
      %v4105 = vld [vmem:[%s3224 + $0x7] sm:$0x1]
      %v4106 = vlaneseq
      %v4107 = vshrl.u32 %v4106, 7
      %v4108 = vsub.s32 0, %v4107
      %v4109 = vrot.slane %v4102, %v4108
      %v4111 = vsel %vm912, %v4080, 0
      %v4114 = vsel %vm912, %v4081, 0
      %4116 = vmatprep.subr.mxu0 0.0
      %4117 = vmatpush1.msra.mxu0 %v4083
      %4118 = vmatprep.subr.mxu0 0.0
      %4119 = vmatpush1.msra.mxu0 %v4084
      %4120 = vmatprep.subr.mxu0 0.0
      %4121 = vmatpush1.msra.mxu0 %v4085
      %4122 = vmatprep.subr.mxu0 0.0
      %4123 = vmatpush1.msra.mxu0 %v4086
      %4124 = vmatprep.subr.mxu0 0.0
      %4125 = vmatpush1.msra.mxu0 0.0
      %4126 = vmatprep.subr.mxu0 0.0
      %4127 = vmatpush1.msra.mxu0 0.0
      %4128 = vmatprep.subr.mxu0 0.0
      %4129 = vmatpush1.msra.mxu0 0.0
      %4130 = vmatprep.subr.mxu0 0.0
      %4131 = vmatpush1.msra.mxu0 0.0
      %4132 = vmatprep.subr.mxu0 0.0
      %4133 = vmatpush1.msra.mxu0 0.0
      %4134 = vmatprep.subr.mxu0 0.0
      %4135 = vmatpush1.msra.mxu0 0.0
      %4136 = vmatprep.subr.mxu0 0.0
      %4137 = vmatpush1.msra.mxu0 0.0
      %4138 = vmatprep.subr.mxu0 0.0
      %4139 = vmatpush1.msra.mxu0 0.0
      %4140 = vmatprep.subr.mxu0 0.0
      %4141 = vmatpush1.msra.mxu0 0.0
      %4142 = vmatprep.subr.mxu0 0.0
      %4143 = vmatpush1.msra.mxu0 0.0
      %4144 = vmatprep.subr.mxu0 0.0
      %4145 = vmatpush1.msra.mxu0 0.0
      %4146 = vmatprep.subr.mxu0 0.0
      %4147 = vmatpush1.msra.mxu0 0.0
      %4148 = vmatprep.subr.mxu0 0.0
      %4149 = vmatpush1.msra.mxu0 0.0
      %4150 = vmatprep.subr.mxu0 0.0
      %4151 = vmatpush1.msra.mxu0 0.0
      %4152 = vmatprep.subr.mxu0 0.0
      %4153 = vmatpush1.msra.mxu0 0.0
      %4154 = vmatprep.subr.mxu0 0.0
      %4155 = vmatpush1.msra.mxu0 0.0
      %4156 = vmatprep.subr.mxu0 0.0
      %4157 = vmatpush1.msra.mxu0 0.0
      %4158 = vmatprep.subr.mxu0 0.0
      %4159 = vmatpush1.msra.mxu0 0.0
      %4160 = vmatprep.subr.mxu0 0.0
      %4161 = vmatpush1.msra.mxu0 0.0
      %4162 = vmatprep.subr.mxu0 0.0
      %4163 = vmatpush1.msra.mxu0 0.0
      %4164 = vmatprep.subr.mxu0 0.0
      %4165 = vmatpush1.msra.mxu0 0.0
      %4166 = vmatprep.subr.mxu0 0.0
      %4167 = vmatpush1.msra.mxu0 0.0
      %4168 = vmatprep.subr.mxu0 0.0
      %4169 = vmatpush1.msra.mxu0 0.0
      %4170 = vmatprep.subr.mxu0 0.0
      %4171 = vmatpush1.msra.mxu0 0.0
      %4172 = vmatprep.subr.mxu0 0.0
      %4173 = vmatpush1.msra.mxu0 0.0
      %4174 = vmatprep.subr.mxu0 0.0
      %4175 = vmatpush1.msra.mxu0 0.0
      %4176 = vmatprep.subr.mxu0 0.0
      %4177 = vmatpush1.msra.mxu0 0.0
      %4178 = vmatprep.subr.mxu0 0.0
      %4179 = vmatpush1.msra.mxu0 0.0
      %4180 = vmatprep.mubr.f32.mxu0 0.0
      %4181 = vmatmul.mubr.f32.gmra.mrb[0].mxu0 %v4111
      %v4182 = vpop.f32.mrb[0].mxu0
      %v4183 = vadd.f32 %v4109, %v4182
      %v4184 = vpop.f32.mrb[0].mxu0
      %4185 = vmatprep.mubr.f32.mxu0 0.0
      %4186 = vmatmul.mubr.f32.gmra.mrb[0].mxu0 %v4114
      %v4187 = vpop.f32.mrb[0].mxu0
      %v4188 = vadd.f32 %v4109, %v4187
      %v4189 = vpop.f32.mrb[0].mxu0
      %4190 = vdwg.mxu0
      %v4191 = vlaneseq
      %v4192 = vshrl.u32 %v4191, 7
      %v4193 = vsub.s32 0, %v4192
      %v4194 = vrot.slane %v4103, %v4193
      %4195 = vmatprep.subr.mxu0 0.0
      %4196 = vmatpush1.msra.mxu0 %v4088
      %4197 = vmatprep.subr.mxu0 0.0
      %4198 = vmatpush1.msra.mxu0 %v4089
      %4199 = vmatprep.subr.mxu0 0.0
      %4200 = vmatpush1.msra.mxu0 %v4090
      %4201 = vmatprep.subr.mxu0 0.0
      %4202 = vmatpush1.msra.mxu0 %v4091
      %4203 = vmatprep.subr.mxu0 0.0
      %4204 = vmatpush1.msra.mxu0 0.0
      %4205 = vmatprep.subr.mxu0 0.0
      %4206 = vmatpush1.msra.mxu0 0.0
      %4207 = vmatprep.subr.mxu0 0.0
      %4208 = vmatpush1.msra.mxu0 0.0
      %4209 = vmatprep.subr.mxu0 0.0
      %4210 = vmatpush1.msra.mxu0 0.0
      %4211 = vmatprep.subr.mxu0 0.0
      %4212 = vmatpush1.msra.mxu0 0.0
      %4213 = vmatprep.subr.mxu0 0.0
      %4214 = vmatpush1.msra.mxu0 0.0
      %4215 = vmatprep.subr.mxu0 0.0
      %4216 = vmatpush1.msra.mxu0 0.0
      %4217 = vmatprep.subr.mxu0 0.0
      %4218 = vmatpush1.msra.mxu0 0.0
      %4219 = vmatprep.subr.mxu0 0.0
      %4220 = vmatpush1.msra.mxu0 0.0
      %4221 = vmatprep.subr.mxu0 0.0
      %4222 = vmatpush1.msra.mxu0 0.0
      %4223 = vmatprep.subr.mxu0 0.0
      %4224 = vmatpush1.msra.mxu0 0.0
      %4225 = vmatprep.subr.mxu0 0.0
      %4226 = vmatpush1.msra.mxu0 0.0
      %4227 = vmatprep.subr.mxu0 0.0
      %4228 = vmatpush1.msra.mxu0 0.0
      %4229 = vmatprep.subr.mxu0 0.0
      %4230 = vmatpush1.msra.mxu0 0.0
      %4231 = vmatprep.subr.mxu0 0.0
      %4232 = vmatpush1.msra.mxu0 0.0
      %4233 = vmatprep.subr.mxu0 0.0
      %4234 = vmatpush1.msra.mxu0 0.0
      %4235 = vmatprep.subr.mxu0 0.0
      %4236 = vmatpush1.msra.mxu0 0.0
      %4237 = vmatprep.subr.mxu0 0.0
      %4238 = vmatpush1.msra.mxu0 0.0
      %4239 = vmatprep.subr.mxu0 0.0
      %4240 = vmatpush1.msra.mxu0 0.0
      %4241 = vmatprep.subr.mxu0 0.0
      %4242 = vmatpush1.msra.mxu0 0.0
      %4243 = vmatprep.subr.mxu0 0.0
      %4244 = vmatpush1.msra.mxu0 0.0
      %4245 = vmatprep.subr.mxu0 0.0
      %4246 = vmatpush1.msra.mxu0 0.0
      %4247 = vmatprep.subr.mxu0 0.0
      %4248 = vmatpush1.msra.mxu0 0.0
      %4249 = vmatprep.subr.mxu0 0.0
      %4250 = vmatpush1.msra.mxu0 0.0
      %4251 = vmatprep.subr.mxu0 0.0
      %4252 = vmatpush1.msra.mxu0 0.0
      %4253 = vmatprep.subr.mxu0 0.0
      %4254 = vmatpush1.msra.mxu0 0.0
      %4255 = vmatprep.subr.mxu0 0.0
      %4256 = vmatpush1.msra.mxu0 0.0
      %4257 = vmatprep.subr.mxu0 0.0
      %4258 = vmatpush1.msra.mxu0 0.0
      %4259 = vmatprep.mubr.f32.mxu0 0.0
      %4260 = vmatmul.mubr.f32.gmra.mrb[0].mxu0 %v2284
      %v4261 = vpop.f32.mrb[0].mxu0
      %v4262 = vadd.f32 %v4194, %v4261
      %v4263 = vpop.f32.mrb[0].mxu0
      %4264 = vmatprep.mubr.f32.mxu0 0.0
      %4265 = vmatmul.mubr.f32.gmra.mrb[0].mxu0 %v2287
      %v4266 = vpop.f32.mrb[0].mxu0
      %v4267 = vadd.f32 %v4194, %v4266
      %v4268 = vpop.f32.mrb[0].mxu0
      %4269 = vdwg.mxu0
      %v4270 = vlaneseq
      %v4271 = vshrl.u32 %v4270, 7
      %v4272 = vsub.s32 0, %v4271
      %v4273 = vrot.slane %v4104, %v4272
      %4274 = vmatprep.subr.mxu0 0.0
      %4275 = vmatpush1.msra.mxu0 %v4093
      %4276 = vmatprep.subr.mxu0 0.0
      %4277 = vmatpush1.msra.mxu0 %v4094
      %4278 = vmatprep.subr.mxu0 0.0
      %4279 = vmatpush1.msra.mxu0 %v4095
      %4280 = vmatprep.subr.mxu0 0.0
      %4281 = vmatpush1.msra.mxu0 %v4096
      %4282 = vmatprep.subr.mxu0 0.0
      %4283 = vmatpush1.msra.mxu0 0.0
      %4284 = vmatprep.subr.mxu0 0.0
      %4285 = vmatpush1.msra.mxu0 0.0
      %4286 = vmatprep.subr.mxu0 0.0
      %4287 = vmatpush1.msra.mxu0 0.0
      %4288 = vmatprep.subr.mxu0 0.0
      %4289 = vmatpush1.msra.mxu0 0.0
      %4290 = vmatprep.subr.mxu0 0.0
      %4291 = vmatpush1.msra.mxu0 0.0
      %4292 = vmatprep.subr.mxu0 0.0
      %4293 = vmatpush1.msra.mxu0 0.0
      %4294 = vmatprep.subr.mxu0 0.0
      %4295 = vmatpush1.msra.mxu0 0.0
      %4296 = vmatprep.subr.mxu0 0.0
      %4297 = vmatpush1.msra.mxu0 0.0
      %4298 = vmatprep.subr.mxu0 0.0
      %4299 = vmatpush1.msra.mxu0 0.0
      %4300 = vmatprep.subr.mxu0 0.0
      %4301 = vmatpush1.msra.mxu0 0.0
      %4302 = vmatprep.subr.mxu0 0.0
      %4303 = vmatpush1.msra.mxu0 0.0
      %4304 = vmatprep.subr.mxu0 0.0
      %4305 = vmatpush1.msra.mxu0 0.0
      %4306 = vmatprep.subr.mxu0 0.0
      %4307 = vmatpush1.msra.mxu0 0.0
      %4308 = vmatprep.subr.mxu0 0.0
      %4309 = vmatpush1.msra.mxu0 0.0
      %4310 = vmatprep.subr.mxu0 0.0
      %4311 = vmatpush1.msra.mxu0 0.0
      %4312 = vmatprep.subr.mxu0 0.0
      %4313 = vmatpush1.msra.mxu0 0.0
      %4314 = vmatprep.subr.mxu0 0.0
      %4315 = vmatpush1.msra.mxu0 0.0
      %4316 = vmatprep.subr.mxu0 0.0
      %4317 = vmatpush1.msra.mxu0 0.0
      %4318 = vmatprep.subr.mxu0 0.0
      %4319 = vmatpush1.msra.mxu0 0.0
      %4320 = vmatprep.subr.mxu0 0.0
      %4321 = vmatpush1.msra.mxu0 0.0
      %4322 = vmatprep.subr.mxu0 0.0
      %4323 = vmatpush1.msra.mxu0 0.0
      %4324 = vmatprep.subr.mxu0 0.0
      %4325 = vmatpush1.msra.mxu0 0.0
      %4326 = vmatprep.subr.mxu0 0.0
      %4327 = vmatpush1.msra.mxu0 0.0
      %4328 = vmatprep.subr.mxu0 0.0
      %4329 = vmatpush1.msra.mxu0 0.0
      %4330 = vmatprep.subr.mxu0 0.0
      %4331 = vmatpush1.msra.mxu0 0.0
      %4332 = vmatprep.subr.mxu0 0.0
      %4333 = vmatpush1.msra.mxu0 0.0
      %4334 = vmatprep.subr.mxu0 0.0
      %4335 = vmatpush1.msra.mxu0 0.0
      %4336 = vmatprep.subr.mxu0 0.0
      %4337 = vmatpush1.msra.mxu0 0.0
      %4338 = vmatprep.mubr.f32.mxu0 0.0
      %4339 = vmatmul.mubr.f32.gmra.mrb[0].mxu0 %v2284
      %v4340 = vpop.f32.mrb[0].mxu0
      %v4341 = vadd.f32 %v4273, %v4340
      %v4342 = vpop.f32.mrb[0].mxu0
      %4343 = vmatprep.mubr.f32.mxu0 0.0
      %4344 = vmatmul.mubr.f32.gmra.mrb[0].mxu0 %v2287
      %v4345 = vpop.f32.mrb[0].mxu0
      %v4346 = vadd.f32 %v4273, %v4345
      %v4347 = vpop.f32.mrb[0].mxu0
      %4348 = vdwg.mxu0
      %v4350 = vsel %vm811, %v4183, 0
      %v4353 = vsel %vm811, %v4188, 0
      %v4356 = vsel %vm811, %v4262, 0
      %v4359 = vsel %vm811, %v4267, 0
      %4361 = vmatprep.subr.mxu0 0.0
      %4362 = vmatpush1.xpose.msra.mxu0 %v4356
      %4363 = vmatprep.subr.mxu0 0.0
      %4364 = vmatpush1.xpose.msra.mxu0 %v4359
      %4365 = vmatprep.subr.mxu0 0.0
      %4366 = vmatpush1.xpose.msra.mxu0 0.0
      %4367 = vmatprep.subr.mxu0 0.0
      %4368 = vmatpush1.xpose.msra.mxu0 0.0
      %4369 = vmatprep.subr.mxu0 0.0
      %4370 = vmatpush1.xpose.msra.mxu0 0.0
      %4371 = vmatprep.subr.mxu0 0.0
      %4372 = vmatpush1.xpose.msra.mxu0 0.0
      %4373 = vmatprep.subr.mxu0 0.0
      %4374 = vmatpush1.xpose.msra.mxu0 0.0
      %4375 = vmatprep.subr.mxu0 0.0
      %4376 = vmatpush1.xpose.msra.mxu0 0.0
      %4377 = vmatprep.subr.mxu0 0.0
      %4378 = vmatpush1.xpose.msra.mxu0 0.0
      %4379 = vmatprep.subr.mxu0 0.0
      %4380 = vmatpush1.xpose.msra.mxu0 0.0
      %4381 = vmatprep.subr.mxu0 0.0
      %4382 = vmatpush1.xpose.msra.mxu0 0.0
      %4383 = vmatprep.subr.mxu0 0.0
      %4384 = vmatpush1.xpose.msra.mxu0 0.0
      %4385 = vmatprep.subr.mxu0 0.0
      %4386 = vmatpush1.xpose.msra.mxu0 0.0
      %4387 = vmatprep.subr.mxu0 0.0
      %4388 = vmatpush1.xpose.msra.mxu0 0.0
      %4389 = vmatprep.subr.mxu0 0.0
      %4390 = vmatpush1.xpose.msra.mxu0 0.0
      %4391 = vmatprep.subr.mxu0 0.0
      %4392 = vmatpush1.xpose.msra.mxu0 0.0
      %4393 = vmatprep.subr.mxu0 0.0
      %4394 = vmatpush1.xpose.msra.mxu0 0.0
      %4395 = vmatprep.subr.mxu0 0.0
      %4396 = vmatpush1.xpose.msra.mxu0 0.0
      %4397 = vmatprep.subr.mxu0 0.0
      %4398 = vmatpush1.xpose.msra.mxu0 0.0
      %4399 = vmatprep.subr.mxu0 0.0
      %4400 = vmatpush1.xpose.msra.mxu0 0.0
      %4401 = vmatprep.subr.mxu0 0.0
      %4402 = vmatpush1.xpose.msra.mxu0 0.0
      %4403 = vmatprep.subr.mxu0 0.0
      %4404 = vmatpush1.xpose.msra.mxu0 0.0
      %4405 = vmatprep.subr.mxu0 0.0
      %4406 = vmatpush1.xpose.msra.mxu0 0.0
      %4407 = vmatprep.subr.mxu0 0.0
      %4408 = vmatpush1.xpose.msra.mxu0 0.0
      %4409 = vmatprep.subr.mxu0 0.0
      %4410 = vmatpush1.xpose.msra.mxu0 0.0
      %4411 = vmatprep.subr.mxu0 0.0
      %4412 = vmatpush1.xpose.msra.mxu0 0.0
      %4413 = vmatprep.subr.mxu0 0.0
      %4414 = vmatpush1.xpose.msra.mxu0 0.0
      %4415 = vmatprep.subr.mxu0 0.0
      %4416 = vmatpush1.xpose.msra.mxu0 0.0
      %4417 = vmatprep.subr.mxu0 0.0
      %4418 = vmatpush1.xpose.msra.mxu0 0.0
      %4419 = vmatprep.subr.mxu0 0.0
      %4420 = vmatpush1.xpose.msra.mxu0 0.0
      %4421 = vmatprep.subr.mxu0 0.0
      %4422 = vmatpush1.xpose.msra.mxu0 0.0
      %4423 = vmatprep.subr.mxu0 0.0
      %4424 = vmatpush1.xpose.msra.mxu0 0.0
      %4425 = vmatprep.mubr.f32.mxu0 0.0
      %4426 = vmatmul.mubr.f32.gmra.mrb[0].mxu0 %v4350
      %v4427 = vpop.f32.mrb[0].mxu0
      %v4428 = vadd.f32 0.0, %v4427
      %v4429 = vpop.f32.mrb[0].mxu0
      %4430 = vmatprep.mubr.f32.mxu0 0.0
      %4431 = vmatmul.mubr.f32.gmra.mrb[0].mxu0 %v4353
      %v4432 = vpop.f32.mrb[0].mxu0
      %v4433 = vadd.f32 0.0, %v4432
      %v4434 = vpop.f32.mrb[0].mxu0
      %4435 = vdwg.mxu0
      %v4436 = vmul.f32 %v4428, 0.25
      %v4437 = vmul.f32 %v4433, 0.25
      %v4438 = vadd.f32 %v4436, %v1646
      %v4439 = vadd.f32 %v4437, %v1646
      %v4440 = vsel %vm811, %v4438, -inf
      %4441 = vmax.xlane.f32.xlu0 %v4440
      %v4442 = vpop.xlane.xlu0 %4441
      %v4443 = vsel %vm811, %v4439, -inf
      %4444 = vmax.xlane.f32.xlu0 %v4443
      %v4445 = vpop.xlane.xlu0 %4444
      %v4446 = vsub.f32 %v4438, %v4442
      %v4447 = vsub.f32 %v4439, %v4445
      %v4448 = vmul.f32 %v4446, 1.442695
      %v4449 = vpow.pop %v4448
      %v4450 = vmul.f32 %v4447, 1.442695
      %v4451 = vpow.pop %v4450
      %v4452 = vsel %vm811, %v4449, 0.0
      %4453 = vadd.xlane.f32.xlu0 %v4452
      %v4454 = vpop.xlane.xlu0 %4453
      %v4455 = vsel %vm811, %v4451, 0.0
      %4456 = vadd.xlane.f32.xlu0 %v4455
      %v4457 = vpop.xlane.xlu0 %4456
      %v4458 = vrcp.pop %v4454
      %v4459 = vrcp.pop %v4457
      %v4460 = vmul.f32 %v4449, %v4458
      %v4461 = vmul.f32 %v4451, %v4459
      %v4463 = vsel %vm811, %v4460, 0
      %v4466 = vsel %vm811, %v4461, 0
      %4468 = vmatprep.subr.mxu0 0.0
      %4469 = vmatpush1.msra.mxu0 %v4341
      %4470 = vmatprep.subr.mxu0 0.0
      %4471 = vmatpush1.msra.mxu0 %v4346
      %4472 = vmatprep.subr.mxu0 0.0
      %4473 = vmatpush1.msra.mxu0 0.0
      %4474 = vmatprep.subr.mxu0 0.0
      %4475 = vmatpush1.msra.mxu0 0.0
      %4476 = vmatprep.subr.mxu0 0.0
      %4477 = vmatpush1.msra.mxu0 0.0
      %4478 = vmatprep.subr.mxu0 0.0
      %4479 = vmatpush1.msra.mxu0 0.0
      %4480 = vmatprep.subr.mxu0 0.0
      %4481 = vmatpush1.msra.mxu0 0.0
      %4482 = vmatprep.subr.mxu0 0.0
      %4483 = vmatpush1.msra.mxu0 0.0
      %4484 = vmatprep.subr.mxu0 0.0
      %4485 = vmatpush1.msra.mxu0 0.0
      %4486 = vmatprep.subr.mxu0 0.0
      %4487 = vmatpush1.msra.mxu0 0.0
      %4488 = vmatprep.subr.mxu0 0.0
      %4489 = vmatpush1.msra.mxu0 0.0
      %4490 = vmatprep.subr.mxu0 0.0
      %4491 = vmatpush1.msra.mxu0 0.0
      %4492 = vmatprep.subr.mxu0 0.0
      %4493 = vmatpush1.msra.mxu0 0.0
      %4494 = vmatprep.subr.mxu0 0.0
      %4495 = vmatpush1.msra.mxu0 0.0
      %4496 = vmatprep.subr.mxu0 0.0
      %4497 = vmatpush1.msra.mxu0 0.0
      %4498 = vmatprep.subr.mxu0 0.0
      %4499 = vmatpush1.msra.mxu0 0.0
      %4500 = vmatprep.subr.mxu0 0.0
      %4501 = vmatpush1.msra.mxu0 0.0
      %4502 = vmatprep.subr.mxu0 0.0
      %4503 = vmatpush1.msra.mxu0 0.0
      %4504 = vmatprep.subr.mxu0 0.0
      %4505 = vmatpush1.msra.mxu0 0.0
      %4506 = vmatprep.subr.mxu0 0.0
      %4507 = vmatpush1.msra.mxu0 0.0
      %4508 = vmatprep.subr.mxu0 0.0
      %4509 = vmatpush1.msra.mxu0 0.0
      %4510 = vmatprep.subr.mxu0 0.0
      %4511 = vmatpush1.msra.mxu0 0.0
      %4512 = vmatprep.subr.mxu0 0.0
      %4513 = vmatpush1.msra.mxu0 0.0
      %4514 = vmatprep.subr.mxu0 0.0
      %4515 = vmatpush1.msra.mxu0 0.0
      %4516 = vmatprep.subr.mxu0 0.0
      %4517 = vmatpush1.msra.mxu0 0.0
      %4518 = vmatprep.subr.mxu0 0.0
      %4519 = vmatpush1.msra.mxu0 0.0
      %4520 = vmatprep.subr.mxu0 0.0
      %4521 = vmatpush1.msra.mxu0 0.0
      %4522 = vmatprep.subr.mxu0 0.0
      %4523 = vmatpush1.msra.mxu0 0.0
      %4524 = vmatprep.subr.mxu0 0.0
      %4525 = vmatpush1.msra.mxu0 0.0
      %4526 = vmatprep.subr.mxu0 0.0
      %4527 = vmatpush1.msra.mxu0 0.0
      %4528 = vmatprep.subr.mxu0 0.0
      %4529 = vmatpush1.msra.mxu0 0.0
      %4530 = vmatprep.subr.mxu0 0.0
      %4531 = vmatpush1.msra.mxu0 0.0
      %4532 = vmatprep.mubr.f32.mxu0 0.0
      %4533 = vmatmul.mubr.f32.gmra.mrb[0].mxu0 %v4463
      %v4534 = vpop.f32.mrb[0].mxu0
      %v4535 = vadd.f32 0.0, %v4534
      %v4536 = vpop.f32.mrb[0].mxu0
      %4537 = vmatprep.mubr.f32.mxu0 0.0
      %4538 = vmatmul.mubr.f32.gmra.mrb[0].mxu0 %v4466
      %v4539 = vpop.f32.mrb[0].mxu0
      %v4540 = vadd.f32 0.0, %v4539
      %v4541 = vpop.f32.mrb[0].mxu0
      %4542 = vdwg.mxu0
      %v4544 = vsel %vm811, %v4535, 0
      %v4547 = vsel %vm811, %v4540, 0
      %4549 = vmatprep.subr.mxu0 0.0
      %4550 = vmatpush1.msra.mxu0 %v4098
      %4551 = vmatprep.subr.mxu0 0.0
      %4552 = vmatpush1.msra.mxu0 %v4099
      %4553 = vmatprep.subr.mxu0 0.0
      %4554 = vmatpush1.msra.mxu0 0.0
      %4555 = vmatprep.subr.mxu0 0.0
      %4556 = vmatpush1.msra.mxu0 0.0
      %4557 = vmatprep.subr.mxu0 0.0
      %4558 = vmatpush1.msra.mxu0 0.0
      %4559 = vmatprep.subr.mxu0 0.0
      %4560 = vmatpush1.msra.mxu0 0.0
      %4561 = vmatprep.subr.mxu0 0.0
      %4562 = vmatpush1.msra.mxu0 0.0
      %4563 = vmatprep.subr.mxu0 0.0
      %4564 = vmatpush1.msra.mxu0 0.0
      %4565 = vmatprep.subr.mxu0 0.0
      %4566 = vmatpush1.msra.mxu0 0.0
      %4567 = vmatprep.subr.mxu0 0.0
      %4568 = vmatpush1.msra.mxu0 0.0
      %4569 = vmatprep.subr.mxu0 0.0
      %4570 = vmatpush1.msra.mxu0 0.0
      %4571 = vmatprep.subr.mxu0 0.0
      %4572 = vmatpush1.msra.mxu0 0.0
      %4573 = vmatprep.subr.mxu0 0.0
      %4574 = vmatpush1.msra.mxu0 0.0
      %4575 = vmatprep.subr.mxu0 0.0
      %4576 = vmatpush1.msra.mxu0 0.0
      %4577 = vmatprep.subr.mxu0 0.0
      %4578 = vmatpush1.msra.mxu0 0.0
      %4579 = vmatprep.subr.mxu0 0.0
      %4580 = vmatpush1.msra.mxu0 0.0
      %4581 = vmatprep.subr.mxu0 0.0
      %4582 = vmatpush1.msra.mxu0 0.0
      %4583 = vmatprep.subr.mxu0 0.0
      %4584 = vmatpush1.msra.mxu0 0.0
      %4585 = vmatprep.subr.mxu0 0.0
      %4586 = vmatpush1.msra.mxu0 0.0
      %4587 = vmatprep.subr.mxu0 0.0
      %4588 = vmatpush1.msra.mxu0 0.0
      %4589 = vmatprep.subr.mxu0 0.0
      %4590 = vmatpush1.msra.mxu0 0.0
      %4591 = vmatprep.subr.mxu0 0.0
      %4592 = vmatpush1.msra.mxu0 0.0
      %4593 = vmatprep.subr.mxu0 0.0
      %4594 = vmatpush1.msra.mxu0 0.0
      %4595 = vmatprep.subr.mxu0 0.0
      %4596 = vmatpush1.msra.mxu0 0.0
      %4597 = vmatprep.subr.mxu0 0.0
      %4598 = vmatpush1.msra.mxu0 0.0
      %4599 = vmatprep.subr.mxu0 0.0
      %4600 = vmatpush1.msra.mxu0 0.0
      %4601 = vmatprep.subr.mxu0 0.0
      %4602 = vmatpush1.msra.mxu0 0.0
      %4603 = vmatprep.subr.mxu0 0.0
      %4604 = vmatpush1.msra.mxu0 0.0
      %4605 = vmatprep.subr.mxu0 0.0
      %4606 = vmatpush1.msra.mxu0 0.0
      %4607 = vmatprep.subr.mxu0 0.0
      %4608 = vmatpush1.msra.mxu0 0.0
      %4609 = vmatprep.subr.mxu0 0.0
      %4610 = vmatpush1.msra.mxu0 0.0
      %4611 = vmatprep.subr.mxu0 0.0
      %4612 = vmatpush1.msra.mxu0 0.0
      %4613 = vmatprep.mubr.f32.mxu0 0.0
      %4614 = vmatmul.mubr.f32.gmra.mrb[0].mxu0 %v4544
      %v4615 = vpop.f32.mrb[0].mxu0
      %v4616 = vadd.f32 0.0, %v4615
      %v4617 = vpop.f32.mrb[0].mxu0
      %4618 = vmatprep.mubr.f32.mxu0 0.0
      %4619 = vmatmul.mubr.f32.gmra.mrb[0].mxu0 %v4547
      %v4620 = vpop.f32.mrb[0].mxu0
      %v4621 = vadd.f32 0.0, %v4620
      %v4622 = vpop.f32.mrb[0].mxu0
      %4623 = vdwg.mxu0
      %v4624 = vlaneseq
      %v4625 = vshrl.u32 %v4624, 7
      %v4626 = vsub.s32 0, %v4625
      %v4627 = vrot.slane %v4105, %v4626
      %v4628 = vadd.f32 %v4627, %v4616
      %v4629 = vadd.f32 %v4627, %v4621
      %4630 = vrot.lane.b32.xlu0 %v4183, 112
      %v4631 = vpop.permute.xlu0 %4630
      %4632 = vrot.lane.b32.xlu0 %v4188, 112
      %v4633 = vpop.permute.xlu0 %4632
      %4634 = vrot.lane.b32.xlu0 %v4262, 112
      %v4635 = vpop.permute.xlu0 %4634
      %4636 = vrot.lane.b32.xlu0 %v4267, 112
      %v4637 = vpop.permute.xlu0 %4636
      %v4638 = vsel %vm811, %v4631, 0
      %v4640 = vsel %vm811, %v4633, 0
      %v4642 = vsel %vm811, %v4635, 0
      %v4644 = vsel %vm811, %v4637, 0
      %4646 = vmatprep.subr.mxu0 0.0
      %4647 = vmatpush1.xpose.msra.mxu0 %v4642
      %4648 = vmatprep.subr.mxu0 0.0
      %4649 = vmatpush1.xpose.msra.mxu0 %v4644
      %4650 = vmatprep.subr.mxu0 0.0
      %4651 = vmatpush1.xpose.msra.mxu0 0.0
      %4652 = vmatprep.subr.mxu0 0.0
      %4653 = vmatpush1.xpose.msra.mxu0 0.0
      %4654 = vmatprep.subr.mxu0 0.0
      %4655 = vmatpush1.xpose.msra.mxu0 0.0
      %4656 = vmatprep.subr.mxu0 0.0
      %4657 = vmatpush1.xpose.msra.mxu0 0.0
      %4658 = vmatprep.subr.mxu0 0.0
      %4659 = vmatpush1.xpose.msra.mxu0 0.0
      %4660 = vmatprep.subr.mxu0 0.0
      %4661 = vmatpush1.xpose.msra.mxu0 0.0
      %4662 = vmatprep.subr.mxu0 0.0
      %4663 = vmatpush1.xpose.msra.mxu0 0.0
      %4664 = vmatprep.subr.mxu0 0.0
      %4665 = vmatpush1.xpose.msra.mxu0 0.0
      %4666 = vmatprep.subr.mxu0 0.0
      %4667 = vmatpush1.xpose.msra.mxu0 0.0
      %4668 = vmatprep.subr.mxu0 0.0
      %4669 = vmatpush1.xpose.msra.mxu0 0.0
      %4670 = vmatprep.subr.mxu0 0.0
      %4671 = vmatpush1.xpose.msra.mxu0 0.0
      %4672 = vmatprep.subr.mxu0 0.0
      %4673 = vmatpush1.xpose.msra.mxu0 0.0
      %4674 = vmatprep.subr.mxu0 0.0
      %4675 = vmatpush1.xpose.msra.mxu0 0.0
      %4676 = vmatprep.subr.mxu0 0.0
      %4677 = vmatpush1.xpose.msra.mxu0 0.0
      %4678 = vmatprep.subr.mxu0 0.0
      %4679 = vmatpush1.xpose.msra.mxu0 0.0
      %4680 = vmatprep.subr.mxu0 0.0
      %4681 = vmatpush1.xpose.msra.mxu0 0.0
      %4682 = vmatprep.subr.mxu0 0.0
      %4683 = vmatpush1.xpose.msra.mxu0 0.0
      %4684 = vmatprep.subr.mxu0 0.0
      %4685 = vmatpush1.xpose.msra.mxu0 0.0
      %4686 = vmatprep.subr.mxu0 0.0
      %4687 = vmatpush1.xpose.msra.mxu0 0.0
      %4688 = vmatprep.subr.mxu0 0.0
      %4689 = vmatpush1.xpose.msra.mxu0 0.0
      %4690 = vmatprep.subr.mxu0 0.0
      %4691 = vmatpush1.xpose.msra.mxu0 0.0
      %4692 = vmatprep.subr.mxu0 0.0
      %4693 = vmatpush1.xpose.msra.mxu0 0.0
      %4694 = vmatprep.subr.mxu0 0.0
      %4695 = vmatpush1.xpose.msra.mxu0 0.0
      %4696 = vmatprep.subr.mxu0 0.0
      %4697 = vmatpush1.xpose.msra.mxu0 0.0
      %4698 = vmatprep.subr.mxu0 0.0
      %4699 = vmatpush1.xpose.msra.mxu0 0.0
      %4700 = vmatprep.subr.mxu0 0.0
      %4701 = vmatpush1.xpose.msra.mxu0 0.0
      %4702 = vmatprep.subr.mxu0 0.0
      %4703 = vmatpush1.xpose.msra.mxu0 0.0
      %4704 = vmatprep.subr.mxu0 0.0
      %4705 = vmatpush1.xpose.msra.mxu0 0.0
      %4706 = vmatprep.subr.mxu0 0.0
      %4707 = vmatpush1.xpose.msra.mxu0 0.0
      %4708 = vmatprep.subr.mxu0 0.0
      %4709 = vmatpush1.xpose.msra.mxu0 0.0
      %4710 = vmatprep.mubr.f32.mxu0 0.0
      %4711 = vmatmul.mubr.f32.gmra.mrb[0].mxu0 %v4638
      %v4712 = vpop.f32.mrb[0].mxu0
      %v4713 = vadd.f32 0.0, %v4712
      %v4714 = vpop.f32.mrb[0].mxu0
      %4715 = vmatprep.mubr.f32.mxu0 0.0
      %4716 = vmatmul.mubr.f32.gmra.mrb[0].mxu0 %v4640
      %v4717 = vpop.f32.mrb[0].mxu0
      %v4718 = vadd.f32 0.0, %v4717
      %v4719 = vpop.f32.mrb[0].mxu0
      %4720 = vdwg.mxu0
      %v4721 = vmul.f32 %v4713, 0.25
      %v4722 = vmul.f32 %v4718, 0.25
      %v4723 = vadd.f32 %v4721, %v1646
      %v4724 = vadd.f32 %v4722, %v1646
      %v4725 = vsel %vm811, %v4723, -inf
      %4726 = vmax.xlane.f32.xlu0 %v4725
      %v4727 = vpop.xlane.xlu0 %4726
      %v4728 = vsel %vm811, %v4724, -inf
      %4729 = vmax.xlane.f32.xlu0 %v4728
      %v4730 = vpop.xlane.xlu0 %4729
      %v4731 = vsub.f32 %v4723, %v4727
      %v4732 = vsub.f32 %v4724, %v4730
      %v4733 = vmul.f32 %v4731, 1.442695
      %v4734 = vpow.pop %v4733
      %v4735 = vmul.f32 %v4732, 1.442695
      %v4736 = vpow.pop %v4735
      %v4737 = vsel %vm811, %v4734, 0.0
      %4738 = vadd.xlane.f32.xlu0 %v4737
      %v4739 = vpop.xlane.xlu0 %4738
      %v4740 = vsel %vm811, %v4736, 0.0
      %4741 = vadd.xlane.f32.xlu0 %v4740
      %v4742 = vpop.xlane.xlu0 %4741
      %v4743 = vrcp.pop %v4739
      %v4744 = vrcp.pop %v4742
      %v4745 = vmul.f32 %v4734, %v4743
      %v4746 = vmul.f32 %v4736, %v4744
      %4749 = vrot.lane.b32.xlu0 %v4341, 112
      %v4750 = vpop.permute.xlu0 %4749
      %4751 = vrot.lane.b32.xlu0 %v4346, 112
      %v4752 = vpop.permute.xlu0 %4751
      %v4756 = vsel %vm811, %v4745, 0
      %v4759 = vsel %vm811, %v4746, 0
      %4761 = vmatprep.subr.mxu0 0.0
      %4762 = vmatpush1.msra.mxu0 %v4750
      %4763 = vmatprep.subr.mxu0 0.0
      %4764 = vmatpush1.msra.mxu0 %v4752
      %4765 = vmatprep.subr.mxu0 0.0
      %4766 = vmatpush1.msra.mxu0 0.0
      %4767 = vmatprep.subr.mxu0 0.0
      %4768 = vmatpush1.msra.mxu0 0.0
      %4769 = vmatprep.subr.mxu0 0.0
      %4770 = vmatpush1.msra.mxu0 0.0
      %4771 = vmatprep.subr.mxu0 0.0
      %4772 = vmatpush1.msra.mxu0 0.0
      %4773 = vmatprep.subr.mxu0 0.0
      %4774 = vmatpush1.msra.mxu0 0.0
      %4775 = vmatprep.subr.mxu0 0.0
      %4776 = vmatpush1.msra.mxu0 0.0
      %4777 = vmatprep.subr.mxu0 0.0
      %4778 = vmatpush1.msra.mxu0 0.0
      %4779 = vmatprep.subr.mxu0 0.0
      %4780 = vmatpush1.msra.mxu0 0.0
      %4781 = vmatprep.subr.mxu0 0.0
      %4782 = vmatpush1.msra.mxu0 0.0
      %4783 = vmatprep.subr.mxu0 0.0
      %4784 = vmatpush1.msra.mxu0 0.0
      %4785 = vmatprep.subr.mxu0 0.0
      %4786 = vmatpush1.msra.mxu0 0.0
      %4787 = vmatprep.subr.mxu0 0.0
      %4788 = vmatpush1.msra.mxu0 0.0
      %4789 = vmatprep.subr.mxu0 0.0
      %4790 = vmatpush1.msra.mxu0 0.0
      %4791 = vmatprep.subr.mxu0 0.0
      %4792 = vmatpush1.msra.mxu0 0.0
      %4793 = vmatprep.subr.mxu0 0.0
      %4794 = vmatpush1.msra.mxu0 0.0
      %4795 = vmatprep.subr.mxu0 0.0
      %4796 = vmatpush1.msra.mxu0 0.0
      %4797 = vmatprep.subr.mxu0 0.0
      %4798 = vmatpush1.msra.mxu0 0.0
      %4799 = vmatprep.subr.mxu0 0.0
      %4800 = vmatpush1.msra.mxu0 0.0
      %4801 = vmatprep.subr.mxu0 0.0
      %4802 = vmatpush1.msra.mxu0 0.0
      %4803 = vmatprep.subr.mxu0 0.0
      %4804 = vmatpush1.msra.mxu0 0.0
      %4805 = vmatprep.subr.mxu0 0.0
      %4806 = vmatpush1.msra.mxu0 0.0
      %4807 = vmatprep.subr.mxu0 0.0
      %4808 = vmatpush1.msra.mxu0 0.0
      %4809 = vmatprep.subr.mxu0 0.0
      %4810 = vmatpush1.msra.mxu0 0.0
      %4811 = vmatprep.subr.mxu0 0.0
      %4812 = vmatpush1.msra.mxu0 0.0
      %4813 = vmatprep.subr.mxu0 0.0
      %4814 = vmatpush1.msra.mxu0 0.0
      %4815 = vmatprep.subr.mxu0 0.0
      %4816 = vmatpush1.msra.mxu0 0.0
      %4817 = vmatprep.subr.mxu0 0.0
      %4818 = vmatpush1.msra.mxu0 0.0
      %4819 = vmatprep.subr.mxu0 0.0
      %4820 = vmatpush1.msra.mxu0 0.0
      %4821 = vmatprep.subr.mxu0 0.0
      %4822 = vmatpush1.msra.mxu0 0.0
      %4823 = vmatprep.subr.mxu0 0.0
      %4824 = vmatpush1.msra.mxu0 0.0
      %4825 = vmatprep.mubr.f32.mxu0 0.0
      %4826 = vmatmul.mubr.f32.gmra.mrb[0].mxu0 %v4756
      %v4827 = vpop.f32.mrb[0].mxu0
      %v4828 = vadd.f32 0.0, %v4827
      %v4829 = vpop.f32.mrb[0].mxu0
      %4830 = vmatprep.mubr.f32.mxu0 0.0
      %4831 = vmatmul.mubr.f32.gmra.mrb[0].mxu0 %v4759
      %v4832 = vpop.f32.mrb[0].mxu0
      %v4833 = vadd.f32 0.0, %v4832
      %v4834 = vpop.f32.mrb[0].mxu0
      %4835 = vdwg.mxu0
      %v4837 = vsel %vm811, %v4828, 0
      %v4840 = vsel %vm811, %v4833, 0
      %4842 = vmatprep.subr.mxu0 0.0
      %4843 = vmatpush1.msra.mxu0 %v4100
      %4844 = vmatprep.subr.mxu0 0.0
      %4845 = vmatpush1.msra.mxu0 %v4101
      %4846 = vmatprep.subr.mxu0 0.0
      %4847 = vmatpush1.msra.mxu0 0.0
      %4848 = vmatprep.subr.mxu0 0.0
      %4849 = vmatpush1.msra.mxu0 0.0
      %4850 = vmatprep.subr.mxu0 0.0
      %4851 = vmatpush1.msra.mxu0 0.0
      %4852 = vmatprep.subr.mxu0 0.0
      %4853 = vmatpush1.msra.mxu0 0.0
      %4854 = vmatprep.subr.mxu0 0.0
      %4855 = vmatpush1.msra.mxu0 0.0
      %4856 = vmatprep.subr.mxu0 0.0
      %4857 = vmatpush1.msra.mxu0 0.0
      %4858 = vmatprep.subr.mxu0 0.0
      %4859 = vmatpush1.msra.mxu0 0.0
      %4860 = vmatprep.subr.mxu0 0.0
      %4861 = vmatpush1.msra.mxu0 0.0
      %4862 = vmatprep.subr.mxu0 0.0
      %4863 = vmatpush1.msra.mxu0 0.0
      %4864 = vmatprep.subr.mxu0 0.0
      %4865 = vmatpush1.msra.mxu0 0.0
      %4866 = vmatprep.subr.mxu0 0.0
      %4867 = vmatpush1.msra.mxu0 0.0
      %4868 = vmatprep.subr.mxu0 0.0
      %4869 = vmatpush1.msra.mxu0 0.0
      %4870 = vmatprep.subr.mxu0 0.0
      %4871 = vmatpush1.msra.mxu0 0.0
      %4872 = vmatprep.subr.mxu0 0.0
      %4873 = vmatpush1.msra.mxu0 0.0
      %4874 = vmatprep.subr.mxu0 0.0
      %4875 = vmatpush1.msra.mxu0 0.0
      %4876 = vmatprep.subr.mxu0 0.0
      %4877 = vmatpush1.msra.mxu0 0.0
      %4878 = vmatprep.subr.mxu0 0.0
      %4879 = vmatpush1.msra.mxu0 0.0
      %4880 = vmatprep.subr.mxu0 0.0
      %4881 = vmatpush1.msra.mxu0 0.0
      %4882 = vmatprep.subr.mxu0 0.0
      %4883 = vmatpush1.msra.mxu0 0.0
      %4884 = vmatprep.subr.mxu0 0.0
      %4885 = vmatpush1.msra.mxu0 0.0
      %4886 = vmatprep.subr.mxu0 0.0
      %4887 = vmatpush1.msra.mxu0 0.0
      %4888 = vmatprep.subr.mxu0 0.0
      %4889 = vmatpush1.msra.mxu0 0.0
      %4890 = vmatprep.subr.mxu0 0.0
      %4891 = vmatpush1.msra.mxu0 0.0
      %4892 = vmatprep.subr.mxu0 0.0
      %4893 = vmatpush1.msra.mxu0 0.0
      %4894 = vmatprep.subr.mxu0 0.0
      %4895 = vmatpush1.msra.mxu0 0.0
      %4896 = vmatprep.subr.mxu0 0.0
      %4897 = vmatpush1.msra.mxu0 0.0
      %4898 = vmatprep.subr.mxu0 0.0
      %4899 = vmatpush1.msra.mxu0 0.0
      %4900 = vmatprep.subr.mxu0 0.0
      %4901 = vmatpush1.msra.mxu0 0.0
      %4902 = vmatprep.subr.mxu0 0.0
      %4903 = vmatpush1.msra.mxu0 0.0
      %4904 = vmatprep.subr.mxu0 0.0
      %4905 = vmatpush1.msra.mxu0 0.0
      %4906 = vmatprep.mubr.f32.mxu0 0.0
      %4907 = vmatmul.mubr.f32.gmra.mrb[0].mxu0 %v4837
      %v4908 = vpop.f32.mrb[0].mxu0
      %v4909 = vadd.f32 0.0, %v4908
      %v4910 = vpop.f32.mrb[0].mxu0
      %4911 = vmatprep.mubr.f32.mxu0 0.0
      %4912 = vmatmul.mubr.f32.gmra.mrb[0].mxu0 %v4840
      %v4913 = vpop.f32.mrb[0].mxu0
      %v4914 = vadd.f32 0.0, %v4913
      %v4915 = vpop.f32.mrb[0].mxu0
      %4916 = vdwg.mxu0
      %v4917 = vadd.f32 %v4628, %v4909
      %v4918 = vadd.f32 %v4629, %v4914
      %v4919 = vadd.f32 %v4080, %v4917
      %v4920 = vadd.f32 %v4081, %v4918
      %v4921 = vsel %vm912, %v4919, 0.0
      %4922 = vadd.xlane.f32.xlu0 %v4921
      %v4923 = vpop.xlane.xlu0 %4922
      %v4924 = vsel %vm912, %v4920, 0.0
      %4925 = vadd.xlane.f32.xlu0 %v4924
      %v4926 = vpop.xlane.xlu0 %4925
      %v4927 = vmul.f32 %v4923, %v2137
      %v4928 = vmul.f32 %v4926, %v2137
      %v4929 = vsub.f32 %v4919, %v4927
      %v4930 = vsub.f32 %v4920, %v4928
      %v4931 = vmul.f32 %v4929, %v4929
      %v4932 = vmul.f32 %v4930, %v4930
      %v4933 = vsel %vm912, %v4931, 0.0
      %4934 = vadd.xlane.f32.xlu0 %v4933
      %v4935 = vpop.xlane.xlu0 %4934
      %v4936 = vsel %vm912, %v4932, 0.0
      %4937 = vadd.xlane.f32.xlu0 %v4936
      %v4938 = vpop.xlane.xlu0 %4937
      %v4939 = vmul.f32 %v4935, %v2137
      %v4940 = vmul.f32 %v4938, %v2137
      %v4941 = vadd.f32 %v4939, 1e-05
      %v4942 = vadd.f32 %v4940, 1e-05
      %v4943 = vrsqrt.pop %v4941
      %v4944 = vrsqrt.pop %v4942
      %v4945 = vmul.f32 %v4929, %v4943
      %v4946 = vmul.f32 %v4930, %v4944
      %v4947 = vlaneseq
      %v4948 = vshrl.u32 %v4947, 7
      %v4949 = vsub.s32 0, %v4948
      %v4950 = vrot.slane %v3201, %v4949
      %v4951 = vmul.f32 %v4945, %v4950
      %v4952 = vmul.f32 %v4946, %v4950
      %v4953 = vlaneseq
      %v4954 = vshrl.u32 %v4953, 7
      %v4955 = vsub.s32 1, %v4954
      %v4956 = vrot.slane %v3201, %v4955
      %v4957 = vadd.f32 %v4951, %v4956
      %v4958 = vadd.f32 %v4952, %v4956
      %s4959 = scalar_lea.vmem %s7, 544
      %v4960 = vld [vmem:[%s4959] sm:$0xff]
      %v4961 = vld [vmem:[%s4959 + $0x8] sm:$0xff]
      %v4962 = vld [vmem:[%s4959 + $0x10] sm:$0xff]
      %v4963 = vld [vmem:[%s4959 + $0x18] sm:$0xff]
      %v4964 = vld [vmem:[%s3224 + $0x8] sm:$0x1]
      %v4965 = vlaneseq
      %v4966 = vshrl.u32 %v4965, 7
      %v4967 = vsub.s32 0, %v4966
      %v4968 = vrot.slane %v4964, %v4967
      %v4970 = vsel %vm912, %v4957, 0
      %v4973 = vsel %vm912, %v4958, 0
      %4975 = vmatprep.subr.mxu0 0.0
      %4976 = vmatpush1.msra.mxu0 %v4960
      %4977 = vmatprep.subr.mxu0 0.0
      %4978 = vmatpush1.msra.mxu0 %v4961
      %4979 = vmatprep.subr.mxu0 0.0
      %4980 = vmatpush1.msra.mxu0 %v4962
      %4981 = vmatprep.subr.mxu0 0.0
      %4982 = vmatpush1.msra.mxu0 %v4963
      %4983 = vmatprep.subr.mxu0 0.0
      %4984 = vmatpush1.msra.mxu0 0.0
      %4985 = vmatprep.subr.mxu0 0.0
      %4986 = vmatpush1.msra.mxu0 0.0
      %4987 = vmatprep.subr.mxu0 0.0
      %4988 = vmatpush1.msra.mxu0 0.0
      %4989 = vmatprep.subr.mxu0 0.0
      %4990 = vmatpush1.msra.mxu0 0.0
      %4991 = vmatprep.subr.mxu0 0.0
      %4992 = vmatpush1.msra.mxu0 0.0
      %4993 = vmatprep.subr.mxu0 0.0
      %4994 = vmatpush1.msra.mxu0 0.0
      %4995 = vmatprep.subr.mxu0 0.0
      %4996 = vmatpush1.msra.mxu0 0.0
      %4997 = vmatprep.subr.mxu0 0.0
      %4998 = vmatpush1.msra.mxu0 0.0
      %4999 = vmatprep.subr.mxu0 0.0
      %5000 = vmatpush1.msra.mxu0 0.0
      %5001 = vmatprep.subr.mxu0 0.0
      %5002 = vmatpush1.msra.mxu0 0.0
      %5003 = vmatprep.subr.mxu0 0.0
      %5004 = vmatpush1.msra.mxu0 0.0
      %5005 = vmatprep.subr.mxu0 0.0
      %5006 = vmatpush1.msra.mxu0 0.0
      %5007 = vmatprep.subr.mxu0 0.0
      %5008 = vmatpush1.msra.mxu0 0.0
      %5009 = vmatprep.subr.mxu0 0.0
      %5010 = vmatpush1.msra.mxu0 0.0
      %5011 = vmatprep.subr.mxu0 0.0
      %5012 = vmatpush1.msra.mxu0 0.0
      %5013 = vmatprep.subr.mxu0 0.0
      %5014 = vmatpush1.msra.mxu0 0.0
      %5015 = vmatprep.subr.mxu0 0.0
      %5016 = vmatpush1.msra.mxu0 0.0
      %5017 = vmatprep.subr.mxu0 0.0
      %5018 = vmatpush1.msra.mxu0 0.0
      %5019 = vmatprep.subr.mxu0 0.0
      %5020 = vmatpush1.msra.mxu0 0.0
      %5021 = vmatprep.subr.mxu0 0.0
      %5022 = vmatpush1.msra.mxu0 0.0
      %5023 = vmatprep.subr.mxu0 0.0
      %5024 = vmatpush1.msra.mxu0 0.0
      %5025 = vmatprep.subr.mxu0 0.0
      %5026 = vmatpush1.msra.mxu0 0.0
      %5027 = vmatprep.subr.mxu0 0.0
      %5028 = vmatpush1.msra.mxu0 0.0
      %5029 = vmatprep.subr.mxu0 0.0
      %5030 = vmatpush1.msra.mxu0 0.0
      %5031 = vmatprep.subr.mxu0 0.0
      %5032 = vmatpush1.msra.mxu0 0.0
      %5033 = vmatprep.subr.mxu0 0.0
      %5034 = vmatpush1.msra.mxu0 0.0
      %5035 = vmatprep.subr.mxu0 0.0
      %5036 = vmatpush1.msra.mxu0 0.0
      %5037 = vmatprep.subr.mxu0 0.0
      %5038 = vmatpush1.msra.mxu0 0.0
      %5039 = vmatprep.mubr.f32.mxu0 0.0
      %5040 = vmatmul.mubr.f32.gmra.mrb[0].mxu0 %v4970
      %v5041 = vpop.f32.mrb[0].mxu0
      %v5042 = vadd.f32 %v4968, %v5041
      %v5043 = vpop.f32.mrb[0].mxu0
      %5044 = vmatprep.mubr.f32.mxu0 0.0
      %5045 = vmatmul.mubr.f32.gmra.mrb[0].mxu0 %v4973
      %v5046 = vpop.f32.mrb[0].mxu0
      %v5047 = vadd.f32 %v4968, %v5046
      %v5048 = vpop.f32.mrb[0].mxu0
      %5049 = vdwg.mxu0
      %v5050 = vxor.u32 %v5042, 2147483648
      %v5051 = vxor.u32 %v5047, 2147483648
      %v5052 = vmul.f32 %v5050, 1.442695
      %v5053 = vpow.pop %v5052
      %v5054 = vmul.f32 %v5051, 1.442695
      %v5055 = vpow.pop %v5054
      %v5056 = vadd.f32 %v5053, 1.0
      %v5057 = vadd.f32 %v5055, 1.0
      %v5058 = vrcp.pop %v5056
      %v5059 = vmul.f32 1.0, %v5058
      %v5060 = vrcp.pop %v5057
      %v5061 = vmul.f32 1.0, %v5060
      %v5062 = vmul.f32 %v5042, %v5059
      %v5063 = vmul.f32 %v5047, %v5061
      %v5064 = vadd.f32 %v4957, %v5062
      %v5065 = vadd.f32 %v4958, %v5063
      %v5066 = vsel %vm912, %v5064, 0.0
      %5067 = vadd.xlane.f32.xlu0 %v5066
      %v5068 = vpop.xlane.xlu0 %5067
      %v5069 = vsel %vm912, %v5065, 0.0
      %5070 = vadd.xlane.f32.xlu0 %v5069
      %v5071 = vpop.xlane.xlu0 %5070
      %v5072 = vmul.f32 %v5068, %v2137
      %v5073 = vmul.f32 %v5071, %v2137
      %v5074 = vsub.f32 %v5064, %v5072
      %v5075 = vsub.f32 %v5065, %v5073
      %v5076 = vmul.f32 %v5074, %v5074
      %v5077 = vmul.f32 %v5075, %v5075
      %v5078 = vsel %vm912, %v5076, 0.0
      %5079 = vadd.xlane.f32.xlu0 %v5078
      %v5080 = vpop.xlane.xlu0 %5079
      %v5081 = vsel %vm912, %v5077, 0.0
      %5082 = vadd.xlane.f32.xlu0 %v5081
      %v5083 = vpop.xlane.xlu0 %5082
      %v5084 = vmul.f32 %v5080, %v2137
      %v5085 = vmul.f32 %v5083, %v2137
      %v5086 = vadd.f32 %v5084, 1e-05
      %v5087 = vadd.f32 %v5085, 1e-05
      %v5088 = vrsqrt.pop %v5086
      %v5089 = vrsqrt.pop %v5087
      %v5090 = vmul.f32 %v5074, %v5088
      %v5091 = vmul.f32 %v5075, %v5089
      %v5092 = vlaneseq
      %v5093 = vshrl.u32 %v5092, 7
      %v5094 = vsub.s32 0, %v5093
      %v5095 = vrot.slane %v3203, %v5094
      %v5096 = vmul.f32 %v5090, %v5095
      %v5097 = vmul.f32 %v5091, %v5095
      %v5098 = vlaneseq
      %v5099 = vshrl.u32 %v5098, 7
      %v5100 = vsub.s32 1, %v5099
      %v5101 = vrot.slane %v3203, %v5100
      %v5102 = vadd.f32 %v5096, %v5101
      %v5103 = vadd.f32 %v5097, %v5101
      %v5104 = vld [vmem:[%s10] sm:$0xff]
      %v5105 = vld [vmem:[%s10 + $0x8] sm:$0xff]
      %v5106 = vld [vmem:[%s10 + $0x10] sm:$0xff]
      %v5107 = vld [vmem:[%s10 + $0x18] sm:$0xff]
      %v5108 = vld [vmem:[%s11] sm:$0x1]
      %v5110 = vlaneseq
      %v5111 = vshrl.u32 %v5110, 7
      %v5112 = vsub.s32 0, %v5111
      %v5113 = vrot.slane %v5108, %v5112
      %v5116 = vsel %vm912, %v5102, 0
      %v5119 = vsel %vm912, %v5103, 0
      %5121 = vmatprep.subr.mxu0 0.0
      %5122 = vmatpush1.msra.mxu0 %v5104
      %5123 = vmatprep.subr.mxu0 0.0
      %5124 = vmatpush1.msra.mxu0 %v5105
      %5125 = vmatprep.subr.mxu0 0.0
      %5126 = vmatpush1.msra.mxu0 %v5106
      %5127 = vmatprep.subr.mxu0 0.0
      %5128 = vmatpush1.msra.mxu0 %v5107
      %5129 = vmatprep.subr.mxu0 0.0
      %5130 = vmatpush1.msra.mxu0 0.0
      %5131 = vmatprep.subr.mxu0 0.0
      %5132 = vmatpush1.msra.mxu0 0.0
      %5133 = vmatprep.subr.mxu0 0.0
      %5134 = vmatpush1.msra.mxu0 0.0
      %5135 = vmatprep.subr.mxu0 0.0
      %5136 = vmatpush1.msra.mxu0 0.0
      %5137 = vmatprep.subr.mxu0 0.0
      %5138 = vmatpush1.msra.mxu0 0.0
      %5139 = vmatprep.subr.mxu0 0.0
      %5140 = vmatpush1.msra.mxu0 0.0
      %5141 = vmatprep.subr.mxu0 0.0
      %5142 = vmatpush1.msra.mxu0 0.0
      %5143 = vmatprep.subr.mxu0 0.0
      %5144 = vmatpush1.msra.mxu0 0.0
      %5145 = vmatprep.subr.mxu0 0.0
      %5146 = vmatpush1.msra.mxu0 0.0
      %5147 = vmatprep.subr.mxu0 0.0
      %5148 = vmatpush1.msra.mxu0 0.0
      %5149 = vmatprep.subr.mxu0 0.0
      %5150 = vmatpush1.msra.mxu0 0.0
      %5151 = vmatprep.subr.mxu0 0.0
      %5152 = vmatpush1.msra.mxu0 0.0
      %5153 = vmatprep.subr.mxu0 0.0
      %5154 = vmatpush1.msra.mxu0 0.0
      %5155 = vmatprep.subr.mxu0 0.0
      %5156 = vmatpush1.msra.mxu0 0.0
      %5157 = vmatprep.subr.mxu0 0.0
      %5158 = vmatpush1.msra.mxu0 0.0
      %5159 = vmatprep.subr.mxu0 0.0
      %5160 = vmatpush1.msra.mxu0 0.0
      %5161 = vmatprep.subr.mxu0 0.0
      %5162 = vmatpush1.msra.mxu0 0.0
      %5163 = vmatprep.subr.mxu0 0.0
      %5164 = vmatpush1.msra.mxu0 0.0
      %5165 = vmatprep.subr.mxu0 0.0
      %5166 = vmatpush1.msra.mxu0 0.0
      %5167 = vmatprep.subr.mxu0 0.0
      %5168 = vmatpush1.msra.mxu0 0.0
      %5169 = vmatprep.subr.mxu0 0.0
      %5170 = vmatpush1.msra.mxu0 0.0
      %5171 = vmatprep.subr.mxu0 0.0
      %5172 = vmatpush1.msra.mxu0 0.0
      %5173 = vmatprep.subr.mxu0 0.0
      %5174 = vmatpush1.msra.mxu0 0.0
      %5175 = vmatprep.subr.mxu0 0.0
      %5176 = vmatpush1.msra.mxu0 0.0
      %5177 = vmatprep.subr.mxu0 0.0
      %5178 = vmatpush1.msra.mxu0 0.0
      %5179 = vmatprep.subr.mxu0 0.0
      %5180 = vmatpush1.msra.mxu0 0.0
      %5181 = vmatprep.subr.mxu0 0.0
      %5182 = vmatpush1.msra.mxu0 0.0
      %5183 = vmatprep.subr.mxu0 0.0
      %5184 = vmatpush1.msra.mxu0 0.0
      %5185 = vmatprep.mubr.f32.mxu0 0.0
      %5186 = vmatmul.mubr.f32.gmra.mrb[0].mxu0 %v5116
      %v5187 = vpop.f32.mrb[0].mxu0
      %v5188 = vadd.f32 %v5113, %v5187
      %v5189 = vpop.f32.mrb[0].mxu0
      %5190 = vmatprep.mubr.f32.mxu0 0.0
      %5191 = vmatmul.mubr.f32.gmra.mrb[0].mxu0 %v5119
      %v5192 = vpop.f32.mrb[0].mxu0
      %v5193 = vadd.f32 %v5113, %v5192
      %v5194 = vpop.f32.mrb[0].mxu0
      %5195 = vdwg.mxu0
      %v5196 = vxor.u32 %v5188, 2147483648
      %v5197 = vxor.u32 %v5193, 2147483648
      %v5198 = vmul.f32 %v5196, 1.442695
      %v5199 = vpow.pop %v5198
      %v5200 = vmul.f32 %v5197, 1.442695
      %v5201 = vpow.pop %v5200
      %v5202 = vadd.f32 %v5199, 1.0
      %v5203 = vadd.f32 %v5201, 1.0
      %v5204 = vrcp.pop %v5202
      %v5205 = vmul.f32 1.0, %v5204
      %v5206 = vrcp.pop %v5203
      %v5207 = vmul.f32 1.0, %v5206
      %v5208 = vmul.f32 %v5188, %v5205
      %v5209 = vmul.f32 %v5193, %v5207
      %v5210 = vld [vmem:[%s12] sm:$0xff]
      %v5211 = vld [vmem:[%s12 + $0x8] sm:$0xff]
      %v5212 = vld [vmem:[%s12 + $0x10] sm:$0xff]
      %v5213 = vld [vmem:[%s12 + $0x18] sm:$0xff]
      %v5214 = vld [vmem:[%s13] sm:$0x1]
      %v5215 = vlaneseq
      %v5216 = vshrl.u32 %v5215, 7
      %v5217 = vsub.s32 0, %v5216
      %v5218 = vrot.slane %v5214, %v5217
      %v5220 = vsel %vm912, %v5208, 0
      %v5223 = vsel %vm912, %v5209, 0
      %5225 = vmatprep.subr.mxu0 0.0
      %5226 = vmatpush1.msra.mxu0 %v5210
      %5227 = vmatprep.subr.mxu0 0.0
      %5228 = vmatpush1.msra.mxu0 %v5211
      %5229 = vmatprep.subr.mxu0 0.0
      %5230 = vmatpush1.msra.mxu0 %v5212
      %5231 = vmatprep.subr.mxu0 0.0
      %5232 = vmatpush1.msra.mxu0 %v5213
      %5233 = vmatprep.subr.mxu0 0.0
      %5234 = vmatpush1.msra.mxu0 0.0
      %5235 = vmatprep.subr.mxu0 0.0
      %5236 = vmatpush1.msra.mxu0 0.0
      %5237 = vmatprep.subr.mxu0 0.0
      %5238 = vmatpush1.msra.mxu0 0.0
      %5239 = vmatprep.subr.mxu0 0.0
      %5240 = vmatpush1.msra.mxu0 0.0
      %5241 = vmatprep.subr.mxu0 0.0
      %5242 = vmatpush1.msra.mxu0 0.0
      %5243 = vmatprep.subr.mxu0 0.0
      %5244 = vmatpush1.msra.mxu0 0.0
      %5245 = vmatprep.subr.mxu0 0.0
      %5246 = vmatpush1.msra.mxu0 0.0
      %5247 = vmatprep.subr.mxu0 0.0
      %5248 = vmatpush1.msra.mxu0 0.0
      %5249 = vmatprep.subr.mxu0 0.0
      %5250 = vmatpush1.msra.mxu0 0.0
      %5251 = vmatprep.subr.mxu0 0.0
      %5252 = vmatpush1.msra.mxu0 0.0
      %5253 = vmatprep.subr.mxu0 0.0
      %5254 = vmatpush1.msra.mxu0 0.0
      %5255 = vmatprep.subr.mxu0 0.0
      %5256 = vmatpush1.msra.mxu0 0.0
      %5257 = vmatprep.subr.mxu0 0.0
      %5258 = vmatpush1.msra.mxu0 0.0
      %5259 = vmatprep.subr.mxu0 0.0
      %5260 = vmatpush1.msra.mxu0 0.0
      %5261 = vmatprep.subr.mxu0 0.0
      %5262 = vmatpush1.msra.mxu0 0.0
      %5263 = vmatprep.subr.mxu0 0.0
      %5264 = vmatpush1.msra.mxu0 0.0
      %5265 = vmatprep.subr.mxu0 0.0
      %5266 = vmatpush1.msra.mxu0 0.0
      %5267 = vmatprep.subr.mxu0 0.0
      %5268 = vmatpush1.msra.mxu0 0.0
      %5269 = vmatprep.subr.mxu0 0.0
      %5270 = vmatpush1.msra.mxu0 0.0
      %5271 = vmatprep.subr.mxu0 0.0
      %5272 = vmatpush1.msra.mxu0 0.0
      %5273 = vmatprep.subr.mxu0 0.0
      %5274 = vmatpush1.msra.mxu0 0.0
      %5275 = vmatprep.subr.mxu0 0.0
      %5276 = vmatpush1.msra.mxu0 0.0
      %5277 = vmatprep.subr.mxu0 0.0
      %5278 = vmatpush1.msra.mxu0 0.0
      %5279 = vmatprep.subr.mxu0 0.0
      %5280 = vmatpush1.msra.mxu0 0.0
      %5281 = vmatprep.subr.mxu0 0.0
      %5282 = vmatpush1.msra.mxu0 0.0
      %5283 = vmatprep.subr.mxu0 0.0
      %5284 = vmatpush1.msra.mxu0 0.0
      %5285 = vmatprep.subr.mxu0 0.0
      %5286 = vmatpush1.msra.mxu0 0.0
      %5287 = vmatprep.subr.mxu0 0.0
      %5288 = vmatpush1.msra.mxu0 0.0
      %5289 = vmatprep.mubr.f32.mxu0 0.0
      %5290 = vmatmul.mubr.f32.gmra.mrb[0].mxu0 %v5220
      %v5291 = vpop.f32.mrb[0].mxu0
      %v5292 = vadd.f32 %v5218, %v5291
      %v5293 = vpop.f32.mrb[0].mxu0
      %5294 = vmatprep.mubr.f32.mxu0 0.0
      %5295 = vmatmul.mubr.f32.gmra.mrb[0].mxu0 %v5223
      %v5296 = vpop.f32.mrb[0].mxu0
      %v5297 = vadd.f32 %v5218, %v5296
      %v5298 = vpop.f32.mrb[0].mxu0
      %5299 = vdwg.mxu0
      %v5300 = vxor.u32 %v5292, 2147483648
      %v5301 = vxor.u32 %v5297, 2147483648
      %v5302 = vmul.f32 %v5300, 1.442695
      %v5303 = vpow.pop %v5302
      %v5304 = vmul.f32 %v5301, 1.442695
      %v5305 = vpow.pop %v5304
      %v5306 = vadd.f32 %v5303, 1.0
      %v5307 = vadd.f32 %v5305, 1.0
      %v5308 = vrcp.pop %v5306
      %v5309 = vmul.f32 1.0, %v5308
      %v5310 = vrcp.pop %v5307
      %v5311 = vmul.f32 1.0, %v5310
      %v5312 = vmul.f32 %v5292, %v5309
      %v5313 = vmul.f32 %v5297, %v5311
      %v5314 = vld [vmem:[%s14] sm:$0xff]
      %v5315 = vld [vmem:[%s14 + $0x8] sm:$0xff]
      %s5316 = scalar_lea.vmem %s14, 16
      %v5317 = vld [vmem:[%s5316] sm:$0xff]
      %v5318 = vld [vmem:[%s5316 + $0x8] sm:$0xff]
      %v5319 = vsel %vm912, %v5312, 0.0
      %v5320 = vsel %vm912, %v5313, 0.0
      %v5321 = vadd.f32 %v5319, %v5320
      %5322 = vadd.xlane.f32.xlu0 %v5321
      %v5323 = vpop.xlane.xlu0 %5322
      %v5324 = vrot.slane %v5323, 4
      %v5325 = vadd.f32 %v5323, %v5324
      %v5326 = vrot.slane %v5325, 2
      %v5327 = vadd.f32 %v5325, %v5326
      %v5328 = vrot.slane %v5327, 1
      %v5329 = vadd.f32 %v5327, %v5328
      %s5330 = vtos %v5329
      %v5331 = vrcp.pop 512.0
      %s5332 = vtos %v5331
      %s5333 = smul.f32 %s5330, %s5332
      %v5334 = vstv %s5333
      %v5335 = vsub.f32 %v5312, %v5334
      %v5336 = vsub.f32 %v5313, %v5334
      %v5337 = vmul.f32 %v5335, %v5335
      %v5338 = vmul.f32 %v5336, %v5336
      %v5339 = vsel %vm912, %v5337, 0.0
      %v5340 = vsel %vm912, %v5338, 0.0
      %v5341 = vadd.f32 %v5339, %v5340
      %5342 = vadd.xlane.f32.xlu0 %v5341
      %v5343 = vpop.xlane.xlu0 %5342
      %v5344 = vrot.slane %v5343, 4
      %v5345 = vadd.f32 %v5343, %v5344
      %v5346 = vrot.slane %v5345, 2
      %v5347 = vadd.f32 %v5345, %v5346
      %v5348 = vrot.slane %v5347, 1
      %v5349 = vadd.f32 %v5347, %v5348
      %s5350 = vtos %v5349
      %v5351 = vrcp.pop 512.0
      %s5352 = vtos %v5351
      %s5353 = smul.f32 %s5350, %s5352
      %s5354 = sadd.f32 %s5353, 1e-05
      %v5355 = vstv %s5354
      %v5356 = vrsqrt.pop %v5355
      %s5357 = vtos %v5356
      %v5358 = vstv %s5357
      %v5359 = vmul.f32 %v5335, %v5358
      %v5360 = vmul.f32 %v5336, %v5358
      %v5361 = vmul.f32 %v5359, %v5314
      %v5362 = vmul.f32 %v5360, %v5315
      %v5363 = vadd.f32 %v5361, %v5317
      %v5364 = vadd.f32 %v5362, %v5318
      %s5365 = scalar_lea.vmem %s12, 32
      %v5366 = vld [vmem:[%s5365] sm:$0xff]
      %v5367 = vld [vmem:[%s5365 + $0x8] sm:$0xff]
      %v5368 = vld [vmem:[%s5365 + $0x10] sm:$0xff]
      %v5369 = vld [vmem:[%s5365 + $0x18] sm:$0xff]
      %v5370 = vld [vmem:[%s13 + $0x1] sm:$0x1]
      %v5371 = vlaneseq
      %v5372 = vshrl.u32 %v5371, 7
      %v5373 = vsub.s32 0, %v5372
      %v5374 = vrot.slane %v5370, %v5373
      %v5376 = vsel %vm912, %v5363, 0
      %v5379 = vsel %vm912, %v5364, 0
      %5381 = vmatprep.subr.mxu0 0.0
      %5382 = vmatpush1.msra.mxu0 %v5366
      %5383 = vmatprep.subr.mxu0 0.0
      %5384 = vmatpush1.msra.mxu0 %v5367
      %5385 = vmatprep.subr.mxu0 0.0
      %5386 = vmatpush1.msra.mxu0 %v5368
      %5387 = vmatprep.subr.mxu0 0.0
      %5388 = vmatpush1.msra.mxu0 %v5369
      %5389 = vmatprep.subr.mxu0 0.0
      %5390 = vmatpush1.msra.mxu0 0.0
      %5391 = vmatprep.subr.mxu0 0.0
      %5392 = vmatpush1.msra.mxu0 0.0
      %5393 = vmatprep.subr.mxu0 0.0
      %5394 = vmatpush1.msra.mxu0 0.0
      %5395 = vmatprep.subr.mxu0 0.0
      %5396 = vmatpush1.msra.mxu0 0.0
      %5397 = vmatprep.subr.mxu0 0.0
      %5398 = vmatpush1.msra.mxu0 0.0
      %5399 = vmatprep.subr.mxu0 0.0
      %5400 = vmatpush1.msra.mxu0 0.0
      %5401 = vmatprep.subr.mxu0 0.0
      %5402 = vmatpush1.msra.mxu0 0.0
      %5403 = vmatprep.subr.mxu0 0.0
      %5404 = vmatpush1.msra.mxu0 0.0
      %5405 = vmatprep.subr.mxu0 0.0
      %5406 = vmatpush1.msra.mxu0 0.0
      %5407 = vmatprep.subr.mxu0 0.0
      %5408 = vmatpush1.msra.mxu0 0.0
      %5409 = vmatprep.subr.mxu0 0.0
      %5410 = vmatpush1.msra.mxu0 0.0
      %5411 = vmatprep.subr.mxu0 0.0
      %5412 = vmatpush1.msra.mxu0 0.0
      %5413 = vmatprep.subr.mxu0 0.0
      %5414 = vmatpush1.msra.mxu0 0.0
      %5415 = vmatprep.subr.mxu0 0.0
      %5416 = vmatpush1.msra.mxu0 0.0
      %5417 = vmatprep.subr.mxu0 0.0
      %5418 = vmatpush1.msra.mxu0 0.0
      %5419 = vmatprep.subr.mxu0 0.0
      %5420 = vmatpush1.msra.mxu0 0.0
      %5421 = vmatprep.subr.mxu0 0.0
      %5422 = vmatpush1.msra.mxu0 0.0
      %5423 = vmatprep.subr.mxu0 0.0
      %5424 = vmatpush1.msra.mxu0 0.0
      %5425 = vmatprep.subr.mxu0 0.0
      %5426 = vmatpush1.msra.mxu0 0.0
      %5427 = vmatprep.subr.mxu0 0.0
      %5428 = vmatpush1.msra.mxu0 0.0
      %5429 = vmatprep.subr.mxu0 0.0
      %5430 = vmatpush1.msra.mxu0 0.0
      %5431 = vmatprep.subr.mxu0 0.0
      %5432 = vmatpush1.msra.mxu0 0.0
      %5433 = vmatprep.subr.mxu0 0.0
      %5434 = vmatpush1.msra.mxu0 0.0
      %5435 = vmatprep.subr.mxu0 0.0
      %5436 = vmatpush1.msra.mxu0 0.0
      %5437 = vmatprep.subr.mxu0 0.0
      %5438 = vmatpush1.msra.mxu0 0.0
      %5439 = vmatprep.subr.mxu0 0.0
      %5440 = vmatpush1.msra.mxu0 0.0
      %5441 = vmatprep.subr.mxu0 0.0
      %5442 = vmatpush1.msra.mxu0 0.0
      %5443 = vmatprep.subr.mxu0 0.0
      %5444 = vmatpush1.msra.mxu0 0.0
      %5445 = vmatprep.mubr.f32.mxu0 0.0
      %5446 = vmatmul.mubr.f32.gmra.mrb[0].mxu0 %v5376
      %v5447 = vpop.f32.mrb[0].mxu0
      %v5448 = vadd.f32 %v5374, %v5447
      %v5449 = vpop.f32.mrb[0].mxu0
      %5450 = vmatprep.mubr.f32.mxu0 0.0
      %5451 = vmatmul.mubr.f32.gmra.mrb[0].mxu0 %v5379
      %v5452 = vpop.f32.mrb[0].mxu0
      %v5453 = vadd.f32 %v5374, %v5452
      %v5454 = vpop.f32.mrb[0].mxu0
      %5455 = vdwg.mxu0
      %v5456 = vxor.u32 %v5448, 2147483648
      %v5457 = vxor.u32 %v5453, 2147483648
      %v5458 = vmul.f32 %v5456, 1.442695
      %v5459 = vpow.pop %v5458
      %v5460 = vmul.f32 %v5457, 1.442695
      %v5461 = vpow.pop %v5460
      %v5462 = vadd.f32 %v5459, 1.0
      %v5463 = vadd.f32 %v5461, 1.0
      %v5464 = vrcp.pop %v5462
      %v5465 = vmul.f32 1.0, %v5464
      %v5466 = vrcp.pop %v5463
      %v5467 = vmul.f32 1.0, %v5466
      %v5468 = vmul.f32 %v5448, %v5465
      %v5469 = vmul.f32 %v5453, %v5467
      %s5470 = scalar_lea.vmem %s14, 32
      %v5471 = vld [vmem:[%s5470] sm:$0xff]
      %v5472 = vld [vmem:[%s5470 + $0x8] sm:$0xff]
      %s5473 = scalar_lea.vmem %s14, 48
      %v5474 = vld [vmem:[%s5473] sm:$0xff]
      %v5475 = vld [vmem:[%s5473 + $0x8] sm:$0xff]
      %v5476 = vsel %vm912, %v5468, 0.0
      %v5477 = vsel %vm912, %v5469, 0.0
      %v5478 = vadd.f32 %v5476, %v5477
      %5479 = vadd.xlane.f32.xlu0 %v5478
      %v5480 = vpop.xlane.xlu0 %5479
      %v5481 = vrot.slane %v5480, 4
      %v5482 = vadd.f32 %v5480, %v5481
      %v5483 = vrot.slane %v5482, 2
      %v5484 = vadd.f32 %v5482, %v5483
      %v5485 = vrot.slane %v5484, 1
      %v5486 = vadd.f32 %v5484, %v5485
      %s5487 = vtos %v5486
      %v5488 = vrcp.pop 512.0
      %s5489 = vtos %v5488
      %s5490 = smul.f32 %s5487, %s5489
      %v5491 = vstv %s5490
      %v5492 = vsub.f32 %v5468, %v5491
      %v5493 = vsub.f32 %v5469, %v5491
      %v5494 = vmul.f32 %v5492, %v5492
      %v5495 = vmul.f32 %v5493, %v5493
      %v5496 = vsel %vm912, %v5494, 0.0
      %v5497 = vsel %vm912, %v5495, 0.0
      %v5498 = vadd.f32 %v5496, %v5497
      %5499 = vadd.xlane.f32.xlu0 %v5498
      %v5500 = vpop.xlane.xlu0 %5499
      %v5501 = vrot.slane %v5500, 4
      %v5502 = vadd.f32 %v5500, %v5501
      %v5503 = vrot.slane %v5502, 2
      %v5504 = vadd.f32 %v5502, %v5503
      %v5505 = vrot.slane %v5504, 1
      %v5506 = vadd.f32 %v5504, %v5505
      %s5507 = vtos %v5506
      %v5508 = vrcp.pop 512.0
      %s5509 = vtos %v5508
      %s5510 = smul.f32 %s5507, %s5509
      %s5511 = sadd.f32 %s5510, 1e-05
      %v5512 = vstv %s5511
      %v5513 = vrsqrt.pop %v5512
      %s5514 = vtos %v5513
      %v5515 = vstv %s5514
      %v5516 = vmul.f32 %v5492, %v5515
      %v5517 = vmul.f32 %v5493, %v5515
      %v5518 = vmul.f32 %v5516, %v5471
      %v5519 = vmul.f32 %v5517, %v5472
      %v5520 = vadd.f32 %v5518, %v5474
      %v5521 = vadd.f32 %v5519, %v5475
      %v5522 = vld [vmem:[%s15] sm:$0xff]
      %v5523 = vld [vmem:[%s15 + $0x8] sm:$0xff]
      %v5524 = vld [vmem:[%s15 + $0x10] sm:$0xff]
      %v5525 = vld [vmem:[%s15 + $0x18] sm:$0xff]
      %v5526 = vld [vmem:[%s16] sm:$0x1]
      %v5528 = vlaneseq
      %v5529 = vshrl.u32 %v5528, 7
      %v5530 = vsub.s32 0, %v5529
      %v5531 = vrot.slane %v5526, %v5530
      %v5534 = vsel %vm912, %v5520, 0
      %v5537 = vsel %vm912, %v5521, 0
      %5539 = vmatprep.subr.mxu0 0.0
      %5540 = vmatpush1.msra.mxu0 %v5522
      %5541 = vmatprep.subr.mxu0 0.0
      %5542 = vmatpush1.msra.mxu0 %v5523
      %5543 = vmatprep.subr.mxu0 0.0
      %5544 = vmatpush1.msra.mxu0 %v5524
      %5545 = vmatprep.subr.mxu0 0.0
      %5546 = vmatpush1.msra.mxu0 %v5525
      %5547 = vmatprep.subr.mxu0 0.0
      %5548 = vmatpush1.msra.mxu0 0.0
      %5549 = vmatprep.subr.mxu0 0.0
      %5550 = vmatpush1.msra.mxu0 0.0
      %5551 = vmatprep.subr.mxu0 0.0
      %5552 = vmatpush1.msra.mxu0 0.0
      %5553 = vmatprep.subr.mxu0 0.0
      %5554 = vmatpush1.msra.mxu0 0.0
      %5555 = vmatprep.subr.mxu0 0.0
      %5556 = vmatpush1.msra.mxu0 0.0
      %5557 = vmatprep.subr.mxu0 0.0
      %5558 = vmatpush1.msra.mxu0 0.0
      %5559 = vmatprep.subr.mxu0 0.0
      %5560 = vmatpush1.msra.mxu0 0.0
      %5561 = vmatprep.subr.mxu0 0.0
      %5562 = vmatpush1.msra.mxu0 0.0
      %5563 = vmatprep.subr.mxu0 0.0
      %5564 = vmatpush1.msra.mxu0 0.0
      %5565 = vmatprep.subr.mxu0 0.0
      %5566 = vmatpush1.msra.mxu0 0.0
      %5567 = vmatprep.subr.mxu0 0.0
      %5568 = vmatpush1.msra.mxu0 0.0
      %5569 = vmatprep.subr.mxu0 0.0
      %5570 = vmatpush1.msra.mxu0 0.0
      %5571 = vmatprep.subr.mxu0 0.0
      %5572 = vmatpush1.msra.mxu0 0.0
      %5573 = vmatprep.subr.mxu0 0.0
      %5574 = vmatpush1.msra.mxu0 0.0
      %5575 = vmatprep.subr.mxu0 0.0
      %5576 = vmatpush1.msra.mxu0 0.0
      %5577 = vmatprep.subr.mxu0 0.0
      %5578 = vmatpush1.msra.mxu0 0.0
      %5579 = vmatprep.subr.mxu0 0.0
      %5580 = vmatpush1.msra.mxu0 0.0
      %5581 = vmatprep.subr.mxu0 0.0
      %5582 = vmatpush1.msra.mxu0 0.0
      %5583 = vmatprep.subr.mxu0 0.0
      %5584 = vmatpush1.msra.mxu0 0.0
      %5585 = vmatprep.subr.mxu0 0.0
      %5586 = vmatpush1.msra.mxu0 0.0
      %5587 = vmatprep.subr.mxu0 0.0
      %5588 = vmatpush1.msra.mxu0 0.0
      %5589 = vmatprep.subr.mxu0 0.0
      %5590 = vmatpush1.msra.mxu0 0.0
      %5591 = vmatprep.subr.mxu0 0.0
      %5592 = vmatpush1.msra.mxu0 0.0
      %5593 = vmatprep.subr.mxu0 0.0
      %5594 = vmatpush1.msra.mxu0 0.0
      %5595 = vmatprep.subr.mxu0 0.0
      %5596 = vmatpush1.msra.mxu0 0.0
      %5597 = vmatprep.subr.mxu0 0.0
      %5598 = vmatpush1.msra.mxu0 0.0
      %5599 = vmatprep.subr.mxu0 0.0
      %5600 = vmatpush1.msra.mxu0 0.0
      %5601 = vmatprep.subr.mxu0 0.0
      %5602 = vmatpush1.msra.mxu0 0.0
      %5603 = vmatprep.mubr.f32.mxu0 0.0
      %5604 = vmatmul.mubr.f32.gmra.mrb[0].mxu0 %v5534
      %v5605 = vpop.f32.mrb[0].mxu0
      %v5606 = vadd.f32 %v5531, %v5605
      %v5607 = vpop.f32.mrb[0].mxu0
      %5608 = vmatprep.mubr.f32.mxu0 0.0
      %5609 = vmatmul.mubr.f32.gmra.mrb[0].mxu0 %v5537
      %v5610 = vpop.f32.mrb[0].mxu0
      %v5611 = vadd.f32 %v5531, %v5610
      %v5612 = vpop.f32.mrb[0].mxu0
      %5613 = vdwg.mxu0
      %v5614 = vld [vmem:[%s17] sm:$0xff]
      %v5615 = vld [vmem:[%s17 + $0x8] sm:$0xff]
      %s5616 = scalar_lea.vmem %s17, 16
      %v5617 = vld [vmem:[%s5616] sm:$0xff]
      %v5618 = vld [vmem:[%s5616 + $0x8] sm:$0xff]
      %vm5619 = vcmask 277504
      %v5620 = vsel %vm5619, %v5606, 0.0
      %v5621 = vsel %vm5619, %v5611, 0.0
      %v5622 = vadd.f32 %v5620, %v5621
      %5623 = vadd.xlane.f32.xlu0 %v5622
      %v5624 = vpop.xlane.xlu0 %5623
      %v5625 = vrot.slane %v5624, 4
      %v5626 = vadd.f32 %v5624, %v5625
      %v5627 = vrot.slane %v5626, 2
      %v5628 = vadd.f32 %v5626, %v5627
      %v5629 = vrot.slane %v5628, 1
      %v5630 = vadd.f32 %v5628, %v5629
      %s5631 = vtos %v5630
      %v5632 = vrcp.pop 544.0
      %s5633 = vtos %v5632
      %s5634 = smul.f32 %s5631, %s5633
      %v5635 = vstv %s5634
      %v5636 = vsub.f32 %v5606, %v5635
      %v5637 = vsub.f32 %v5611, %v5635
      %v5638 = vmul.f32 %v5636, %v5636
      %v5639 = vmul.f32 %v5637, %v5637
      %v5640 = vsel %vm5619, %v5638, 0.0
      %v5641 = vsel %vm5619, %v5639, 0.0
      %v5642 = vadd.f32 %v5640, %v5641
      %5643 = vadd.xlane.f32.xlu0 %v5642
      %v5644 = vpop.xlane.xlu0 %5643
      %v5645 = vrot.slane %v5644, 4
      %v5646 = vadd.f32 %v5644, %v5645
      %v5647 = vrot.slane %v5646, 2
      %v5648 = vadd.f32 %v5646, %v5647
      %v5649 = vrot.slane %v5648, 1
      %v5650 = vadd.f32 %v5648, %v5649
      %s5651 = vtos %v5650
      %v5652 = vrcp.pop 544.0
      %s5653 = vtos %v5652
      %s5654 = smul.f32 %s5651, %s5653
      %s5655 = sadd.f32 %s5654, 1e-05
      %v5656 = vstv %s5655
      %v5657 = vrsqrt.pop %v5656
      %s5658 = vtos %v5657
      %v5659 = vstv %s5658
      %v5660 = vmul.f32 %v5636, %v5659
      %v5661 = vmul.f32 %v5637, %v5659
      %v5662 = vmul.f32 %v5660, %v5614
      %v5663 = vmul.f32 %v5661, %v5615
      %v5664 = vadd.f32 %v5662, %v5617
      %v5665 = vadd.f32 %v5663, %v5618
      %v5666 = vtanh.pop %v5664
      %v5667 = vtanh.pop %v5665
      %5668 = vst.msk [vmem:[%s786] sm:$0xff] %vm5619, %v5666
      %5669 = vst.msk [vmem:[%s786 + $0x8] sm:$0xff] %vm5619, %v5667
      %v5670 = vld [vmem:[%s18] sm:$0xff]
      %v5671 = vld [vmem:[%s18 + $0x8] sm:$0xff]
      %v5672 = vld [vmem:[%s18 + $0x10] sm:$0xff]
      %v5673 = vld [vmem:[%s18 + $0x18] sm:$0xff]
      %v5674 = vld [vmem:[%s19] sm:$0x1]
      %v5675 = vlaneseq
      %v5676 = vshrl.u32 %v5675, 7
      %v5677 = vsub.s32 0, %v5676
      %v5678 = vrot.slane %v5674, %v5677
      %5679 = vrot.lane.b32.xlu0 %v5208, 96
      %v5680 = vpop.permute.xlu0 %5679
      %5681 = vrot.lane.b32.xlu0 %v5209, 96
      %v5682 = vpop.permute.xlu0 %5681
      %v5683 = vsel %vm912, %v5680, 0
      %v5685 = vsel %vm912, %v5682, 0
      %5687 = vmatprep.subr.mxu0 0.0
      %5688 = vmatpush1.msra.mxu0 %v5670
      %5689 = vmatprep.subr.mxu0 0.0
      %5690 = vmatpush1.msra.mxu0 %v5671
      %5691 = vmatprep.subr.mxu0 0.0
      %5692 = vmatpush1.msra.mxu0 %v5672
      %5693 = vmatprep.subr.mxu0 0.0
      %5694 = vmatpush1.msra.mxu0 %v5673
      %5695 = vmatprep.subr.mxu0 0.0
      %5696 = vmatpush1.msra.mxu0 0.0
      %5697 = vmatprep.subr.mxu0 0.0
      %5698 = vmatpush1.msra.mxu0 0.0
      %5699 = vmatprep.subr.mxu0 0.0
      %5700 = vmatpush1.msra.mxu0 0.0
      %5701 = vmatprep.subr.mxu0 0.0
      %5702 = vmatpush1.msra.mxu0 0.0
      %5703 = vmatprep.subr.mxu0 0.0
      %5704 = vmatpush1.msra.mxu0 0.0
      %5705 = vmatprep.subr.mxu0 0.0
      %5706 = vmatpush1.msra.mxu0 0.0
      %5707 = vmatprep.subr.mxu0 0.0
      %5708 = vmatpush1.msra.mxu0 0.0
      %5709 = vmatprep.subr.mxu0 0.0
      %5710 = vmatpush1.msra.mxu0 0.0
      %5711 = vmatprep.subr.mxu0 0.0
      %5712 = vmatpush1.msra.mxu0 0.0
      %5713 = vmatprep.subr.mxu0 0.0
      %5714 = vmatpush1.msra.mxu0 0.0
      %5715 = vmatprep.subr.mxu0 0.0
      %5716 = vmatpush1.msra.mxu0 0.0
      %5717 = vmatprep.subr.mxu0 0.0
      %5718 = vmatpush1.msra.mxu0 0.0
      %5719 = vmatprep.subr.mxu0 0.0
      %5720 = vmatpush1.msra.mxu0 0.0
      %5721 = vmatprep.subr.mxu0 0.0
      %5722 = vmatpush1.msra.mxu0 0.0
      %5723 = vmatprep.subr.mxu0 0.0
      %5724 = vmatpush1.msra.mxu0 0.0
      %5725 = vmatprep.subr.mxu0 0.0
      %5726 = vmatpush1.msra.mxu0 0.0
      %5727 = vmatprep.subr.mxu0 0.0
      %5728 = vmatpush1.msra.mxu0 0.0
      %5729 = vmatprep.subr.mxu0 0.0
      %5730 = vmatpush1.msra.mxu0 0.0
      %5731 = vmatprep.subr.mxu0 0.0
      %5732 = vmatpush1.msra.mxu0 0.0
      %5733 = vmatprep.subr.mxu0 0.0
      %5734 = vmatpush1.msra.mxu0 0.0
      %5735 = vmatprep.subr.mxu0 0.0
      %5736 = vmatpush1.msra.mxu0 0.0
      %5737 = vmatprep.subr.mxu0 0.0
      %5738 = vmatpush1.msra.mxu0 0.0
      %5739 = vmatprep.subr.mxu0 0.0
      %5740 = vmatpush1.msra.mxu0 0.0
      %5741 = vmatprep.subr.mxu0 0.0
      %5742 = vmatpush1.msra.mxu0 0.0
      %5743 = vmatprep.subr.mxu0 0.0
      %5744 = vmatpush1.msra.mxu0 0.0
      %5745 = vmatprep.subr.mxu0 0.0
      %5746 = vmatpush1.msra.mxu0 0.0
      %5747 = vmatprep.subr.mxu0 0.0
      %5748 = vmatpush1.msra.mxu0 0.0
      %5749 = vmatprep.subr.mxu0 0.0
      %5750 = vmatpush1.msra.mxu0 0.0
      %5751 = vmatprep.mubr.f32.mxu0 0.0
      %5752 = vmatmul.mubr.f32.gmra.mrb[0].mxu0 %v5683
      %v5753 = vpop.f32.mrb[0].mxu0
      %v5754 = vadd.f32 %v5678, %v5753
      %v5755 = vpop.f32.mrb[0].mxu0
      %5756 = vmatprep.mubr.f32.mxu0 0.0
      %5757 = vmatmul.mubr.f32.gmra.mrb[0].mxu0 %v5685
      %v5758 = vpop.f32.mrb[0].mxu0
      %v5759 = vadd.f32 %v5678, %v5758
      %v5760 = vpop.f32.mrb[0].mxu0
      %5761 = vdwg.mxu0
      %v5762 = vxor.u32 %v5754, 2147483648
      %v5763 = vxor.u32 %v5759, 2147483648
      %v5764 = vmul.f32 %v5762, 1.442695
      %v5765 = vpow.pop %v5764
      %v5766 = vmul.f32 %v5763, 1.442695
      %v5767 = vpow.pop %v5766
      %v5768 = vadd.f32 %v5765, 1.0
      %v5769 = vadd.f32 %v5767, 1.0
      %v5770 = vrcp.pop %v5768
      %v5771 = vmul.f32 1.0, %v5770
      %v5772 = vrcp.pop %v5769
      %v5773 = vmul.f32 1.0, %v5772
      %v5774 = vmul.f32 %v5754, %v5771
      %v5775 = vmul.f32 %v5759, %v5773
      %v5776 = vld [vmem:[%s20] sm:$0xff]
      %v5777 = vld [vmem:[%s20 + $0x8] sm:$0xff]
      %s5778 = scalar_lea.vmem %s20, 16
      %v5779 = vld [vmem:[%s5778] sm:$0xff]
      %v5780 = vld [vmem:[%s5778 + $0x8] sm:$0xff]
      %v5781 = vsel %vm912, %v5774, 0.0
      %v5782 = vsel %vm912, %v5775, 0.0
      %v5783 = vadd.f32 %v5781, %v5782
      %5784 = vadd.xlane.f32.xlu0 %v5783
      %v5785 = vpop.xlane.xlu0 %5784
      %v5786 = vrot.slane %v5785, 4
      %v5787 = vadd.f32 %v5785, %v5786
      %v5788 = vrot.slane %v5787, 2
      %v5789 = vadd.f32 %v5787, %v5788
      %v5790 = vrot.slane %v5789, 1
      %v5791 = vadd.f32 %v5789, %v5790
      %s5792 = vtos %v5791
      %v5793 = vrcp.pop 512.0
      %s5794 = vtos %v5793
      %s5795 = smul.f32 %s5792, %s5794
      %v5796 = vstv %s5795
      %v5797 = vsub.f32 %v5774, %v5796
      %v5798 = vsub.f32 %v5775, %v5796
      %v5799 = vmul.f32 %v5797, %v5797
      %v5800 = vmul.f32 %v5798, %v5798
      %v5801 = vsel %vm912, %v5799, 0.0
      %v5802 = vsel %vm912, %v5800, 0.0
      %v5803 = vadd.f32 %v5801, %v5802
      %5804 = vadd.xlane.f32.xlu0 %v5803
      %v5805 = vpop.xlane.xlu0 %5804
      %v5806 = vrot.slane %v5805, 4
      %v5807 = vadd.f32 %v5805, %v5806
      %v5808 = vrot.slane %v5807, 2
      %v5809 = vadd.f32 %v5807, %v5808
      %v5810 = vrot.slane %v5809, 1
      %v5811 = vadd.f32 %v5809, %v5810
      %s5812 = vtos %v5811
      %v5813 = vrcp.pop 512.0
      %s5814 = vtos %v5813
      %s5815 = smul.f32 %s5812, %s5814
      %s5816 = sadd.f32 %s5815, 1e-05
      %v5817 = vstv %s5816
      %v5818 = vrsqrt.pop %v5817
      %s5819 = vtos %v5818
      %v5820 = vstv %s5819
      %v5821 = vmul.f32 %v5797, %v5820
      %v5822 = vmul.f32 %v5798, %v5820
      %v5823 = vmul.f32 %v5821, %v5776
      %v5824 = vmul.f32 %v5822, %v5777
      %v5825 = vadd.f32 %v5823, %v5779
      %v5826 = vadd.f32 %v5824, %v5780
      %s5827 = scalar_lea.vmem %s18, 32
      %v5828 = vld [vmem:[%s5827] sm:$0xff]
      %v5829 = vld [vmem:[%s5827 + $0x8] sm:$0xff]
      %v5830 = vld [vmem:[%s5827 + $0x10] sm:$0xff]
      %v5831 = vld [vmem:[%s5827 + $0x18] sm:$0xff]
      %v5832 = vld [vmem:[%s19 + $0x1] sm:$0x1]
      %v5833 = vlaneseq
      %v5834 = vshrl.u32 %v5833, 7
      %v5835 = vsub.s32 0, %v5834
      %v5836 = vrot.slane %v5832, %v5835
      %v5838 = vsel %vm912, %v5825, 0
      %v5841 = vsel %vm912, %v5826, 0
      %5843 = vmatprep.subr.mxu0 0.0
      %5844 = vmatpush1.msra.mxu0 %v5828
      %5845 = vmatprep.subr.mxu0 0.0
      %5846 = vmatpush1.msra.mxu0 %v5829
      %5847 = vmatprep.subr.mxu0 0.0
      %5848 = vmatpush1.msra.mxu0 %v5830
      %5849 = vmatprep.subr.mxu0 0.0
      %5850 = vmatpush1.msra.mxu0 %v5831
      %5851 = vmatprep.subr.mxu0 0.0
      %5852 = vmatpush1.msra.mxu0 0.0
      %5853 = vmatprep.subr.mxu0 0.0
      %5854 = vmatpush1.msra.mxu0 0.0
      %5855 = vmatprep.subr.mxu0 0.0
      %5856 = vmatpush1.msra.mxu0 0.0
      %5857 = vmatprep.subr.mxu0 0.0
      %5858 = vmatpush1.msra.mxu0 0.0
      %5859 = vmatprep.subr.mxu0 0.0
      %5860 = vmatpush1.msra.mxu0 0.0
      %5861 = vmatprep.subr.mxu0 0.0
      %5862 = vmatpush1.msra.mxu0 0.0
      %5863 = vmatprep.subr.mxu0 0.0
      %5864 = vmatpush1.msra.mxu0 0.0
      %5865 = vmatprep.subr.mxu0 0.0
      %5866 = vmatpush1.msra.mxu0 0.0
      %5867 = vmatprep.subr.mxu0 0.0
      %5868 = vmatpush1.msra.mxu0 0.0
      %5869 = vmatprep.subr.mxu0 0.0
      %5870 = vmatpush1.msra.mxu0 0.0
      %5871 = vmatprep.subr.mxu0 0.0
      %5872 = vmatpush1.msra.mxu0 0.0
      %5873 = vmatprep.subr.mxu0 0.0
      %5874 = vmatpush1.msra.mxu0 0.0
      %5875 = vmatprep.subr.mxu0 0.0
      %5876 = vmatpush1.msra.mxu0 0.0
      %5877 = vmatprep.subr.mxu0 0.0
      %5878 = vmatpush1.msra.mxu0 0.0
      %5879 = vmatprep.subr.mxu0 0.0
      %5880 = vmatpush1.msra.mxu0 0.0
      %5881 = vmatprep.subr.mxu0 0.0
      %5882 = vmatpush1.msra.mxu0 0.0
      %5883 = vmatprep.subr.mxu0 0.0
      %5884 = vmatpush1.msra.mxu0 0.0
      %5885 = vmatprep.subr.mxu0 0.0
      %5886 = vmatpush1.msra.mxu0 0.0
      %5887 = vmatprep.subr.mxu0 0.0
      %5888 = vmatpush1.msra.mxu0 0.0
      %5889 = vmatprep.subr.mxu0 0.0
      %5890 = vmatpush1.msra.mxu0 0.0
      %5891 = vmatprep.subr.mxu0 0.0
      %5892 = vmatpush1.msra.mxu0 0.0
      %5893 = vmatprep.subr.mxu0 0.0
      %5894 = vmatpush1.msra.mxu0 0.0
      %5895 = vmatprep.subr.mxu0 0.0
      %5896 = vmatpush1.msra.mxu0 0.0
      %5897 = vmatprep.subr.mxu0 0.0
      %5898 = vmatpush1.msra.mxu0 0.0
      %5899 = vmatprep.subr.mxu0 0.0
      %5900 = vmatpush1.msra.mxu0 0.0
      %5901 = vmatprep.subr.mxu0 0.0
      %5902 = vmatpush1.msra.mxu0 0.0
      %5903 = vmatprep.subr.mxu0 0.0
      %5904 = vmatpush1.msra.mxu0 0.0
      %5905 = vmatprep.subr.mxu0 0.0
      %5906 = vmatpush1.msra.mxu0 0.0
      %5907 = vmatprep.mubr.f32.mxu0 0.0
      %5908 = vmatmul.mubr.f32.gmra.mrb[0].mxu0 %v5838
      %v5909 = vpop.f32.mrb[0].mxu0
      %v5910 = vadd.f32 %v5836, %v5909
      %v5911 = vpop.f32.mrb[0].mxu0
      %5912 = vmatprep.mubr.f32.mxu0 0.0
      %5913 = vmatmul.mubr.f32.gmra.mrb[0].mxu0 %v5841
      %v5914 = vpop.f32.mrb[0].mxu0
      %v5915 = vadd.f32 %v5836, %v5914
      %v5916 = vpop.f32.mrb[0].mxu0
      %5917 = vdwg.mxu0
      %v5918 = vxor.u32 %v5910, 2147483648
      %v5919 = vxor.u32 %v5915, 2147483648
      %v5920 = vmul.f32 %v5918, 1.442695
      %v5921 = vpow.pop %v5920
      %v5922 = vmul.f32 %v5919, 1.442695
      %v5923 = vpow.pop %v5922
      %v5924 = vadd.f32 %v5921, 1.0
      %v5925 = vadd.f32 %v5923, 1.0
      %v5926 = vrcp.pop %v5924
      %v5927 = vmul.f32 1.0, %v5926
      %v5928 = vrcp.pop %v5925
      %v5929 = vmul.f32 1.0, %v5928
      %v5930 = vmul.f32 %v5910, %v5927
      %v5931 = vmul.f32 %v5915, %v5929
      %s5932 = scalar_lea.vmem %s20, 32
      %v5933 = vld [vmem:[%s5932] sm:$0xff]
      %v5934 = vld [vmem:[%s5932 + $0x8] sm:$0xff]
      %s5935 = scalar_lea.vmem %s20, 48
      %v5936 = vld [vmem:[%s5935] sm:$0xff]
      %v5937 = vld [vmem:[%s5935 + $0x8] sm:$0xff]
      %v5938 = vsel %vm912, %v5930, 0.0
      %v5939 = vsel %vm912, %v5931, 0.0
      %v5940 = vadd.f32 %v5938, %v5939
      %5941 = vadd.xlane.f32.xlu0 %v5940
      %v5942 = vpop.xlane.xlu0 %5941
      %v5943 = vrot.slane %v5942, 4
      %v5944 = vadd.f32 %v5942, %v5943
      %v5945 = vrot.slane %v5944, 2
      %v5946 = vadd.f32 %v5944, %v5945
      %v5947 = vrot.slane %v5946, 1
      %v5948 = vadd.f32 %v5946, %v5947
      %s5949 = vtos %v5948
      %v5950 = vrcp.pop 512.0
      %s5951 = vtos %v5950
      %s5952 = smul.f32 %s5949, %s5951
      %v5953 = vstv %s5952
      %v5954 = vsub.f32 %v5930, %v5953
      %v5955 = vsub.f32 %v5931, %v5953
      %v5956 = vmul.f32 %v5954, %v5954
      %v5957 = vmul.f32 %v5955, %v5955
      %v5958 = vsel %vm912, %v5956, 0.0
      %v5959 = vsel %vm912, %v5957, 0.0
      %v5960 = vadd.f32 %v5958, %v5959
      %5961 = vadd.xlane.f32.xlu0 %v5960
      %v5962 = vpop.xlane.xlu0 %5961
      %v5963 = vrot.slane %v5962, 4
      %v5964 = vadd.f32 %v5962, %v5963
      %v5965 = vrot.slane %v5964, 2
      %v5966 = vadd.f32 %v5964, %v5965
      %v5967 = vrot.slane %v5966, 1
      %v5968 = vadd.f32 %v5966, %v5967
      %s5969 = vtos %v5968
      %v5970 = vrcp.pop 512.0
      %s5971 = vtos %v5970
      %s5972 = smul.f32 %s5969, %s5971
      %s5973 = sadd.f32 %s5972, 1e-05
      %v5974 = vstv %s5973
      %v5975 = vrsqrt.pop %v5974
      %s5976 = vtos %v5975
      %v5977 = vstv %s5976
      %v5978 = vmul.f32 %v5954, %v5977
      %v5979 = vmul.f32 %v5955, %v5977
      %v5980 = vmul.f32 %v5978, %v5933
      %v5981 = vmul.f32 %v5979, %v5934
      %v5982 = vadd.f32 %v5980, %v5936
      %v5983 = vadd.f32 %v5981, %v5937
      %v5984 = vld [vmem:[%s21] sm:$0xff]
      %v5985 = vld [vmem:[%s21 + $0x8] sm:$0xff]
      %v5986 = vld [vmem:[%s21 + $0x10] sm:$0xff]
      %v5987 = vld [vmem:[%s21 + $0x18] sm:$0xff]
      %v5988 = vld [vmem:[%s22] sm:$0x1]
      %v5990 = vlaneseq
      %v5991 = vshrl.u32 %v5990, 7
      %v5992 = vsub.s32 0, %v5991
      %v5993 = vrot.slane %v5988, %v5992
      %v5996 = vsel %vm912, %v5982, 0
      %v5999 = vsel %vm912, %v5983, 0
      %6001 = vmatprep.subr.mxu0 0.0
      %6002 = vmatpush1.msra.mxu0 %v5984
      %6003 = vmatprep.subr.mxu0 0.0
      %6004 = vmatpush1.msra.mxu0 %v5985
      %6005 = vmatprep.subr.mxu0 0.0
      %6006 = vmatpush1.msra.mxu0 %v5986
      %6007 = vmatprep.subr.mxu0 0.0
      %6008 = vmatpush1.msra.mxu0 %v5987
      %6009 = vmatprep.subr.mxu0 0.0
      %6010 = vmatpush1.msra.mxu0 0.0
      %6011 = vmatprep.subr.mxu0 0.0
      %6012 = vmatpush1.msra.mxu0 0.0
      %6013 = vmatprep.subr.mxu0 0.0
      %6014 = vmatpush1.msra.mxu0 0.0
      %6015 = vmatprep.subr.mxu0 0.0
      %6016 = vmatpush1.msra.mxu0 0.0
      %6017 = vmatprep.subr.mxu0 0.0
      %6018 = vmatpush1.msra.mxu0 0.0
      %6019 = vmatprep.subr.mxu0 0.0
      %6020 = vmatpush1.msra.mxu0 0.0
      %6021 = vmatprep.subr.mxu0 0.0
      %6022 = vmatpush1.msra.mxu0 0.0
      %6023 = vmatprep.subr.mxu0 0.0
      %6024 = vmatpush1.msra.mxu0 0.0
      %6025 = vmatprep.subr.mxu0 0.0
      %6026 = vmatpush1.msra.mxu0 0.0
      %6027 = vmatprep.subr.mxu0 0.0
      %6028 = vmatpush1.msra.mxu0 0.0
      %6029 = vmatprep.subr.mxu0 0.0
      %6030 = vmatpush1.msra.mxu0 0.0
      %6031 = vmatprep.subr.mxu0 0.0
      %6032 = vmatpush1.msra.mxu0 0.0
      %6033 = vmatprep.subr.mxu0 0.0
      %6034 = vmatpush1.msra.mxu0 0.0
      %6035 = vmatprep.subr.mxu0 0.0
      %6036 = vmatpush1.msra.mxu0 0.0
      %6037 = vmatprep.subr.mxu0 0.0
      %6038 = vmatpush1.msra.mxu0 0.0
      %6039 = vmatprep.subr.mxu0 0.0
      %6040 = vmatpush1.msra.mxu0 0.0
      %6041 = vmatprep.subr.mxu0 0.0
      %6042 = vmatpush1.msra.mxu0 0.0
      %6043 = vmatprep.subr.mxu0 0.0
      %6044 = vmatpush1.msra.mxu0 0.0
      %6045 = vmatprep.subr.mxu0 0.0
      %6046 = vmatpush1.msra.mxu0 0.0
      %6047 = vmatprep.subr.mxu0 0.0
      %6048 = vmatpush1.msra.mxu0 0.0
      %6049 = vmatprep.subr.mxu0 0.0
      %6050 = vmatpush1.msra.mxu0 0.0
      %6051 = vmatprep.subr.mxu0 0.0
      %6052 = vmatpush1.msra.mxu0 0.0
      %6053 = vmatprep.subr.mxu0 0.0
      %6054 = vmatpush1.msra.mxu0 0.0
      %6055 = vmatprep.subr.mxu0 0.0
      %6056 = vmatpush1.msra.mxu0 0.0
      %6057 = vmatprep.subr.mxu0 0.0
      %6058 = vmatpush1.msra.mxu0 0.0
      %6059 = vmatprep.subr.mxu0 0.0
      %6060 = vmatpush1.msra.mxu0 0.0
      %6061 = vmatprep.subr.mxu0 0.0
      %6062 = vmatpush1.msra.mxu0 0.0
      %6063 = vmatprep.subr.mxu0 0.0
      %6064 = vmatpush1.msra.mxu0 0.0
      %6065 = vmatprep.mubr.f32.mxu0 0.0
      %6066 = vmatmul.mubr.f32.gmra.mrb[0].mxu0 %v5996
      %v6067 = vpop.f32.mrb[0].mxu0
      %v6068 = vadd.f32 %v5993, %v6067
      %v6069 = vpop.f32.mrb[0].mxu0
      %6070 = vmatprep.mubr.f32.mxu0 0.0
      %6071 = vmatmul.mubr.f32.gmra.mrb[0].mxu0 %v5999
      %v6072 = vpop.f32.mrb[0].mxu0
      %v6073 = vadd.f32 %v5993, %v6072
      %v6074 = vpop.f32.mrb[0].mxu0
      %6075 = vdwg.mxu0
      %v6076 = vld [vmem:[%s23] sm:$0xff]
      %v6077 = vld [vmem:[%s23 + $0x8] sm:$0xff]
      %s6078 = scalar_lea.vmem %s23, 16
      %v6079 = vld [vmem:[%s6078] sm:$0xff]
      %v6080 = vld [vmem:[%s6078 + $0x8] sm:$0xff]
      %vm6081 = vcmask 31744
      %v6082 = vsel %vm6081, %v6068, 0.0
      %v6083 = vsel %vm6081, %v6073, 0.0
      %v6084 = vadd.f32 %v6082, %v6083
      %6085 = vadd.xlane.f32.xlu0 %v6084
      %v6086 = vpop.xlane.xlu0 %6085
      %v6087 = vrot.slane %v6086, 4
      %v6088 = vadd.f32 %v6086, %v6087
      %v6089 = vrot.slane %v6088, 2
      %v6090 = vadd.f32 %v6088, %v6089
      %v6091 = vrot.slane %v6090, 1
      %v6092 = vadd.f32 %v6090, %v6091
      %s6093 = vtos %v6092
      %v6094 = vrcp.pop 64.0
      %s6095 = vtos %v6094
      %s6096 = smul.f32 %s6093, %s6095
      %v6097 = vstv %s6096
      %v6098 = vsub.f32 %v6068, %v6097
      %v6099 = vsub.f32 %v6073, %v6097
      %v6100 = vmul.f32 %v6098, %v6098
      %v6101 = vmul.f32 %v6099, %v6099
      %v6102 = vsel %vm6081, %v6100, 0.0
      %v6103 = vsel %vm6081, %v6101, 0.0
      %v6104 = vadd.f32 %v6102, %v6103
      %6105 = vadd.xlane.f32.xlu0 %v6104
      %v6106 = vpop.xlane.xlu0 %6105
      %v6107 = vrot.slane %v6106, 4
      %v6108 = vadd.f32 %v6106, %v6107
      %v6109 = vrot.slane %v6108, 2
      %v6110 = vadd.f32 %v6108, %v6109
      %v6111 = vrot.slane %v6110, 1
      %v6112 = vadd.f32 %v6110, %v6111
      %s6113 = vtos %v6112
      %v6114 = vrcp.pop 64.0
      %s6115 = vtos %v6114
      %s6116 = smul.f32 %s6113, %s6115
      %s6117 = sadd.f32 %s6116, 1e-05
      %v6118 = vstv %s6117
      %v6119 = vrsqrt.pop %v6118
      %s6120 = vtos %v6119
      %v6121 = vstv %s6120
      %v6122 = vmul.f32 %v6098, %v6121
      %v6123 = vmul.f32 %v6099, %v6121
      %v6124 = vmul.f32 %v6122, %v6076
      %v6125 = vmul.f32 %v6123, %v6077
      %v6126 = vadd.f32 %v6124, %v6079
      %v6127 = vadd.f32 %v6125, %v6080
      %v6128 = vtanh.pop %v6126
      %v6129 = vtanh.pop %v6127
      %6130 = vst.msk [vmem:[%s791] sm:$0xff] %vm6081, %v6128
      %6131 = vst.msk [vmem:[%s791 + $0x8] sm:$0xff] %vm6081, %v6129
      %p6132 = scmp.lt.s32.totalorder %s37, 1
      %s6133 = scalar_select %p6132, %s37, 1
      %s6134 = smul.addr %s6133, 2
      %s6135 = smul.addr %s6134, 8
      %s6136 = scalar_lea.vmem %s24, %s6135
      %p6137 = scmp.lt.s32.totalorder %s37, 1
      %s6138 = scalar_select %p6137, %s37, 1
      %s6139 = smul.addr %s6138, 2
      %s6140 = smul.addr %s6139, 8
      %s6141 = scalar_lea.vmem %s25, %s6140
      // Predicated region
      $region117: #{_lambda_.1} parent=115 // pred_check
        %p6142 = pneg %p569
      $region118: #{_lambda_.1} parent=115 // pred_check_branch
        %6144 = sbr.rel (%p6142) target = $region120
      $region119: #{_lambda_.1} parent=115 // pred_region
        _
      $region120: #{_lambda_.1} parent=115 // pred_fallthru
        _
      // Predicated region
      $region121: #{_lambda_.1} parent=115 // pred_check
        %p6145 = pneg %p595
      $region122: #{_lambda_.1} parent=115 // pred_check_branch
        %6147 = sbr.rel (%p6145) target = $region124
      $region123: #{_lambda_.1} parent=115 // pred_region
        _
      $region124: #{_lambda_.1} parent=115 // pred_fallthru
        _
    $region116: #{_lambda_.1} parent=5 // pred_fallthru
      _
    %p6148 = scmp.le.s32.totalorder 2, %s32
    // Predicated region
    $region125: #{_lambda_.1} parent=5 // pred_check
      %p6149 = pneg %p6148
    $region126: #{_lambda_.1} parent=5 // pred_check_branch
      %6151 = sbr.rel (%p6149) target = $region128
    $region127: #{_lambda_.1} parent=5 // pred_region
      %s6152 = ssub.s32 %s32, 2
      // Predicated region
      $region129: #{_lambda_.1} parent=127 // pred_check
        %p6153 = pneg %p575
      $region130: #{_lambda_.1} parent=127 // pred_check_branch
        %6155 = sbr.rel (%p6153) target = $region132
      $region131: #{_lambda_.1} parent=127 // pred_region
        %p6156 = scmp.lt.s32.totalorder %s38, 1
        %s6157 = scalar_select %p6156, %s38, 1
        %s6158 = smul.addr %s6157, 2
        %s6159 = smul.addr %s6158, 8
        %s6160 = scalar_lea.vmem %s24, %s6159
      $region132: #{_lambda_.1} parent=127 // pred_fallthru
        _
      // Predicated region
      $region133: #{_lambda_.1} parent=127 // pred_check
        %p6161 = pneg %p601
      $region134: #{_lambda_.1} parent=127 // pred_check_branch
        %6163 = sbr.rel (%p6161) target = $region136
      $region135: #{_lambda_.1} parent=127 // pred_region
        %p6164 = scmp.lt.s32.totalorder %s38, 1
        %s6165 = scalar_select %p6164, %s38, 1
        %s6166 = smul.addr %s6165, 2
        %s6167 = smul.addr %s6166, 8
        %s6168 = scalar_lea.vmem %s25, %s6167
      $region136: #{_lambda_.1} parent=127 // pred_fallthru
        _
    $region128: #{_lambda_.1} parent=5 // pred_fallthru
      _
  $region6: #{_lambda_.1} parent=0 // loop_footer
    %s36 = sadd.s32 1, %s32
  $region7: #{_lambda_.1} parent=0 // loop_footer_branch
    %31 = sbr.rel target = $region3
  $region8: #{_lambda_.1} parent=0 // loop_exit
    _

</llo_original>
